<compile_context>
chip_gen: v6e
topology: v6e:2x2x1
jax: 0.10.0
libtpu: 0.0.40
codegen_flags: <defaults>
</compile_context>

<pallas_src>
import jax
import jax.numpy as jnp
from jax.experimental import pallas as pl
from jax.experimental.pallas import tpu as pltpu

AUDIO_DIM = 23
LM_FRAMES = 250
LM_FEAT = 3 * 20                 # 60
LM_FLAT = LM_FRAMES * LM_FEAT    # 15000
HIDDEN = 128
NUM_CLASSES = 2
BN_EPS = 1e-5


def _mlp_kernel(bias_ref, land_ref, w1l_ref, w2_ref, b2_ref, out_ref):
    # pool + BN + first-linear (landmark part), all folded into one MXU matmul
    h = jnp.dot(land_ref[...], w1l_ref[...],
                preferred_element_type=jnp.float32)            # (block_b, 128) f32
    # add precomputed audio @ W1a' + b1' per-row bias; ReLU
    # (Dropout(0.2) is identity in eval mode)
    h = jnp.maximum(h + bias_ref[...], 0.0)
    # final linear -> (block_b, 2)
    out = jnp.dot(h, w2_ref[...], preferred_element_type=jnp.float32) + b2_ref[...]
    out_ref[...] = out.astype(out_ref.dtype)


def fold_params(params, *, landmark_dtype=jnp.bfloat16):
    """One-time parameter prep (call when params change, NOT per forward):
    folds eval-mode BatchNorm into the first linear and the 250-frame mean
    pool into an expanded (15000, 128) landmark weight."""
    scale = params["gamma"] * jax.lax.rsqrt(params["run_var"] + BN_EPS)      # (1,128)
    w1a = (params["w1_audio"] * scale).astype(jnp.float32)                   # (23,128)
    b1 = ((params["b1"] - params["run_mean"]) * scale
          + params["beta"]).astype(jnp.float32)                              # (1,128)
    # land_flat[b, frame*60 + f] pairs with w1_land[f] / 250 -> tile down frames
    w1l = params["w1_land"] * scale                                          # (60,128)
    w1l_exp = (jnp.tile(w1l, (LM_FRAMES, 1)) / LM_FRAMES).astype(landmark_dtype)
    return {
        "w1_audio": w1a,                      # (23, 128)  f32
        "b1": b1,                             # (1, 128)   f32
        "w1_land_exp": w1l_exp,               # (15000, 128) landmark_dtype
        "w2": params["w2"].astype(jnp.float32),
        "b2": params["b2"].astype(jnp.float32),
    }


def _pick_block_b(B, block_b):
    if B <= 8:
        return B                              # one tile; block dim == array dim is legal
    block_b = max(8, min(block_b, B))
    block_b = (block_b // 8) * 8
    # keep >= 2 grid steps when B allows, so both v7x TensorCores get work
    two_step = ((pl.cdiv(B, 2) + 7) // 8) * 8
    return max(8, min(block_b, two_step))


def mlp_forward(audio, landmarks, folded, *, block_b=None):
    """audio: (B, 23); landmarks: (B, 250, 3, 20) (ideally already bf16);
    folded: output of fold_params().  Returns (B, 2) f32 logits."""
    B = audio.shape[0]
    land_dtype = folded["w1_land_exp"].dtype

    # Lane-dense landmark slab (B, 15000): free, contiguous reshape.
    land_flat = landmarks.reshape(B, LM_FLAT)
    if land_flat.dtype != land_dtype:
        # TODO(synk): store/produce landmarks in bf16 upstream; this cast is an
        # extra HBM pass over the dominant tensor and should be fused away.
        land_flat = land_flat.astype(land_dtype)

    # Tiny audio branch precomputed in XLA: (B, 128) per-row bias.
    row_bias = audio.astype(jnp.float32) @ folded["w1_audio"] + folded["b1"]

    if block_b is None:
        block_b = 512 if land_dtype == jnp.bfloat16 else 256
    block_b = _pick_block_b(B, block_b)
    grid = (pl.cdiv(B, block_b),)             # ragged last block handled by Pallas

    # VMEM budget: double-buffered batch blocks + (double-buffered) resident
    # weights + headroom; stays well under v7x's 64 MiB at the bf16 defaults.
    land_itemsize = jnp.dtype(land_dtype).itemsize
    vmem_need = (2 * block_b * LM_FLAT * land_itemsize       # landmark double buffer
                 + 2 * block_b * HIDDEN * 4                  # row-bias double buffer
                 + 2 * LM_FLAT * HIDDEN * land_itemsize      # resident weight buffers
                 + 2 * block_b * NUM_CLASSES * 4             # output double buffer
                 + 2 * (HIDDEN + 1) * NUM_CLASSES * 4)       # w2 / b2
    vmem_limit = int(min(vmem_need + (8 << 20), 100 << 20))

    batch_spec = lambda cols: pl.BlockSpec((block_b, cols), lambda i: (i, 0))
    resident = lambda shape: pl.BlockSpec(shape, lambda i: (0, 0))

    return pl.pallas_call(
        _mlp_kernel,
        out_shape=jax.ShapeDtypeStruct((B, NUM_CLASSES), jnp.float32),
        grid=grid,
        in_specs=[
            batch_spec(HIDDEN),                   # row bias     (block_b, 128) f32
            batch_spec(LM_FLAT),                  # landmarks    (block_b, 15000)
            resident((LM_FLAT, HIDDEN)),          # w1_land_exp  (15000, 128)
            resident((HIDDEN, NUM_CLASSES)),      # w2           (128, 2)
            resident((1, NUM_CLASSES)),           # b2           (1, 2)
        ],
        out_specs=batch_spec(NUM_CLASSES),        # out          (block_b, 2)
        compiler_params=pltpu.CompilerParams(
            dimension_semantics=("parallel",),    # shard batch across TCs (v7x)
            vmem_limit_bytes=vmem_limit,
        ),
    )(row_bias, land_flat, folded["w1_land_exp"], folded["w2"], folded["b2"])


def init_params(key):
    """Deterministic init matching the PyTorch module's parameter shapes."""
    k1, k2, k3, k4 = jax.random.split(key, 4)
    in_dim = AUDIO_DIM + LM_FEAT
    bound1 = 1.0 / jnp.sqrt(in_dim)
    bound2 = 1.0 / jnp.sqrt(HIDDEN)
    w1 = jax.random.uniform(k1, (in_dim, HIDDEN), jnp.float32, -bound1, bound1)
    b1 = jax.random.uniform(k2, (1, HIDDEN), jnp.float32, -bound1, bound1)
    w2 = jax.random.uniform(k3, (HIDDEN, NUM_CLASSES), jnp.float32, -bound2, bound2)
    b2 = jax.random.uniform(k4, (1, NUM_CLASSES), jnp.float32, -bound2, bound2)
    return {
        "w1_audio": w1[:AUDIO_DIM],            # (23, 128)
        "w1_land": w1[AUDIO_DIM:],             # (60, 128)
        "b1": b1,                              # (1, 128)
        "gamma": jnp.ones((1, HIDDEN), jnp.float32),
        "beta": jnp.zeros((1, HIDDEN), jnp.float32),
        "run_mean": jnp.zeros((1, HIDDEN), jnp.float32),
        "run_var": jnp.ones((1, HIDDEN), jnp.float32),
        "w2": w2,                              # (128, 2)
        "b2": b2,                              # (1, 2)
    }


def mlp_reference(audio, landmarks, params):
    """Plain-JAX reference matching the PyTorch forward (eval mode), f32."""
    B = audio.shape[0]
    pooled = landmarks.astype(jnp.float32).mean(axis=1).reshape(B, -1)
    fused = jnp.concatenate([audio.astype(jnp.float32), pooled], axis=1)
    w1 = jnp.concatenate([params["w1_audio"], params["w1_land"]], axis=0)
    h = fused @ w1 + params["b1"]
    h = ((h - params["run_mean"])
         / jnp.sqrt(params["run_var"] + BN_EPS)) * params["gamma"] + params["beta"]
    h = jnp.maximum(h, 0.0)
    return h @ params["w2"] + params["b2"]


if __name__ == "__main__":
    key = jax.random.PRNGKey(0)
    kp, ka, kl = jax.random.split(key, 3)

    B = 8
    params = init_params(kp)
    audio = jax.random.normal(ka, (B, AUDIO_DIM), jnp.float32)
    # Landmarks ingested directly in bf16 (zero-cost cast path for the kernel).
    landmarks = jax.random.normal(kl, (B, LM_FRAMES, 3, 20), jnp.bfloat16)

    folded = fold_params(params)                 # one-time weight prep (hoisted)
    out = jax.block_until_ready(mlp_forward(audio, landmarks, folded))

    ref = mlp_reference(audio, landmarks, params)
    assert out.shape == (B, NUM_CLASSES)
    err = float(jnp.max(jnp.abs(out - ref)))
    # tolerance covers bf16 weight/activation quantization on the landmark path
    assert jnp.allclose(out, ref, atol=2e-3, rtol=2e-3), err

    print("KERNEL_OK")
</pallas_src>

<mosaic_0001>
module attributes {stable_mosaic.version = 11 : i64} {
  func.func @_mlp_kernel(%arg0: i32, %arg1: memref<8x128xf32, #tpu.memory_space<vmem>>, %arg2: memref<8x15000xbf16, #tpu.memory_space<vmem>>, %arg3: memref<15000x128xbf16, #tpu.memory_space<vmem>>, %arg4: memref<128x2xf32, #tpu.memory_space<vmem>>, %arg5: memref<1x2xf32, #tpu.memory_space<vmem>>, %arg6: memref<8x2xf32, #tpu.memory_space<vmem>>) attributes {dimension_semantics = [#tpu.dimension_semantics<parallel>], iteration_bounds = array<i64: 1>, scalar_prefetch = 0 : i64, scratch_operands = 0 : i64, tpu.core_type = #tpu.core_type<tc>, window_params = [{transform_indices = @transform_0, window_bounds = array<i64: 8, 128>}, {transform_indices = @transform_1, window_bounds = array<i64: 8, 15000>}, {pipeline_mode = #tpu.pipeline_mode<synchronous>, transform_indices = @transform_2, window_bounds = array<i64: 15000, 128>}, {pipeline_mode = #tpu.pipeline_mode<synchronous>, transform_indices = @transform_3, window_bounds = array<i64: 128, 2>}, {pipeline_mode = #tpu.pipeline_mode<synchronous>, transform_indices = @transform_4, window_bounds = array<i64: 1, 2>}, {transform_indices = @transform_5, window_bounds = array<i64: 8, 2>}]} {
    %c0 = arith.constant 0 : index
    %c0_0 = arith.constant 0 : index
    %0 = vector.load %arg2[%c0, %c0_0] : memref<8x15000xbf16, #tpu.memory_space<vmem>>, vector<8x15000xbf16>
    %c0_1 = arith.constant 0 : index
    %c0_2 = arith.constant 0 : index
    %1 = vector.load %arg3[%c0_1, %c0_2] : memref<15000x128xbf16, #tpu.memory_space<vmem>>, vector<15000x128xbf16>
    %cst = arith.constant dense<0.000000e+00> : vector<8x128xf32>
    %2 = tpu.matmul %0, %1, %cst {dimension_numbers = #tpu.dot_dimension_numbers<[1], [0], [0], [1], [0, 0, 1, 1], [], []>} : vector<8x15000xbf16>, vector<15000x128xbf16>, vector<8x128xf32> -> vector<8x128xf32>
    %c0_3 = arith.constant 0 : index
    %c0_4 = arith.constant 0 : index
    %3 = vector.load %arg1[%c0_3, %c0_4] : memref<8x128xf32, #tpu.memory_space<vmem>>, vector<8x128xf32>
    %4 = arith.addf %2, %3 : vector<8x128xf32>
    %cst_5 = arith.constant 0.000000e+00 : f32
    %5 = vector.broadcast %cst_5 : f32 to vector<8x128xf32>
    %6 = arith.maximumf %4, %5 : vector<8x128xf32>
    %c0_6 = arith.constant 0 : index
    %c0_7 = arith.constant 0 : index
    %7 = vector.load %arg4[%c0_6, %c0_7] : memref<128x2xf32, #tpu.memory_space<vmem>>, vector<128x2xf32>
    %cst_8 = arith.constant dense<0.000000e+00> : vector<8x2xf32>
    %8 = tpu.matmul %6, %7, %cst_8 {dimension_numbers = #tpu.dot_dimension_numbers<[1], [0], [0], [1], [0, 0, 1, 1], [], []>} : vector<8x128xf32>, vector<128x2xf32>, vector<8x2xf32> -> vector<8x2xf32>
    %c0_9 = arith.constant 0 : index
    %c0_10 = arith.constant 0 : index
    %9 = vector.load %arg5[%c0_9, %c0_10] : memref<1x2xf32, #tpu.memory_space<vmem>>, vector<1x2xf32>
    %10 = vector.broadcast %9 : vector<1x2xf32> to vector<8x2xf32>
    %11 = arith.addf %8, %10 : vector<8x2xf32>
    %c0_11 = arith.constant 0 : index
    %c0_12 = arith.constant 0 : index
    %12 = vector.load %arg6[%c0_11, %c0_12] : memref<8x2xf32, #tpu.memory_space<vmem>>, vector<8x2xf32>
    tpu.vector_store %arg6[%c0_11, %c0_12], %11 {strides = array<i32>} : memref<8x2xf32, #tpu.memory_space<vmem>>, vector<8x2xf32>,
    return
  }
  func.func @transform_0(%arg0: i32) -> (i32, i32) {
    %c0_i32 = arith.constant 0 : i32
    %c0_i32_0 = arith.constant 0 : i32
    return %arg0, %c0_i32 : i32, i32
  }
  func.func @transform_1(%arg0: i32) -> (i32, i32) {
    %c0_i32 = arith.constant 0 : i32
    %c0_i32_0 = arith.constant 0 : i32
    return %arg0, %c0_i32 : i32, i32
  }
  func.func @transform_2(%arg0: i32) -> (i32, i32) {
    %c0_i32 = arith.constant 0 : i32
    %c0_i32_0 = arith.constant 0 : i32
    %c0_i32_1 = arith.constant 0 : i32
    return %c0_i32, %c0_i32_0 : i32, i32
  }
  func.func @transform_3(%arg0: i32) -> (i32, i32) {
    %c0_i32 = arith.constant 0 : i32
    %c0_i32_0 = arith.constant 0 : i32
    %c0_i32_1 = arith.constant 0 : i32
    return %c0_i32, %c0_i32_0 : i32, i32
  }
  func.func @transform_4(%arg0: i32) -> (i32, i32) {
    %c0_i32 = arith.constant 0 : i32
    %c0_i32_0 = arith.constant 0 : i32
    %c0_i32_1 = arith.constant 0 : i32
    return %c0_i32, %c0_i32_0 : i32, i32
  }
  func.func @transform_5(%arg0: i32) -> (i32, i32) {
    %c0_i32 = arith.constant 0 : i32
    %c0_i32_0 = arith.constant 0 : i32
    return %arg0, %c0_i32 : i32, i32
  }
}

</mosaic_0001>

<llo_original>
// kernel: tpu_custom_call.1
$region0: #{tpu_custom_call.1}
  #allocation0 [shape = 'u32[]', space=smem, size = 0x4, offset = 0x4, fixed_abs, tag = 'smem constant byte address 0x4 - core index']
  #allocation1 [shape = 'u32[144,128]{1,0:T(1,128)}', space=vmem, size = 0x12000, scoped, tag = 'internal scratch']
  %s0 = inlined_call_operand.hbm [shape: f32[8,128], index: 0, kind: input, shape index: {}]
  %s1 = inlined_call_operand.hbm [shape: bf16[8,15000], index: 1, kind: input, shape index: {}]
  %s2 = inlined_call_operand.hbm [shape: bf16[15000,128], index: 2, kind: input, shape index: {}]
  %s3 = inlined_call_operand.vmem [shape: f32[128,2], index: 3, kind: input, shape index: {}]
  %s4 = inlined_call_operand.hbm [shape: f32[1,2], index: 4, kind: input, shape index: {}]
  %s5 = inlined_call_operand.vmem [shape: f32[8,2], index: 5, kind: output, shape index: {}]
  %s6 = sld [smem:[#allocation0]]
  $region46: #{tpu_custom_call.1} parent=0
    _
  %s8 = ssub.s32 1, %s6
  %s9 = scalar_select 0, %s8, %s6
  $region1: #{tpu_custom_call.1} parent=0
    #allocation2 [shape = 'u8[4096]{0}', space=vmem, size = 0x1000, scoped, tag = 'input window, operand 0, single buffered']
    #allocation3 [shape = 's32[1]{0}', space=sflag, size = 0x4, scoped, tag = 'scoped memory for tpu_custom_call.1']
    #allocation4 [shape = 'u8[241664]{0}', space=vmem, size = 0x3b000, scoped, tag = 'input window, operand 1, single buffered']
    #allocation5 [shape = 's32[1]{0}', space=sflag, size = 0x4, scoped, tag = 'scoped memory for tpu_custom_call.1']
    #allocation6 [shape = 'u8[3840000]{0}', space=vmem, size = 0x3a9800, scoped, tag = 'input window, operand 2, single buffered']
    #allocation7 [shape = 'u8[512]{0}', space=vmem, size = 0x400, scoped, tag = 'input window, operand 4, single buffered']
    #allocation8 [shape = 's32[1]{0}', space=sflag, size = 0x4, scoped, tag = 'scoped memory for tpu_custom_call.1']
    %10 = vsyncpa [#allocation3], 0
    %11 = vsyncpa [#allocation5], 0
    %12 = vsyncpa [#allocation8], 0
    // Predicated region
    $region2: #{tpu_custom_call.1} parent=1 // pred_check
      _
    $region3: #{tpu_custom_call.1} parent=1 // pred_check_branch
      %14 = sbr.rel (0) target = $region5
    $region4: #{tpu_custom_call.1} parent=1 // pred_region
      %s16 = ssub.s32 128, 128
      %17 = vsyncadd [#allocation3], %s16
      %s19 = sshll.u32 [#allocation2], 4
      %s20 = int_to_ptr.vmem [resolvable:$true] %s19
      %22 = dma.hbm_to_vmem [thread:$0]  %s0, 128, %s20, [#allocation3]
    $region5: #{tpu_custom_call.1} parent=1 // pred_fallthru
      _
    // Predicated region
    $region6: #{tpu_custom_call.1} parent=1 // pred_check
      _
    $region7: #{tpu_custom_call.1} parent=1 // pred_check_branch
      %24 = sbr.rel (0) target = $region9
    $region8: #{tpu_custom_call.1} parent=1 // pred_region
      %s26 = ssub.s32 7552, 7552
      %27 = vsyncadd [#allocation5], %s26
      %s29 = sshll.u32 [#allocation4], 4
      %s30 = int_to_ptr.vmem [resolvable:$true] %s29
      %32 = dma.hbm_to_vmem [thread:$0]  %s1, 7552, %s30, [#allocation5]
    $region9: #{tpu_custom_call.1} parent=1 // pred_fallthru
      _
    // Predicated region
    $region10: #{tpu_custom_call.1} parent=1 // pred_check
      _
    $region11: #{tpu_custom_call.1} parent=1 // pred_check_branch
      %34 = sbr.rel (0) target = $region13
    $region12: #{tpu_custom_call.1} parent=1 // pred_region
      %s36 = ssub.s32 120000, 120000
      %37 = vsyncadd [#allocation5], %s36
      %s38 = sshll.u32 [#allocation6], 4
      %s39 = int_to_ptr.vmem [resolvable:$true] %s38
      %44 = dma.hbm_to_vmem [thread:$0]  %s2, 120000, %s39, [#allocation5], 64, 64, 4
    $region13: #{tpu_custom_call.1} parent=1 // pred_fallthru
      _
    // Predicated region
    $region14: #{tpu_custom_call.1} parent=1 // pred_check
      _
    $region15: #{tpu_custom_call.1} parent=1 // pred_check_branch
      %46 = sbr.rel (0) target = $region17
    $region16: #{tpu_custom_call.1} parent=1 // pred_region
      _
    $region17: #{tpu_custom_call.1} parent=1 // pred_fallthru
      _
    // Predicated region
    $region18: #{tpu_custom_call.1} parent=1 // pred_check
      _
    $region19: #{tpu_custom_call.1} parent=1 // pred_check_branch
      %48 = sbr.rel (0) target = $region21
    $region20: #{tpu_custom_call.1} parent=1 // pred_region
      %s50 = ssub.s32 16, 16
      %51 = vsyncadd [#allocation8], %s50
      %s53 = sshll.u32 [#allocation7], 4
      %s54 = int_to_ptr.vmem [resolvable:$true] %s53
      %56 = dma.hbm_to_vmem [thread:$0]  %s4, 16, %s54, [#allocation8]
    $region21: #{tpu_custom_call.1} parent=1 // pred_fallthru
      _
    // Predicated region
    $region22: #{tpu_custom_call.1} parent=1 // pred_check
      _
    $region23: #{tpu_custom_call.1} parent=1 // pred_check_branch
      %58 = sbr.rel (0) target = $region25
    $region24: #{tpu_custom_call.1} parent=1 // pred_region
      %59 = dma.done [#allocation3], 128
    $region25: #{tpu_custom_call.1} parent=1 // pred_fallthru
      _
    // Predicated region
    $region26: #{tpu_custom_call.1} parent=1 // pred_check
      _
    $region27: #{tpu_custom_call.1} parent=1 // pred_check_branch
      %61 = sbr.rel (0) target = $region29
    $region28: #{tpu_custom_call.1} parent=1 // pred_region
      %62 = dma.done [#allocation5], 7552
    $region29: #{tpu_custom_call.1} parent=1 // pred_fallthru
      _
    // Predicated region
    $region30: #{tpu_custom_call.1} parent=1 // pred_check
      _
    $region31: #{tpu_custom_call.1} parent=1 // pred_check_branch
      %64 = sbr.rel (0) target = $region33
    $region32: #{tpu_custom_call.1} parent=1 // pred_region
      %65 = dma.done [#allocation5], 120000
    $region33: #{tpu_custom_call.1} parent=1 // pred_fallthru
      _
    // Predicated region
    $region34: #{tpu_custom_call.1} parent=1 // pred_check
      _
    $region35: #{tpu_custom_call.1} parent=1 // pred_check_branch
      %67 = sbr.rel (0) target = $region37
    $region36: #{tpu_custom_call.1} parent=1 // pred_region
      %68 = dma.done [#allocation8], 16
    $region37: #{tpu_custom_call.1} parent=1 // pred_fallthru
      _
    %v70 = vld [vmem:[#allocation4] sm:$0xff]
    %v71 = vld [vmem:[#allocation4 + $0x8] sm:$0xff]
    %v72 = vld [vmem:[#allocation4 + $0x10] sm:$0xff]
    %v73 = vld [vmem:[#allocation4 + $0x18] sm:$0xff]
    %v74 = vld [vmem:[#allocation4 + $0x20] sm:$0xff]
    %v75 = vld [vmem:[#allocation4 + $0x28] sm:$0xff]
    %v76 = vld [vmem:[#allocation4 + $0x30] sm:$0xff]
    %v77 = vld [vmem:[#allocation4 + $0x38] sm:$0xff]
    %v78 = vld [vmem:[#allocation4 + $0x40] sm:$0xff]
    %v79 = vld [vmem:[#allocation4 + $0x48] sm:$0xff]
    %v80 = vld [vmem:[#allocation4 + $0x50] sm:$0xff]
    %v81 = vld [vmem:[#allocation4 + $0x58] sm:$0xff]
    %v82 = vld [vmem:[#allocation4 + $0x60] sm:$0xff]
    %v83 = vld [vmem:[#allocation4 + $0x68] sm:$0xff]
    %v84 = vld [vmem:[#allocation4 + $0x70] sm:$0xff]
    %v85 = vld [vmem:[#allocation4 + $0x78] sm:$0xff]
    %v86 = vld [vmem:[#allocation4 + $0x80] sm:$0xff]
    %v87 = vld [vmem:[#allocation4 + $0x88] sm:$0xff]
    %v88 = vld [vmem:[#allocation4 + $0x90] sm:$0xff]
    %v89 = vld [vmem:[#allocation4 + $0x98] sm:$0xff]
    %v90 = vld [vmem:[#allocation4 + $0xa0] sm:$0xff]
    %v91 = vld [vmem:[#allocation4 + $0xa8] sm:$0xff]
    %v92 = vld [vmem:[#allocation4 + $0xb0] sm:$0xff]
    %v93 = vld [vmem:[#allocation4 + $0xb8] sm:$0xff]
    %v94 = vld [vmem:[#allocation4 + $0xc0] sm:$0xff]
    %v95 = vld [vmem:[#allocation4 + $0xc8] sm:$0xff]
    %v96 = vld [vmem:[#allocation4 + $0xd0] sm:$0xff]
    %v97 = vld [vmem:[#allocation4 + $0xd8] sm:$0xff]
    %v98 = vld [vmem:[#allocation4 + $0xe0] sm:$0xff]
    %v99 = vld [vmem:[#allocation4 + $0xe8] sm:$0xff]
    %v100 = vld [vmem:[#allocation4 + $0xf0] sm:$0xff]
    %v101 = vld [vmem:[#allocation4 + $0xf8] sm:$0xff]
    %v102 = vld [vmem:[#allocation4 + $0x100] sm:$0xff]
    %v103 = vld [vmem:[#allocation4 + $0x108] sm:$0xff]
    %v104 = vld [vmem:[#allocation4 + $0x110] sm:$0xff]
    %v105 = vld [vmem:[#allocation4 + $0x118] sm:$0xff]
    %v106 = vld [vmem:[#allocation4 + $0x120] sm:$0xff]
    %v107 = vld [vmem:[#allocation4 + $0x128] sm:$0xff]
    %v108 = vld [vmem:[#allocation4 + $0x130] sm:$0xff]
    %v109 = vld [vmem:[#allocation4 + $0x138] sm:$0xff]
    %v110 = vld [vmem:[#allocation4 + $0x140] sm:$0xff]
    %v111 = vld [vmem:[#allocation4 + $0x148] sm:$0xff]
    %v112 = vld [vmem:[#allocation4 + $0x150] sm:$0xff]
    %v113 = vld [vmem:[#allocation4 + $0x158] sm:$0xff]
    %v114 = vld [vmem:[#allocation4 + $0x160] sm:$0xff]
    %v115 = vld [vmem:[#allocation4 + $0x168] sm:$0xff]
    %v116 = vld [vmem:[#allocation4 + $0x170] sm:$0xff]
    %v117 = vld [vmem:[#allocation4 + $0x178] sm:$0xff]
    %v118 = vld [vmem:[#allocation4 + $0x180] sm:$0xff]
    %v119 = vld [vmem:[#allocation4 + $0x188] sm:$0xff]
    %v120 = vld [vmem:[#allocation4 + $0x190] sm:$0xff]
    %v121 = vld [vmem:[#allocation4 + $0x198] sm:$0xff]
    %v122 = vld [vmem:[#allocation4 + $0x1a0] sm:$0xff]
    %v123 = vld [vmem:[#allocation4 + $0x1a8] sm:$0xff]
    %v124 = vld [vmem:[#allocation4 + $0x1b0] sm:$0xff]
    %v125 = vld [vmem:[#allocation4 + $0x1b8] sm:$0xff]
    %v126 = vld [vmem:[#allocation4 + $0x1c0] sm:$0xff]
    %v127 = vld [vmem:[#allocation4 + $0x1c8] sm:$0xff]
    %v128 = vld [vmem:[#allocation4 + $0x1d0] sm:$0xff]
    %v129 = vld [vmem:[#allocation6] sm:$0xf]
    %v130 = vld [vmem:[#allocation6 + $0x4] sm:$0xf]
    %v131 = vld [vmem:[#allocation6 + $0x8] sm:$0xf]
    %v132 = vld [vmem:[#allocation6 + $0xc] sm:$0xf]
    %v133 = vld [vmem:[#allocation6 + $0x10] sm:$0xf]
    %v134 = vld [vmem:[#allocation6 + $0x14] sm:$0xf]
    %v135 = vld [vmem:[#allocation6 + $0x18] sm:$0xf]
    %v136 = vld [vmem:[#allocation6 + $0x1c] sm:$0xf]
    %v137 = vld [vmem:[#allocation6 + $0x20] sm:$0xf]
    %v138 = vld [vmem:[#allocation6 + $0x24] sm:$0xf]
    %v139 = vld [vmem:[#allocation6 + $0x28] sm:$0xf]
    %v140 = vld [vmem:[#allocation6 + $0x2c] sm:$0xf]
    %v141 = vld [vmem:[#allocation6 + $0x30] sm:$0xf]
    %v142 = vld [vmem:[#allocation6 + $0x34] sm:$0xf]
    %v143 = vld [vmem:[#allocation6 + $0x38] sm:$0xf]
    %v144 = vld [vmem:[#allocation6 + $0x3c] sm:$0xf]
    %v145 = vld [vmem:[#allocation6 + $0x40] sm:$0xf]
    %v146 = vld [vmem:[#allocation6 + $0x44] sm:$0xf]
    %v147 = vld [vmem:[#allocation6 + $0x48] sm:$0xf]
    %v148 = vld [vmem:[#allocation6 + $0x4c] sm:$0xf]
    %v149 = vld [vmem:[#allocation6 + $0x50] sm:$0xf]
    %v150 = vld [vmem:[#allocation6 + $0x54] sm:$0xf]
    %v151 = vld [vmem:[#allocation6 + $0x58] sm:$0xf]
    %v152 = vld [vmem:[#allocation6 + $0x5c] sm:$0xf]
    %v153 = vld [vmem:[#allocation6 + $0x60] sm:$0xf]
    %v154 = vld [vmem:[#allocation6 + $0x64] sm:$0xf]
    %v155 = vld [vmem:[#allocation6 + $0x68] sm:$0xf]
    %v156 = vld [vmem:[#allocation6 + $0x6c] sm:$0xf]
    %v157 = vld [vmem:[#allocation6 + $0x70] sm:$0xf]
    %v158 = vld [vmem:[#allocation6 + $0x74] sm:$0xf]
    %v159 = vld [vmem:[#allocation6 + $0x78] sm:$0xf]
    %v160 = vld [vmem:[#allocation6 + $0x7c] sm:$0xf]
    %v161 = vld [vmem:[#allocation6 + $0x80] sm:$0xf]
    %v162 = vld [vmem:[#allocation6 + $0x84] sm:$0xf]
    %v163 = vld [vmem:[#allocation6 + $0x88] sm:$0xf]
    %v164 = vld [vmem:[#allocation6 + $0x8c] sm:$0xf]
    %v165 = vld [vmem:[#allocation6 + $0x90] sm:$0xf]
    %v166 = vld [vmem:[#allocation6 + $0x94] sm:$0xf]
    %v167 = vld [vmem:[#allocation6 + $0x98] sm:$0xf]
    %v168 = vld [vmem:[#allocation6 + $0x9c] sm:$0xf]
    %v169 = vld [vmem:[#allocation6 + $0xa0] sm:$0xf]
    %v170 = vld [vmem:[#allocation6 + $0xa4] sm:$0xf]
    %v171 = vld [vmem:[#allocation6 + $0xa8] sm:$0xf]
    %v172 = vld [vmem:[#allocation6 + $0xac] sm:$0xf]
    %v173 = vld [vmem:[#allocation6 + $0xb0] sm:$0xf]
    %v174 = vld [vmem:[#allocation6 + $0xb4] sm:$0xf]
    %v175 = vld [vmem:[#allocation6 + $0xb8] sm:$0xf]
    %v176 = vld [vmem:[#allocation6 + $0xbc] sm:$0xf]
    %v177 = vld [vmem:[#allocation6 + $0xc0] sm:$0xf]
    %v178 = vld [vmem:[#allocation6 + $0xc4] sm:$0xf]
    %v179 = vld [vmem:[#allocation6 + $0xc8] sm:$0xf]
    %v180 = vld [vmem:[#allocation6 + $0xcc] sm:$0xf]
    %v181 = vld [vmem:[#allocation6 + $0xd0] sm:$0xf]
    %v182 = vld [vmem:[#allocation6 + $0xd4] sm:$0xf]
    %v183 = vld [vmem:[#allocation6 + $0xd8] sm:$0xf]
    %v184 = vld [vmem:[#allocation6 + $0xdc] sm:$0xf]
    %v185 = vld [vmem:[#allocation6 + $0xe0] sm:$0xf]
    %v186 = vld [vmem:[#allocation6 + $0xe4] sm:$0xf]
    %v187 = vld [vmem:[#allocation6 + $0xe8] sm:$0xf]
    %v188 = vld [vmem:[#allocation6 + $0xec] sm:$0xf]
    %v189 = vld [vmem:[#allocation6 + $0xf0] sm:$0xf]
    %v190 = vld [vmem:[#allocation6 + $0xf4] sm:$0xf]
    %v191 = vld [vmem:[#allocation6 + $0xf8] sm:$0xf]
    %v192 = vld [vmem:[#allocation6 + $0xfc] sm:$0xf]
    %v193 = vld [vmem:[#allocation6 + $0x100] sm:$0xf]
    %v194 = vld [vmem:[#allocation6 + $0x104] sm:$0xf]
    %v195 = vld [vmem:[#allocation6 + $0x108] sm:$0xf]
    %v196 = vld [vmem:[#allocation6 + $0x10c] sm:$0xf]
    %v197 = vld [vmem:[#allocation6 + $0x110] sm:$0xf]
    %v198 = vld [vmem:[#allocation6 + $0x114] sm:$0xf]
    %v199 = vld [vmem:[#allocation6 + $0x118] sm:$0xf]
    %v200 = vld [vmem:[#allocation6 + $0x11c] sm:$0xf]
    %v201 = vld [vmem:[#allocation6 + $0x120] sm:$0xf]
    %v202 = vld [vmem:[#allocation6 + $0x124] sm:$0xf]
    %v203 = vld [vmem:[#allocation6 + $0x128] sm:$0xf]
    %v204 = vld [vmem:[#allocation6 + $0x12c] sm:$0xf]
    %v205 = vld [vmem:[#allocation6 + $0x130] sm:$0xf]
    %v206 = vld [vmem:[#allocation6 + $0x134] sm:$0xf]
    %v207 = vld [vmem:[#allocation6 + $0x138] sm:$0xf]
    %v208 = vld [vmem:[#allocation6 + $0x13c] sm:$0xf]
    %v209 = vld [vmem:[#allocation6 + $0x140] sm:$0xf]
    %v210 = vld [vmem:[#allocation6 + $0x144] sm:$0xf]
    %v211 = vld [vmem:[#allocation6 + $0x148] sm:$0xf]
    %v212 = vld [vmem:[#allocation6 + $0x14c] sm:$0xf]
    %v213 = vld [vmem:[#allocation6 + $0x150] sm:$0xf]
    %v214 = vld [vmem:[#allocation6 + $0x154] sm:$0xf]
    %v215 = vld [vmem:[#allocation6 + $0x158] sm:$0xf]
    %v216 = vld [vmem:[#allocation6 + $0x15c] sm:$0xf]
    %v217 = vld [vmem:[#allocation6 + $0x160] sm:$0xf]
    %v218 = vld [vmem:[#allocation6 + $0x164] sm:$0xf]
    %v219 = vld [vmem:[#allocation6 + $0x168] sm:$0xf]
    %v220 = vld [vmem:[#allocation6 + $0x16c] sm:$0xf]
    %v221 = vld [vmem:[#allocation6 + $0x170] sm:$0xf]
    %v222 = vld [vmem:[#allocation6 + $0x174] sm:$0xf]
    %v223 = vld [vmem:[#allocation6 + $0x178] sm:$0xf]
    %v224 = vld [vmem:[#allocation6 + $0x17c] sm:$0xf]
    %v225 = vld [vmem:[#allocation6 + $0x180] sm:$0xf]
    %v226 = vld [vmem:[#allocation6 + $0x184] sm:$0xf]
    %v227 = vld [vmem:[#allocation6 + $0x188] sm:$0xf]
    %v228 = vld [vmem:[#allocation6 + $0x18c] sm:$0xf]
    %v229 = vld [vmem:[#allocation6 + $0x190] sm:$0xf]
    %v230 = vld [vmem:[#allocation6 + $0x194] sm:$0xf]
    %v231 = vld [vmem:[#allocation6 + $0x198] sm:$0xf]
    %v232 = vld [vmem:[#allocation6 + $0x19c] sm:$0xf]
    %v233 = vld [vmem:[#allocation6 + $0x1a0] sm:$0xf]
    %v234 = vld [vmem:[#allocation6 + $0x1a4] sm:$0xf]
    %v235 = vld [vmem:[#allocation6 + $0x1a8] sm:$0xf]
    %v236 = vld [vmem:[#allocation6 + $0x1ac] sm:$0xf]
    %v237 = vld [vmem:[#allocation6 + $0x1b0] sm:$0xf]
    %v238 = vld [vmem:[#allocation6 + $0x1b4] sm:$0xf]
    %v239 = vld [vmem:[#allocation6 + $0x1b8] sm:$0xf]
    %v240 = vld [vmem:[#allocation6 + $0x1bc] sm:$0xf]
    %v241 = vld [vmem:[#allocation6 + $0x1c0] sm:$0xf]
    %v242 = vld [vmem:[#allocation6 + $0x1c4] sm:$0xf]
    %v243 = vld [vmem:[#allocation6 + $0x1c8] sm:$0xf]
    %v244 = vld [vmem:[#allocation6 + $0x1cc] sm:$0xf]
    %v245 = vld [vmem:[#allocation6 + $0x1d0] sm:$0xf]
    %v246 = vld [vmem:[#allocation6 + $0x1d4] sm:$0xf]
    %v247 = vld [vmem:[#allocation6 + $0x1d8] sm:$0xf]
    %v248 = vld [vmem:[#allocation6 + $0x1dc] sm:$0xf]
    %v249 = vld [vmem:[#allocation6 + $0x1e0] sm:$0xf]
    %v250 = vld [vmem:[#allocation6 + $0x1e4] sm:$0xf]
    %v251 = vld [vmem:[#allocation6 + $0x1e8] sm:$0xf]
    %v252 = vld [vmem:[#allocation6 + $0x1ec] sm:$0xf]
    %v253 = vld [vmem:[#allocation6 + $0x1f0] sm:$0xf]
    %v254 = vld [vmem:[#allocation6 + $0x1f4] sm:$0xf]
    %v255 = vld [vmem:[#allocation6 + $0x1f8] sm:$0xf]
    %v256 = vld [vmem:[#allocation6 + $0x1fc] sm:$0xf]
    %v257 = vld [vmem:[#allocation6 + $0x200] sm:$0xf]
    %v258 = vld [vmem:[#allocation6 + $0x204] sm:$0xf]
    %v259 = vld [vmem:[#allocation6 + $0x208] sm:$0xf]
    %v260 = vld [vmem:[#allocation6 + $0x20c] sm:$0xf]
    %v261 = vld [vmem:[#allocation6 + $0x210] sm:$0xf]
    %v262 = vld [vmem:[#allocation6 + $0x214] sm:$0xf]
    %v263 = vld [vmem:[#allocation6 + $0x218] sm:$0xf]
    %v264 = vld [vmem:[#allocation6 + $0x21c] sm:$0xf]
    %v265 = vld [vmem:[#allocation6 + $0x220] sm:$0xf]
    %v266 = vld [vmem:[#allocation6 + $0x224] sm:$0xf]
    %v267 = vld [vmem:[#allocation6 + $0x228] sm:$0xf]
    %v268 = vld [vmem:[#allocation6 + $0x22c] sm:$0xf]
    %v269 = vld [vmem:[#allocation6 + $0x230] sm:$0xf]
    %v270 = vld [vmem:[#allocation6 + $0x234] sm:$0xf]
    %v271 = vld [vmem:[#allocation6 + $0x238] sm:$0xf]
    %v272 = vld [vmem:[#allocation6 + $0x23c] sm:$0xf]
    %v273 = vld [vmem:[#allocation6 + $0x240] sm:$0xf]
    %v274 = vld [vmem:[#allocation6 + $0x244] sm:$0xf]
    %v275 = vld [vmem:[#allocation6 + $0x248] sm:$0xf]
    %v276 = vld [vmem:[#allocation6 + $0x24c] sm:$0xf]
    %v277 = vld [vmem:[#allocation6 + $0x250] sm:$0xf]
    %v278 = vld [vmem:[#allocation6 + $0x254] sm:$0xf]
    %v279 = vld [vmem:[#allocation6 + $0x258] sm:$0xf]
    %v280 = vld [vmem:[#allocation6 + $0x25c] sm:$0xf]
    %v281 = vld [vmem:[#allocation6 + $0x260] sm:$0xf]
    %v282 = vld [vmem:[#allocation6 + $0x264] sm:$0xf]
    %v283 = vld [vmem:[#allocation6 + $0x268] sm:$0xf]
    %v284 = vld [vmem:[#allocation6 + $0x26c] sm:$0xf]
    %v285 = vld [vmem:[#allocation6 + $0x270] sm:$0xf]
    %v286 = vld [vmem:[#allocation6 + $0x274] sm:$0xf]
    %v287 = vld [vmem:[#allocation6 + $0x278] sm:$0xf]
    %v288 = vld [vmem:[#allocation6 + $0x27c] sm:$0xf]
    %v289 = vld [vmem:[#allocation6 + $0x280] sm:$0xf]
    %v290 = vld [vmem:[#allocation6 + $0x284] sm:$0xf]
    %v291 = vld [vmem:[#allocation6 + $0x288] sm:$0xf]
    %v292 = vld [vmem:[#allocation6 + $0x28c] sm:$0xf]
    %v293 = vld [vmem:[#allocation6 + $0x290] sm:$0xf]
    %v294 = vld [vmem:[#allocation6 + $0x294] sm:$0xf]
    %v295 = vld [vmem:[#allocation6 + $0x298] sm:$0xf]
    %v296 = vld [vmem:[#allocation6 + $0x29c] sm:$0xf]
    %v297 = vld [vmem:[#allocation6 + $0x2a0] sm:$0xf]
    %v298 = vld [vmem:[#allocation6 + $0x2a4] sm:$0xf]
    %v299 = vld [vmem:[#allocation6 + $0x2a8] sm:$0xf]
    %v300 = vld [vmem:[#allocation6 + $0x2ac] sm:$0xf]
    %v301 = vld [vmem:[#allocation6 + $0x2b0] sm:$0xf]
    %v302 = vld [vmem:[#allocation6 + $0x2b4] sm:$0xf]
    %v303 = vld [vmem:[#allocation6 + $0x2b8] sm:$0xf]
    %v304 = vld [vmem:[#allocation6 + $0x2bc] sm:$0xf]
    %v305 = vld [vmem:[#allocation6 + $0x2c0] sm:$0xf]
    %v306 = vld [vmem:[#allocation6 + $0x2c4] sm:$0xf]
    %v307 = vld [vmem:[#allocation6 + $0x2c8] sm:$0xf]
    %v308 = vld [vmem:[#allocation6 + $0x2cc] sm:$0xf]
    %v309 = vld [vmem:[#allocation6 + $0x2d0] sm:$0xf]
    %v310 = vld [vmem:[#allocation6 + $0x2d4] sm:$0xf]
    %v311 = vld [vmem:[#allocation6 + $0x2d8] sm:$0xf]
    %v312 = vld [vmem:[#allocation6 + $0x2dc] sm:$0xf]
    %v313 = vld [vmem:[#allocation6 + $0x2e0] sm:$0xf]
    %v314 = vld [vmem:[#allocation6 + $0x2e4] sm:$0xf]
    %v315 = vld [vmem:[#allocation6 + $0x2e8] sm:$0xf]
    %v316 = vld [vmem:[#allocation6 + $0x2ec] sm:$0xf]
    %v317 = vld [vmem:[#allocation6 + $0x2f0] sm:$0xf]
    %v318 = vld [vmem:[#allocation6 + $0x2f4] sm:$0xf]
    %v319 = vld [vmem:[#allocation6 + $0x2f8] sm:$0xf]
    %v320 = vld [vmem:[#allocation6 + $0x2fc] sm:$0xf]
    %v321 = vld [vmem:[#allocation6 + $0x300] sm:$0xf]
    %v322 = vld [vmem:[#allocation6 + $0x304] sm:$0xf]
    %v323 = vld [vmem:[#allocation6 + $0x308] sm:$0xf]
    %v324 = vld [vmem:[#allocation6 + $0x30c] sm:$0xf]
    %v325 = vld [vmem:[#allocation6 + $0x310] sm:$0xf]
    %v326 = vld [vmem:[#allocation6 + $0x314] sm:$0xf]
    %v327 = vld [vmem:[#allocation6 + $0x318] sm:$0xf]
    %v328 = vld [vmem:[#allocation6 + $0x31c] sm:$0xf]
    %v329 = vld [vmem:[#allocation6 + $0x320] sm:$0xf]
    %v330 = vld [vmem:[#allocation6 + $0x324] sm:$0xf]
    %v331 = vld [vmem:[#allocation6 + $0x328] sm:$0xf]
    %v332 = vld [vmem:[#allocation6 + $0x32c] sm:$0xf]
    %v333 = vld [vmem:[#allocation6 + $0x330] sm:$0xf]
    %v334 = vld [vmem:[#allocation6 + $0x334] sm:$0xf]
    %v335 = vld [vmem:[#allocation6 + $0x338] sm:$0xf]
    %v336 = vld [vmem:[#allocation6 + $0x33c] sm:$0xf]
    %v337 = vld [vmem:[#allocation6 + $0x340] sm:$0xf]
    %v338 = vld [vmem:[#allocation6 + $0x344] sm:$0xf]
    %v339 = vld [vmem:[#allocation6 + $0x348] sm:$0xf]
    %v340 = vld [vmem:[#allocation6 + $0x34c] sm:$0xf]
    %v341 = vld [vmem:[#allocation6 + $0x350] sm:$0xf]
    %v342 = vld [vmem:[#allocation6 + $0x354] sm:$0xf]
    %v343 = vld [vmem:[#allocation6 + $0x358] sm:$0xf]
    %v344 = vld [vmem:[#allocation6 + $0x35c] sm:$0xf]
    %v345 = vld [vmem:[#allocation6 + $0x360] sm:$0xf]
    %v346 = vld [vmem:[#allocation6 + $0x364] sm:$0xf]
    %v347 = vld [vmem:[#allocation6 + $0x368] sm:$0xf]
    %v348 = vld [vmem:[#allocation6 + $0x36c] sm:$0xf]
    %v349 = vld [vmem:[#allocation6 + $0x370] sm:$0xf]
    %v350 = vld [vmem:[#allocation6 + $0x374] sm:$0xf]
    %v351 = vld [vmem:[#allocation6 + $0x378] sm:$0xf]
    %v352 = vld [vmem:[#allocation6 + $0x37c] sm:$0xf]
    %v353 = vld [vmem:[#allocation6 + $0x380] sm:$0xf]
    %v354 = vld [vmem:[#allocation6 + $0x384] sm:$0xf]
    %v355 = vld [vmem:[#allocation6 + $0x388] sm:$0xf]
    %v356 = vld [vmem:[#allocation6 + $0x38c] sm:$0xf]
    %v357 = vld [vmem:[#allocation6 + $0x390] sm:$0xf]
    %v358 = vld [vmem:[#allocation6 + $0x394] sm:$0xf]
    %v359 = vld [vmem:[#allocation6 + $0x398] sm:$0xf]
    %v360 = vld [vmem:[#allocation6 + $0x39c] sm:$0xf]
    %v361 = vld [vmem:[#allocation6 + $0x3a0] sm:$0xf]
    %v362 = vld [vmem:[#allocation6 + $0x3a4] sm:$0xf]
    %v363 = vld [vmem:[#allocation6 + $0x3a8] sm:$0xf]
    %v364 = vld [vmem:[#allocation6 + $0x3ac] sm:$0xf]
    %v365 = vld [vmem:[#allocation6 + $0x3b0] sm:$0xf]
    %v366 = vld [vmem:[#allocation6 + $0x3b4] sm:$0xf]
    %v367 = vld [vmem:[#allocation6 + $0x3b8] sm:$0xf]
    %v368 = vld [vmem:[#allocation6 + $0x3bc] sm:$0xf]
    %v369 = vld [vmem:[#allocation6 + $0x3c0] sm:$0xf]
    %v370 = vld [vmem:[#allocation6 + $0x3c4] sm:$0xf]
    %v371 = vld [vmem:[#allocation6 + $0x3c8] sm:$0xf]
    %v372 = vld [vmem:[#allocation6 + $0x3cc] sm:$0xf]
    %v373 = vld [vmem:[#allocation6 + $0x3d0] sm:$0xf]
    %v374 = vld [vmem:[#allocation6 + $0x3d4] sm:$0xf]
    %v375 = vld [vmem:[#allocation6 + $0x3d8] sm:$0xf]
    %v376 = vld [vmem:[#allocation6 + $0x3dc] sm:$0xf]
    %v377 = vld [vmem:[#allocation6 + $0x3e0] sm:$0xf]
    %v378 = vld [vmem:[#allocation6 + $0x3e4] sm:$0xf]
    %v379 = vld [vmem:[#allocation6 + $0x3e8] sm:$0xf]
    %v380 = vld [vmem:[#allocation6 + $0x3ec] sm:$0xf]
    %v381 = vld [vmem:[#allocation6 + $0x3f0] sm:$0xf]
    %v382 = vld [vmem:[#allocation6 + $0x3f4] sm:$0xf]
    %v383 = vld [vmem:[#allocation6 + $0x3f8] sm:$0xf]
    %v384 = vld [vmem:[#allocation6 + $0x3fc] sm:$0xf]
    %v385 = vld [vmem:[#allocation6 + $0x400] sm:$0xf]
    %v386 = vld [vmem:[#allocation6 + $0x404] sm:$0xf]
    %v387 = vld [vmem:[#allocation6 + $0x408] sm:$0xf]
    %v388 = vld [vmem:[#allocation6 + $0x40c] sm:$0xf]
    %v389 = vld [vmem:[#allocation6 + $0x410] sm:$0xf]
    %v390 = vld [vmem:[#allocation6 + $0x414] sm:$0xf]
    %v391 = vld [vmem:[#allocation6 + $0x418] sm:$0xf]
    %v392 = vld [vmem:[#allocation6 + $0x41c] sm:$0xf]
    %v393 = vld [vmem:[#allocation6 + $0x420] sm:$0xf]
    %v394 = vld [vmem:[#allocation6 + $0x424] sm:$0xf]
    %v395 = vld [vmem:[#allocation6 + $0x428] sm:$0xf]
    %v396 = vld [vmem:[#allocation6 + $0x42c] sm:$0xf]
    %v397 = vld [vmem:[#allocation6 + $0x430] sm:$0xf]
    %v398 = vld [vmem:[#allocation6 + $0x434] sm:$0xf]
    %v399 = vld [vmem:[#allocation6 + $0x438] sm:$0xf]
    %v400 = vld [vmem:[#allocation6 + $0x43c] sm:$0xf]
    %v401 = vld [vmem:[#allocation6 + $0x440] sm:$0xf]
    %v402 = vld [vmem:[#allocation6 + $0x444] sm:$0xf]
    %v403 = vld [vmem:[#allocation6 + $0x448] sm:$0xf]
    %v404 = vld [vmem:[#allocation6 + $0x44c] sm:$0xf]
    %v405 = vld [vmem:[#allocation6 + $0x450] sm:$0xf]
    %v406 = vld [vmem:[#allocation6 + $0x454] sm:$0xf]
    %v407 = vld [vmem:[#allocation6 + $0x458] sm:$0xf]
    %v408 = vld [vmem:[#allocation6 + $0x45c] sm:$0xf]
    %v409 = vld [vmem:[#allocation6 + $0x460] sm:$0xf]
    %v410 = vld [vmem:[#allocation6 + $0x464] sm:$0xf]
    %v411 = vld [vmem:[#allocation6 + $0x468] sm:$0xf]
    %v412 = vld [vmem:[#allocation6 + $0x46c] sm:$0xf]
    %v413 = vld [vmem:[#allocation6 + $0x470] sm:$0xf]
    %v414 = vld [vmem:[#allocation6 + $0x474] sm:$0xf]
    %v415 = vld [vmem:[#allocation6 + $0x478] sm:$0xf]
    %v416 = vld [vmem:[#allocation6 + $0x47c] sm:$0xf]
    %v417 = vld [vmem:[#allocation6 + $0x480] sm:$0xf]
    %v418 = vld [vmem:[#allocation6 + $0x484] sm:$0xf]
    %v419 = vld [vmem:[#allocation6 + $0x488] sm:$0xf]
    %v420 = vld [vmem:[#allocation6 + $0x48c] sm:$0xf]
    %v421 = vld [vmem:[#allocation6 + $0x490] sm:$0xf]
    %v422 = vld [vmem:[#allocation6 + $0x494] sm:$0xf]
    %v423 = vld [vmem:[#allocation6 + $0x498] sm:$0xf]
    %v424 = vld [vmem:[#allocation6 + $0x49c] sm:$0xf]
    %v425 = vld [vmem:[#allocation6 + $0x4a0] sm:$0xf]
    %v426 = vld [vmem:[#allocation6 + $0x4a4] sm:$0xf]
    %v427 = vld [vmem:[#allocation6 + $0x4a8] sm:$0xf]
    %v428 = vld [vmem:[#allocation6 + $0x4ac] sm:$0xf]
    %v429 = vld [vmem:[#allocation6 + $0x4b0] sm:$0xf]
    %v430 = vld [vmem:[#allocation6 + $0x4b4] sm:$0xf]
    %v431 = vld [vmem:[#allocation6 + $0x4b8] sm:$0xf]
    %v432 = vld [vmem:[#allocation6 + $0x4bc] sm:$0xf]
    %v433 = vld [vmem:[#allocation6 + $0x4c0] sm:$0xf]
    %v434 = vld [vmem:[#allocation6 + $0x4c4] sm:$0xf]
    %v435 = vld [vmem:[#allocation6 + $0x4c8] sm:$0xf]
    %v436 = vld [vmem:[#allocation6 + $0x4cc] sm:$0xf]
    %v437 = vld [vmem:[#allocation6 + $0x4d0] sm:$0xf]
    %v438 = vld [vmem:[#allocation6 + $0x4d4] sm:$0xf]
    %v439 = vld [vmem:[#allocation6 + $0x4d8] sm:$0xf]
    %v440 = vld [vmem:[#allocation6 + $0x4dc] sm:$0xf]
    %v441 = vld [vmem:[#allocation6 + $0x4e0] sm:$0xf]
    %v442 = vld [vmem:[#allocation6 + $0x4e4] sm:$0xf]
    %v443 = vld [vmem:[#allocation6 + $0x4e8] sm:$0xf]
    %v444 = vld [vmem:[#allocation6 + $0x4ec] sm:$0xf]
    %v445 = vld [vmem:[#allocation6 + $0x4f0] sm:$0xf]
    %v446 = vld [vmem:[#allocation6 + $0x4f4] sm:$0xf]
    %v447 = vld [vmem:[#allocation6 + $0x4f8] sm:$0xf]
    %v448 = vld [vmem:[#allocation6 + $0x4fc] sm:$0xf]
    %v449 = vld [vmem:[#allocation6 + $0x500] sm:$0xf]
    %v450 = vld [vmem:[#allocation6 + $0x504] sm:$0xf]
    %v451 = vld [vmem:[#allocation6 + $0x508] sm:$0xf]
    %v452 = vld [vmem:[#allocation6 + $0x50c] sm:$0xf]
    %v453 = vld [vmem:[#allocation6 + $0x510] sm:$0xf]
    %v454 = vld [vmem:[#allocation6 + $0x514] sm:$0xf]
    %v455 = vld [vmem:[#allocation6 + $0x518] sm:$0xf]
    %v456 = vld [vmem:[#allocation6 + $0x51c] sm:$0xf]
    %v457 = vld [vmem:[#allocation6 + $0x520] sm:$0xf]
    %v458 = vld [vmem:[#allocation6 + $0x524] sm:$0xf]
    %v459 = vld [vmem:[#allocation6 + $0x528] sm:$0xf]
    %v460 = vld [vmem:[#allocation6 + $0x52c] sm:$0xf]
    %v461 = vld [vmem:[#allocation6 + $0x530] sm:$0xf]
    %v462 = vld [vmem:[#allocation6 + $0x534] sm:$0xf]
    %v463 = vld [vmem:[#allocation6 + $0x538] sm:$0xf]
    %v464 = vld [vmem:[#allocation6 + $0x53c] sm:$0xf]
    %v465 = vld [vmem:[#allocation6 + $0x540] sm:$0xf]
    %v466 = vld [vmem:[#allocation6 + $0x544] sm:$0xf]
    %v467 = vld [vmem:[#allocation6 + $0x548] sm:$0xf]
    %v468 = vld [vmem:[#allocation6 + $0x54c] sm:$0xf]
    %v469 = vld [vmem:[#allocation6 + $0x550] sm:$0xf]
    %v470 = vld [vmem:[#allocation6 + $0x554] sm:$0xf]
    %v471 = vld [vmem:[#allocation6 + $0x558] sm:$0xf]
    %v472 = vld [vmem:[#allocation6 + $0x55c] sm:$0xf]
    %v473 = vld [vmem:[#allocation6 + $0x560] sm:$0xf]
    %v474 = vld [vmem:[#allocation6 + $0x564] sm:$0xf]
    %v475 = vld [vmem:[#allocation6 + $0x568] sm:$0xf]
    %v476 = vld [vmem:[#allocation6 + $0x56c] sm:$0xf]
    %v477 = vld [vmem:[#allocation6 + $0x570] sm:$0xf]
    %v478 = vld [vmem:[#allocation6 + $0x574] sm:$0xf]
    %v479 = vld [vmem:[#allocation6 + $0x578] sm:$0xf]
    %v480 = vld [vmem:[#allocation6 + $0x57c] sm:$0xf]
    %v481 = vld [vmem:[#allocation6 + $0x580] sm:$0xf]
    %v482 = vld [vmem:[#allocation6 + $0x584] sm:$0xf]
    %v483 = vld [vmem:[#allocation6 + $0x588] sm:$0xf]
    %v484 = vld [vmem:[#allocation6 + $0x58c] sm:$0xf]
    %v485 = vld [vmem:[#allocation6 + $0x590] sm:$0xf]
    %v486 = vld [vmem:[#allocation6 + $0x594] sm:$0xf]
    %v487 = vld [vmem:[#allocation6 + $0x598] sm:$0xf]
    %v488 = vld [vmem:[#allocation6 + $0x59c] sm:$0xf]
    %v489 = vld [vmem:[#allocation6 + $0x5a0] sm:$0xf]
    %v490 = vld [vmem:[#allocation6 + $0x5a4] sm:$0xf]
    %v491 = vld [vmem:[#allocation6 + $0x5a8] sm:$0xf]
    %v492 = vld [vmem:[#allocation6 + $0x5ac] sm:$0xf]
    %v493 = vld [vmem:[#allocation6 + $0x5b0] sm:$0xf]
    %v494 = vld [vmem:[#allocation6 + $0x5b4] sm:$0xf]
    %v495 = vld [vmem:[#allocation6 + $0x5b8] sm:$0xf]
    %v496 = vld [vmem:[#allocation6 + $0x5bc] sm:$0xf]
    %v497 = vld [vmem:[#allocation6 + $0x5c0] sm:$0xf]
    %v498 = vld [vmem:[#allocation6 + $0x5c4] sm:$0xf]
    %v499 = vld [vmem:[#allocation6 + $0x5c8] sm:$0xf]
    %v500 = vld [vmem:[#allocation6 + $0x5cc] sm:$0xf]
    %v501 = vld [vmem:[#allocation6 + $0x5d0] sm:$0xf]
    %v502 = vld [vmem:[#allocation6 + $0x5d4] sm:$0xf]
    %v503 = vld [vmem:[#allocation6 + $0x5d8] sm:$0xf]
    %v504 = vld [vmem:[#allocation6 + $0x5dc] sm:$0xf]
    %v505 = vld [vmem:[#allocation6 + $0x5e0] sm:$0xf]
    %v506 = vld [vmem:[#allocation6 + $0x5e4] sm:$0xf]
    %v507 = vld [vmem:[#allocation6 + $0x5e8] sm:$0xf]
    %v508 = vld [vmem:[#allocation6 + $0x5ec] sm:$0xf]
    %v509 = vld [vmem:[#allocation6 + $0x5f0] sm:$0xf]
    %v510 = vld [vmem:[#allocation6 + $0x5f4] sm:$0xf]
    %v511 = vld [vmem:[#allocation6 + $0x5f8] sm:$0xf]
    %v512 = vld [vmem:[#allocation6 + $0x5fc] sm:$0xf]
    %v513 = vld [vmem:[#allocation6 + $0x600] sm:$0xf]
    %v514 = vld [vmem:[#allocation6 + $0x604] sm:$0xf]
    %v515 = vld [vmem:[#allocation6 + $0x608] sm:$0xf]
    %v516 = vld [vmem:[#allocation6 + $0x60c] sm:$0xf]
    %v517 = vld [vmem:[#allocation6 + $0x610] sm:$0xf]
    %v518 = vld [vmem:[#allocation6 + $0x614] sm:$0xf]
    %v519 = vld [vmem:[#allocation6 + $0x618] sm:$0xf]
    %v520 = vld [vmem:[#allocation6 + $0x61c] sm:$0xf]
    %v521 = vld [vmem:[#allocation6 + $0x620] sm:$0xf]
    %v522 = vld [vmem:[#allocation6 + $0x624] sm:$0xf]
    %v523 = vld [vmem:[#allocation6 + $0x628] sm:$0xf]
    %v524 = vld [vmem:[#allocation6 + $0x62c] sm:$0xf]
    %v525 = vld [vmem:[#allocation6 + $0x630] sm:$0xf]
    %v526 = vld [vmem:[#allocation6 + $0x634] sm:$0xf]
    %v527 = vld [vmem:[#allocation6 + $0x638] sm:$0xf]
    %v528 = vld [vmem:[#allocation6 + $0x63c] sm:$0xf]
    %v529 = vld [vmem:[#allocation6 + $0x640] sm:$0xf]
    %v530 = vld [vmem:[#allocation6 + $0x644] sm:$0xf]
    %v531 = vld [vmem:[#allocation6 + $0x648] sm:$0xf]
    %v532 = vld [vmem:[#allocation6 + $0x64c] sm:$0xf]
    %v533 = vld [vmem:[#allocation6 + $0x650] sm:$0xf]
    %v534 = vld [vmem:[#allocation6 + $0x654] sm:$0xf]
    %v535 = vld [vmem:[#allocation6 + $0x658] sm:$0xf]
    %v536 = vld [vmem:[#allocation6 + $0x65c] sm:$0xf]
    %v537 = vld [vmem:[#allocation6 + $0x660] sm:$0xf]
    %v538 = vld [vmem:[#allocation6 + $0x664] sm:$0xf]
    %v539 = vld [vmem:[#allocation6 + $0x668] sm:$0xf]
    %v540 = vld [vmem:[#allocation6 + $0x66c] sm:$0xf]
    %v541 = vld [vmem:[#allocation6 + $0x670] sm:$0xf]
    %v542 = vld [vmem:[#allocation6 + $0x674] sm:$0xf]
    %v543 = vld [vmem:[#allocation6 + $0x678] sm:$0xf]
    %v544 = vld [vmem:[#allocation6 + $0x67c] sm:$0xf]
    %v545 = vld [vmem:[#allocation6 + $0x680] sm:$0xf]
    %v546 = vld [vmem:[#allocation6 + $0x684] sm:$0xf]
    %v547 = vld [vmem:[#allocation6 + $0x688] sm:$0xf]
    %v548 = vld [vmem:[#allocation6 + $0x68c] sm:$0xf]
    %v549 = vld [vmem:[#allocation6 + $0x690] sm:$0xf]
    %v550 = vld [vmem:[#allocation6 + $0x694] sm:$0xf]
    %v551 = vld [vmem:[#allocation6 + $0x698] sm:$0xf]
    %v552 = vld [vmem:[#allocation6 + $0x69c] sm:$0xf]
    %v553 = vld [vmem:[#allocation6 + $0x6a0] sm:$0xf]
    %v554 = vld [vmem:[#allocation6 + $0x6a4] sm:$0xf]
    %v555 = vld [vmem:[#allocation6 + $0x6a8] sm:$0xf]
    %v556 = vld [vmem:[#allocation6 + $0x6ac] sm:$0xf]
    %v557 = vld [vmem:[#allocation6 + $0x6b0] sm:$0xf]
    %v558 = vld [vmem:[#allocation6 + $0x6b4] sm:$0xf]
    %v559 = vld [vmem:[#allocation6 + $0x6b8] sm:$0xf]
    %v560 = vld [vmem:[#allocation6 + $0x6bc] sm:$0xf]
    %v561 = vld [vmem:[#allocation6 + $0x6c0] sm:$0xf]
    %v562 = vld [vmem:[#allocation6 + $0x6c4] sm:$0xf]
    %v563 = vld [vmem:[#allocation6 + $0x6c8] sm:$0xf]
    %v564 = vld [vmem:[#allocation6 + $0x6cc] sm:$0xf]
    %v565 = vld [vmem:[#allocation6 + $0x6d0] sm:$0xf]
    %v566 = vld [vmem:[#allocation6 + $0x6d4] sm:$0xf]
    %v567 = vld [vmem:[#allocation6 + $0x6d8] sm:$0xf]
    %v568 = vld [vmem:[#allocation6 + $0x6dc] sm:$0xf]
    %v569 = vld [vmem:[#allocation6 + $0x6e0] sm:$0xf]
    %v570 = vld [vmem:[#allocation6 + $0x6e4] sm:$0xf]
    %v571 = vld [vmem:[#allocation6 + $0x6e8] sm:$0xf]
    %v572 = vld [vmem:[#allocation6 + $0x6ec] sm:$0xf]
    %v573 = vld [vmem:[#allocation6 + $0x6f0] sm:$0xf]
    %v574 = vld [vmem:[#allocation6 + $0x6f4] sm:$0xf]
    %v575 = vld [vmem:[#allocation6 + $0x6f8] sm:$0xf]
    %v576 = vld [vmem:[#allocation6 + $0x6fc] sm:$0xf]
    %v577 = vld [vmem:[#allocation6 + $0x700] sm:$0xf]
    %v578 = vld [vmem:[#allocation6 + $0x704] sm:$0xf]
    %v579 = vld [vmem:[#allocation6 + $0x708] sm:$0xf]
    %v580 = vld [vmem:[#allocation6 + $0x70c] sm:$0xf]
    %v581 = vld [vmem:[#allocation6 + $0x710] sm:$0xf]
    %v582 = vld [vmem:[#allocation6 + $0x714] sm:$0xf]
    %v583 = vld [vmem:[#allocation6 + $0x718] sm:$0xf]
    %v584 = vld [vmem:[#allocation6 + $0x71c] sm:$0xf]
    %v585 = vld [vmem:[#allocation6 + $0x720] sm:$0xf]
    %v586 = vld [vmem:[#allocation6 + $0x724] sm:$0xf]
    %v587 = vld [vmem:[#allocation6 + $0x728] sm:$0xf]
    %v588 = vld [vmem:[#allocation6 + $0x72c] sm:$0xf]
    %v589 = vld [vmem:[#allocation6 + $0x730] sm:$0xf]
    %v590 = vld [vmem:[#allocation6 + $0x734] sm:$0xf]
    %v591 = vld [vmem:[#allocation6 + $0x738] sm:$0xf]
    %v592 = vld [vmem:[#allocation6 + $0x73c] sm:$0xf]
    %v593 = vld [vmem:[#allocation6 + $0x740] sm:$0xf]
    %v594 = vld [vmem:[#allocation6 + $0x744] sm:$0xf]
    %v595 = vld [vmem:[#allocation6 + $0x748] sm:$0xf]
    %v596 = vld [vmem:[#allocation6 + $0x74c] sm:$0xf]
    %v597 = vld [vmem:[#allocation6 + $0x750] sm:$0xf]
    %v598 = vld [vmem:[#allocation6 + $0x754] sm:$0xf]
    %v599 = vld [vmem:[#allocation6 + $0x758] sm:$0xf]
    %v600 = vld [vmem:[#allocation6 + $0x75c] sm:$0xf]
    %v601 = vld [vmem:[#allocation6 + $0x760] sm:$0xf]
    %v602 = vld [vmem:[#allocation6 + $0x764] sm:$0xf]
    %v603 = vld [vmem:[#allocation6 + $0x768] sm:$0xf]
    %v604 = vld [vmem:[#allocation6 + $0x76c] sm:$0xf]
    %v605 = vld [vmem:[#allocation6 + $0x770] sm:$0xf]
    %v606 = vld [vmem:[#allocation6 + $0x774] sm:$0xf]
    %v607 = vld [vmem:[#allocation6 + $0x778] sm:$0xf]
    %v608 = vld [vmem:[#allocation6 + $0x77c] sm:$0xf]
    %v609 = vld [vmem:[#allocation6 + $0x780] sm:$0xf]
    %v610 = vld [vmem:[#allocation6 + $0x784] sm:$0xf]
    %v611 = vld [vmem:[#allocation6 + $0x788] sm:$0xf]
    %v612 = vld [vmem:[#allocation6 + $0x78c] sm:$0xf]
    %v613 = vld [vmem:[#allocation6 + $0x790] sm:$0xf]
    %v614 = vld [vmem:[#allocation6 + $0x794] sm:$0xf]
    %v615 = vld [vmem:[#allocation6 + $0x798] sm:$0xf]
    %v616 = vld [vmem:[#allocation6 + $0x79c] sm:$0xf]
    %v617 = vld [vmem:[#allocation6 + $0x7a0] sm:$0xf]
    %v618 = vld [vmem:[#allocation6 + $0x7a4] sm:$0xf]
    %v619 = vld [vmem:[#allocation6 + $0x7a8] sm:$0xf]
    %v620 = vld [vmem:[#allocation6 + $0x7ac] sm:$0xf]
    %v621 = vld [vmem:[#allocation6 + $0x7b0] sm:$0xf]
    %v622 = vld [vmem:[#allocation6 + $0x7b4] sm:$0xf]
    %v623 = vld [vmem:[#allocation6 + $0x7b8] sm:$0xf]
    %v624 = vld [vmem:[#allocation6 + $0x7bc] sm:$0xf]
    %v625 = vld [vmem:[#allocation6 + $0x7c0] sm:$0xf]
    %v626 = vld [vmem:[#allocation6 + $0x7c4] sm:$0xf]
    %v627 = vld [vmem:[#allocation6 + $0x7c8] sm:$0xf]
    %v628 = vld [vmem:[#allocation6 + $0x7cc] sm:$0xf]
    %v629 = vld [vmem:[#allocation6 + $0x7d0] sm:$0xf]
    %v630 = vld [vmem:[#allocation6 + $0x7d4] sm:$0xf]
    %v631 = vld [vmem:[#allocation6 + $0x7d8] sm:$0xf]
    %v632 = vld [vmem:[#allocation6 + $0x7dc] sm:$0xf]
    %v633 = vld [vmem:[#allocation6 + $0x7e0] sm:$0xf]
    %v634 = vld [vmem:[#allocation6 + $0x7e4] sm:$0xf]
    %v635 = vld [vmem:[#allocation6 + $0x7e8] sm:$0xf]
    %v636 = vld [vmem:[#allocation6 + $0x7ec] sm:$0xf]
    %v637 = vld [vmem:[#allocation6 + $0x7f0] sm:$0xf]
    %v638 = vld [vmem:[#allocation6 + $0x7f4] sm:$0xf]
    %v639 = vld [vmem:[#allocation6 + $0x7f8] sm:$0xf]
    %v640 = vld [vmem:[#allocation6 + $0x7fc] sm:$0xf]
    %v641 = vld [vmem:[#allocation6 + $0x800] sm:$0xf]
    %v642 = vld [vmem:[#allocation6 + $0x804] sm:$0xf]
    %v643 = vld [vmem:[#allocation6 + $0x808] sm:$0xf]
    %v644 = vld [vmem:[#allocation6 + $0x80c] sm:$0xf]
    %v645 = vld [vmem:[#allocation6 + $0x810] sm:$0xf]
    %v646 = vld [vmem:[#allocation6 + $0x814] sm:$0xf]
    %v647 = vld [vmem:[#allocation6 + $0x818] sm:$0xf]
    %v648 = vld [vmem:[#allocation6 + $0x81c] sm:$0xf]
    %v649 = vld [vmem:[#allocation6 + $0x820] sm:$0xf]
    %v650 = vld [vmem:[#allocation6 + $0x824] sm:$0xf]
    %v651 = vld [vmem:[#allocation6 + $0x828] sm:$0xf]
    %v652 = vld [vmem:[#allocation6 + $0x82c] sm:$0xf]
    %v653 = vld [vmem:[#allocation6 + $0x830] sm:$0xf]
    %v654 = vld [vmem:[#allocation6 + $0x834] sm:$0xf]
    %v655 = vld [vmem:[#allocation6 + $0x838] sm:$0xf]
    %v656 = vld [vmem:[#allocation6 + $0x83c] sm:$0xf]
    %v657 = vld [vmem:[#allocation6 + $0x840] sm:$0xf]
    %v658 = vld [vmem:[#allocation6 + $0x844] sm:$0xf]
    %v659 = vld [vmem:[#allocation6 + $0x848] sm:$0xf]
    %v660 = vld [vmem:[#allocation6 + $0x84c] sm:$0xf]
    %v661 = vld [vmem:[#allocation6 + $0x850] sm:$0xf]
    %v662 = vld [vmem:[#allocation6 + $0x854] sm:$0xf]
    %v663 = vld [vmem:[#allocation6 + $0x858] sm:$0xf]
    %v664 = vld [vmem:[#allocation6 + $0x85c] sm:$0xf]
    %v665 = vld [vmem:[#allocation6 + $0x860] sm:$0xf]
    %v666 = vld [vmem:[#allocation6 + $0x864] sm:$0xf]
    %v667 = vld [vmem:[#allocation6 + $0x868] sm:$0xf]
    %v668 = vld [vmem:[#allocation6 + $0x86c] sm:$0xf]
    %v669 = vld [vmem:[#allocation6 + $0x870] sm:$0xf]
    %v670 = vld [vmem:[#allocation6 + $0x874] sm:$0xf]
    %v671 = vld [vmem:[#allocation6 + $0x878] sm:$0xf]
    %v672 = vld [vmem:[#allocation6 + $0x87c] sm:$0xf]
    %v673 = vld [vmem:[#allocation6 + $0x880] sm:$0xf]
    %v674 = vld [vmem:[#allocation6 + $0x884] sm:$0xf]
    %v675 = vld [vmem:[#allocation6 + $0x888] sm:$0xf]
    %v676 = vld [vmem:[#allocation6 + $0x88c] sm:$0xf]
    %v677 = vld [vmem:[#allocation6 + $0x890] sm:$0xf]
    %v678 = vld [vmem:[#allocation6 + $0x894] sm:$0xf]
    %v679 = vld [vmem:[#allocation6 + $0x898] sm:$0xf]
    %v680 = vld [vmem:[#allocation6 + $0x89c] sm:$0xf]
    %v681 = vld [vmem:[#allocation6 + $0x8a0] sm:$0xf]
    %v682 = vld [vmem:[#allocation6 + $0x8a4] sm:$0xf]
    %v683 = vld [vmem:[#allocation6 + $0x8a8] sm:$0xf]
    %v684 = vld [vmem:[#allocation6 + $0x8ac] sm:$0xf]
    %v685 = vld [vmem:[#allocation6 + $0x8b0] sm:$0xf]
    %v686 = vld [vmem:[#allocation6 + $0x8b4] sm:$0xf]
    %v687 = vld [vmem:[#allocation6 + $0x8b8] sm:$0xf]
    %v688 = vld [vmem:[#allocation6 + $0x8bc] sm:$0xf]
    %v689 = vld [vmem:[#allocation6 + $0x8c0] sm:$0xf]
    %v690 = vld [vmem:[#allocation6 + $0x8c4] sm:$0xf]
    %v691 = vld [vmem:[#allocation6 + $0x8c8] sm:$0xf]
    %v692 = vld [vmem:[#allocation6 + $0x8cc] sm:$0xf]
    %v693 = vld [vmem:[#allocation6 + $0x8d0] sm:$0xf]
    %v694 = vld [vmem:[#allocation6 + $0x8d4] sm:$0xf]
    %v695 = vld [vmem:[#allocation6 + $0x8d8] sm:$0xf]
    %v696 = vld [vmem:[#allocation6 + $0x8dc] sm:$0xf]
    %v697 = vld [vmem:[#allocation6 + $0x8e0] sm:$0xf]
    %v698 = vld [vmem:[#allocation6 + $0x8e4] sm:$0xf]
    %v699 = vld [vmem:[#allocation6 + $0x8e8] sm:$0xf]
    %v700 = vld [vmem:[#allocation6 + $0x8ec] sm:$0xf]
    %v701 = vld [vmem:[#allocation6 + $0x8f0] sm:$0xf]
    %v702 = vld [vmem:[#allocation6 + $0x8f4] sm:$0xf]
    %v703 = vld [vmem:[#allocation6 + $0x8f8] sm:$0xf]
    %v704 = vld [vmem:[#allocation6 + $0x8fc] sm:$0xf]
    %v705 = vld [vmem:[#allocation6 + $0x900] sm:$0xf]
    %v706 = vld [vmem:[#allocation6 + $0x904] sm:$0xf]
    %v707 = vld [vmem:[#allocation6 + $0x908] sm:$0xf]
    %v708 = vld [vmem:[#allocation6 + $0x90c] sm:$0xf]
    %v709 = vld [vmem:[#allocation6 + $0x910] sm:$0xf]
    %v710 = vld [vmem:[#allocation6 + $0x914] sm:$0xf]
    %v711 = vld [vmem:[#allocation6 + $0x918] sm:$0xf]
    %v712 = vld [vmem:[#allocation6 + $0x91c] sm:$0xf]
    %v713 = vld [vmem:[#allocation6 + $0x920] sm:$0xf]
    %v714 = vld [vmem:[#allocation6 + $0x924] sm:$0xf]
    %v715 = vld [vmem:[#allocation6 + $0x928] sm:$0xf]
    %v716 = vld [vmem:[#allocation6 + $0x92c] sm:$0xf]
    %v717 = vld [vmem:[#allocation6 + $0x930] sm:$0xf]
    %v718 = vld [vmem:[#allocation6 + $0x934] sm:$0xf]
    %v719 = vld [vmem:[#allocation6 + $0x938] sm:$0xf]
    %v720 = vld [vmem:[#allocation6 + $0x93c] sm:$0xf]
    %v721 = vld [vmem:[#allocation6 + $0x940] sm:$0xf]
    %v722 = vld [vmem:[#allocation6 + $0x944] sm:$0xf]
    %v723 = vld [vmem:[#allocation6 + $0x948] sm:$0xf]
    %v724 = vld [vmem:[#allocation6 + $0x94c] sm:$0xf]
    %v725 = vld [vmem:[#allocation6 + $0x950] sm:$0xf]
    %v726 = vld [vmem:[#allocation6 + $0x954] sm:$0xf]
    %v727 = vld [vmem:[#allocation6 + $0x958] sm:$0xf]
    %v728 = vld [vmem:[#allocation6 + $0x95c] sm:$0xf]
    %v729 = vld [vmem:[#allocation6 + $0x960] sm:$0xf]
    %v730 = vld [vmem:[#allocation6 + $0x964] sm:$0xf]
    %v731 = vld [vmem:[#allocation6 + $0x968] sm:$0xf]
    %v732 = vld [vmem:[#allocation6 + $0x96c] sm:$0xf]
    %v733 = vld [vmem:[#allocation6 + $0x970] sm:$0xf]
    %v734 = vld [vmem:[#allocation6 + $0x974] sm:$0xf]
    %v735 = vld [vmem:[#allocation6 + $0x978] sm:$0xf]
    %v736 = vld [vmem:[#allocation6 + $0x97c] sm:$0xf]
    %v737 = vld [vmem:[#allocation6 + $0x980] sm:$0xf]
    %v738 = vld [vmem:[#allocation6 + $0x984] sm:$0xf]
    %v739 = vld [vmem:[#allocation6 + $0x988] sm:$0xf]
    %v740 = vld [vmem:[#allocation6 + $0x98c] sm:$0xf]
    %v741 = vld [vmem:[#allocation6 + $0x990] sm:$0xf]
    %v742 = vld [vmem:[#allocation6 + $0x994] sm:$0xf]
    %v743 = vld [vmem:[#allocation6 + $0x998] sm:$0xf]
    %v744 = vld [vmem:[#allocation6 + $0x99c] sm:$0xf]
    %v745 = vld [vmem:[#allocation6 + $0x9a0] sm:$0xf]
    %v746 = vld [vmem:[#allocation6 + $0x9a4] sm:$0xf]
    %v747 = vld [vmem:[#allocation6 + $0x9a8] sm:$0xf]
    %v748 = vld [vmem:[#allocation6 + $0x9ac] sm:$0xf]
    %v749 = vld [vmem:[#allocation6 + $0x9b0] sm:$0xf]
    %v750 = vld [vmem:[#allocation6 + $0x9b4] sm:$0xf]
    %v751 = vld [vmem:[#allocation6 + $0x9b8] sm:$0xf]
    %v752 = vld [vmem:[#allocation6 + $0x9bc] sm:$0xf]
    %v753 = vld [vmem:[#allocation6 + $0x9c0] sm:$0xf]
    %v754 = vld [vmem:[#allocation6 + $0x9c4] sm:$0xf]
    %v755 = vld [vmem:[#allocation6 + $0x9c8] sm:$0xf]
    %v756 = vld [vmem:[#allocation6 + $0x9cc] sm:$0xf]
    %v757 = vld [vmem:[#allocation6 + $0x9d0] sm:$0xf]
    %v758 = vld [vmem:[#allocation6 + $0x9d4] sm:$0xf]
    %v759 = vld [vmem:[#allocation6 + $0x9d8] sm:$0xf]
    %v760 = vld [vmem:[#allocation6 + $0x9dc] sm:$0xf]
    %v761 = vld [vmem:[#allocation6 + $0x9e0] sm:$0xf]
    %v762 = vld [vmem:[#allocation6 + $0x9e4] sm:$0xf]
    %v763 = vld [vmem:[#allocation6 + $0x9e8] sm:$0xf]
    %v764 = vld [vmem:[#allocation6 + $0x9ec] sm:$0xf]
    %v765 = vld [vmem:[#allocation6 + $0x9f0] sm:$0xf]
    %v766 = vld [vmem:[#allocation6 + $0x9f4] sm:$0xf]
    %v767 = vld [vmem:[#allocation6 + $0x9f8] sm:$0xf]
    %v768 = vld [vmem:[#allocation6 + $0x9fc] sm:$0xf]
    %v769 = vld [vmem:[#allocation6 + $0xa00] sm:$0xf]
    %v770 = vld [vmem:[#allocation6 + $0xa04] sm:$0xf]
    %v771 = vld [vmem:[#allocation6 + $0xa08] sm:$0xf]
    %v772 = vld [vmem:[#allocation6 + $0xa0c] sm:$0xf]
    %v773 = vld [vmem:[#allocation6 + $0xa10] sm:$0xf]
    %v774 = vld [vmem:[#allocation6 + $0xa14] sm:$0xf]
    %v775 = vld [vmem:[#allocation6 + $0xa18] sm:$0xf]
    %v776 = vld [vmem:[#allocation6 + $0xa1c] sm:$0xf]
    %v777 = vld [vmem:[#allocation6 + $0xa20] sm:$0xf]
    %v778 = vld [vmem:[#allocation6 + $0xa24] sm:$0xf]
    %v779 = vld [vmem:[#allocation6 + $0xa28] sm:$0xf]
    %v780 = vld [vmem:[#allocation6 + $0xa2c] sm:$0xf]
    %v781 = vld [vmem:[#allocation6 + $0xa30] sm:$0xf]
    %v782 = vld [vmem:[#allocation6 + $0xa34] sm:$0xf]
    %v783 = vld [vmem:[#allocation6 + $0xa38] sm:$0xf]
    %v784 = vld [vmem:[#allocation6 + $0xa3c] sm:$0xf]
    %v785 = vld [vmem:[#allocation6 + $0xa40] sm:$0xf]
    %v786 = vld [vmem:[#allocation6 + $0xa44] sm:$0xf]
    %v787 = vld [vmem:[#allocation6 + $0xa48] sm:$0xf]
    %v788 = vld [vmem:[#allocation6 + $0xa4c] sm:$0xf]
    %v789 = vld [vmem:[#allocation6 + $0xa50] sm:$0xf]
    %v790 = vld [vmem:[#allocation6 + $0xa54] sm:$0xf]
    %v791 = vld [vmem:[#allocation6 + $0xa58] sm:$0xf]
    %v792 = vld [vmem:[#allocation6 + $0xa5c] sm:$0xf]
    %v793 = vld [vmem:[#allocation6 + $0xa60] sm:$0xf]
    %v794 = vld [vmem:[#allocation6 + $0xa64] sm:$0xf]
    %v795 = vld [vmem:[#allocation6 + $0xa68] sm:$0xf]
    %v796 = vld [vmem:[#allocation6 + $0xa6c] sm:$0xf]
    %v797 = vld [vmem:[#allocation6 + $0xa70] sm:$0xf]
    %v798 = vld [vmem:[#allocation6 + $0xa74] sm:$0xf]
    %v799 = vld [vmem:[#allocation6 + $0xa78] sm:$0xf]
    %v800 = vld [vmem:[#allocation6 + $0xa7c] sm:$0xf]
    %v801 = vld [vmem:[#allocation6 + $0xa80] sm:$0xf]
    %v802 = vld [vmem:[#allocation6 + $0xa84] sm:$0xf]
    %v803 = vld [vmem:[#allocation6 + $0xa88] sm:$0xf]
    %v804 = vld [vmem:[#allocation6 + $0xa8c] sm:$0xf]
    %v805 = vld [vmem:[#allocation6 + $0xa90] sm:$0xf]
    %v806 = vld [vmem:[#allocation6 + $0xa94] sm:$0xf]
    %v807 = vld [vmem:[#allocation6 + $0xa98] sm:$0xf]
    %v808 = vld [vmem:[#allocation6 + $0xa9c] sm:$0xf]
    %v809 = vld [vmem:[#allocation6 + $0xaa0] sm:$0xf]
    %v810 = vld [vmem:[#allocation6 + $0xaa4] sm:$0xf]
    %v811 = vld [vmem:[#allocation6 + $0xaa8] sm:$0xf]
    %v812 = vld [vmem:[#allocation6 + $0xaac] sm:$0xf]
    %v813 = vld [vmem:[#allocation6 + $0xab0] sm:$0xf]
    %v814 = vld [vmem:[#allocation6 + $0xab4] sm:$0xf]
    %v815 = vld [vmem:[#allocation6 + $0xab8] sm:$0xf]
    %v816 = vld [vmem:[#allocation6 + $0xabc] sm:$0xf]
    %v817 = vld [vmem:[#allocation6 + $0xac0] sm:$0xf]
    %v818 = vld [vmem:[#allocation6 + $0xac4] sm:$0xf]
    %v819 = vld [vmem:[#allocation6 + $0xac8] sm:$0xf]
    %v820 = vld [vmem:[#allocation6 + $0xacc] sm:$0xf]
    %v821 = vld [vmem:[#allocation6 + $0xad0] sm:$0xf]
    %v822 = vld [vmem:[#allocation6 + $0xad4] sm:$0xf]
    %v823 = vld [vmem:[#allocation6 + $0xad8] sm:$0xf]
    %v824 = vld [vmem:[#allocation6 + $0xadc] sm:$0xf]
    %v825 = vld [vmem:[#allocation6 + $0xae0] sm:$0xf]
    %v826 = vld [vmem:[#allocation6 + $0xae4] sm:$0xf]
    %v827 = vld [vmem:[#allocation6 + $0xae8] sm:$0xf]
    %v828 = vld [vmem:[#allocation6 + $0xaec] sm:$0xf]
    %v829 = vld [vmem:[#allocation6 + $0xaf0] sm:$0xf]
    %v830 = vld [vmem:[#allocation6 + $0xaf4] sm:$0xf]
    %v831 = vld [vmem:[#allocation6 + $0xaf8] sm:$0xf]
    %v832 = vld [vmem:[#allocation6 + $0xafc] sm:$0xf]
    %v833 = vld [vmem:[#allocation6 + $0xb00] sm:$0xf]
    %v834 = vld [vmem:[#allocation6 + $0xb04] sm:$0xf]
    %v835 = vld [vmem:[#allocation6 + $0xb08] sm:$0xf]
    %v836 = vld [vmem:[#allocation6 + $0xb0c] sm:$0xf]
    %v837 = vld [vmem:[#allocation6 + $0xb10] sm:$0xf]
    %v838 = vld [vmem:[#allocation6 + $0xb14] sm:$0xf]
    %v839 = vld [vmem:[#allocation6 + $0xb18] sm:$0xf]
    %v840 = vld [vmem:[#allocation6 + $0xb1c] sm:$0xf]
    %v841 = vld [vmem:[#allocation6 + $0xb20] sm:$0xf]
    %v842 = vld [vmem:[#allocation6 + $0xb24] sm:$0xf]
    %v843 = vld [vmem:[#allocation6 + $0xb28] sm:$0xf]
    %v844 = vld [vmem:[#allocation6 + $0xb2c] sm:$0xf]
    %v845 = vld [vmem:[#allocation6 + $0xb30] sm:$0xf]
    %v846 = vld [vmem:[#allocation6 + $0xb34] sm:$0xf]
    %v847 = vld [vmem:[#allocation6 + $0xb38] sm:$0xf]
    %v848 = vld [vmem:[#allocation6 + $0xb3c] sm:$0xf]
    %v849 = vld [vmem:[#allocation6 + $0xb40] sm:$0xf]
    %v850 = vld [vmem:[#allocation6 + $0xb44] sm:$0xf]
    %v851 = vld [vmem:[#allocation6 + $0xb48] sm:$0xf]
    %v852 = vld [vmem:[#allocation6 + $0xb4c] sm:$0xf]
    %v853 = vld [vmem:[#allocation6 + $0xb50] sm:$0xf]
    %v854 = vld [vmem:[#allocation6 + $0xb54] sm:$0xf]
    %v855 = vld [vmem:[#allocation6 + $0xb58] sm:$0xf]
    %v856 = vld [vmem:[#allocation6 + $0xb5c] sm:$0xf]
    %v857 = vld [vmem:[#allocation6 + $0xb60] sm:$0xf]
    %v858 = vld [vmem:[#allocation6 + $0xb64] sm:$0xf]
    %v859 = vld [vmem:[#allocation6 + $0xb68] sm:$0xf]
    %v860 = vld [vmem:[#allocation6 + $0xb6c] sm:$0xf]
    %v861 = vld [vmem:[#allocation6 + $0xb70] sm:$0xf]
    %v862 = vld [vmem:[#allocation6 + $0xb74] sm:$0xf]
    %v863 = vld [vmem:[#allocation6 + $0xb78] sm:$0xf]
    %v864 = vld [vmem:[#allocation6 + $0xb7c] sm:$0xf]
    %v865 = vld [vmem:[#allocation6 + $0xb80] sm:$0xf]
    %v866 = vld [vmem:[#allocation6 + $0xb84] sm:$0xf]
    %v867 = vld [vmem:[#allocation6 + $0xb88] sm:$0xf]
    %v868 = vld [vmem:[#allocation6 + $0xb8c] sm:$0xf]
    %v869 = vld [vmem:[#allocation6 + $0xb90] sm:$0xf]
    %v870 = vld [vmem:[#allocation6 + $0xb94] sm:$0xf]
    %v871 = vld [vmem:[#allocation6 + $0xb98] sm:$0xf]
    %v872 = vld [vmem:[#allocation6 + $0xb9c] sm:$0xf]
    %v873 = vld [vmem:[#allocation6 + $0xba0] sm:$0xf]
    %v874 = vld [vmem:[#allocation6 + $0xba4] sm:$0xf]
    %v875 = vld [vmem:[#allocation6 + $0xba8] sm:$0xf]
    %v876 = vld [vmem:[#allocation6 + $0xbac] sm:$0xf]
    %v877 = vld [vmem:[#allocation6 + $0xbb0] sm:$0xf]
    %v878 = vld [vmem:[#allocation6 + $0xbb4] sm:$0xf]
    %v879 = vld [vmem:[#allocation6 + $0xbb8] sm:$0xf]
    %v880 = vld [vmem:[#allocation6 + $0xbbc] sm:$0xf]
    %v881 = vld [vmem:[#allocation6 + $0xbc0] sm:$0xf]
    %v882 = vld [vmem:[#allocation6 + $0xbc4] sm:$0xf]
    %v883 = vld [vmem:[#allocation6 + $0xbc8] sm:$0xf]
    %v884 = vld [vmem:[#allocation6 + $0xbcc] sm:$0xf]
    %v885 = vld [vmem:[#allocation6 + $0xbd0] sm:$0xf]
    %v886 = vld [vmem:[#allocation6 + $0xbd4] sm:$0xf]
    %v887 = vld [vmem:[#allocation6 + $0xbd8] sm:$0xf]
    %v888 = vld [vmem:[#allocation6 + $0xbdc] sm:$0xf]
    %v889 = vld [vmem:[#allocation6 + $0xbe0] sm:$0xf]
    %v890 = vld [vmem:[#allocation6 + $0xbe4] sm:$0xf]
    %v891 = vld [vmem:[#allocation6 + $0xbe8] sm:$0xf]
    %v892 = vld [vmem:[#allocation6 + $0xbec] sm:$0xf]
    %v893 = vld [vmem:[#allocation6 + $0xbf0] sm:$0xf]
    %v894 = vld [vmem:[#allocation6 + $0xbf4] sm:$0xf]
    %v895 = vld [vmem:[#allocation6 + $0xbf8] sm:$0xf]
    %v896 = vld [vmem:[#allocation6 + $0xbfc] sm:$0xf]
    %v897 = vld [vmem:[#allocation6 + $0xc00] sm:$0xf]
    %v898 = vld [vmem:[#allocation6 + $0xc04] sm:$0xf]
    %v899 = vld [vmem:[#allocation6 + $0xc08] sm:$0xf]
    %v900 = vld [vmem:[#allocation6 + $0xc0c] sm:$0xf]
    %v901 = vld [vmem:[#allocation6 + $0xc10] sm:$0xf]
    %v902 = vld [vmem:[#allocation6 + $0xc14] sm:$0xf]
    %v903 = vld [vmem:[#allocation6 + $0xc18] sm:$0xf]
    %v904 = vld [vmem:[#allocation6 + $0xc1c] sm:$0xf]
    %v905 = vld [vmem:[#allocation6 + $0xc20] sm:$0xf]
    %v906 = vld [vmem:[#allocation6 + $0xc24] sm:$0xf]
    %v907 = vld [vmem:[#allocation6 + $0xc28] sm:$0xf]
    %v908 = vld [vmem:[#allocation6 + $0xc2c] sm:$0xf]
    %v909 = vld [vmem:[#allocation6 + $0xc30] sm:$0xf]
    %v910 = vld [vmem:[#allocation6 + $0xc34] sm:$0xf]
    %v911 = vld [vmem:[#allocation6 + $0xc38] sm:$0xf]
    %v912 = vld [vmem:[#allocation6 + $0xc3c] sm:$0xf]
    %v913 = vld [vmem:[#allocation6 + $0xc40] sm:$0xf]
    %v914 = vld [vmem:[#allocation6 + $0xc44] sm:$0xf]
    %v915 = vld [vmem:[#allocation6 + $0xc48] sm:$0xf]
    %v916 = vld [vmem:[#allocation6 + $0xc4c] sm:$0xf]
    %v917 = vld [vmem:[#allocation6 + $0xc50] sm:$0xf]
    %v918 = vld [vmem:[#allocation6 + $0xc54] sm:$0xf]
    %v919 = vld [vmem:[#allocation6 + $0xc58] sm:$0xf]
    %v920 = vld [vmem:[#allocation6 + $0xc5c] sm:$0xf]
    %v921 = vld [vmem:[#allocation6 + $0xc60] sm:$0xf]
    %v922 = vld [vmem:[#allocation6 + $0xc64] sm:$0xf]
    %v923 = vld [vmem:[#allocation6 + $0xc68] sm:$0xf]
    %v924 = vld [vmem:[#allocation6 + $0xc6c] sm:$0xf]
    %v925 = vld [vmem:[#allocation6 + $0xc70] sm:$0xf]
    %v926 = vld [vmem:[#allocation6 + $0xc74] sm:$0xf]
    %v927 = vld [vmem:[#allocation6 + $0xc78] sm:$0xf]
    %v928 = vld [vmem:[#allocation6 + $0xc7c] sm:$0xf]
    %v929 = vld [vmem:[#allocation6 + $0xc80] sm:$0xf]
    %v930 = vld [vmem:[#allocation6 + $0xc84] sm:$0xf]
    %v931 = vld [vmem:[#allocation6 + $0xc88] sm:$0xf]
    %v932 = vld [vmem:[#allocation6 + $0xc8c] sm:$0xf]
    %v933 = vld [vmem:[#allocation6 + $0xc90] sm:$0xf]
    %v934 = vld [vmem:[#allocation6 + $0xc94] sm:$0xf]
    %v935 = vld [vmem:[#allocation6 + $0xc98] sm:$0xf]
    %v936 = vld [vmem:[#allocation6 + $0xc9c] sm:$0xf]
    %v937 = vld [vmem:[#allocation6 + $0xca0] sm:$0xf]
    %v938 = vld [vmem:[#allocation6 + $0xca4] sm:$0xf]
    %v939 = vld [vmem:[#allocation6 + $0xca8] sm:$0xf]
    %v940 = vld [vmem:[#allocation6 + $0xcac] sm:$0xf]
    %v941 = vld [vmem:[#allocation6 + $0xcb0] sm:$0xf]
    %v942 = vld [vmem:[#allocation6 + $0xcb4] sm:$0xf]
    %v943 = vld [vmem:[#allocation6 + $0xcb8] sm:$0xf]
    %v944 = vld [vmem:[#allocation6 + $0xcbc] sm:$0xf]
    %v945 = vld [vmem:[#allocation6 + $0xcc0] sm:$0xf]
    %v946 = vld [vmem:[#allocation6 + $0xcc4] sm:$0xf]
    %v947 = vld [vmem:[#allocation6 + $0xcc8] sm:$0xf]
    %v948 = vld [vmem:[#allocation6 + $0xccc] sm:$0xf]
    %v949 = vld [vmem:[#allocation6 + $0xcd0] sm:$0xf]
    %v950 = vld [vmem:[#allocation6 + $0xcd4] sm:$0xf]
    %v951 = vld [vmem:[#allocation6 + $0xcd8] sm:$0xf]
    %v952 = vld [vmem:[#allocation6 + $0xcdc] sm:$0xf]
    %v953 = vld [vmem:[#allocation6 + $0xce0] sm:$0xf]
    %v954 = vld [vmem:[#allocation6 + $0xce4] sm:$0xf]
    %v955 = vld [vmem:[#allocation6 + $0xce8] sm:$0xf]
    %v956 = vld [vmem:[#allocation6 + $0xcec] sm:$0xf]
    %v957 = vld [vmem:[#allocation6 + $0xcf0] sm:$0xf]
    %v958 = vld [vmem:[#allocation6 + $0xcf4] sm:$0xf]
    %v959 = vld [vmem:[#allocation6 + $0xcf8] sm:$0xf]
    %v960 = vld [vmem:[#allocation6 + $0xcfc] sm:$0xf]
    %v961 = vld [vmem:[#allocation6 + $0xd00] sm:$0xf]
    %v962 = vld [vmem:[#allocation6 + $0xd04] sm:$0xf]
    %v963 = vld [vmem:[#allocation6 + $0xd08] sm:$0xf]
    %v964 = vld [vmem:[#allocation6 + $0xd0c] sm:$0xf]
    %v965 = vld [vmem:[#allocation6 + $0xd10] sm:$0xf]
    %v966 = vld [vmem:[#allocation6 + $0xd14] sm:$0xf]
    %v967 = vld [vmem:[#allocation6 + $0xd18] sm:$0xf]
    %v968 = vld [vmem:[#allocation6 + $0xd1c] sm:$0xf]
    %v969 = vld [vmem:[#allocation6 + $0xd20] sm:$0xf]
    %v970 = vld [vmem:[#allocation6 + $0xd24] sm:$0xf]
    %v971 = vld [vmem:[#allocation6 + $0xd28] sm:$0xf]
    %v972 = vld [vmem:[#allocation6 + $0xd2c] sm:$0xf]
    %v973 = vld [vmem:[#allocation6 + $0xd30] sm:$0xf]
    %v974 = vld [vmem:[#allocation6 + $0xd34] sm:$0xf]
    %v975 = vld [vmem:[#allocation6 + $0xd38] sm:$0xf]
    %v976 = vld [vmem:[#allocation6 + $0xd3c] sm:$0xf]
    %v977 = vld [vmem:[#allocation6 + $0xd40] sm:$0xf]
    %v978 = vld [vmem:[#allocation6 + $0xd44] sm:$0xf]
    %v979 = vld [vmem:[#allocation6 + $0xd48] sm:$0xf]
    %v980 = vld [vmem:[#allocation6 + $0xd4c] sm:$0xf]
    %v981 = vld [vmem:[#allocation6 + $0xd50] sm:$0xf]
    %v982 = vld [vmem:[#allocation6 + $0xd54] sm:$0xf]
    %v983 = vld [vmem:[#allocation6 + $0xd58] sm:$0xf]
    %v984 = vld [vmem:[#allocation6 + $0xd5c] sm:$0xf]
    %v985 = vld [vmem:[#allocation6 + $0xd60] sm:$0xf]
    %v986 = vld [vmem:[#allocation6 + $0xd64] sm:$0xf]
    %v987 = vld [vmem:[#allocation6 + $0xd68] sm:$0xf]
    %v988 = vld [vmem:[#allocation6 + $0xd6c] sm:$0xf]
    %v989 = vld [vmem:[#allocation6 + $0xd70] sm:$0xf]
    %v990 = vld [vmem:[#allocation6 + $0xd74] sm:$0xf]
    %v991 = vld [vmem:[#allocation6 + $0xd78] sm:$0xf]
    %v992 = vld [vmem:[#allocation6 + $0xd7c] sm:$0xf]
    %v993 = vld [vmem:[#allocation6 + $0xd80] sm:$0xf]
    %v994 = vld [vmem:[#allocation6 + $0xd84] sm:$0xf]
    %v995 = vld [vmem:[#allocation6 + $0xd88] sm:$0xf]
    %v996 = vld [vmem:[#allocation6 + $0xd8c] sm:$0xf]
    %v997 = vld [vmem:[#allocation6 + $0xd90] sm:$0xf]
    %v998 = vld [vmem:[#allocation6 + $0xd94] sm:$0xf]
    %v999 = vld [vmem:[#allocation6 + $0xd98] sm:$0xf]
    %v1000 = vld [vmem:[#allocation6 + $0xd9c] sm:$0xf]
    %v1001 = vld [vmem:[#allocation6 + $0xda0] sm:$0xf]
    %v1002 = vld [vmem:[#allocation6 + $0xda4] sm:$0xf]
    %v1003 = vld [vmem:[#allocation6 + $0xda8] sm:$0xf]
    %v1004 = vld [vmem:[#allocation6 + $0xdac] sm:$0xf]
    %v1005 = vld [vmem:[#allocation6 + $0xdb0] sm:$0xf]
    %v1006 = vld [vmem:[#allocation6 + $0xdb4] sm:$0xf]
    %v1007 = vld [vmem:[#allocation6 + $0xdb8] sm:$0xf]
    %v1008 = vld [vmem:[#allocation6 + $0xdbc] sm:$0xf]
    %v1009 = vld [vmem:[#allocation6 + $0xdc0] sm:$0xf]
    %v1010 = vld [vmem:[#allocation6 + $0xdc4] sm:$0xf]
    %v1011 = vld [vmem:[#allocation6 + $0xdc8] sm:$0xf]
    %v1012 = vld [vmem:[#allocation6 + $0xdcc] sm:$0xf]
    %v1013 = vld [vmem:[#allocation6 + $0xdd0] sm:$0xf]
    %v1014 = vld [vmem:[#allocation6 + $0xdd4] sm:$0xf]
    %v1015 = vld [vmem:[#allocation6 + $0xdd8] sm:$0xf]
    %v1016 = vld [vmem:[#allocation6 + $0xddc] sm:$0xf]
    %v1017 = vld [vmem:[#allocation6 + $0xde0] sm:$0xf]
    %v1018 = vld [vmem:[#allocation6 + $0xde4] sm:$0xf]
    %v1019 = vld [vmem:[#allocation6 + $0xde8] sm:$0xf]
    %v1020 = vld [vmem:[#allocation6 + $0xdec] sm:$0xf]
    %v1021 = vld [vmem:[#allocation6 + $0xdf0] sm:$0xf]
    %v1022 = vld [vmem:[#allocation6 + $0xdf4] sm:$0xf]
    %v1023 = vld [vmem:[#allocation6 + $0xdf8] sm:$0xf]
    %v1024 = vld [vmem:[#allocation6 + $0xdfc] sm:$0xf]
    %v1025 = vld [vmem:[#allocation6 + $0xe00] sm:$0xf]
    %v1026 = vld [vmem:[#allocation6 + $0xe04] sm:$0xf]
    %v1027 = vld [vmem:[#allocation6 + $0xe08] sm:$0xf]
    %v1028 = vld [vmem:[#allocation6 + $0xe0c] sm:$0xf]
    %v1029 = vld [vmem:[#allocation6 + $0xe10] sm:$0xf]
    %v1030 = vld [vmem:[#allocation6 + $0xe14] sm:$0xf]
    %v1031 = vld [vmem:[#allocation6 + $0xe18] sm:$0xf]
    %v1032 = vld [vmem:[#allocation6 + $0xe1c] sm:$0xf]
    %v1033 = vld [vmem:[#allocation6 + $0xe20] sm:$0xf]
    %v1034 = vld [vmem:[#allocation6 + $0xe24] sm:$0xf]
    %v1035 = vld [vmem:[#allocation6 + $0xe28] sm:$0xf]
    %v1036 = vld [vmem:[#allocation6 + $0xe2c] sm:$0xf]
    %v1037 = vld [vmem:[#allocation6 + $0xe30] sm:$0xf]
    %v1038 = vld [vmem:[#allocation6 + $0xe34] sm:$0xf]
    %v1039 = vld [vmem:[#allocation6 + $0xe38] sm:$0xf]
    %v1040 = vld [vmem:[#allocation6 + $0xe3c] sm:$0xf]
    %v1041 = vld [vmem:[#allocation6 + $0xe40] sm:$0xf]
    %v1042 = vld [vmem:[#allocation6 + $0xe44] sm:$0xf]
    %v1043 = vld [vmem:[#allocation6 + $0xe48] sm:$0xf]
    %v1044 = vld [vmem:[#allocation6 + $0xe4c] sm:$0xf]
    %v1045 = vld [vmem:[#allocation6 + $0xe50] sm:$0xf]
    %v1046 = vld [vmem:[#allocation6 + $0xe54] sm:$0xf]
    %v1047 = vld [vmem:[#allocation6 + $0xe58] sm:$0xf]
    %v1048 = vld [vmem:[#allocation6 + $0xe5c] sm:$0xf]
    %v1049 = vld [vmem:[#allocation6 + $0xe60] sm:$0xf]
    %v1050 = vld [vmem:[#allocation6 + $0xe64] sm:$0xf]
    %v1051 = vld [vmem:[#allocation6 + $0xe68] sm:$0xf]
    %v1052 = vld [vmem:[#allocation6 + $0xe6c] sm:$0xf]
    %v1053 = vld [vmem:[#allocation6 + $0xe70] sm:$0xf]
    %v1054 = vld [vmem:[#allocation6 + $0xe74] sm:$0xf]
    %v1055 = vld [vmem:[#allocation6 + $0xe78] sm:$0xf]
    %v1056 = vld [vmem:[#allocation6 + $0xe7c] sm:$0xf]
    %v1057 = vld [vmem:[#allocation6 + $0xe80] sm:$0xf]
    %v1058 = vld [vmem:[#allocation6 + $0xe84] sm:$0xf]
    %v1059 = vld [vmem:[#allocation6 + $0xe88] sm:$0xf]
    %v1060 = vld [vmem:[#allocation6 + $0xe8c] sm:$0xf]
    %v1061 = vld [vmem:[#allocation6 + $0xe90] sm:$0xf]
    %v1062 = vld [vmem:[#allocation6 + $0xe94] sm:$0xf]
    %v1063 = vld [vmem:[#allocation6 + $0xe98] sm:$0xf]
    %v1064 = vld [vmem:[#allocation6 + $0xe9c] sm:$0xf]
    %v1065 = vld [vmem:[#allocation6 + $0xea0] sm:$0xf]
    %v1066 = vld [vmem:[#allocation6 + $0xea4] sm:$0xf]
    %v1067 = vld [vmem:[#allocation6 + $0xea8] sm:$0xf]
    %v1068 = vld [vmem:[#allocation6 + $0xeac] sm:$0xf]
    %v1069 = vld [vmem:[#allocation6 + $0xeb0] sm:$0xf]
    %v1070 = vld [vmem:[#allocation6 + $0xeb4] sm:$0xf]
    %v1071 = vld [vmem:[#allocation6 + $0xeb8] sm:$0xf]
    %v1072 = vld [vmem:[#allocation6 + $0xebc] sm:$0xf]
    %v1073 = vld [vmem:[#allocation6 + $0xec0] sm:$0xf]
    %v1074 = vld [vmem:[#allocation6 + $0xec4] sm:$0xf]
    %v1075 = vld [vmem:[#allocation6 + $0xec8] sm:$0xf]
    %v1076 = vld [vmem:[#allocation6 + $0xecc] sm:$0xf]
    %v1077 = vld [vmem:[#allocation6 + $0xed0] sm:$0xf]
    %v1078 = vld [vmem:[#allocation6 + $0xed4] sm:$0xf]
    %v1079 = vld [vmem:[#allocation6 + $0xed8] sm:$0xf]
    %v1080 = vld [vmem:[#allocation6 + $0xedc] sm:$0xf]
    %v1081 = vld [vmem:[#allocation6 + $0xee0] sm:$0xf]
    %v1082 = vld [vmem:[#allocation6 + $0xee4] sm:$0xf]
    %v1083 = vld [vmem:[#allocation6 + $0xee8] sm:$0xf]
    %v1084 = vld [vmem:[#allocation6 + $0xeec] sm:$0xf]
    %v1085 = vld [vmem:[#allocation6 + $0xef0] sm:$0xf]
    %v1086 = vld [vmem:[#allocation6 + $0xef4] sm:$0xf]
    %v1087 = vld [vmem:[#allocation6 + $0xef8] sm:$0xf]
    %v1088 = vld [vmem:[#allocation6 + $0xefc] sm:$0xf]
    %v1089 = vld [vmem:[#allocation6 + $0xf00] sm:$0xf]
    %v1090 = vld [vmem:[#allocation6 + $0xf04] sm:$0xf]
    %v1091 = vld [vmem:[#allocation6 + $0xf08] sm:$0xf]
    %v1092 = vld [vmem:[#allocation6 + $0xf0c] sm:$0xf]
    %v1093 = vld [vmem:[#allocation6 + $0xf10] sm:$0xf]
    %v1094 = vld [vmem:[#allocation6 + $0xf14] sm:$0xf]
    %v1095 = vld [vmem:[#allocation6 + $0xf18] sm:$0xf]
    %v1096 = vld [vmem:[#allocation6 + $0xf1c] sm:$0xf]
    %v1097 = vld [vmem:[#allocation6 + $0xf20] sm:$0xf]
    %v1098 = vld [vmem:[#allocation6 + $0xf24] sm:$0xf]
    %v1099 = vld [vmem:[#allocation6 + $0xf28] sm:$0xf]
    %v1100 = vld [vmem:[#allocation6 + $0xf2c] sm:$0xf]
    %v1101 = vld [vmem:[#allocation6 + $0xf30] sm:$0xf]
    %v1102 = vld [vmem:[#allocation6 + $0xf34] sm:$0xf]
    %v1103 = vld [vmem:[#allocation6 + $0xf38] sm:$0xf]
    %v1104 = vld [vmem:[#allocation6 + $0xf3c] sm:$0xf]
    %v1105 = vld [vmem:[#allocation6 + $0xf40] sm:$0xf]
    %v1106 = vld [vmem:[#allocation6 + $0xf44] sm:$0xf]
    %v1107 = vld [vmem:[#allocation6 + $0xf48] sm:$0xf]
    %v1108 = vld [vmem:[#allocation6 + $0xf4c] sm:$0xf]
    %v1109 = vld [vmem:[#allocation6 + $0xf50] sm:$0xf]
    %v1110 = vld [vmem:[#allocation6 + $0xf54] sm:$0xf]
    %v1111 = vld [vmem:[#allocation6 + $0xf58] sm:$0xf]
    %v1112 = vld [vmem:[#allocation6 + $0xf5c] sm:$0xf]
    %v1113 = vld [vmem:[#allocation6 + $0xf60] sm:$0xf]
    %v1114 = vld [vmem:[#allocation6 + $0xf64] sm:$0xf]
    %v1115 = vld [vmem:[#allocation6 + $0xf68] sm:$0xf]
    %v1116 = vld [vmem:[#allocation6 + $0xf6c] sm:$0xf]
    %v1117 = vld [vmem:[#allocation6 + $0xf70] sm:$0xf]
    %v1118 = vld [vmem:[#allocation6 + $0xf74] sm:$0xf]
    %v1119 = vld [vmem:[#allocation6 + $0xf78] sm:$0xf]
    %v1120 = vld [vmem:[#allocation6 + $0xf7c] sm:$0xf]
    %v1121 = vld [vmem:[#allocation6 + $0xf80] sm:$0xf]
    %v1122 = vld [vmem:[#allocation6 + $0xf84] sm:$0xf]
    %v1123 = vld [vmem:[#allocation6 + $0xf88] sm:$0xf]
    %v1124 = vld [vmem:[#allocation6 + $0xf8c] sm:$0xf]
    %v1125 = vld [vmem:[#allocation6 + $0xf90] sm:$0xf]
    %v1126 = vld [vmem:[#allocation6 + $0xf94] sm:$0xf]
    %v1127 = vld [vmem:[#allocation6 + $0xf98] sm:$0xf]
    %v1128 = vld [vmem:[#allocation6 + $0xf9c] sm:$0xf]
    %v1129 = vld [vmem:[#allocation6 + $0xfa0] sm:$0xf]
    %v1130 = vld [vmem:[#allocation6 + $0xfa4] sm:$0xf]
    %v1131 = vld [vmem:[#allocation6 + $0xfa8] sm:$0xf]
    %v1132 = vld [vmem:[#allocation6 + $0xfac] sm:$0xf]
    %v1133 = vld [vmem:[#allocation6 + $0xfb0] sm:$0xf]
    %v1134 = vld [vmem:[#allocation6 + $0xfb4] sm:$0xf]
    %v1135 = vld [vmem:[#allocation6 + $0xfb8] sm:$0xf]
    %v1136 = vld [vmem:[#allocation6 + $0xfbc] sm:$0xf]
    %v1137 = vld [vmem:[#allocation6 + $0xfc0] sm:$0xf]
    %v1138 = vld [vmem:[#allocation6 + $0xfc4] sm:$0xf]
    %v1139 = vld [vmem:[#allocation6 + $0xfc8] sm:$0xf]
    %v1140 = vld [vmem:[#allocation6 + $0xfcc] sm:$0xf]
    %v1141 = vld [vmem:[#allocation6 + $0xfd0] sm:$0xf]
    %v1142 = vld [vmem:[#allocation6 + $0xfd4] sm:$0xf]
    %v1143 = vld [vmem:[#allocation6 + $0xfd8] sm:$0xf]
    %v1144 = vld [vmem:[#allocation6 + $0xfdc] sm:$0xf]
    %v1145 = vld [vmem:[#allocation6 + $0xfe0] sm:$0xf]
    %v1146 = vld [vmem:[#allocation6 + $0xfe4] sm:$0xf]
    %v1147 = vld [vmem:[#allocation6 + $0xfe8] sm:$0xf]
    %v1148 = vld [vmem:[#allocation6 + $0xfec] sm:$0xf]
    %v1149 = vld [vmem:[#allocation6 + $0xff0] sm:$0xf]
    %v1150 = vld [vmem:[#allocation6 + $0xff4] sm:$0xf]
    %v1151 = vld [vmem:[#allocation6 + $0xff8] sm:$0xf]
    %v1152 = vld [vmem:[#allocation6 + $0xffc] sm:$0xf]
    %v1153 = vld [vmem:[#allocation6 + $0x1000] sm:$0xf]
    %v1154 = vld [vmem:[#allocation6 + $0x1004] sm:$0xf]
    %v1155 = vld [vmem:[#allocation6 + $0x1008] sm:$0xf]
    %v1156 = vld [vmem:[#allocation6 + $0x100c] sm:$0xf]
    %v1157 = vld [vmem:[#allocation6 + $0x1010] sm:$0xf]
    %v1158 = vld [vmem:[#allocation6 + $0x1014] sm:$0xf]
    %v1159 = vld [vmem:[#allocation6 + $0x1018] sm:$0xf]
    %v1160 = vld [vmem:[#allocation6 + $0x101c] sm:$0xf]
    %v1161 = vld [vmem:[#allocation6 + $0x1020] sm:$0xf]
    %v1162 = vld [vmem:[#allocation6 + $0x1024] sm:$0xf]
    %v1163 = vld [vmem:[#allocation6 + $0x1028] sm:$0xf]
    %v1164 = vld [vmem:[#allocation6 + $0x102c] sm:$0xf]
    %v1165 = vld [vmem:[#allocation6 + $0x1030] sm:$0xf]
    %v1166 = vld [vmem:[#allocation6 + $0x1034] sm:$0xf]
    %v1167 = vld [vmem:[#allocation6 + $0x1038] sm:$0xf]
    %v1168 = vld [vmem:[#allocation6 + $0x103c] sm:$0xf]
    %v1169 = vld [vmem:[#allocation6 + $0x1040] sm:$0xf]
    %v1170 = vld [vmem:[#allocation6 + $0x1044] sm:$0xf]
    %v1171 = vld [vmem:[#allocation6 + $0x1048] sm:$0xf]
    %v1172 = vld [vmem:[#allocation6 + $0x104c] sm:$0xf]
    %v1173 = vld [vmem:[#allocation6 + $0x1050] sm:$0xf]
    %v1174 = vld [vmem:[#allocation6 + $0x1054] sm:$0xf]
    %v1175 = vld [vmem:[#allocation6 + $0x1058] sm:$0xf]
    %v1176 = vld [vmem:[#allocation6 + $0x105c] sm:$0xf]
    %v1177 = vld [vmem:[#allocation6 + $0x1060] sm:$0xf]
    %v1178 = vld [vmem:[#allocation6 + $0x1064] sm:$0xf]
    %v1179 = vld [vmem:[#allocation6 + $0x1068] sm:$0xf]
    %v1180 = vld [vmem:[#allocation6 + $0x106c] sm:$0xf]
    %v1181 = vld [vmem:[#allocation6 + $0x1070] sm:$0xf]
    %v1182 = vld [vmem:[#allocation6 + $0x1074] sm:$0xf]
    %v1183 = vld [vmem:[#allocation6 + $0x1078] sm:$0xf]
    %v1184 = vld [vmem:[#allocation6 + $0x107c] sm:$0xf]
    %v1185 = vld [vmem:[#allocation6 + $0x1080] sm:$0xf]
    %v1186 = vld [vmem:[#allocation6 + $0x1084] sm:$0xf]
    %v1187 = vld [vmem:[#allocation6 + $0x1088] sm:$0xf]
    %v1188 = vld [vmem:[#allocation6 + $0x108c] sm:$0xf]
    %v1189 = vld [vmem:[#allocation6 + $0x1090] sm:$0xf]
    %v1190 = vld [vmem:[#allocation6 + $0x1094] sm:$0xf]
    %v1191 = vld [vmem:[#allocation6 + $0x1098] sm:$0xf]
    %v1192 = vld [vmem:[#allocation6 + $0x109c] sm:$0xf]
    %v1193 = vld [vmem:[#allocation6 + $0x10a0] sm:$0xf]
    %v1194 = vld [vmem:[#allocation6 + $0x10a4] sm:$0xf]
    %v1195 = vld [vmem:[#allocation6 + $0x10a8] sm:$0xf]
    %v1196 = vld [vmem:[#allocation6 + $0x10ac] sm:$0xf]
    %v1197 = vld [vmem:[#allocation6 + $0x10b0] sm:$0xf]
    %v1198 = vld [vmem:[#allocation6 + $0x10b4] sm:$0xf]
    %v1199 = vld [vmem:[#allocation6 + $0x10b8] sm:$0xf]
    %v1200 = vld [vmem:[#allocation6 + $0x10bc] sm:$0xf]
    %v1201 = vld [vmem:[#allocation6 + $0x10c0] sm:$0xf]
    %v1202 = vld [vmem:[#allocation6 + $0x10c4] sm:$0xf]
    %v1203 = vld [vmem:[#allocation6 + $0x10c8] sm:$0xf]
    %v1204 = vld [vmem:[#allocation6 + $0x10cc] sm:$0xf]
    %v1205 = vld [vmem:[#allocation6 + $0x10d0] sm:$0xf]
    %v1206 = vld [vmem:[#allocation6 + $0x10d4] sm:$0xf]
    %v1207 = vld [vmem:[#allocation6 + $0x10d8] sm:$0xf]
    %v1208 = vld [vmem:[#allocation6 + $0x10dc] sm:$0xf]
    %v1209 = vld [vmem:[#allocation6 + $0x10e0] sm:$0xf]
    %v1210 = vld [vmem:[#allocation6 + $0x10e4] sm:$0xf]
    %v1211 = vld [vmem:[#allocation6 + $0x10e8] sm:$0xf]
    %v1212 = vld [vmem:[#allocation6 + $0x10ec] sm:$0xf]
    %v1213 = vld [vmem:[#allocation6 + $0x10f0] sm:$0xf]
    %v1214 = vld [vmem:[#allocation6 + $0x10f4] sm:$0xf]
    %v1215 = vld [vmem:[#allocation6 + $0x10f8] sm:$0xf]
    %v1216 = vld [vmem:[#allocation6 + $0x10fc] sm:$0xf]
    %v1217 = vld [vmem:[#allocation6 + $0x1100] sm:$0xf]
    %v1218 = vld [vmem:[#allocation6 + $0x1104] sm:$0xf]
    %v1219 = vld [vmem:[#allocation6 + $0x1108] sm:$0xf]
    %v1220 = vld [vmem:[#allocation6 + $0x110c] sm:$0xf]
    %v1221 = vld [vmem:[#allocation6 + $0x1110] sm:$0xf]
    %v1222 = vld [vmem:[#allocation6 + $0x1114] sm:$0xf]
    %v1223 = vld [vmem:[#allocation6 + $0x1118] sm:$0xf]
    %v1224 = vld [vmem:[#allocation6 + $0x111c] sm:$0xf]
    %v1225 = vld [vmem:[#allocation6 + $0x1120] sm:$0xf]
    %v1226 = vld [vmem:[#allocation6 + $0x1124] sm:$0xf]
    %v1227 = vld [vmem:[#allocation6 + $0x1128] sm:$0xf]
    %v1228 = vld [vmem:[#allocation6 + $0x112c] sm:$0xf]
    %v1229 = vld [vmem:[#allocation6 + $0x1130] sm:$0xf]
    %v1230 = vld [vmem:[#allocation6 + $0x1134] sm:$0xf]
    %v1231 = vld [vmem:[#allocation6 + $0x1138] sm:$0xf]
    %v1232 = vld [vmem:[#allocation6 + $0x113c] sm:$0xf]
    %v1233 = vld [vmem:[#allocation6 + $0x1140] sm:$0xf]
    %v1234 = vld [vmem:[#allocation6 + $0x1144] sm:$0xf]
    %v1235 = vld [vmem:[#allocation6 + $0x1148] sm:$0xf]
    %v1236 = vld [vmem:[#allocation6 + $0x114c] sm:$0xf]
    %v1237 = vld [vmem:[#allocation6 + $0x1150] sm:$0xf]
    %v1238 = vld [vmem:[#allocation6 + $0x1154] sm:$0xf]
    %v1239 = vld [vmem:[#allocation6 + $0x1158] sm:$0xf]
    %v1240 = vld [vmem:[#allocation6 + $0x115c] sm:$0xf]
    %v1241 = vld [vmem:[#allocation6 + $0x1160] sm:$0xf]
    %v1242 = vld [vmem:[#allocation6 + $0x1164] sm:$0xf]
    %v1243 = vld [vmem:[#allocation6 + $0x1168] sm:$0xf]
    %v1244 = vld [vmem:[#allocation6 + $0x116c] sm:$0xf]
    %v1245 = vld [vmem:[#allocation6 + $0x1170] sm:$0xf]
    %v1246 = vld [vmem:[#allocation6 + $0x1174] sm:$0xf]
    %v1247 = vld [vmem:[#allocation6 + $0x1178] sm:$0xf]
    %v1248 = vld [vmem:[#allocation6 + $0x117c] sm:$0xf]
    %v1249 = vld [vmem:[#allocation6 + $0x1180] sm:$0xf]
    %v1250 = vld [vmem:[#allocation6 + $0x1184] sm:$0xf]
    %v1251 = vld [vmem:[#allocation6 + $0x1188] sm:$0xf]
    %v1252 = vld [vmem:[#allocation6 + $0x118c] sm:$0xf]
    %v1253 = vld [vmem:[#allocation6 + $0x1190] sm:$0xf]
    %v1254 = vld [vmem:[#allocation6 + $0x1194] sm:$0xf]
    %v1255 = vld [vmem:[#allocation6 + $0x1198] sm:$0xf]
    %v1256 = vld [vmem:[#allocation6 + $0x119c] sm:$0xf]
    %v1257 = vld [vmem:[#allocation6 + $0x11a0] sm:$0xf]
    %v1258 = vld [vmem:[#allocation6 + $0x11a4] sm:$0xf]
    %v1259 = vld [vmem:[#allocation6 + $0x11a8] sm:$0xf]
    %v1260 = vld [vmem:[#allocation6 + $0x11ac] sm:$0xf]
    %v1261 = vld [vmem:[#allocation6 + $0x11b0] sm:$0xf]
    %v1262 = vld [vmem:[#allocation6 + $0x11b4] sm:$0xf]
    %v1263 = vld [vmem:[#allocation6 + $0x11b8] sm:$0xf]
    %v1264 = vld [vmem:[#allocation6 + $0x11bc] sm:$0xf]
    %v1265 = vld [vmem:[#allocation6 + $0x11c0] sm:$0xf]
    %v1266 = vld [vmem:[#allocation6 + $0x11c4] sm:$0xf]
    %v1267 = vld [vmem:[#allocation6 + $0x11c8] sm:$0xf]
    %v1268 = vld [vmem:[#allocation6 + $0x11cc] sm:$0xf]
    %v1269 = vld [vmem:[#allocation6 + $0x11d0] sm:$0xf]
    %v1270 = vld [vmem:[#allocation6 + $0x11d4] sm:$0xf]
    %v1271 = vld [vmem:[#allocation6 + $0x11d8] sm:$0xf]
    %v1272 = vld [vmem:[#allocation6 + $0x11dc] sm:$0xf]
    %v1273 = vld [vmem:[#allocation6 + $0x11e0] sm:$0xf]
    %v1274 = vld [vmem:[#allocation6 + $0x11e4] sm:$0xf]
    %v1275 = vld [vmem:[#allocation6 + $0x11e8] sm:$0xf]
    %v1276 = vld [vmem:[#allocation6 + $0x11ec] sm:$0xf]
    %v1277 = vld [vmem:[#allocation6 + $0x11f0] sm:$0xf]
    %v1278 = vld [vmem:[#allocation6 + $0x11f4] sm:$0xf]
    %v1279 = vld [vmem:[#allocation6 + $0x11f8] sm:$0xf]
    %v1280 = vld [vmem:[#allocation6 + $0x11fc] sm:$0xf]
    %v1281 = vld [vmem:[#allocation6 + $0x1200] sm:$0xf]
    %v1282 = vld [vmem:[#allocation6 + $0x1204] sm:$0xf]
    %v1283 = vld [vmem:[#allocation6 + $0x1208] sm:$0xf]
    %v1284 = vld [vmem:[#allocation6 + $0x120c] sm:$0xf]
    %v1285 = vld [vmem:[#allocation6 + $0x1210] sm:$0xf]
    %v1286 = vld [vmem:[#allocation6 + $0x1214] sm:$0xf]
    %v1287 = vld [vmem:[#allocation6 + $0x1218] sm:$0xf]
    %v1288 = vld [vmem:[#allocation6 + $0x121c] sm:$0xf]
    %v1289 = vld [vmem:[#allocation6 + $0x1220] sm:$0xf]
    %v1290 = vld [vmem:[#allocation6 + $0x1224] sm:$0xf]
    %v1291 = vld [vmem:[#allocation6 + $0x1228] sm:$0xf]
    %v1292 = vld [vmem:[#allocation6 + $0x122c] sm:$0xf]
    %v1293 = vld [vmem:[#allocation6 + $0x1230] sm:$0xf]
    %v1294 = vld [vmem:[#allocation6 + $0x1234] sm:$0xf]
    %v1295 = vld [vmem:[#allocation6 + $0x1238] sm:$0xf]
    %v1296 = vld [vmem:[#allocation6 + $0x123c] sm:$0xf]
    %v1297 = vld [vmem:[#allocation6 + $0x1240] sm:$0xf]
    %v1298 = vld [vmem:[#allocation6 + $0x1244] sm:$0xf]
    %v1299 = vld [vmem:[#allocation6 + $0x1248] sm:$0xf]
    %v1300 = vld [vmem:[#allocation6 + $0x124c] sm:$0xf]
    %v1301 = vld [vmem:[#allocation6 + $0x1250] sm:$0xf]
    %v1302 = vld [vmem:[#allocation6 + $0x1254] sm:$0xf]
    %v1303 = vld [vmem:[#allocation6 + $0x1258] sm:$0xf]
    %v1304 = vld [vmem:[#allocation6 + $0x125c] sm:$0xf]
    %v1305 = vld [vmem:[#allocation6 + $0x1260] sm:$0xf]
    %v1306 = vld [vmem:[#allocation6 + $0x1264] sm:$0xf]
    %v1307 = vld [vmem:[#allocation6 + $0x1268] sm:$0xf]
    %v1308 = vld [vmem:[#allocation6 + $0x126c] sm:$0xf]
    %v1309 = vld [vmem:[#allocation6 + $0x1270] sm:$0xf]
    %v1310 = vld [vmem:[#allocation6 + $0x1274] sm:$0xf]
    %v1311 = vld [vmem:[#allocation6 + $0x1278] sm:$0xf]
    %v1312 = vld [vmem:[#allocation6 + $0x127c] sm:$0xf]
    %v1313 = vld [vmem:[#allocation6 + $0x1280] sm:$0xf]
    %v1314 = vld [vmem:[#allocation6 + $0x1284] sm:$0xf]
    %v1315 = vld [vmem:[#allocation6 + $0x1288] sm:$0xf]
    %v1316 = vld [vmem:[#allocation6 + $0x128c] sm:$0xf]
    %v1317 = vld [vmem:[#allocation6 + $0x1290] sm:$0xf]
    %v1318 = vld [vmem:[#allocation6 + $0x1294] sm:$0xf]
    %v1319 = vld [vmem:[#allocation6 + $0x1298] sm:$0xf]
    %v1320 = vld [vmem:[#allocation6 + $0x129c] sm:$0xf]
    %v1321 = vld [vmem:[#allocation6 + $0x12a0] sm:$0xf]
    %v1322 = vld [vmem:[#allocation6 + $0x12a4] sm:$0xf]
    %v1323 = vld [vmem:[#allocation6 + $0x12a8] sm:$0xf]
    %v1324 = vld [vmem:[#allocation6 + $0x12ac] sm:$0xf]
    %v1325 = vld [vmem:[#allocation6 + $0x12b0] sm:$0xf]
    %v1326 = vld [vmem:[#allocation6 + $0x12b4] sm:$0xf]
    %v1327 = vld [vmem:[#allocation6 + $0x12b8] sm:$0xf]
    %v1328 = vld [vmem:[#allocation6 + $0x12bc] sm:$0xf]
    %v1329 = vld [vmem:[#allocation6 + $0x12c0] sm:$0xf]
    %v1330 = vld [vmem:[#allocation6 + $0x12c4] sm:$0xf]
    %v1331 = vld [vmem:[#allocation6 + $0x12c8] sm:$0xf]
    %v1332 = vld [vmem:[#allocation6 + $0x12cc] sm:$0xf]
    %v1333 = vld [vmem:[#allocation6 + $0x12d0] sm:$0xf]
    %v1334 = vld [vmem:[#allocation6 + $0x12d4] sm:$0xf]
    %v1335 = vld [vmem:[#allocation6 + $0x12d8] sm:$0xf]
    %v1336 = vld [vmem:[#allocation6 + $0x12dc] sm:$0xf]
    %v1337 = vld [vmem:[#allocation6 + $0x12e0] sm:$0xf]
    %v1338 = vld [vmem:[#allocation6 + $0x12e4] sm:$0xf]
    %v1339 = vld [vmem:[#allocation6 + $0x12e8] sm:$0xf]
    %v1340 = vld [vmem:[#allocation6 + $0x12ec] sm:$0xf]
    %v1341 = vld [vmem:[#allocation6 + $0x12f0] sm:$0xf]
    %v1342 = vld [vmem:[#allocation6 + $0x12f4] sm:$0xf]
    %v1343 = vld [vmem:[#allocation6 + $0x12f8] sm:$0xf]
    %v1344 = vld [vmem:[#allocation6 + $0x12fc] sm:$0xf]
    %v1345 = vld [vmem:[#allocation6 + $0x1300] sm:$0xf]
    %v1346 = vld [vmem:[#allocation6 + $0x1304] sm:$0xf]
    %v1347 = vld [vmem:[#allocation6 + $0x1308] sm:$0xf]
    %v1348 = vld [vmem:[#allocation6 + $0x130c] sm:$0xf]
    %v1349 = vld [vmem:[#allocation6 + $0x1310] sm:$0xf]
    %v1350 = vld [vmem:[#allocation6 + $0x1314] sm:$0xf]
    %v1351 = vld [vmem:[#allocation6 + $0x1318] sm:$0xf]
    %v1352 = vld [vmem:[#allocation6 + $0x131c] sm:$0xf]
    %v1353 = vld [vmem:[#allocation6 + $0x1320] sm:$0xf]
    %v1354 = vld [vmem:[#allocation6 + $0x1324] sm:$0xf]
    %v1355 = vld [vmem:[#allocation6 + $0x1328] sm:$0xf]
    %v1356 = vld [vmem:[#allocation6 + $0x132c] sm:$0xf]
    %v1357 = vld [vmem:[#allocation6 + $0x1330] sm:$0xf]
    %v1358 = vld [vmem:[#allocation6 + $0x1334] sm:$0xf]
    %v1359 = vld [vmem:[#allocation6 + $0x1338] sm:$0xf]
    %v1360 = vld [vmem:[#allocation6 + $0x133c] sm:$0xf]
    %v1361 = vld [vmem:[#allocation6 + $0x1340] sm:$0xf]
    %v1362 = vld [vmem:[#allocation6 + $0x1344] sm:$0xf]
    %v1363 = vld [vmem:[#allocation6 + $0x1348] sm:$0xf]
    %v1364 = vld [vmem:[#allocation6 + $0x134c] sm:$0xf]
    %v1365 = vld [vmem:[#allocation6 + $0x1350] sm:$0xf]
    %v1366 = vld [vmem:[#allocation6 + $0x1354] sm:$0xf]
    %v1367 = vld [vmem:[#allocation6 + $0x1358] sm:$0xf]
    %v1368 = vld [vmem:[#allocation6 + $0x135c] sm:$0xf]
    %v1369 = vld [vmem:[#allocation6 + $0x1360] sm:$0xf]
    %v1370 = vld [vmem:[#allocation6 + $0x1364] sm:$0xf]
    %v1371 = vld [vmem:[#allocation6 + $0x1368] sm:$0xf]
    %v1372 = vld [vmem:[#allocation6 + $0x136c] sm:$0xf]
    %v1373 = vld [vmem:[#allocation6 + $0x1370] sm:$0xf]
    %v1374 = vld [vmem:[#allocation6 + $0x1374] sm:$0xf]
    %v1375 = vld [vmem:[#allocation6 + $0x1378] sm:$0xf]
    %v1376 = vld [vmem:[#allocation6 + $0x137c] sm:$0xf]
    %v1377 = vld [vmem:[#allocation6 + $0x1380] sm:$0xf]
    %v1378 = vld [vmem:[#allocation6 + $0x1384] sm:$0xf]
    %v1379 = vld [vmem:[#allocation6 + $0x1388] sm:$0xf]
    %v1380 = vld [vmem:[#allocation6 + $0x138c] sm:$0xf]
    %v1381 = vld [vmem:[#allocation6 + $0x1390] sm:$0xf]
    %v1382 = vld [vmem:[#allocation6 + $0x1394] sm:$0xf]
    %v1383 = vld [vmem:[#allocation6 + $0x1398] sm:$0xf]
    %v1384 = vld [vmem:[#allocation6 + $0x139c] sm:$0xf]
    %v1385 = vld [vmem:[#allocation6 + $0x13a0] sm:$0xf]
    %v1386 = vld [vmem:[#allocation6 + $0x13a4] sm:$0xf]
    %v1387 = vld [vmem:[#allocation6 + $0x13a8] sm:$0xf]
    %v1388 = vld [vmem:[#allocation6 + $0x13ac] sm:$0xf]
    %v1389 = vld [vmem:[#allocation6 + $0x13b0] sm:$0xf]
    %v1390 = vld [vmem:[#allocation6 + $0x13b4] sm:$0xf]
    %v1391 = vld [vmem:[#allocation6 + $0x13b8] sm:$0xf]
    %v1392 = vld [vmem:[#allocation6 + $0x13bc] sm:$0xf]
    %v1393 = vld [vmem:[#allocation6 + $0x13c0] sm:$0xf]
    %v1394 = vld [vmem:[#allocation6 + $0x13c4] sm:$0xf]
    %v1395 = vld [vmem:[#allocation6 + $0x13c8] sm:$0xf]
    %v1396 = vld [vmem:[#allocation6 + $0x13cc] sm:$0xf]
    %v1397 = vld [vmem:[#allocation6 + $0x13d0] sm:$0xf]
    %v1398 = vld [vmem:[#allocation6 + $0x13d4] sm:$0xf]
    %v1399 = vld [vmem:[#allocation6 + $0x13d8] sm:$0xf]
    %v1400 = vld [vmem:[#allocation6 + $0x13dc] sm:$0xf]
    %v1401 = vld [vmem:[#allocation6 + $0x13e0] sm:$0xf]
    %v1402 = vld [vmem:[#allocation6 + $0x13e4] sm:$0xf]
    %v1403 = vld [vmem:[#allocation6 + $0x13e8] sm:$0xf]
    %v1404 = vld [vmem:[#allocation6 + $0x13ec] sm:$0xf]
    %v1405 = vld [vmem:[#allocation6 + $0x13f0] sm:$0xf]
    %v1406 = vld [vmem:[#allocation6 + $0x13f4] sm:$0xf]
    %v1407 = vld [vmem:[#allocation6 + $0x13f8] sm:$0xf]
    %v1408 = vld [vmem:[#allocation6 + $0x13fc] sm:$0xf]
    %v1409 = vld [vmem:[#allocation6 + $0x1400] sm:$0xf]
    %v1410 = vld [vmem:[#allocation6 + $0x1404] sm:$0xf]
    %v1411 = vld [vmem:[#allocation6 + $0x1408] sm:$0xf]
    %v1412 = vld [vmem:[#allocation6 + $0x140c] sm:$0xf]
    %v1413 = vld [vmem:[#allocation6 + $0x1410] sm:$0xf]
    %v1414 = vld [vmem:[#allocation6 + $0x1414] sm:$0xf]
    %v1415 = vld [vmem:[#allocation6 + $0x1418] sm:$0xf]
    %v1416 = vld [vmem:[#allocation6 + $0x141c] sm:$0xf]
    %v1417 = vld [vmem:[#allocation6 + $0x1420] sm:$0xf]
    %v1418 = vld [vmem:[#allocation6 + $0x1424] sm:$0xf]
    %v1419 = vld [vmem:[#allocation6 + $0x1428] sm:$0xf]
    %v1420 = vld [vmem:[#allocation6 + $0x142c] sm:$0xf]
    %v1421 = vld [vmem:[#allocation6 + $0x1430] sm:$0xf]
    %v1422 = vld [vmem:[#allocation6 + $0x1434] sm:$0xf]
    %v1423 = vld [vmem:[#allocation6 + $0x1438] sm:$0xf]
    %v1424 = vld [vmem:[#allocation6 + $0x143c] sm:$0xf]
    %v1425 = vld [vmem:[#allocation6 + $0x1440] sm:$0xf]
    %v1426 = vld [vmem:[#allocation6 + $0x1444] sm:$0xf]
    %v1427 = vld [vmem:[#allocation6 + $0x1448] sm:$0xf]
    %v1428 = vld [vmem:[#allocation6 + $0x144c] sm:$0xf]
    %v1429 = vld [vmem:[#allocation6 + $0x1450] sm:$0xf]
    %v1430 = vld [vmem:[#allocation6 + $0x1454] sm:$0xf]
    %v1431 = vld [vmem:[#allocation6 + $0x1458] sm:$0xf]
    %v1432 = vld [vmem:[#allocation6 + $0x145c] sm:$0xf]
    %v1433 = vld [vmem:[#allocation6 + $0x1460] sm:$0xf]
    %v1434 = vld [vmem:[#allocation6 + $0x1464] sm:$0xf]
    %v1435 = vld [vmem:[#allocation6 + $0x1468] sm:$0xf]
    %v1436 = vld [vmem:[#allocation6 + $0x146c] sm:$0xf]
    %v1437 = vld [vmem:[#allocation6 + $0x1470] sm:$0xf]
    %v1438 = vld [vmem:[#allocation6 + $0x1474] sm:$0xf]
    %v1439 = vld [vmem:[#allocation6 + $0x1478] sm:$0xf]
    %v1440 = vld [vmem:[#allocation6 + $0x147c] sm:$0xf]
    %v1441 = vld [vmem:[#allocation6 + $0x1480] sm:$0xf]
    %v1442 = vld [vmem:[#allocation6 + $0x1484] sm:$0xf]
    %v1443 = vld [vmem:[#allocation6 + $0x1488] sm:$0xf]
    %v1444 = vld [vmem:[#allocation6 + $0x148c] sm:$0xf]
    %v1445 = vld [vmem:[#allocation6 + $0x1490] sm:$0xf]
    %v1446 = vld [vmem:[#allocation6 + $0x1494] sm:$0xf]
    %v1447 = vld [vmem:[#allocation6 + $0x1498] sm:$0xf]
    %v1448 = vld [vmem:[#allocation6 + $0x149c] sm:$0xf]
    %v1449 = vld [vmem:[#allocation6 + $0x14a0] sm:$0xf]
    %v1450 = vld [vmem:[#allocation6 + $0x14a4] sm:$0xf]
    %v1451 = vld [vmem:[#allocation6 + $0x14a8] sm:$0xf]
    %v1452 = vld [vmem:[#allocation6 + $0x14ac] sm:$0xf]
    %v1453 = vld [vmem:[#allocation6 + $0x14b0] sm:$0xf]
    %v1454 = vld [vmem:[#allocation6 + $0x14b4] sm:$0xf]
    %v1455 = vld [vmem:[#allocation6 + $0x14b8] sm:$0xf]
    %v1456 = vld [vmem:[#allocation6 + $0x14bc] sm:$0xf]
    %v1457 = vld [vmem:[#allocation6 + $0x14c0] sm:$0xf]
    %v1458 = vld [vmem:[#allocation6 + $0x14c4] sm:$0xf]
    %v1459 = vld [vmem:[#allocation6 + $0x14c8] sm:$0xf]
    %v1460 = vld [vmem:[#allocation6 + $0x14cc] sm:$0xf]
    %v1461 = vld [vmem:[#allocation6 + $0x14d0] sm:$0xf]
    %v1462 = vld [vmem:[#allocation6 + $0x14d4] sm:$0xf]
    %v1463 = vld [vmem:[#allocation6 + $0x14d8] sm:$0xf]
    %v1464 = vld [vmem:[#allocation6 + $0x14dc] sm:$0xf]
    %v1465 = vld [vmem:[#allocation6 + $0x14e0] sm:$0xf]
    %v1466 = vld [vmem:[#allocation6 + $0x14e4] sm:$0xf]
    %v1467 = vld [vmem:[#allocation6 + $0x14e8] sm:$0xf]
    %v1468 = vld [vmem:[#allocation6 + $0x14ec] sm:$0xf]
    %v1469 = vld [vmem:[#allocation6 + $0x14f0] sm:$0xf]
    %v1470 = vld [vmem:[#allocation6 + $0x14f4] sm:$0xf]
    %v1471 = vld [vmem:[#allocation6 + $0x14f8] sm:$0xf]
    %v1472 = vld [vmem:[#allocation6 + $0x14fc] sm:$0xf]
    %v1473 = vld [vmem:[#allocation6 + $0x1500] sm:$0xf]
    %v1474 = vld [vmem:[#allocation6 + $0x1504] sm:$0xf]
    %v1475 = vld [vmem:[#allocation6 + $0x1508] sm:$0xf]
    %v1476 = vld [vmem:[#allocation6 + $0x150c] sm:$0xf]
    %v1477 = vld [vmem:[#allocation6 + $0x1510] sm:$0xf]
    %v1478 = vld [vmem:[#allocation6 + $0x1514] sm:$0xf]
    %v1479 = vld [vmem:[#allocation6 + $0x1518] sm:$0xf]
    %v1480 = vld [vmem:[#allocation6 + $0x151c] sm:$0xf]
    %v1481 = vld [vmem:[#allocation6 + $0x1520] sm:$0xf]
    %v1482 = vld [vmem:[#allocation6 + $0x1524] sm:$0xf]
    %v1483 = vld [vmem:[#allocation6 + $0x1528] sm:$0xf]
    %v1484 = vld [vmem:[#allocation6 + $0x152c] sm:$0xf]
    %v1485 = vld [vmem:[#allocation6 + $0x1530] sm:$0xf]
    %v1486 = vld [vmem:[#allocation6 + $0x1534] sm:$0xf]
    %v1487 = vld [vmem:[#allocation6 + $0x1538] sm:$0xf]
    %v1488 = vld [vmem:[#allocation6 + $0x153c] sm:$0xf]
    %v1489 = vld [vmem:[#allocation6 + $0x1540] sm:$0xf]
    %v1490 = vld [vmem:[#allocation6 + $0x1544] sm:$0xf]
    %v1491 = vld [vmem:[#allocation6 + $0x1548] sm:$0xf]
    %v1492 = vld [vmem:[#allocation6 + $0x154c] sm:$0xf]
    %v1493 = vld [vmem:[#allocation6 + $0x1550] sm:$0xf]
    %v1494 = vld [vmem:[#allocation6 + $0x1554] sm:$0xf]
    %v1495 = vld [vmem:[#allocation6 + $0x1558] sm:$0xf]
    %v1496 = vld [vmem:[#allocation6 + $0x155c] sm:$0xf]
    %v1497 = vld [vmem:[#allocation6 + $0x1560] sm:$0xf]
    %v1498 = vld [vmem:[#allocation6 + $0x1564] sm:$0xf]
    %v1499 = vld [vmem:[#allocation6 + $0x1568] sm:$0xf]
    %v1500 = vld [vmem:[#allocation6 + $0x156c] sm:$0xf]
    %v1501 = vld [vmem:[#allocation6 + $0x1570] sm:$0xf]
    %v1502 = vld [vmem:[#allocation6 + $0x1574] sm:$0xf]
    %v1503 = vld [vmem:[#allocation6 + $0x1578] sm:$0xf]
    %v1504 = vld [vmem:[#allocation6 + $0x157c] sm:$0xf]
    %v1505 = vld [vmem:[#allocation6 + $0x1580] sm:$0xf]
    %v1506 = vld [vmem:[#allocation6 + $0x1584] sm:$0xf]
    %v1507 = vld [vmem:[#allocation6 + $0x1588] sm:$0xf]
    %v1508 = vld [vmem:[#allocation6 + $0x158c] sm:$0xf]
    %v1509 = vld [vmem:[#allocation6 + $0x1590] sm:$0xf]
    %v1510 = vld [vmem:[#allocation6 + $0x1594] sm:$0xf]
    %v1511 = vld [vmem:[#allocation6 + $0x1598] sm:$0xf]
    %v1512 = vld [vmem:[#allocation6 + $0x159c] sm:$0xf]
    %v1513 = vld [vmem:[#allocation6 + $0x15a0] sm:$0xf]
    %v1514 = vld [vmem:[#allocation6 + $0x15a4] sm:$0xf]
    %v1515 = vld [vmem:[#allocation6 + $0x15a8] sm:$0xf]
    %v1516 = vld [vmem:[#allocation6 + $0x15ac] sm:$0xf]
    %v1517 = vld [vmem:[#allocation6 + $0x15b0] sm:$0xf]
    %v1518 = vld [vmem:[#allocation6 + $0x15b4] sm:$0xf]
    %v1519 = vld [vmem:[#allocation6 + $0x15b8] sm:$0xf]
    %v1520 = vld [vmem:[#allocation6 + $0x15bc] sm:$0xf]
    %v1521 = vld [vmem:[#allocation6 + $0x15c0] sm:$0xf]
    %v1522 = vld [vmem:[#allocation6 + $0x15c4] sm:$0xf]
    %v1523 = vld [vmem:[#allocation6 + $0x15c8] sm:$0xf]
    %v1524 = vld [vmem:[#allocation6 + $0x15cc] sm:$0xf]
    %v1525 = vld [vmem:[#allocation6 + $0x15d0] sm:$0xf]
    %v1526 = vld [vmem:[#allocation6 + $0x15d4] sm:$0xf]
    %v1527 = vld [vmem:[#allocation6 + $0x15d8] sm:$0xf]
    %v1528 = vld [vmem:[#allocation6 + $0x15dc] sm:$0xf]
    %v1529 = vld [vmem:[#allocation6 + $0x15e0] sm:$0xf]
    %v1530 = vld [vmem:[#allocation6 + $0x15e4] sm:$0xf]
    %v1531 = vld [vmem:[#allocation6 + $0x15e8] sm:$0xf]
    %v1532 = vld [vmem:[#allocation6 + $0x15ec] sm:$0xf]
    %v1533 = vld [vmem:[#allocation6 + $0x15f0] sm:$0xf]
    %v1534 = vld [vmem:[#allocation6 + $0x15f4] sm:$0xf]
    %v1535 = vld [vmem:[#allocation6 + $0x15f8] sm:$0xf]
    %v1536 = vld [vmem:[#allocation6 + $0x15fc] sm:$0xf]
    %v1537 = vld [vmem:[#allocation6 + $0x1600] sm:$0xf]
    %v1538 = vld [vmem:[#allocation6 + $0x1604] sm:$0xf]
    %v1539 = vld [vmem:[#allocation6 + $0x1608] sm:$0xf]
    %v1540 = vld [vmem:[#allocation6 + $0x160c] sm:$0xf]
    %v1541 = vld [vmem:[#allocation6 + $0x1610] sm:$0xf]
    %v1542 = vld [vmem:[#allocation6 + $0x1614] sm:$0xf]
    %v1543 = vld [vmem:[#allocation6 + $0x1618] sm:$0xf]
    %v1544 = vld [vmem:[#allocation6 + $0x161c] sm:$0xf]
    %v1545 = vld [vmem:[#allocation6 + $0x1620] sm:$0xf]
    %v1546 = vld [vmem:[#allocation6 + $0x1624] sm:$0xf]
    %v1547 = vld [vmem:[#allocation6 + $0x1628] sm:$0xf]
    %v1548 = vld [vmem:[#allocation6 + $0x162c] sm:$0xf]
    %v1549 = vld [vmem:[#allocation6 + $0x1630] sm:$0xf]
    %v1550 = vld [vmem:[#allocation6 + $0x1634] sm:$0xf]
    %v1551 = vld [vmem:[#allocation6 + $0x1638] sm:$0xf]
    %v1552 = vld [vmem:[#allocation6 + $0x163c] sm:$0xf]
    %v1553 = vld [vmem:[#allocation6 + $0x1640] sm:$0xf]
    %v1554 = vld [vmem:[#allocation6 + $0x1644] sm:$0xf]
    %v1555 = vld [vmem:[#allocation6 + $0x1648] sm:$0xf]
    %v1556 = vld [vmem:[#allocation6 + $0x164c] sm:$0xf]
    %v1557 = vld [vmem:[#allocation6 + $0x1650] sm:$0xf]
    %v1558 = vld [vmem:[#allocation6 + $0x1654] sm:$0xf]
    %v1559 = vld [vmem:[#allocation6 + $0x1658] sm:$0xf]
    %v1560 = vld [vmem:[#allocation6 + $0x165c] sm:$0xf]
    %v1561 = vld [vmem:[#allocation6 + $0x1660] sm:$0xf]
    %v1562 = vld [vmem:[#allocation6 + $0x1664] sm:$0xf]
    %v1563 = vld [vmem:[#allocation6 + $0x1668] sm:$0xf]
    %v1564 = vld [vmem:[#allocation6 + $0x166c] sm:$0xf]
    %v1565 = vld [vmem:[#allocation6 + $0x1670] sm:$0xf]
    %v1566 = vld [vmem:[#allocation6 + $0x1674] sm:$0xf]
    %v1567 = vld [vmem:[#allocation6 + $0x1678] sm:$0xf]
    %v1568 = vld [vmem:[#allocation6 + $0x167c] sm:$0xf]
    %v1569 = vld [vmem:[#allocation6 + $0x1680] sm:$0xf]
    %v1570 = vld [vmem:[#allocation6 + $0x1684] sm:$0xf]
    %v1571 = vld [vmem:[#allocation6 + $0x1688] sm:$0xf]
    %v1572 = vld [vmem:[#allocation6 + $0x168c] sm:$0xf]
    %v1573 = vld [vmem:[#allocation6 + $0x1690] sm:$0xf]
    %v1574 = vld [vmem:[#allocation6 + $0x1694] sm:$0xf]
    %v1575 = vld [vmem:[#allocation6 + $0x1698] sm:$0xf]
    %v1576 = vld [vmem:[#allocation6 + $0x169c] sm:$0xf]
    %v1577 = vld [vmem:[#allocation6 + $0x16a0] sm:$0xf]
    %v1578 = vld [vmem:[#allocation6 + $0x16a4] sm:$0xf]
    %v1579 = vld [vmem:[#allocation6 + $0x16a8] sm:$0xf]
    %v1580 = vld [vmem:[#allocation6 + $0x16ac] sm:$0xf]
    %v1581 = vld [vmem:[#allocation6 + $0x16b0] sm:$0xf]
    %v1582 = vld [vmem:[#allocation6 + $0x16b4] sm:$0xf]
    %v1583 = vld [vmem:[#allocation6 + $0x16b8] sm:$0xf]
    %v1584 = vld [vmem:[#allocation6 + $0x16bc] sm:$0xf]
    %v1585 = vld [vmem:[#allocation6 + $0x16c0] sm:$0xf]
    %v1586 = vld [vmem:[#allocation6 + $0x16c4] sm:$0xf]
    %v1587 = vld [vmem:[#allocation6 + $0x16c8] sm:$0xf]
    %v1588 = vld [vmem:[#allocation6 + $0x16cc] sm:$0xf]
    %v1589 = vld [vmem:[#allocation6 + $0x16d0] sm:$0xf]
    %v1590 = vld [vmem:[#allocation6 + $0x16d4] sm:$0xf]
    %v1591 = vld [vmem:[#allocation6 + $0x16d8] sm:$0xf]
    %v1592 = vld [vmem:[#allocation6 + $0x16dc] sm:$0xf]
    %v1593 = vld [vmem:[#allocation6 + $0x16e0] sm:$0xf]
    %v1594 = vld [vmem:[#allocation6 + $0x16e4] sm:$0xf]
    %v1595 = vld [vmem:[#allocation6 + $0x16e8] sm:$0xf]
    %v1596 = vld [vmem:[#allocation6 + $0x16ec] sm:$0xf]
    %v1597 = vld [vmem:[#allocation6 + $0x16f0] sm:$0xf]
    %v1598 = vld [vmem:[#allocation6 + $0x16f4] sm:$0xf]
    %v1599 = vld [vmem:[#allocation6 + $0x16f8] sm:$0xf]
    %v1600 = vld [vmem:[#allocation6 + $0x16fc] sm:$0xf]
    %v1601 = vld [vmem:[#allocation6 + $0x1700] sm:$0xf]
    %v1602 = vld [vmem:[#allocation6 + $0x1704] sm:$0xf]
    %v1603 = vld [vmem:[#allocation6 + $0x1708] sm:$0xf]
    %v1604 = vld [vmem:[#allocation6 + $0x170c] sm:$0xf]
    %v1605 = vld [vmem:[#allocation6 + $0x1710] sm:$0xf]
    %v1606 = vld [vmem:[#allocation6 + $0x1714] sm:$0xf]
    %v1607 = vld [vmem:[#allocation6 + $0x1718] sm:$0xf]
    %v1608 = vld [vmem:[#allocation6 + $0x171c] sm:$0xf]
    %v1609 = vld [vmem:[#allocation6 + $0x1720] sm:$0xf]
    %v1610 = vld [vmem:[#allocation6 + $0x1724] sm:$0xf]
    %v1611 = vld [vmem:[#allocation6 + $0x1728] sm:$0xf]
    %v1612 = vld [vmem:[#allocation6 + $0x172c] sm:$0xf]
    %v1613 = vld [vmem:[#allocation6 + $0x1730] sm:$0xf]
    %v1614 = vld [vmem:[#allocation6 + $0x1734] sm:$0xf]
    %v1615 = vld [vmem:[#allocation6 + $0x1738] sm:$0xf]
    %v1616 = vld [vmem:[#allocation6 + $0x173c] sm:$0xf]
    %v1617 = vld [vmem:[#allocation6 + $0x1740] sm:$0xf]
    %v1618 = vld [vmem:[#allocation6 + $0x1744] sm:$0xf]
    %v1619 = vld [vmem:[#allocation6 + $0x1748] sm:$0xf]
    %v1620 = vld [vmem:[#allocation6 + $0x174c] sm:$0xf]
    %v1621 = vld [vmem:[#allocation6 + $0x1750] sm:$0xf]
    %v1622 = vld [vmem:[#allocation6 + $0x1754] sm:$0xf]
    %v1623 = vld [vmem:[#allocation6 + $0x1758] sm:$0xf]
    %v1624 = vld [vmem:[#allocation6 + $0x175c] sm:$0xf]
    %v1625 = vld [vmem:[#allocation6 + $0x1760] sm:$0xf]
    %v1626 = vld [vmem:[#allocation6 + $0x1764] sm:$0xf]
    %v1627 = vld [vmem:[#allocation6 + $0x1768] sm:$0xf]
    %v1628 = vld [vmem:[#allocation6 + $0x176c] sm:$0xf]
    %v1629 = vld [vmem:[#allocation6 + $0x1770] sm:$0xf]
    %v1630 = vld [vmem:[#allocation6 + $0x1774] sm:$0xf]
    %v1631 = vld [vmem:[#allocation6 + $0x1778] sm:$0xf]
    %v1632 = vld [vmem:[#allocation6 + $0x177c] sm:$0xf]
    %v1633 = vld [vmem:[#allocation6 + $0x1780] sm:$0xf]
    %v1634 = vld [vmem:[#allocation6 + $0x1784] sm:$0xf]
    %v1635 = vld [vmem:[#allocation6 + $0x1788] sm:$0xf]
    %v1636 = vld [vmem:[#allocation6 + $0x178c] sm:$0xf]
    %v1637 = vld [vmem:[#allocation6 + $0x1790] sm:$0xf]
    %v1638 = vld [vmem:[#allocation6 + $0x1794] sm:$0xf]
    %v1639 = vld [vmem:[#allocation6 + $0x1798] sm:$0xf]
    %v1640 = vld [vmem:[#allocation6 + $0x179c] sm:$0xf]
    %v1641 = vld [vmem:[#allocation6 + $0x17a0] sm:$0xf]
    %v1642 = vld [vmem:[#allocation6 + $0x17a4] sm:$0xf]
    %v1643 = vld [vmem:[#allocation6 + $0x17a8] sm:$0xf]
    %v1644 = vld [vmem:[#allocation6 + $0x17ac] sm:$0xf]
    %v1645 = vld [vmem:[#allocation6 + $0x17b0] sm:$0xf]
    %v1646 = vld [vmem:[#allocation6 + $0x17b4] sm:$0xf]
    %v1647 = vld [vmem:[#allocation6 + $0x17b8] sm:$0xf]
    %v1648 = vld [vmem:[#allocation6 + $0x17bc] sm:$0xf]
    %v1649 = vld [vmem:[#allocation6 + $0x17c0] sm:$0xf]
    %v1650 = vld [vmem:[#allocation6 + $0x17c4] sm:$0xf]
    %v1651 = vld [vmem:[#allocation6 + $0x17c8] sm:$0xf]
    %v1652 = vld [vmem:[#allocation6 + $0x17cc] sm:$0xf]
    %v1653 = vld [vmem:[#allocation6 + $0x17d0] sm:$0xf]
    %v1654 = vld [vmem:[#allocation6 + $0x17d4] sm:$0xf]
    %v1655 = vld [vmem:[#allocation6 + $0x17d8] sm:$0xf]
    %v1656 = vld [vmem:[#allocation6 + $0x17dc] sm:$0xf]
    %v1657 = vld [vmem:[#allocation6 + $0x17e0] sm:$0xf]
    %v1658 = vld [vmem:[#allocation6 + $0x17e4] sm:$0xf]
    %v1659 = vld [vmem:[#allocation6 + $0x17e8] sm:$0xf]
    %v1660 = vld [vmem:[#allocation6 + $0x17ec] sm:$0xf]
    %v1661 = vld [vmem:[#allocation6 + $0x17f0] sm:$0xf]
    %v1662 = vld [vmem:[#allocation6 + $0x17f4] sm:$0xf]
    %v1663 = vld [vmem:[#allocation6 + $0x17f8] sm:$0xf]
    %v1664 = vld [vmem:[#allocation6 + $0x17fc] sm:$0xf]
    %v1665 = vld [vmem:[#allocation6 + $0x1800] sm:$0xf]
    %v1666 = vld [vmem:[#allocation6 + $0x1804] sm:$0xf]
    %v1667 = vld [vmem:[#allocation6 + $0x1808] sm:$0xf]
    %v1668 = vld [vmem:[#allocation6 + $0x180c] sm:$0xf]
    %v1669 = vld [vmem:[#allocation6 + $0x1810] sm:$0xf]
    %v1670 = vld [vmem:[#allocation6 + $0x1814] sm:$0xf]
    %v1671 = vld [vmem:[#allocation6 + $0x1818] sm:$0xf]
    %v1672 = vld [vmem:[#allocation6 + $0x181c] sm:$0xf]
    %v1673 = vld [vmem:[#allocation6 + $0x1820] sm:$0xf]
    %v1674 = vld [vmem:[#allocation6 + $0x1824] sm:$0xf]
    %v1675 = vld [vmem:[#allocation6 + $0x1828] sm:$0xf]
    %v1676 = vld [vmem:[#allocation6 + $0x182c] sm:$0xf]
    %v1677 = vld [vmem:[#allocation6 + $0x1830] sm:$0xf]
    %v1678 = vld [vmem:[#allocation6 + $0x1834] sm:$0xf]
    %v1679 = vld [vmem:[#allocation6 + $0x1838] sm:$0xf]
    %v1680 = vld [vmem:[#allocation6 + $0x183c] sm:$0xf]
    %v1681 = vld [vmem:[#allocation6 + $0x1840] sm:$0xf]
    %v1682 = vld [vmem:[#allocation6 + $0x1844] sm:$0xf]
    %v1683 = vld [vmem:[#allocation6 + $0x1848] sm:$0xf]
    %v1684 = vld [vmem:[#allocation6 + $0x184c] sm:$0xf]
    %v1685 = vld [vmem:[#allocation6 + $0x1850] sm:$0xf]
    %v1686 = vld [vmem:[#allocation6 + $0x1854] sm:$0xf]
    %v1687 = vld [vmem:[#allocation6 + $0x1858] sm:$0xf]
    %v1688 = vld [vmem:[#allocation6 + $0x185c] sm:$0xf]
    %v1689 = vld [vmem:[#allocation6 + $0x1860] sm:$0xf]
    %v1690 = vld [vmem:[#allocation6 + $0x1864] sm:$0xf]
    %v1691 = vld [vmem:[#allocation6 + $0x1868] sm:$0xf]
    %v1692 = vld [vmem:[#allocation6 + $0x186c] sm:$0xf]
    %v1693 = vld [vmem:[#allocation6 + $0x1870] sm:$0xf]
    %v1694 = vld [vmem:[#allocation6 + $0x1874] sm:$0xf]
    %v1695 = vld [vmem:[#allocation6 + $0x1878] sm:$0xf]
    %v1696 = vld [vmem:[#allocation6 + $0x187c] sm:$0xf]
    %v1697 = vld [vmem:[#allocation6 + $0x1880] sm:$0xf]
    %v1698 = vld [vmem:[#allocation6 + $0x1884] sm:$0xf]
    %v1699 = vld [vmem:[#allocation6 + $0x1888] sm:$0xf]
    %v1700 = vld [vmem:[#allocation6 + $0x188c] sm:$0xf]
    %v1701 = vld [vmem:[#allocation6 + $0x1890] sm:$0xf]
    %v1702 = vld [vmem:[#allocation6 + $0x1894] sm:$0xf]
    %v1703 = vld [vmem:[#allocation6 + $0x1898] sm:$0xf]
    %v1704 = vld [vmem:[#allocation6 + $0x189c] sm:$0xf]
    %v1705 = vld [vmem:[#allocation6 + $0x18a0] sm:$0xf]
    %v1706 = vld [vmem:[#allocation6 + $0x18a4] sm:$0xf]
    %v1707 = vld [vmem:[#allocation6 + $0x18a8] sm:$0xf]
    %v1708 = vld [vmem:[#allocation6 + $0x18ac] sm:$0xf]
    %v1709 = vld [vmem:[#allocation6 + $0x18b0] sm:$0xf]
    %v1710 = vld [vmem:[#allocation6 + $0x18b4] sm:$0xf]
    %v1711 = vld [vmem:[#allocation6 + $0x18b8] sm:$0xf]
    %v1712 = vld [vmem:[#allocation6 + $0x18bc] sm:$0xf]
    %v1713 = vld [vmem:[#allocation6 + $0x18c0] sm:$0xf]
    %v1714 = vld [vmem:[#allocation6 + $0x18c4] sm:$0xf]
    %v1715 = vld [vmem:[#allocation6 + $0x18c8] sm:$0xf]
    %v1716 = vld [vmem:[#allocation6 + $0x18cc] sm:$0xf]
    %v1717 = vld [vmem:[#allocation6 + $0x18d0] sm:$0xf]
    %v1718 = vld [vmem:[#allocation6 + $0x18d4] sm:$0xf]
    %v1719 = vld [vmem:[#allocation6 + $0x18d8] sm:$0xf]
    %v1720 = vld [vmem:[#allocation6 + $0x18dc] sm:$0xf]
    %v1721 = vld [vmem:[#allocation6 + $0x18e0] sm:$0xf]
    %v1722 = vld [vmem:[#allocation6 + $0x18e4] sm:$0xf]
    %v1723 = vld [vmem:[#allocation6 + $0x18e8] sm:$0xf]
    %v1724 = vld [vmem:[#allocation6 + $0x18ec] sm:$0xf]
    %v1725 = vld [vmem:[#allocation6 + $0x18f0] sm:$0xf]
    %v1726 = vld [vmem:[#allocation6 + $0x18f4] sm:$0xf]
    %v1727 = vld [vmem:[#allocation6 + $0x18f8] sm:$0xf]
    %v1728 = vld [vmem:[#allocation6 + $0x18fc] sm:$0xf]
    %v1729 = vld [vmem:[#allocation6 + $0x1900] sm:$0xf]
    %v1730 = vld [vmem:[#allocation6 + $0x1904] sm:$0xf]
    %v1731 = vld [vmem:[#allocation6 + $0x1908] sm:$0xf]
    %v1732 = vld [vmem:[#allocation6 + $0x190c] sm:$0xf]
    %v1733 = vld [vmem:[#allocation6 + $0x1910] sm:$0xf]
    %v1734 = vld [vmem:[#allocation6 + $0x1914] sm:$0xf]
    %v1735 = vld [vmem:[#allocation6 + $0x1918] sm:$0xf]
    %v1736 = vld [vmem:[#allocation6 + $0x191c] sm:$0xf]
    %v1737 = vld [vmem:[#allocation6 + $0x1920] sm:$0xf]
    %v1738 = vld [vmem:[#allocation6 + $0x1924] sm:$0xf]
    %v1739 = vld [vmem:[#allocation6 + $0x1928] sm:$0xf]
    %v1740 = vld [vmem:[#allocation6 + $0x192c] sm:$0xf]
    %v1741 = vld [vmem:[#allocation6 + $0x1930] sm:$0xf]
    %v1742 = vld [vmem:[#allocation6 + $0x1934] sm:$0xf]
    %v1743 = vld [vmem:[#allocation6 + $0x1938] sm:$0xf]
    %v1744 = vld [vmem:[#allocation6 + $0x193c] sm:$0xf]
    %v1745 = vld [vmem:[#allocation6 + $0x1940] sm:$0xf]
    %v1746 = vld [vmem:[#allocation6 + $0x1944] sm:$0xf]
    %v1747 = vld [vmem:[#allocation6 + $0x1948] sm:$0xf]
    %v1748 = vld [vmem:[#allocation6 + $0x194c] sm:$0xf]
    %v1749 = vld [vmem:[#allocation6 + $0x1950] sm:$0xf]
    %v1750 = vld [vmem:[#allocation6 + $0x1954] sm:$0xf]
    %v1751 = vld [vmem:[#allocation6 + $0x1958] sm:$0xf]
    %v1752 = vld [vmem:[#allocation6 + $0x195c] sm:$0xf]
    %v1753 = vld [vmem:[#allocation6 + $0x1960] sm:$0xf]
    %v1754 = vld [vmem:[#allocation6 + $0x1964] sm:$0xf]
    %v1755 = vld [vmem:[#allocation6 + $0x1968] sm:$0xf]
    %v1756 = vld [vmem:[#allocation6 + $0x196c] sm:$0xf]
    %v1757 = vld [vmem:[#allocation6 + $0x1970] sm:$0xf]
    %v1758 = vld [vmem:[#allocation6 + $0x1974] sm:$0xf]
    %v1759 = vld [vmem:[#allocation6 + $0x1978] sm:$0xf]
    %v1760 = vld [vmem:[#allocation6 + $0x197c] sm:$0xf]
    %v1761 = vld [vmem:[#allocation6 + $0x1980] sm:$0xf]
    %v1762 = vld [vmem:[#allocation6 + $0x1984] sm:$0xf]
    %v1763 = vld [vmem:[#allocation6 + $0x1988] sm:$0xf]
    %v1764 = vld [vmem:[#allocation6 + $0x198c] sm:$0xf]
    %v1765 = vld [vmem:[#allocation6 + $0x1990] sm:$0xf]
    %v1766 = vld [vmem:[#allocation6 + $0x1994] sm:$0xf]
    %v1767 = vld [vmem:[#allocation6 + $0x1998] sm:$0xf]
    %v1768 = vld [vmem:[#allocation6 + $0x199c] sm:$0xf]
    %v1769 = vld [vmem:[#allocation6 + $0x19a0] sm:$0xf]
    %v1770 = vld [vmem:[#allocation6 + $0x19a4] sm:$0xf]
    %v1771 = vld [vmem:[#allocation6 + $0x19a8] sm:$0xf]
    %v1772 = vld [vmem:[#allocation6 + $0x19ac] sm:$0xf]
    %v1773 = vld [vmem:[#allocation6 + $0x19b0] sm:$0xf]
    %v1774 = vld [vmem:[#allocation6 + $0x19b4] sm:$0xf]
    %v1775 = vld [vmem:[#allocation6 + $0x19b8] sm:$0xf]
    %v1776 = vld [vmem:[#allocation6 + $0x19bc] sm:$0xf]
    %v1777 = vld [vmem:[#allocation6 + $0x19c0] sm:$0xf]
    %v1778 = vld [vmem:[#allocation6 + $0x19c4] sm:$0xf]
    %v1779 = vld [vmem:[#allocation6 + $0x19c8] sm:$0xf]
    %v1780 = vld [vmem:[#allocation6 + $0x19cc] sm:$0xf]
    %v1781 = vld [vmem:[#allocation6 + $0x19d0] sm:$0xf]
    %v1782 = vld [vmem:[#allocation6 + $0x19d4] sm:$0xf]
    %v1783 = vld [vmem:[#allocation6 + $0x19d8] sm:$0xf]
    %v1784 = vld [vmem:[#allocation6 + $0x19dc] sm:$0xf]
    %v1785 = vld [vmem:[#allocation6 + $0x19e0] sm:$0xf]
    %v1786 = vld [vmem:[#allocation6 + $0x19e4] sm:$0xf]
    %v1787 = vld [vmem:[#allocation6 + $0x19e8] sm:$0xf]
    %v1788 = vld [vmem:[#allocation6 + $0x19ec] sm:$0xf]
    %v1789 = vld [vmem:[#allocation6 + $0x19f0] sm:$0xf]
    %v1790 = vld [vmem:[#allocation6 + $0x19f4] sm:$0xf]
    %v1791 = vld [vmem:[#allocation6 + $0x19f8] sm:$0xf]
    %v1792 = vld [vmem:[#allocation6 + $0x19fc] sm:$0xf]
    %v1793 = vld [vmem:[#allocation6 + $0x1a00] sm:$0xf]
    %v1794 = vld [vmem:[#allocation6 + $0x1a04] sm:$0xf]
    %v1795 = vld [vmem:[#allocation6 + $0x1a08] sm:$0xf]
    %v1796 = vld [vmem:[#allocation6 + $0x1a0c] sm:$0xf]
    %v1797 = vld [vmem:[#allocation6 + $0x1a10] sm:$0xf]
    %v1798 = vld [vmem:[#allocation6 + $0x1a14] sm:$0xf]
    %v1799 = vld [vmem:[#allocation6 + $0x1a18] sm:$0xf]
    %v1800 = vld [vmem:[#allocation6 + $0x1a1c] sm:$0xf]
    %v1801 = vld [vmem:[#allocation6 + $0x1a20] sm:$0xf]
    %v1802 = vld [vmem:[#allocation6 + $0x1a24] sm:$0xf]
    %v1803 = vld [vmem:[#allocation6 + $0x1a28] sm:$0xf]
    %v1804 = vld [vmem:[#allocation6 + $0x1a2c] sm:$0xf]
    %v1805 = vld [vmem:[#allocation6 + $0x1a30] sm:$0xf]
    %v1806 = vld [vmem:[#allocation6 + $0x1a34] sm:$0xf]
    %v1807 = vld [vmem:[#allocation6 + $0x1a38] sm:$0xf]
    %v1808 = vld [vmem:[#allocation6 + $0x1a3c] sm:$0xf]
    %v1809 = vld [vmem:[#allocation6 + $0x1a40] sm:$0xf]
    %v1810 = vld [vmem:[#allocation6 + $0x1a44] sm:$0xf]
    %v1811 = vld [vmem:[#allocation6 + $0x1a48] sm:$0xf]
    %v1812 = vld [vmem:[#allocation6 + $0x1a4c] sm:$0xf]
    %v1813 = vld [vmem:[#allocation6 + $0x1a50] sm:$0xf]
    %v1814 = vld [vmem:[#allocation6 + $0x1a54] sm:$0xf]
    %v1815 = vld [vmem:[#allocation6 + $0x1a58] sm:$0xf]
    %v1816 = vld [vmem:[#allocation6 + $0x1a5c] sm:$0xf]
    %v1817 = vld [vmem:[#allocation6 + $0x1a60] sm:$0xf]
    %v1818 = vld [vmem:[#allocation6 + $0x1a64] sm:$0xf]
    %v1819 = vld [vmem:[#allocation6 + $0x1a68] sm:$0xf]
    %v1820 = vld [vmem:[#allocation6 + $0x1a6c] sm:$0xf]
    %v1821 = vld [vmem:[#allocation6 + $0x1a70] sm:$0xf]
    %v1822 = vld [vmem:[#allocation6 + $0x1a74] sm:$0xf]
    %v1823 = vld [vmem:[#allocation6 + $0x1a78] sm:$0xf]
    %v1824 = vld [vmem:[#allocation6 + $0x1a7c] sm:$0xf]
    %v1825 = vld [vmem:[#allocation6 + $0x1a80] sm:$0xf]
    %v1826 = vld [vmem:[#allocation6 + $0x1a84] sm:$0xf]
    %v1827 = vld [vmem:[#allocation6 + $0x1a88] sm:$0xf]
    %v1828 = vld [vmem:[#allocation6 + $0x1a8c] sm:$0xf]
    %v1829 = vld [vmem:[#allocation6 + $0x1a90] sm:$0xf]
    %v1830 = vld [vmem:[#allocation6 + $0x1a94] sm:$0xf]
    %v1831 = vld [vmem:[#allocation6 + $0x1a98] sm:$0xf]
    %v1832 = vld [vmem:[#allocation6 + $0x1a9c] sm:$0xf]
    %v1833 = vld [vmem:[#allocation6 + $0x1aa0] sm:$0xf]
    %v1834 = vld [vmem:[#allocation6 + $0x1aa4] sm:$0xf]
    %v1835 = vld [vmem:[#allocation6 + $0x1aa8] sm:$0xf]
    %v1836 = vld [vmem:[#allocation6 + $0x1aac] sm:$0xf]
    %v1837 = vld [vmem:[#allocation6 + $0x1ab0] sm:$0xf]
    %v1838 = vld [vmem:[#allocation6 + $0x1ab4] sm:$0xf]
    %v1839 = vld [vmem:[#allocation6 + $0x1ab8] sm:$0xf]
    %v1840 = vld [vmem:[#allocation6 + $0x1abc] sm:$0xf]
    %v1841 = vld [vmem:[#allocation6 + $0x1ac0] sm:$0xf]
    %v1842 = vld [vmem:[#allocation6 + $0x1ac4] sm:$0xf]
    %v1843 = vld [vmem:[#allocation6 + $0x1ac8] sm:$0xf]
    %v1844 = vld [vmem:[#allocation6 + $0x1acc] sm:$0xf]
    %v1845 = vld [vmem:[#allocation6 + $0x1ad0] sm:$0xf]
    %v1846 = vld [vmem:[#allocation6 + $0x1ad4] sm:$0xf]
    %v1847 = vld [vmem:[#allocation6 + $0x1ad8] sm:$0xf]
    %v1848 = vld [vmem:[#allocation6 + $0x1adc] sm:$0xf]
    %v1849 = vld [vmem:[#allocation6 + $0x1ae0] sm:$0xf]
    %v1850 = vld [vmem:[#allocation6 + $0x1ae4] sm:$0xf]
    %v1851 = vld [vmem:[#allocation6 + $0x1ae8] sm:$0xf]
    %v1852 = vld [vmem:[#allocation6 + $0x1aec] sm:$0xf]
    %v1853 = vld [vmem:[#allocation6 + $0x1af0] sm:$0xf]
    %v1854 = vld [vmem:[#allocation6 + $0x1af4] sm:$0xf]
    %v1855 = vld [vmem:[#allocation6 + $0x1af8] sm:$0xf]
    %v1856 = vld [vmem:[#allocation6 + $0x1afc] sm:$0xf]
    %v1857 = vld [vmem:[#allocation6 + $0x1b00] sm:$0xf]
    %v1858 = vld [vmem:[#allocation6 + $0x1b04] sm:$0xf]
    %v1859 = vld [vmem:[#allocation6 + $0x1b08] sm:$0xf]
    %v1860 = vld [vmem:[#allocation6 + $0x1b0c] sm:$0xf]
    %v1861 = vld [vmem:[#allocation6 + $0x1b10] sm:$0xf]
    %v1862 = vld [vmem:[#allocation6 + $0x1b14] sm:$0xf]
    %v1863 = vld [vmem:[#allocation6 + $0x1b18] sm:$0xf]
    %v1864 = vld [vmem:[#allocation6 + $0x1b1c] sm:$0xf]
    %v1865 = vld [vmem:[#allocation6 + $0x1b20] sm:$0xf]
    %v1866 = vld [vmem:[#allocation6 + $0x1b24] sm:$0xf]
    %v1867 = vld [vmem:[#allocation6 + $0x1b28] sm:$0xf]
    %v1868 = vld [vmem:[#allocation6 + $0x1b2c] sm:$0xf]
    %v1869 = vld [vmem:[#allocation6 + $0x1b30] sm:$0xf]
    %v1870 = vld [vmem:[#allocation6 + $0x1b34] sm:$0xf]
    %v1871 = vld [vmem:[#allocation6 + $0x1b38] sm:$0xf]
    %v1872 = vld [vmem:[#allocation6 + $0x1b3c] sm:$0xf]
    %v1873 = vld [vmem:[#allocation6 + $0x1b40] sm:$0xf]
    %v1874 = vld [vmem:[#allocation6 + $0x1b44] sm:$0xf]
    %v1875 = vld [vmem:[#allocation6 + $0x1b48] sm:$0xf]
    %v1876 = vld [vmem:[#allocation6 + $0x1b4c] sm:$0xf]
    %v1877 = vld [vmem:[#allocation6 + $0x1b50] sm:$0xf]
    %v1878 = vld [vmem:[#allocation6 + $0x1b54] sm:$0xf]
    %v1879 = vld [vmem:[#allocation6 + $0x1b58] sm:$0xf]
    %v1880 = vld [vmem:[#allocation6 + $0x1b5c] sm:$0xf]
    %v1881 = vld [vmem:[#allocation6 + $0x1b60] sm:$0xf]
    %v1882 = vld [vmem:[#allocation6 + $0x1b64] sm:$0xf]
    %v1883 = vld [vmem:[#allocation6 + $0x1b68] sm:$0xf]
    %v1884 = vld [vmem:[#allocation6 + $0x1b6c] sm:$0xf]
    %v1885 = vld [vmem:[#allocation6 + $0x1b70] sm:$0xf]
    %v1886 = vld [vmem:[#allocation6 + $0x1b74] sm:$0xf]
    %v1887 = vld [vmem:[#allocation6 + $0x1b78] sm:$0xf]
    %v1888 = vld [vmem:[#allocation6 + $0x1b7c] sm:$0xf]
    %v1889 = vld [vmem:[#allocation6 + $0x1b80] sm:$0xf]
    %v1890 = vld [vmem:[#allocation6 + $0x1b84] sm:$0xf]
    %v1891 = vld [vmem:[#allocation6 + $0x1b88] sm:$0xf]
    %v1892 = vld [vmem:[#allocation6 + $0x1b8c] sm:$0xf]
    %v1893 = vld [vmem:[#allocation6 + $0x1b90] sm:$0xf]
    %v1894 = vld [vmem:[#allocation6 + $0x1b94] sm:$0xf]
    %v1895 = vld [vmem:[#allocation6 + $0x1b98] sm:$0xf]
    %v1896 = vld [vmem:[#allocation6 + $0x1b9c] sm:$0xf]
    %v1897 = vld [vmem:[#allocation6 + $0x1ba0] sm:$0xf]
    %v1898 = vld [vmem:[#allocation6 + $0x1ba4] sm:$0xf]
    %v1899 = vld [vmem:[#allocation6 + $0x1ba8] sm:$0xf]
    %v1900 = vld [vmem:[#allocation6 + $0x1bac] sm:$0xf]
    %v1901 = vld [vmem:[#allocation6 + $0x1bb0] sm:$0xf]
    %v1902 = vld [vmem:[#allocation6 + $0x1bb4] sm:$0xf]
    %v1903 = vld [vmem:[#allocation6 + $0x1bb8] sm:$0xf]
    %v1904 = vld [vmem:[#allocation6 + $0x1bbc] sm:$0xf]
    %v1905 = vld [vmem:[#allocation6 + $0x1bc0] sm:$0xf]
    %v1906 = vld [vmem:[#allocation6 + $0x1bc4] sm:$0xf]
    %v1907 = vld [vmem:[#allocation6 + $0x1bc8] sm:$0xf]
    %v1908 = vld [vmem:[#allocation6 + $0x1bcc] sm:$0xf]
    %v1909 = vld [vmem:[#allocation6 + $0x1bd0] sm:$0xf]
    %v1910 = vld [vmem:[#allocation6 + $0x1bd4] sm:$0xf]
    %v1911 = vld [vmem:[#allocation6 + $0x1bd8] sm:$0xf]
    %v1912 = vld [vmem:[#allocation6 + $0x1bdc] sm:$0xf]
    %v1913 = vld [vmem:[#allocation6 + $0x1be0] sm:$0xf]
    %v1914 = vld [vmem:[#allocation6 + $0x1be4] sm:$0xf]
    %v1915 = vld [vmem:[#allocation6 + $0x1be8] sm:$0xf]
    %v1916 = vld [vmem:[#allocation6 + $0x1bec] sm:$0xf]
    %v1917 = vld [vmem:[#allocation6 + $0x1bf0] sm:$0xf]
    %v1918 = vld [vmem:[#allocation6 + $0x1bf4] sm:$0xf]
    %v1919 = vld [vmem:[#allocation6 + $0x1bf8] sm:$0xf]
    %v1920 = vld [vmem:[#allocation6 + $0x1bfc] sm:$0xf]
    %v1921 = vld [vmem:[#allocation6 + $0x1c00] sm:$0xf]
    %v1922 = vld [vmem:[#allocation6 + $0x1c04] sm:$0xf]
    %v1923 = vld [vmem:[#allocation6 + $0x1c08] sm:$0xf]
    %v1924 = vld [vmem:[#allocation6 + $0x1c0c] sm:$0xf]
    %v1925 = vld [vmem:[#allocation6 + $0x1c10] sm:$0xf]
    %v1926 = vld [vmem:[#allocation6 + $0x1c14] sm:$0xf]
    %v1927 = vld [vmem:[#allocation6 + $0x1c18] sm:$0xf]
    %v1928 = vld [vmem:[#allocation6 + $0x1c1c] sm:$0xf]
    %v1929 = vld [vmem:[#allocation6 + $0x1c20] sm:$0xf]
    %v1930 = vld [vmem:[#allocation6 + $0x1c24] sm:$0xf]
    %v1931 = vld [vmem:[#allocation6 + $0x1c28] sm:$0xf]
    %v1932 = vld [vmem:[#allocation6 + $0x1c2c] sm:$0xf]
    %v1933 = vld [vmem:[#allocation6 + $0x1c30] sm:$0xf]
    %v1934 = vld [vmem:[#allocation6 + $0x1c34] sm:$0xf]
    %v1935 = vld [vmem:[#allocation6 + $0x1c38] sm:$0xf]
    %v1936 = vld [vmem:[#allocation6 + $0x1c3c] sm:$0xf]
    %v1937 = vld [vmem:[#allocation6 + $0x1c40] sm:$0xf]
    %v1938 = vld [vmem:[#allocation6 + $0x1c44] sm:$0xf]
    %v1939 = vld [vmem:[#allocation6 + $0x1c48] sm:$0xf]
    %v1940 = vld [vmem:[#allocation6 + $0x1c4c] sm:$0xf]
    %v1941 = vld [vmem:[#allocation6 + $0x1c50] sm:$0xf]
    %v1942 = vld [vmem:[#allocation6 + $0x1c54] sm:$0xf]
    %v1943 = vld [vmem:[#allocation6 + $0x1c58] sm:$0xf]
    %v1944 = vld [vmem:[#allocation6 + $0x1c5c] sm:$0xf]
    %v1945 = vld [vmem:[#allocation6 + $0x1c60] sm:$0xf]
    %v1946 = vld [vmem:[#allocation6 + $0x1c64] sm:$0xf]
    %v1947 = vld [vmem:[#allocation6 + $0x1c68] sm:$0xf]
    %v1948 = vld [vmem:[#allocation6 + $0x1c6c] sm:$0xf]
    %v1949 = vld [vmem:[#allocation6 + $0x1c70] sm:$0xf]
    %v1950 = vld [vmem:[#allocation6 + $0x1c74] sm:$0xf]
    %v1951 = vld [vmem:[#allocation6 + $0x1c78] sm:$0xf]
    %v1952 = vld [vmem:[#allocation6 + $0x1c7c] sm:$0xf]
    %v1953 = vld [vmem:[#allocation6 + $0x1c80] sm:$0xf]
    %v1954 = vld [vmem:[#allocation6 + $0x1c84] sm:$0xf]
    %v1955 = vld [vmem:[#allocation6 + $0x1c88] sm:$0xf]
    %v1956 = vld [vmem:[#allocation6 + $0x1c8c] sm:$0xf]
    %v1957 = vld [vmem:[#allocation6 + $0x1c90] sm:$0xf]
    %v1958 = vld [vmem:[#allocation6 + $0x1c94] sm:$0xf]
    %v1959 = vld [vmem:[#allocation6 + $0x1c98] sm:$0xf]
    %v1960 = vld [vmem:[#allocation6 + $0x1c9c] sm:$0xf]
    %v1961 = vld [vmem:[#allocation6 + $0x1ca0] sm:$0xf]
    %v1962 = vld [vmem:[#allocation6 + $0x1ca4] sm:$0xf]
    %v1963 = vld [vmem:[#allocation6 + $0x1ca8] sm:$0xf]
    %v1964 = vld [vmem:[#allocation6 + $0x1cac] sm:$0xf]
    %v1965 = vld [vmem:[#allocation6 + $0x1cb0] sm:$0xf]
    %v1966 = vld [vmem:[#allocation6 + $0x1cb4] sm:$0xf]
    %v1967 = vld [vmem:[#allocation6 + $0x1cb8] sm:$0xf]
    %v1968 = vld [vmem:[#allocation6 + $0x1cbc] sm:$0xf]
    %v1969 = vld [vmem:[#allocation6 + $0x1cc0] sm:$0xf]
    %v1970 = vld [vmem:[#allocation6 + $0x1cc4] sm:$0xf]
    %v1971 = vld [vmem:[#allocation6 + $0x1cc8] sm:$0xf]
    %v1972 = vld [vmem:[#allocation6 + $0x1ccc] sm:$0xf]
    %v1973 = vld [vmem:[#allocation6 + $0x1cd0] sm:$0xf]
    %v1974 = vld [vmem:[#allocation6 + $0x1cd4] sm:$0xf]
    %v1975 = vld [vmem:[#allocation6 + $0x1cd8] sm:$0xf]
    %v1976 = vld [vmem:[#allocation6 + $0x1cdc] sm:$0xf]
    %v1977 = vld [vmem:[#allocation6 + $0x1ce0] sm:$0xf]
    %v1978 = vld [vmem:[#allocation6 + $0x1ce4] sm:$0xf]
    %v1979 = vld [vmem:[#allocation6 + $0x1ce8] sm:$0xf]
    %v1980 = vld [vmem:[#allocation6 + $0x1cec] sm:$0xf]
    %v1981 = vld [vmem:[#allocation6 + $0x1cf0] sm:$0xf]
    %v1982 = vld [vmem:[#allocation6 + $0x1cf4] sm:$0xf]
    %v1983 = vld [vmem:[#allocation6 + $0x1cf8] sm:$0xf]
    %v1984 = vld [vmem:[#allocation6 + $0x1cfc] sm:$0xf]
    %v1985 = vld [vmem:[#allocation6 + $0x1d00] sm:$0xf]
    %v1986 = vld [vmem:[#allocation6 + $0x1d04] sm:$0xf]
    %v1987 = vld [vmem:[#allocation6 + $0x1d08] sm:$0xf]
    %v1988 = vld [vmem:[#allocation6 + $0x1d0c] sm:$0xf]
    %v1989 = vld [vmem:[#allocation6 + $0x1d10] sm:$0xf]
    %v1990 = vld [vmem:[#allocation6 + $0x1d14] sm:$0xf]
    %v1991 = vld [vmem:[#allocation6 + $0x1d18] sm:$0xf]
    %v1992 = vld [vmem:[#allocation6 + $0x1d1c] sm:$0xf]
    %v1993 = vld [vmem:[#allocation6 + $0x1d20] sm:$0xf]
    %v1994 = vld [vmem:[#allocation6 + $0x1d24] sm:$0xf]
    %v1995 = vld [vmem:[#allocation6 + $0x1d28] sm:$0xf]
    %v1996 = vld [vmem:[#allocation6 + $0x1d2c] sm:$0xf]
    %v1997 = vld [vmem:[#allocation6 + $0x1d30] sm:$0xf]
    %v1998 = vld [vmem:[#allocation6 + $0x1d34] sm:$0xf]
    %v1999 = vld [vmem:[#allocation6 + $0x1d38] sm:$0xf]
    %v2000 = vld [vmem:[#allocation6 + $0x1d3c] sm:$0xf]
    %v2001 = vld [vmem:[#allocation6 + $0x1d40] sm:$0xf]
    %v2002 = vld [vmem:[#allocation6 + $0x1d44] sm:$0xf]
    %v2003 = vld [vmem:[#allocation6 + $0x1d48] sm:$0xf]
    %v2004 = vld [vmem:[#allocation2] sm:$0xff]
    %v2064 = vunpack.c.l.b16 %v70
    %v2065 = vunpack.c.h.b16 %v70
    %v2066 = vunpack.c.l.b16 %v71
    %v2067 = vunpack.c.h.b16 %v71
    %v2068 = vunpack.c.l.b16 %v72
    %v2069 = vunpack.c.h.b16 %v72
    %v2070 = vunpack.c.l.b16 %v73
    %v2071 = vunpack.c.h.b16 %v73
    %v2072 = vunpack.c.l.b16 %v74
    %v2073 = vunpack.c.h.b16 %v74
    %v2074 = vunpack.c.l.b16 %v75
    %v2075 = vunpack.c.h.b16 %v75
    %v2076 = vunpack.c.l.b16 %v76
    %v2077 = vunpack.c.h.b16 %v76
    %v2078 = vunpack.c.l.b16 %v77
    %v2079 = vunpack.c.h.b16 %v77
    %v2080 = vunpack.c.l.b16 %v78
    %v2081 = vunpack.c.h.b16 %v78
    %v2082 = vunpack.c.l.b16 %v79
    %v2083 = vunpack.c.h.b16 %v79
    %v2084 = vunpack.c.l.b16 %v80
    %v2085 = vunpack.c.h.b16 %v80
    %v2086 = vunpack.c.l.b16 %v81
    %v2087 = vunpack.c.h.b16 %v81
    %v2088 = vunpack.c.l.b16 %v82
    %v2089 = vunpack.c.h.b16 %v82
    %v2090 = vunpack.c.l.b16 %v83
    %v2091 = vunpack.c.h.b16 %v83
    %v2092 = vunpack.c.l.b16 %v84
    %v2093 = vunpack.c.h.b16 %v84
    %v2094 = vunpack.c.l.b16 %v85
    %v2095 = vunpack.c.h.b16 %v85
    %v2096 = vunpack.c.l.b16 %v86
    %v2097 = vunpack.c.h.b16 %v86
    %v2098 = vunpack.c.l.b16 %v87
    %v2099 = vunpack.c.h.b16 %v87
    %v2100 = vunpack.c.l.b16 %v88
    %v2101 = vunpack.c.h.b16 %v88
    %v2102 = vunpack.c.l.b16 %v89
    %v2103 = vunpack.c.h.b16 %v89
    %v2104 = vunpack.c.l.b16 %v90
    %v2105 = vunpack.c.h.b16 %v90
    %v2106 = vunpack.c.l.b16 %v91
    %v2107 = vunpack.c.h.b16 %v91
    %v2108 = vunpack.c.l.b16 %v92
    %v2109 = vunpack.c.h.b16 %v92
    %v2110 = vunpack.c.l.b16 %v93
    %v2111 = vunpack.c.h.b16 %v93
    %v2112 = vunpack.c.l.b16 %v94
    %v2113 = vunpack.c.h.b16 %v94
    %v2114 = vunpack.c.l.b16 %v95
    %v2115 = vunpack.c.h.b16 %v95
    %v2116 = vunpack.c.l.b16 %v96
    %v2117 = vunpack.c.h.b16 %v96
    %v2118 = vunpack.c.l.b16 %v97
    %v2119 = vunpack.c.h.b16 %v97
    %v2120 = vunpack.c.l.b16 %v98
    %v2121 = vunpack.c.h.b16 %v98
    %v2122 = vunpack.c.l.b16 %v99
    %v2123 = vunpack.c.h.b16 %v99
    %v2124 = vunpack.c.l.b16 %v100
    %v2125 = vunpack.c.h.b16 %v100
    %v2126 = vunpack.c.l.b16 %v101
    %v2127 = vunpack.c.h.b16 %v101
    %v2128 = vunpack.c.l.b16 %v102
    %v2129 = vunpack.c.h.b16 %v102
    %v2130 = vunpack.c.l.b16 %v103
    %v2131 = vunpack.c.h.b16 %v103
    %v2132 = vunpack.c.l.b16 %v104
    %v2133 = vunpack.c.h.b16 %v104
    %v2134 = vunpack.c.l.b16 %v105
    %v2135 = vunpack.c.h.b16 %v105
    %v2136 = vunpack.c.l.b16 %v106
    %v2137 = vunpack.c.h.b16 %v106
    %v2138 = vunpack.c.l.b16 %v107
    %v2139 = vunpack.c.h.b16 %v107
    %v2140 = vunpack.c.l.b16 %v108
    %v2141 = vunpack.c.h.b16 %v108
    %v2142 = vunpack.c.l.b16 %v109
    %v2143 = vunpack.c.h.b16 %v109
    %v2144 = vunpack.c.l.b16 %v110
    %v2145 = vunpack.c.h.b16 %v110
    %v2146 = vunpack.c.l.b16 %v111
    %v2147 = vunpack.c.h.b16 %v111
    %v2148 = vunpack.c.l.b16 %v112
    %v2149 = vunpack.c.h.b16 %v112
    %v2150 = vunpack.c.l.b16 %v113
    %v2151 = vunpack.c.h.b16 %v113
    %v2152 = vunpack.c.l.b16 %v114
    %v2153 = vunpack.c.h.b16 %v114
    %v2154 = vunpack.c.l.b16 %v115
    %v2155 = vunpack.c.h.b16 %v115
    %v2156 = vunpack.c.l.b16 %v116
    %v2157 = vunpack.c.h.b16 %v116
    %v2158 = vunpack.c.l.b16 %v117
    %v2159 = vunpack.c.h.b16 %v117
    %v2160 = vunpack.c.l.b16 %v118
    %v2161 = vunpack.c.h.b16 %v118
    %v2162 = vunpack.c.l.b16 %v119
    %v2163 = vunpack.c.h.b16 %v119
    %v2164 = vunpack.c.l.b16 %v120
    %v2165 = vunpack.c.h.b16 %v120
    %v2166 = vunpack.c.l.b16 %v121
    %v2167 = vunpack.c.h.b16 %v121
    %v2168 = vunpack.c.l.b16 %v122
    %v2169 = vunpack.c.h.b16 %v122
    %v2170 = vunpack.c.l.b16 %v123
    %v2171 = vunpack.c.h.b16 %v123
    %v2172 = vunpack.c.l.b16 %v124
    %v2173 = vunpack.c.h.b16 %v124
    %v2174 = vunpack.c.l.b16 %v125
    %v2175 = vunpack.c.h.b16 %v125
    %v2176 = vunpack.c.l.b16 %v126
    %v2177 = vunpack.c.h.b16 %v126
    %v2178 = vunpack.c.l.b16 %v127
    %v2179 = vunpack.c.h.b16 %v127
    %v2180 = vunpack.c.l.b16 %v128
    %v2181 = vunpack.c.h.b16 %v128
    %v2182 = vpack.c.b16 %v2064, %v2064
    %v2183 = vpack.c.b16 %v2065, %v2065
    %v2184 = vpack.c.b16 %v2066, %v2066
    %v2185 = vpack.c.b16 %v2067, %v2067
    %v2186 = vpack.c.b16 %v2068, %v2068
    %v2187 = vpack.c.b16 %v2069, %v2069
    %v2188 = vpack.c.b16 %v2070, %v2070
    %v2189 = vpack.c.b16 %v2071, %v2071
    %v2190 = vpack.c.b16 %v2072, %v2072
    %v2191 = vpack.c.b16 %v2073, %v2073
    %v2192 = vpack.c.b16 %v2074, %v2074
    %v2193 = vpack.c.b16 %v2075, %v2075
    %v2194 = vpack.c.b16 %v2076, %v2076
    %v2195 = vpack.c.b16 %v2077, %v2077
    %v2196 = vpack.c.b16 %v2078, %v2078
    %v2197 = vpack.c.b16 %v2079, %v2079
    %v2198 = vpack.c.b16 %v2080, %v2080
    %v2199 = vpack.c.b16 %v2081, %v2081
    %v2200 = vpack.c.b16 %v2082, %v2082
    %v2201 = vpack.c.b16 %v2083, %v2083
    %v2202 = vpack.c.b16 %v2084, %v2084
    %v2203 = vpack.c.b16 %v2085, %v2085
    %v2204 = vpack.c.b16 %v2086, %v2086
    %v2205 = vpack.c.b16 %v2087, %v2087
    %v2206 = vpack.c.b16 %v2088, %v2088
    %v2207 = vpack.c.b16 %v2089, %v2089
    %v2208 = vpack.c.b16 %v2090, %v2090
    %v2209 = vpack.c.b16 %v2091, %v2091
    %v2210 = vpack.c.b16 %v2092, %v2092
    %v2211 = vpack.c.b16 %v2093, %v2093
    %v2212 = vpack.c.b16 %v2094, %v2094
    %v2213 = vpack.c.b16 %v2095, %v2095
    %v2214 = vpack.c.b16 %v2096, %v2096
    %v2215 = vpack.c.b16 %v2097, %v2097
    %v2216 = vpack.c.b16 %v2098, %v2098
    %v2217 = vpack.c.b16 %v2099, %v2099
    %v2218 = vpack.c.b16 %v2100, %v2100
    %v2219 = vpack.c.b16 %v2101, %v2101
    %v2220 = vpack.c.b16 %v2102, %v2102
    %v2221 = vpack.c.b16 %v2103, %v2103
    %v2222 = vpack.c.b16 %v2104, %v2104
    %v2223 = vpack.c.b16 %v2105, %v2105
    %v2224 = vpack.c.b16 %v2106, %v2106
    %v2225 = vpack.c.b16 %v2107, %v2107
    %v2226 = vpack.c.b16 %v2108, %v2108
    %v2227 = vpack.c.b16 %v2109, %v2109
    %v2228 = vpack.c.b16 %v2110, %v2110
    %v2229 = vpack.c.b16 %v2111, %v2111
    %v2230 = vpack.c.b16 %v2112, %v2112
    %v2231 = vpack.c.b16 %v2113, %v2113
    %v2232 = vpack.c.b16 %v2114, %v2114
    %v2233 = vpack.c.b16 %v2115, %v2115
    %v2234 = vpack.c.b16 %v2116, %v2116
    %v2235 = vpack.c.b16 %v2117, %v2117
    %v2236 = vpack.c.b16 %v2118, %v2118
    %v2237 = vpack.c.b16 %v2119, %v2119
    %v2238 = vpack.c.b16 %v2120, %v2120
    %v2239 = vpack.c.b16 %v2121, %v2121
    %v2240 = vpack.c.b16 %v2122, %v2122
    %v2241 = vpack.c.b16 %v2123, %v2123
    %v2242 = vpack.c.b16 %v2124, %v2124
    %v2243 = vpack.c.b16 %v2125, %v2125
    %v2244 = vpack.c.b16 %v2126, %v2126
    %v2245 = vpack.c.b16 %v2127, %v2127
    %v2246 = vpack.c.b16 %v2128, %v2128
    %v2247 = vpack.c.b16 %v2129, %v2129
    %v2248 = vpack.c.b16 %v2130, %v2130
    %v2249 = vpack.c.b16 %v2131, %v2131
    %v2250 = vpack.c.b16 %v2132, %v2132
    %v2251 = vpack.c.b16 %v2133, %v2133
    %v2252 = vpack.c.b16 %v2134, %v2134
    %v2253 = vpack.c.b16 %v2135, %v2135
    %v2254 = vpack.c.b16 %v2136, %v2136
    %v2255 = vpack.c.b16 %v2137, %v2137
    %v2256 = vpack.c.b16 %v2138, %v2138
    %v2257 = vpack.c.b16 %v2139, %v2139
    %v2258 = vpack.c.b16 %v2140, %v2140
    %v2259 = vpack.c.b16 %v2141, %v2141
    %v2260 = vpack.c.b16 %v2142, %v2142
    %v2261 = vpack.c.b16 %v2143, %v2143
    %v2262 = vpack.c.b16 %v2144, %v2144
    %v2263 = vpack.c.b16 %v2145, %v2145
    %v2264 = vpack.c.b16 %v2146, %v2146
    %v2265 = vpack.c.b16 %v2147, %v2147
    %v2266 = vpack.c.b16 %v2148, %v2148
    %v2267 = vpack.c.b16 %v2149, %v2149
    %v2268 = vpack.c.b16 %v2150, %v2150
    %v2269 = vpack.c.b16 %v2151, %v2151
    %v2270 = vpack.c.b16 %v2152, %v2152
    %v2271 = vpack.c.b16 %v2153, %v2153
    %v2272 = vpack.c.b16 %v2154, %v2154
    %v2273 = vpack.c.b16 %v2155, %v2155
    %v2274 = vpack.c.b16 %v2156, %v2156
    %v2275 = vpack.c.b16 %v2157, %v2157
    %v2276 = vpack.c.b16 %v2158, %v2158
    %v2277 = vpack.c.b16 %v2159, %v2159
    %v2278 = vpack.c.b16 %v2160, %v2160
    %v2279 = vpack.c.b16 %v2161, %v2161
    %v2280 = vpack.c.b16 %v2162, %v2162
    %v2281 = vpack.c.b16 %v2163, %v2163
    %v2282 = vpack.c.b16 %v2164, %v2164
    %v2283 = vpack.c.b16 %v2165, %v2165
    %v2284 = vpack.c.b16 %v2166, %v2166
    %v2285 = vpack.c.b16 %v2167, %v2167
    %v2286 = vpack.c.b16 %v2168, %v2168
    %v2287 = vpack.c.b16 %v2169, %v2169
    %v2288 = vpack.c.b16 %v2170, %v2170
    %v2289 = vpack.c.b16 %v2171, %v2171
    %v2290 = vpack.c.b16 %v2172, %v2172
    %v2291 = vpack.c.b16 %v2173, %v2173
    %v2292 = vpack.c.b16 %v2174, %v2174
    %v2293 = vpack.c.b16 %v2175, %v2175
    %v2294 = vpack.c.b16 %v2176, %v2176
    %v2295 = vpack.c.b16 %v2177, %v2177
    %v2296 = vpack.c.b16 %v2178, %v2178
    %v2297 = vpack.c.b16 %v2179, %v2179
    %v2298 = vpack.c.b16 %v2180, %v2180
    %v2299 = vpack.c.b16 %v2181, %v2181
    %v4292 = vunpack.c.l.b16 %v129
    %v4293 = vunpack.c.l.b16 %v130
    %v4294 = vunpack.c.l.b16 %v131
    %v4295 = vunpack.c.l.b16 %v132
    %v4296 = vunpack.c.l.b16 %v133
    %v4297 = vunpack.c.l.b16 %v134
    %v4298 = vunpack.c.l.b16 %v135
    %v4299 = vunpack.c.l.b16 %v136
    %v4300 = vunpack.c.l.b16 %v137
    %v4301 = vunpack.c.l.b16 %v138
    %v4302 = vunpack.c.l.b16 %v139
    %v4303 = vunpack.c.l.b16 %v140
    %v4304 = vunpack.c.l.b16 %v141
    %v4305 = vunpack.c.l.b16 %v142
    %v4306 = vunpack.c.l.b16 %v143
    %v4307 = vunpack.c.l.b16 %v144
    %v4308 = vunpack.c.l.b16 %v145
    %v4309 = vunpack.c.l.b16 %v146
    %v4310 = vunpack.c.l.b16 %v147
    %v4311 = vunpack.c.l.b16 %v148
    %v4312 = vunpack.c.l.b16 %v149
    %v4313 = vunpack.c.l.b16 %v150
    %v4314 = vunpack.c.l.b16 %v151
    %v4315 = vunpack.c.l.b16 %v152
    %v4316 = vunpack.c.l.b16 %v153
    %v4317 = vunpack.c.l.b16 %v154
    %v4318 = vunpack.c.l.b16 %v155
    %v4319 = vunpack.c.l.b16 %v156
    %v4320 = vunpack.c.l.b16 %v157
    %v4321 = vunpack.c.l.b16 %v158
    %v4322 = vunpack.c.l.b16 %v159
    %v4323 = vunpack.c.l.b16 %v160
    %v4324 = vunpack.c.l.b16 %v161
    %v4325 = vunpack.c.l.b16 %v162
    %v4326 = vunpack.c.l.b16 %v163
    %v4327 = vunpack.c.l.b16 %v164
    %v4328 = vunpack.c.l.b16 %v165
    %v4329 = vunpack.c.l.b16 %v166
    %v4330 = vunpack.c.l.b16 %v167
    %v4331 = vunpack.c.l.b16 %v168
    %v4332 = vunpack.c.l.b16 %v169
    %v4333 = vunpack.c.l.b16 %v170
    %v4334 = vunpack.c.l.b16 %v171
    %v4335 = vunpack.c.l.b16 %v172
    %v4336 = vunpack.c.l.b16 %v173
    %v4337 = vunpack.c.l.b16 %v174
    %v4338 = vunpack.c.l.b16 %v175
    %v4339 = vunpack.c.l.b16 %v176
    %v4340 = vunpack.c.l.b16 %v177
    %v4341 = vunpack.c.l.b16 %v178
    %v4342 = vunpack.c.l.b16 %v179
    %v4343 = vunpack.c.l.b16 %v180
    %v4344 = vunpack.c.l.b16 %v181
    %v4345 = vunpack.c.l.b16 %v182
    %v4346 = vunpack.c.l.b16 %v183
    %v4347 = vunpack.c.l.b16 %v184
    %v4348 = vunpack.c.l.b16 %v185
    %v4349 = vunpack.c.l.b16 %v186
    %v4350 = vunpack.c.l.b16 %v187
    %v4351 = vunpack.c.l.b16 %v188
    %v4352 = vunpack.c.l.b16 %v189
    %v4353 = vunpack.c.l.b16 %v190
    %v4354 = vunpack.c.l.b16 %v191
    %v4355 = vunpack.c.l.b16 %v192
    %v4356 = vunpack.c.l.b16 %v193
    %v4357 = vunpack.c.l.b16 %v194
    %v4358 = vunpack.c.l.b16 %v195
    %v4359 = vunpack.c.l.b16 %v196
    %v4360 = vunpack.c.l.b16 %v197
    %v4361 = vunpack.c.l.b16 %v198
    %v4362 = vunpack.c.l.b16 %v199
    %v4363 = vunpack.c.l.b16 %v200
    %v4364 = vunpack.c.l.b16 %v201
    %v4365 = vunpack.c.l.b16 %v202
    %v4366 = vunpack.c.l.b16 %v203
    %v4367 = vunpack.c.l.b16 %v204
    %v4368 = vunpack.c.l.b16 %v205
    %v4369 = vunpack.c.l.b16 %v206
    %v4370 = vunpack.c.l.b16 %v207
    %v4371 = vunpack.c.l.b16 %v208
    %v4372 = vunpack.c.l.b16 %v209
    %v4373 = vunpack.c.l.b16 %v210
    %v4374 = vunpack.c.l.b16 %v211
    %v4375 = vunpack.c.l.b16 %v212
    %v4376 = vunpack.c.l.b16 %v213
    %v4377 = vunpack.c.l.b16 %v214
    %v4378 = vunpack.c.l.b16 %v215
    %v4379 = vunpack.c.l.b16 %v216
    %v4380 = vunpack.c.l.b16 %v217
    %v4381 = vunpack.c.l.b16 %v218
    %v4382 = vunpack.c.l.b16 %v219
    %v4383 = vunpack.c.l.b16 %v220
    %v4384 = vunpack.c.l.b16 %v221
    %v4385 = vunpack.c.l.b16 %v222
    %v4386 = vunpack.c.l.b16 %v223
    %v4387 = vunpack.c.l.b16 %v224
    %v4388 = vunpack.c.l.b16 %v225
    %v4389 = vunpack.c.l.b16 %v226
    %v4390 = vunpack.c.l.b16 %v227
    %v4391 = vunpack.c.l.b16 %v228
    %v4392 = vunpack.c.l.b16 %v229
    %v4393 = vunpack.c.l.b16 %v230
    %v4394 = vunpack.c.l.b16 %v231
    %v4395 = vunpack.c.l.b16 %v232
    %v4396 = vunpack.c.l.b16 %v233
    %v4397 = vunpack.c.l.b16 %v234
    %v4398 = vunpack.c.l.b16 %v235
    %v4399 = vunpack.c.l.b16 %v236
    %v4400 = vunpack.c.l.b16 %v237
    %v4401 = vunpack.c.l.b16 %v238
    %v4402 = vunpack.c.l.b16 %v239
    %v4403 = vunpack.c.l.b16 %v240
    %v4404 = vunpack.c.l.b16 %v241
    %v4405 = vunpack.c.l.b16 %v242
    %v4406 = vunpack.c.l.b16 %v243
    %v4407 = vunpack.c.l.b16 %v244
    %v4408 = vunpack.c.l.b16 %v245
    %v4409 = vunpack.c.l.b16 %v246
    %v4410 = vunpack.c.l.b16 %v247
    %v4411 = vunpack.c.l.b16 %v248
    %v4412 = vunpack.c.l.b16 %v249
    %v4413 = vunpack.c.l.b16 %v250
    %v4414 = vunpack.c.l.b16 %v251
    %v4415 = vunpack.c.l.b16 %v252
    %v4416 = vunpack.c.l.b16 %v253
    %v4417 = vunpack.c.l.b16 %v254
    %v4418 = vunpack.c.l.b16 %v255
    %v4419 = vunpack.c.l.b16 %v256
    %v4420 = vunpack.c.l.b16 %v257
    %v4421 = vunpack.c.l.b16 %v258
    %v4422 = vunpack.c.l.b16 %v259
    %v4423 = vunpack.c.l.b16 %v260
    %v4424 = vunpack.c.l.b16 %v261
    %v4425 = vunpack.c.l.b16 %v262
    %v4426 = vunpack.c.l.b16 %v263
    %v4427 = vunpack.c.l.b16 %v264
    %v4428 = vunpack.c.l.b16 %v265
    %v4429 = vunpack.c.l.b16 %v266
    %v4430 = vunpack.c.l.b16 %v267
    %v4431 = vunpack.c.l.b16 %v268
    %v4432 = vunpack.c.l.b16 %v269
    %v4433 = vunpack.c.l.b16 %v270
    %v4434 = vunpack.c.l.b16 %v271
    %v4435 = vunpack.c.l.b16 %v272
    %v4436 = vunpack.c.l.b16 %v273
    %v4437 = vunpack.c.l.b16 %v274
    %v4438 = vunpack.c.l.b16 %v275
    %v4439 = vunpack.c.l.b16 %v276
    %v4440 = vunpack.c.l.b16 %v277
    %v4441 = vunpack.c.l.b16 %v278
    %v4442 = vunpack.c.l.b16 %v279
    %v4443 = vunpack.c.l.b16 %v280
    %v4444 = vunpack.c.l.b16 %v281
    %v4445 = vunpack.c.l.b16 %v282
    %v4446 = vunpack.c.l.b16 %v283
    %v4447 = vunpack.c.l.b16 %v284
    %v4448 = vunpack.c.l.b16 %v285
    %v4449 = vunpack.c.l.b16 %v286
    %v4450 = vunpack.c.l.b16 %v287
    %v4451 = vunpack.c.l.b16 %v288
    %v4452 = vunpack.c.l.b16 %v289
    %v4453 = vunpack.c.l.b16 %v290
    %v4454 = vunpack.c.l.b16 %v291
    %v4455 = vunpack.c.l.b16 %v292
    %v4456 = vunpack.c.l.b16 %v293
    %v4457 = vunpack.c.l.b16 %v294
    %v4458 = vunpack.c.l.b16 %v295
    %v4459 = vunpack.c.l.b16 %v296
    %v4460 = vunpack.c.l.b16 %v297
    %v4461 = vunpack.c.l.b16 %v298
    %v4462 = vunpack.c.l.b16 %v299
    %v4463 = vunpack.c.l.b16 %v300
    %v4464 = vunpack.c.l.b16 %v301
    %v4465 = vunpack.c.l.b16 %v302
    %v4466 = vunpack.c.l.b16 %v303
    %v4467 = vunpack.c.l.b16 %v304
    %v4468 = vunpack.c.l.b16 %v305
    %v4469 = vunpack.c.l.b16 %v306
    %v4470 = vunpack.c.l.b16 %v307
    %v4471 = vunpack.c.l.b16 %v308
    %v4472 = vunpack.c.l.b16 %v309
    %v4473 = vunpack.c.l.b16 %v310
    %v4474 = vunpack.c.l.b16 %v311
    %v4475 = vunpack.c.l.b16 %v312
    %v4476 = vunpack.c.l.b16 %v313
    %v4477 = vunpack.c.l.b16 %v314
    %v4478 = vunpack.c.l.b16 %v315
    %v4479 = vunpack.c.l.b16 %v316
    %v4480 = vunpack.c.l.b16 %v317
    %v4481 = vunpack.c.l.b16 %v318
    %v4482 = vunpack.c.l.b16 %v319
    %v4483 = vunpack.c.l.b16 %v320
    %v4484 = vunpack.c.l.b16 %v321
    %v4485 = vunpack.c.l.b16 %v322
    %v4486 = vunpack.c.l.b16 %v323
    %v4487 = vunpack.c.l.b16 %v324
    %v4488 = vunpack.c.l.b16 %v325
    %v4489 = vunpack.c.l.b16 %v326
    %v4490 = vunpack.c.l.b16 %v327
    %v4491 = vunpack.c.l.b16 %v328
    %v4492 = vunpack.c.l.b16 %v329
    %v4493 = vunpack.c.l.b16 %v330
    %v4494 = vunpack.c.l.b16 %v331
    %v4495 = vunpack.c.l.b16 %v332
    %v4496 = vunpack.c.l.b16 %v333
    %v4497 = vunpack.c.l.b16 %v334
    %v4498 = vunpack.c.l.b16 %v335
    %v4499 = vunpack.c.l.b16 %v336
    %v4500 = vunpack.c.l.b16 %v337
    %v4501 = vunpack.c.l.b16 %v338
    %v4502 = vunpack.c.l.b16 %v339
    %v4503 = vunpack.c.l.b16 %v340
    %v4504 = vunpack.c.l.b16 %v341
    %v4505 = vunpack.c.l.b16 %v342
    %v4506 = vunpack.c.l.b16 %v343
    %v4507 = vunpack.c.l.b16 %v344
    %v4508 = vunpack.c.l.b16 %v345
    %v4509 = vunpack.c.l.b16 %v346
    %v4510 = vunpack.c.l.b16 %v347
    %v4511 = vunpack.c.l.b16 %v348
    %v4512 = vunpack.c.l.b16 %v349
    %v4513 = vunpack.c.l.b16 %v350
    %v4514 = vunpack.c.l.b16 %v351
    %v4515 = vunpack.c.l.b16 %v352
    %v4516 = vunpack.c.l.b16 %v353
    %v4517 = vunpack.c.l.b16 %v354
    %v4518 = vunpack.c.l.b16 %v355
    %v4519 = vunpack.c.l.b16 %v356
    %v4520 = vunpack.c.l.b16 %v357
    %v4521 = vunpack.c.l.b16 %v358
    %v4522 = vunpack.c.l.b16 %v359
    %v4523 = vunpack.c.l.b16 %v360
    %v4524 = vunpack.c.l.b16 %v361
    %v4525 = vunpack.c.l.b16 %v362
    %v4526 = vunpack.c.l.b16 %v363
    %v4527 = vunpack.c.l.b16 %v364
    %v4528 = vunpack.c.l.b16 %v365
    %v4529 = vunpack.c.l.b16 %v366
    %v4530 = vunpack.c.l.b16 %v367
    %v4531 = vunpack.c.l.b16 %v368
    %v4532 = vunpack.c.l.b16 %v369
    %v4533 = vunpack.c.l.b16 %v370
    %v4534 = vunpack.c.l.b16 %v371
    %v4535 = vunpack.c.l.b16 %v372
    %v4536 = vunpack.c.l.b16 %v373
    %v4537 = vunpack.c.l.b16 %v374
    %v4538 = vunpack.c.l.b16 %v375
    %v4539 = vunpack.c.l.b16 %v376
    %v4540 = vunpack.c.l.b16 %v377
    %v4541 = vunpack.c.l.b16 %v378
    %v4542 = vunpack.c.l.b16 %v379
    %v4543 = vunpack.c.l.b16 %v380
    %v4544 = vunpack.c.l.b16 %v381
    %v4545 = vunpack.c.l.b16 %v382
    %v4546 = vunpack.c.l.b16 %v383
    %v4547 = vunpack.c.l.b16 %v384
    %v4548 = vunpack.c.l.b16 %v385
    %v4549 = vunpack.c.l.b16 %v386
    %v4550 = vunpack.c.l.b16 %v387
    %v4551 = vunpack.c.l.b16 %v388
    %v4552 = vunpack.c.l.b16 %v389
    %v4553 = vunpack.c.l.b16 %v390
    %v4554 = vunpack.c.l.b16 %v391
    %v4555 = vunpack.c.l.b16 %v392
    %v4556 = vunpack.c.l.b16 %v393
    %v4557 = vunpack.c.l.b16 %v394
    %v4558 = vunpack.c.l.b16 %v395
    %v4559 = vunpack.c.l.b16 %v396
    %v4560 = vunpack.c.l.b16 %v397
    %v4561 = vunpack.c.l.b16 %v398
    %v4562 = vunpack.c.l.b16 %v399
    %v4563 = vunpack.c.l.b16 %v400
    %v4564 = vunpack.c.l.b16 %v401
    %v4565 = vunpack.c.l.b16 %v402
    %v4566 = vunpack.c.l.b16 %v403
    %v4567 = vunpack.c.l.b16 %v404
    %v4568 = vunpack.c.l.b16 %v405
    %v4569 = vunpack.c.l.b16 %v406
    %v4570 = vunpack.c.l.b16 %v407
    %v4571 = vunpack.c.l.b16 %v408
    %v4572 = vunpack.c.l.b16 %v409
    %v4573 = vunpack.c.l.b16 %v410
    %v4574 = vunpack.c.l.b16 %v411
    %v4575 = vunpack.c.l.b16 %v412
    %v4576 = vunpack.c.l.b16 %v413
    %v4577 = vunpack.c.l.b16 %v414
    %v4578 = vunpack.c.l.b16 %v415
    %v4579 = vunpack.c.l.b16 %v416
    %v4580 = vunpack.c.l.b16 %v417
    %v4581 = vunpack.c.l.b16 %v418
    %v4582 = vunpack.c.l.b16 %v419
    %v4583 = vunpack.c.l.b16 %v420
    %v4584 = vunpack.c.l.b16 %v421
    %v4585 = vunpack.c.l.b16 %v422
    %v4586 = vunpack.c.l.b16 %v423
    %v4587 = vunpack.c.l.b16 %v424
    %v4588 = vunpack.c.l.b16 %v425
    %v4589 = vunpack.c.l.b16 %v426
    %v4590 = vunpack.c.l.b16 %v427
    %v4591 = vunpack.c.l.b16 %v428
    %v4592 = vunpack.c.l.b16 %v429
    %v4593 = vunpack.c.l.b16 %v430
    %v4594 = vunpack.c.l.b16 %v431
    %v4595 = vunpack.c.l.b16 %v432
    %v4596 = vunpack.c.l.b16 %v433
    %v4597 = vunpack.c.l.b16 %v434
    %v4598 = vunpack.c.l.b16 %v435
    %v4599 = vunpack.c.l.b16 %v436
    %v4600 = vunpack.c.l.b16 %v437
    %v4601 = vunpack.c.l.b16 %v438
    %v4602 = vunpack.c.l.b16 %v439
    %v4603 = vunpack.c.l.b16 %v440
    %v4604 = vunpack.c.l.b16 %v441
    %v4605 = vunpack.c.l.b16 %v442
    %v4606 = vunpack.c.l.b16 %v443
    %v4607 = vunpack.c.l.b16 %v444
    %v4608 = vunpack.c.l.b16 %v445
    %v4609 = vunpack.c.l.b16 %v446
    %v4610 = vunpack.c.l.b16 %v447
    %v4611 = vunpack.c.l.b16 %v448
    %v4612 = vunpack.c.l.b16 %v449
    %v4613 = vunpack.c.l.b16 %v450
    %v4614 = vunpack.c.l.b16 %v451
    %v4615 = vunpack.c.l.b16 %v452
    %v4616 = vunpack.c.l.b16 %v453
    %v4617 = vunpack.c.l.b16 %v454
    %v4618 = vunpack.c.l.b16 %v455
    %v4619 = vunpack.c.l.b16 %v456
    %v4620 = vunpack.c.l.b16 %v457
    %v4621 = vunpack.c.l.b16 %v458
    %v4622 = vunpack.c.l.b16 %v459
    %v4623 = vunpack.c.l.b16 %v460
    %v4624 = vunpack.c.l.b16 %v461
    %v4625 = vunpack.c.l.b16 %v462
    %v4626 = vunpack.c.l.b16 %v463
    %v4627 = vunpack.c.l.b16 %v464
    %v4628 = vunpack.c.l.b16 %v465
    %v4629 = vunpack.c.l.b16 %v466
    %v4630 = vunpack.c.l.b16 %v467
    %v4631 = vunpack.c.l.b16 %v468
    %v4632 = vunpack.c.l.b16 %v469
    %v4633 = vunpack.c.l.b16 %v470
    %v4634 = vunpack.c.l.b16 %v471
    %v4635 = vunpack.c.l.b16 %v472
    %v4636 = vunpack.c.l.b16 %v473
    %v4637 = vunpack.c.l.b16 %v474
    %v4638 = vunpack.c.l.b16 %v475
    %v4639 = vunpack.c.l.b16 %v476
    %v4640 = vunpack.c.l.b16 %v477
    %v4641 = vunpack.c.l.b16 %v478
    %v4642 = vunpack.c.l.b16 %v479
    %v4643 = vunpack.c.l.b16 %v480
    %v4644 = vunpack.c.l.b16 %v481
    %v4645 = vunpack.c.l.b16 %v482
    %v4646 = vunpack.c.l.b16 %v483
    %v4647 = vunpack.c.l.b16 %v484
    %v4648 = vunpack.c.l.b16 %v485
    %v4649 = vunpack.c.l.b16 %v486
    %v4650 = vunpack.c.l.b16 %v487
    %v4651 = vunpack.c.l.b16 %v488
    %v4652 = vunpack.c.l.b16 %v489
    %v4653 = vunpack.c.l.b16 %v490
    %v4654 = vunpack.c.l.b16 %v491
    %v4655 = vunpack.c.l.b16 %v492
    %v4656 = vunpack.c.l.b16 %v493
    %v4657 = vunpack.c.l.b16 %v494
    %v4658 = vunpack.c.l.b16 %v495
    %v4659 = vunpack.c.l.b16 %v496
    %v4660 = vunpack.c.l.b16 %v497
    %v4661 = vunpack.c.l.b16 %v498
    %v4662 = vunpack.c.l.b16 %v499
    %v4663 = vunpack.c.l.b16 %v500
    %v4664 = vunpack.c.l.b16 %v501
    %v4665 = vunpack.c.l.b16 %v502
    %v4666 = vunpack.c.l.b16 %v503
    %v4667 = vunpack.c.l.b16 %v504
    %v4668 = vunpack.c.l.b16 %v505
    %v4669 = vunpack.c.l.b16 %v506
    %v4670 = vunpack.c.l.b16 %v507
    %v4671 = vunpack.c.l.b16 %v508
    %v4672 = vunpack.c.l.b16 %v509
    %v4673 = vunpack.c.l.b16 %v510
    %v4674 = vunpack.c.l.b16 %v511
    %v4675 = vunpack.c.l.b16 %v512
    %v4676 = vunpack.c.l.b16 %v513
    %v4677 = vunpack.c.l.b16 %v514
    %v4678 = vunpack.c.l.b16 %v515
    %v4679 = vunpack.c.l.b16 %v516
    %v4680 = vunpack.c.l.b16 %v517
    %v4681 = vunpack.c.l.b16 %v518
    %v4682 = vunpack.c.l.b16 %v519
    %v4683 = vunpack.c.l.b16 %v520
    %v4684 = vunpack.c.l.b16 %v521
    %v4685 = vunpack.c.l.b16 %v522
    %v4686 = vunpack.c.l.b16 %v523
    %v4687 = vunpack.c.l.b16 %v524
    %v4688 = vunpack.c.l.b16 %v525
    %v4689 = vunpack.c.l.b16 %v526
    %v4690 = vunpack.c.l.b16 %v527
    %v4691 = vunpack.c.l.b16 %v528
    %v4692 = vunpack.c.l.b16 %v529
    %v4693 = vunpack.c.l.b16 %v530
    %v4694 = vunpack.c.l.b16 %v531
    %v4695 = vunpack.c.l.b16 %v532
    %v4696 = vunpack.c.l.b16 %v533
    %v4697 = vunpack.c.l.b16 %v534
    %v4698 = vunpack.c.l.b16 %v535
    %v4699 = vunpack.c.l.b16 %v536
    %v4700 = vunpack.c.l.b16 %v537
    %v4701 = vunpack.c.l.b16 %v538
    %v4702 = vunpack.c.l.b16 %v539
    %v4703 = vunpack.c.l.b16 %v540
    %v4704 = vunpack.c.l.b16 %v541
    %v4705 = vunpack.c.l.b16 %v542
    %v4706 = vunpack.c.l.b16 %v543
    %v4707 = vunpack.c.l.b16 %v544
    %v4708 = vunpack.c.l.b16 %v545
    %v4709 = vunpack.c.l.b16 %v546
    %v4710 = vunpack.c.l.b16 %v547
    %v4711 = vunpack.c.l.b16 %v548
    %v4712 = vunpack.c.l.b16 %v549
    %v4713 = vunpack.c.l.b16 %v550
    %v4714 = vunpack.c.l.b16 %v551
    %v4715 = vunpack.c.l.b16 %v552
    %v4716 = vunpack.c.l.b16 %v553
    %v4717 = vunpack.c.l.b16 %v554
    %v4718 = vunpack.c.l.b16 %v555
    %v4719 = vunpack.c.l.b16 %v556
    %v4720 = vunpack.c.l.b16 %v557
    %v4721 = vunpack.c.l.b16 %v558
    %v4722 = vunpack.c.l.b16 %v559
    %v4723 = vunpack.c.l.b16 %v560
    %v4724 = vunpack.c.l.b16 %v561
    %v4725 = vunpack.c.l.b16 %v562
    %v4726 = vunpack.c.l.b16 %v563
    %v4727 = vunpack.c.l.b16 %v564
    %v4728 = vunpack.c.l.b16 %v565
    %v4729 = vunpack.c.l.b16 %v566
    %v4730 = vunpack.c.l.b16 %v567
    %v4731 = vunpack.c.l.b16 %v568
    %v4732 = vunpack.c.l.b16 %v569
    %v4733 = vunpack.c.l.b16 %v570
    %v4734 = vunpack.c.l.b16 %v571
    %v4735 = vunpack.c.l.b16 %v572
    %v4736 = vunpack.c.l.b16 %v573
    %v4737 = vunpack.c.l.b16 %v574
    %v4738 = vunpack.c.l.b16 %v575
    %v4739 = vunpack.c.l.b16 %v576
    %v4740 = vunpack.c.l.b16 %v577
    %v4741 = vunpack.c.l.b16 %v578
    %v4742 = vunpack.c.l.b16 %v579
    %v4743 = vunpack.c.l.b16 %v580
    %v4744 = vunpack.c.l.b16 %v581
    %v4745 = vunpack.c.l.b16 %v582
    %v4746 = vunpack.c.l.b16 %v583
    %v4747 = vunpack.c.l.b16 %v584
    %v4748 = vunpack.c.l.b16 %v585
    %v4749 = vunpack.c.l.b16 %v586
    %v4750 = vunpack.c.l.b16 %v587
    %v4751 = vunpack.c.l.b16 %v588
    %v4752 = vunpack.c.l.b16 %v589
    %v4753 = vunpack.c.l.b16 %v590
    %v4754 = vunpack.c.l.b16 %v591
    %v4755 = vunpack.c.l.b16 %v592
    %v4756 = vunpack.c.l.b16 %v593
    %v4757 = vunpack.c.l.b16 %v594
    %v4758 = vunpack.c.l.b16 %v595
    %v4759 = vunpack.c.l.b16 %v596
    %v4760 = vunpack.c.l.b16 %v597
    %v4761 = vunpack.c.l.b16 %v598
    %v4762 = vunpack.c.l.b16 %v599
    %v4763 = vunpack.c.l.b16 %v600
    %v4764 = vunpack.c.l.b16 %v601
    %v4765 = vunpack.c.l.b16 %v602
    %v4766 = vunpack.c.l.b16 %v603
    %v4767 = vunpack.c.l.b16 %v604
    %v4768 = vunpack.c.l.b16 %v605
    %v4769 = vunpack.c.l.b16 %v606
    %v4770 = vunpack.c.l.b16 %v607
    %v4771 = vunpack.c.l.b16 %v608
    %v4772 = vunpack.c.l.b16 %v609
    %v4773 = vunpack.c.l.b16 %v610
    %v4774 = vunpack.c.l.b16 %v611
    %v4775 = vunpack.c.l.b16 %v612
    %v4776 = vunpack.c.l.b16 %v613
    %v4777 = vunpack.c.l.b16 %v614
    %v4778 = vunpack.c.l.b16 %v615
    %v4779 = vunpack.c.l.b16 %v616
    %v4780 = vunpack.c.l.b16 %v617
    %v4781 = vunpack.c.l.b16 %v618
    %v4782 = vunpack.c.l.b16 %v619
    %v4783 = vunpack.c.l.b16 %v620
    %v4784 = vunpack.c.l.b16 %v621
    %v4785 = vunpack.c.l.b16 %v622
    %v4786 = vunpack.c.l.b16 %v623
    %v4787 = vunpack.c.l.b16 %v624
    %v4788 = vunpack.c.l.b16 %v625
    %v4789 = vunpack.c.l.b16 %v626
    %v4790 = vunpack.c.l.b16 %v627
    %v4791 = vunpack.c.l.b16 %v628
    %v4792 = vunpack.c.l.b16 %v629
    %v4793 = vunpack.c.l.b16 %v630
    %v4794 = vunpack.c.l.b16 %v631
    %v4795 = vunpack.c.l.b16 %v632
    %v4796 = vunpack.c.l.b16 %v633
    %v4797 = vunpack.c.l.b16 %v634
    %v4798 = vunpack.c.l.b16 %v635
    %v4799 = vunpack.c.l.b16 %v636
    %v4800 = vunpack.c.l.b16 %v637
    %v4801 = vunpack.c.l.b16 %v638
    %v4802 = vunpack.c.l.b16 %v639
    %v4803 = vunpack.c.l.b16 %v640
    %v4804 = vunpack.c.l.b16 %v641
    %v4805 = vunpack.c.l.b16 %v642
    %v4806 = vunpack.c.l.b16 %v643
    %v4807 = vunpack.c.l.b16 %v644
    %v4808 = vunpack.c.l.b16 %v645
    %v4809 = vunpack.c.l.b16 %v646
    %v4810 = vunpack.c.l.b16 %v647
    %v4811 = vunpack.c.l.b16 %v648
    %v4812 = vunpack.c.l.b16 %v649
    %v4813 = vunpack.c.l.b16 %v650
    %v4814 = vunpack.c.l.b16 %v651
    %v4815 = vunpack.c.l.b16 %v652
    %v4816 = vunpack.c.l.b16 %v653
    %v4817 = vunpack.c.l.b16 %v654
    %v4818 = vunpack.c.l.b16 %v655
    %v4819 = vunpack.c.l.b16 %v656
    %v4820 = vunpack.c.l.b16 %v657
    %v4821 = vunpack.c.l.b16 %v658
    %v4822 = vunpack.c.l.b16 %v659
    %v4823 = vunpack.c.l.b16 %v660
    %v4824 = vunpack.c.l.b16 %v661
    %v4825 = vunpack.c.l.b16 %v662
    %v4826 = vunpack.c.l.b16 %v663
    %v4827 = vunpack.c.l.b16 %v664
    %v4828 = vunpack.c.l.b16 %v665
    %v4829 = vunpack.c.l.b16 %v666
    %v4830 = vunpack.c.l.b16 %v667
    %v4831 = vunpack.c.l.b16 %v668
    %v4832 = vunpack.c.l.b16 %v669
    %v4833 = vunpack.c.l.b16 %v670
    %v4834 = vunpack.c.l.b16 %v671
    %v4835 = vunpack.c.l.b16 %v672
    %v4836 = vunpack.c.l.b16 %v673
    %v4837 = vunpack.c.l.b16 %v674
    %v4838 = vunpack.c.l.b16 %v675
    %v4839 = vunpack.c.l.b16 %v676
    %v4840 = vunpack.c.l.b16 %v677
    %v4841 = vunpack.c.l.b16 %v678
    %v4842 = vunpack.c.l.b16 %v679
    %v4843 = vunpack.c.l.b16 %v680
    %v4844 = vunpack.c.l.b16 %v681
    %v4845 = vunpack.c.l.b16 %v682
    %v4846 = vunpack.c.l.b16 %v683
    %v4847 = vunpack.c.l.b16 %v684
    %v4848 = vunpack.c.l.b16 %v685
    %v4849 = vunpack.c.l.b16 %v686
    %v4850 = vunpack.c.l.b16 %v687
    %v4851 = vunpack.c.l.b16 %v688
    %v4852 = vunpack.c.l.b16 %v689
    %v4853 = vunpack.c.l.b16 %v690
    %v4854 = vunpack.c.l.b16 %v691
    %v4855 = vunpack.c.l.b16 %v692
    %v4856 = vunpack.c.l.b16 %v693
    %v4857 = vunpack.c.l.b16 %v694
    %v4858 = vunpack.c.l.b16 %v695
    %v4859 = vunpack.c.l.b16 %v696
    %v4860 = vunpack.c.l.b16 %v697
    %v4861 = vunpack.c.l.b16 %v698
    %v4862 = vunpack.c.l.b16 %v699
    %v4863 = vunpack.c.l.b16 %v700
    %v4864 = vunpack.c.l.b16 %v701
    %v4865 = vunpack.c.l.b16 %v702
    %v4866 = vunpack.c.l.b16 %v703
    %v4867 = vunpack.c.l.b16 %v704
    %v4868 = vunpack.c.l.b16 %v705
    %v4869 = vunpack.c.l.b16 %v706
    %v4870 = vunpack.c.l.b16 %v707
    %v4871 = vunpack.c.l.b16 %v708
    %v4872 = vunpack.c.l.b16 %v709
    %v4873 = vunpack.c.l.b16 %v710
    %v4874 = vunpack.c.l.b16 %v711
    %v4875 = vunpack.c.l.b16 %v712
    %v4876 = vunpack.c.l.b16 %v713
    %v4877 = vunpack.c.l.b16 %v714
    %v4878 = vunpack.c.l.b16 %v715
    %v4879 = vunpack.c.l.b16 %v716
    %v4880 = vunpack.c.l.b16 %v717
    %v4881 = vunpack.c.l.b16 %v718
    %v4882 = vunpack.c.l.b16 %v719
    %v4883 = vunpack.c.l.b16 %v720
    %v4884 = vunpack.c.l.b16 %v721
    %v4885 = vunpack.c.l.b16 %v722
    %v4886 = vunpack.c.l.b16 %v723
    %v4887 = vunpack.c.l.b16 %v724
    %v4888 = vunpack.c.l.b16 %v725
    %v4889 = vunpack.c.l.b16 %v726
    %v4890 = vunpack.c.l.b16 %v727
    %v4891 = vunpack.c.l.b16 %v728
    %v4892 = vunpack.c.l.b16 %v729
    %v4893 = vunpack.c.l.b16 %v730
    %v4894 = vunpack.c.l.b16 %v731
    %v4895 = vunpack.c.l.b16 %v732
    %v4896 = vunpack.c.l.b16 %v733
    %v4897 = vunpack.c.l.b16 %v734
    %v4898 = vunpack.c.l.b16 %v735
    %v4899 = vunpack.c.l.b16 %v736
    %v4900 = vunpack.c.l.b16 %v737
    %v4901 = vunpack.c.l.b16 %v738
    %v4902 = vunpack.c.l.b16 %v739
    %v4903 = vunpack.c.l.b16 %v740
    %v4904 = vunpack.c.l.b16 %v741
    %v4905 = vunpack.c.l.b16 %v742
    %v4906 = vunpack.c.l.b16 %v743
    %v4907 = vunpack.c.l.b16 %v744
    %v4908 = vunpack.c.l.b16 %v745
    %v4909 = vunpack.c.l.b16 %v746
    %v4910 = vunpack.c.l.b16 %v747
    %v4911 = vunpack.c.l.b16 %v748
    %v4912 = vunpack.c.l.b16 %v749
    %v4913 = vunpack.c.l.b16 %v750
    %v4914 = vunpack.c.l.b16 %v751
    %v4915 = vunpack.c.l.b16 %v752
    %v4916 = vunpack.c.l.b16 %v753
    %v4917 = vunpack.c.l.b16 %v754
    %v4918 = vunpack.c.l.b16 %v755
    %v4919 = vunpack.c.l.b16 %v756
    %v4920 = vunpack.c.l.b16 %v757
    %v4921 = vunpack.c.l.b16 %v758
    %v4922 = vunpack.c.l.b16 %v759
    %v4923 = vunpack.c.l.b16 %v760
    %v4924 = vunpack.c.l.b16 %v761
    %v4925 = vunpack.c.l.b16 %v762
    %v4926 = vunpack.c.l.b16 %v763
    %v4927 = vunpack.c.l.b16 %v764
    %v4928 = vunpack.c.l.b16 %v765
    %v4929 = vunpack.c.l.b16 %v766
    %v4930 = vunpack.c.l.b16 %v767
    %v4931 = vunpack.c.l.b16 %v768
    %v4932 = vunpack.c.l.b16 %v769
    %v4933 = vunpack.c.l.b16 %v770
    %v4934 = vunpack.c.l.b16 %v771
    %v4935 = vunpack.c.l.b16 %v772
    %v4936 = vunpack.c.l.b16 %v773
    %v4937 = vunpack.c.l.b16 %v774
    %v4938 = vunpack.c.l.b16 %v775
    %v4939 = vunpack.c.l.b16 %v776
    %v4940 = vunpack.c.l.b16 %v777
    %v4941 = vunpack.c.l.b16 %v778
    %v4942 = vunpack.c.l.b16 %v779
    %v4943 = vunpack.c.l.b16 %v780
    %v4944 = vunpack.c.l.b16 %v781
    %v4945 = vunpack.c.l.b16 %v782
    %v4946 = vunpack.c.l.b16 %v783
    %v4947 = vunpack.c.l.b16 %v784
    %v4948 = vunpack.c.l.b16 %v785
    %v4949 = vunpack.c.l.b16 %v786
    %v4950 = vunpack.c.l.b16 %v787
    %v4951 = vunpack.c.l.b16 %v788
    %v4952 = vunpack.c.l.b16 %v789
    %v4953 = vunpack.c.l.b16 %v790
    %v4954 = vunpack.c.l.b16 %v791
    %v4955 = vunpack.c.l.b16 %v792
    %v4956 = vunpack.c.l.b16 %v793
    %v4957 = vunpack.c.l.b16 %v794
    %v4958 = vunpack.c.l.b16 %v795
    %v4959 = vunpack.c.l.b16 %v796
    %v4960 = vunpack.c.l.b16 %v797
    %v4961 = vunpack.c.l.b16 %v798
    %v4962 = vunpack.c.l.b16 %v799
    %v4963 = vunpack.c.l.b16 %v800
    %v4964 = vunpack.c.l.b16 %v801
    %v4965 = vunpack.c.l.b16 %v802
    %v4966 = vunpack.c.l.b16 %v803
    %v4967 = vunpack.c.l.b16 %v804
    %v4968 = vunpack.c.l.b16 %v805
    %v4969 = vunpack.c.l.b16 %v806
    %v4970 = vunpack.c.l.b16 %v807
    %v4971 = vunpack.c.l.b16 %v808
    %v4972 = vunpack.c.l.b16 %v809
    %v4973 = vunpack.c.l.b16 %v810
    %v4974 = vunpack.c.l.b16 %v811
    %v4975 = vunpack.c.l.b16 %v812
    %v4976 = vunpack.c.l.b16 %v813
    %v4977 = vunpack.c.l.b16 %v814
    %v4978 = vunpack.c.l.b16 %v815
    %v4979 = vunpack.c.l.b16 %v816
    %v4980 = vunpack.c.l.b16 %v817
    %v4981 = vunpack.c.l.b16 %v818
    %v4982 = vunpack.c.l.b16 %v819
    %v4983 = vunpack.c.l.b16 %v820
    %v4984 = vunpack.c.l.b16 %v821
    %v4985 = vunpack.c.l.b16 %v822
    %v4986 = vunpack.c.l.b16 %v823
    %v4987 = vunpack.c.l.b16 %v824
    %v4988 = vunpack.c.l.b16 %v825
    %v4989 = vunpack.c.l.b16 %v826
    %v4990 = vunpack.c.l.b16 %v827
    %v4991 = vunpack.c.l.b16 %v828
    %v4992 = vunpack.c.l.b16 %v829
    %v4993 = vunpack.c.l.b16 %v830
    %v4994 = vunpack.c.l.b16 %v831
    %v4995 = vunpack.c.l.b16 %v832
    %v4996 = vunpack.c.l.b16 %v833
    %v4997 = vunpack.c.l.b16 %v834
    %v4998 = vunpack.c.l.b16 %v835
    %v4999 = vunpack.c.l.b16 %v836
    %v5000 = vunpack.c.l.b16 %v837
    %v5001 = vunpack.c.l.b16 %v838
    %v5002 = vunpack.c.l.b16 %v839
    %v5003 = vunpack.c.l.b16 %v840
    %v5004 = vunpack.c.l.b16 %v841
    %v5005 = vunpack.c.l.b16 %v842
    %v5006 = vunpack.c.l.b16 %v843
    %v5007 = vunpack.c.l.b16 %v844
    %v5008 = vunpack.c.l.b16 %v845
    %v5009 = vunpack.c.l.b16 %v846
    %v5010 = vunpack.c.l.b16 %v847
    %v5011 = vunpack.c.l.b16 %v848
    %v5012 = vunpack.c.l.b16 %v849
    %v5013 = vunpack.c.l.b16 %v850
    %v5014 = vunpack.c.l.b16 %v851
    %v5015 = vunpack.c.l.b16 %v852
    %v5016 = vunpack.c.l.b16 %v853
    %v5017 = vunpack.c.l.b16 %v854
    %v5018 = vunpack.c.l.b16 %v855
    %v5019 = vunpack.c.l.b16 %v856
    %v5020 = vunpack.c.l.b16 %v857
    %v5021 = vunpack.c.l.b16 %v858
    %v5022 = vunpack.c.l.b16 %v859
    %v5023 = vunpack.c.l.b16 %v860
    %v5024 = vunpack.c.l.b16 %v861
    %v5025 = vunpack.c.l.b16 %v862
    %v5026 = vunpack.c.l.b16 %v863
    %v5027 = vunpack.c.l.b16 %v864
    %v5028 = vunpack.c.l.b16 %v865
    %v5029 = vunpack.c.l.b16 %v866
    %v5030 = vunpack.c.l.b16 %v867
    %v5031 = vunpack.c.l.b16 %v868
    %v5032 = vunpack.c.l.b16 %v869
    %v5033 = vunpack.c.l.b16 %v870
    %v5034 = vunpack.c.l.b16 %v871
    %v5035 = vunpack.c.l.b16 %v872
    %v5036 = vunpack.c.l.b16 %v873
    %v5037 = vunpack.c.l.b16 %v874
    %v5038 = vunpack.c.l.b16 %v875
    %v5039 = vunpack.c.l.b16 %v876
    %v5040 = vunpack.c.l.b16 %v877
    %v5041 = vunpack.c.l.b16 %v878
    %v5042 = vunpack.c.l.b16 %v879
    %v5043 = vunpack.c.l.b16 %v880
    %v5044 = vunpack.c.l.b16 %v881
    %v5045 = vunpack.c.l.b16 %v882
    %v5046 = vunpack.c.l.b16 %v883
    %v5047 = vunpack.c.l.b16 %v884
    %v5048 = vunpack.c.l.b16 %v885
    %v5049 = vunpack.c.l.b16 %v886
    %v5050 = vunpack.c.l.b16 %v887
    %v5051 = vunpack.c.l.b16 %v888
    %v5052 = vunpack.c.l.b16 %v889
    %v5053 = vunpack.c.l.b16 %v890
    %v5054 = vunpack.c.l.b16 %v891
    %v5055 = vunpack.c.l.b16 %v892
    %v5056 = vunpack.c.l.b16 %v893
    %v5057 = vunpack.c.l.b16 %v894
    %v5058 = vunpack.c.l.b16 %v895
    %v5059 = vunpack.c.l.b16 %v896
    %v5060 = vunpack.c.l.b16 %v897
    %v5061 = vunpack.c.l.b16 %v898
    %v5062 = vunpack.c.l.b16 %v899
    %v5063 = vunpack.c.l.b16 %v900
    %v5064 = vunpack.c.l.b16 %v901
    %v5065 = vunpack.c.l.b16 %v902
    %v5066 = vunpack.c.l.b16 %v903
    %v5067 = vunpack.c.l.b16 %v904
    %v5068 = vunpack.c.l.b16 %v905
    %v5069 = vunpack.c.l.b16 %v906
    %v5070 = vunpack.c.l.b16 %v907
    %v5071 = vunpack.c.l.b16 %v908
    %v5072 = vunpack.c.l.b16 %v909
    %v5073 = vunpack.c.l.b16 %v910
    %v5074 = vunpack.c.l.b16 %v911
    %v5075 = vunpack.c.l.b16 %v912
    %v5076 = vunpack.c.l.b16 %v913
    %v5077 = vunpack.c.l.b16 %v914
    %v5078 = vunpack.c.l.b16 %v915
    %v5079 = vunpack.c.l.b16 %v916
    %v5080 = vunpack.c.l.b16 %v917
    %v5081 = vunpack.c.l.b16 %v918
    %v5082 = vunpack.c.l.b16 %v919
    %v5083 = vunpack.c.l.b16 %v920
    %v5084 = vunpack.c.l.b16 %v921
    %v5085 = vunpack.c.l.b16 %v922
    %v5086 = vunpack.c.l.b16 %v923
    %v5087 = vunpack.c.l.b16 %v924
    %v5088 = vunpack.c.l.b16 %v925
    %v5089 = vunpack.c.l.b16 %v926
    %v5090 = vunpack.c.l.b16 %v927
    %v5091 = vunpack.c.l.b16 %v928
    %v5092 = vunpack.c.l.b16 %v929
    %v5093 = vunpack.c.l.b16 %v930
    %v5094 = vunpack.c.l.b16 %v931
    %v5095 = vunpack.c.l.b16 %v932
    %v5096 = vunpack.c.l.b16 %v933
    %v5097 = vunpack.c.l.b16 %v934
    %v5098 = vunpack.c.l.b16 %v935
    %v5099 = vunpack.c.l.b16 %v936
    %v5100 = vunpack.c.l.b16 %v937
    %v5101 = vunpack.c.l.b16 %v938
    %v5102 = vunpack.c.l.b16 %v939
    %v5103 = vunpack.c.l.b16 %v940
    %v5104 = vunpack.c.l.b16 %v941
    %v5105 = vunpack.c.l.b16 %v942
    %v5106 = vunpack.c.l.b16 %v943
    %v5107 = vunpack.c.l.b16 %v944
    %v5108 = vunpack.c.l.b16 %v945
    %v5109 = vunpack.c.l.b16 %v946
    %v5110 = vunpack.c.l.b16 %v947
    %v5111 = vunpack.c.l.b16 %v948
    %v5112 = vunpack.c.l.b16 %v949
    %v5113 = vunpack.c.l.b16 %v950
    %v5114 = vunpack.c.l.b16 %v951
    %v5115 = vunpack.c.l.b16 %v952
    %v5116 = vunpack.c.l.b16 %v953
    %v5117 = vunpack.c.l.b16 %v954
    %v5118 = vunpack.c.l.b16 %v955
    %v5119 = vunpack.c.l.b16 %v956
    %v5120 = vunpack.c.l.b16 %v957
    %v5121 = vunpack.c.l.b16 %v958
    %v5122 = vunpack.c.l.b16 %v959
    %v5123 = vunpack.c.l.b16 %v960
    %v5124 = vunpack.c.l.b16 %v961
    %v5125 = vunpack.c.l.b16 %v962
    %v5126 = vunpack.c.l.b16 %v963
    %v5127 = vunpack.c.l.b16 %v964
    %v5128 = vunpack.c.l.b16 %v965
    %v5129 = vunpack.c.l.b16 %v966
    %v5130 = vunpack.c.l.b16 %v967
    %v5131 = vunpack.c.l.b16 %v968
    %v5132 = vunpack.c.l.b16 %v969
    %v5133 = vunpack.c.l.b16 %v970
    %v5134 = vunpack.c.l.b16 %v971
    %v5135 = vunpack.c.l.b16 %v972
    %v5136 = vunpack.c.l.b16 %v973
    %v5137 = vunpack.c.l.b16 %v974
    %v5138 = vunpack.c.l.b16 %v975
    %v5139 = vunpack.c.l.b16 %v976
    %v5140 = vunpack.c.l.b16 %v977
    %v5141 = vunpack.c.l.b16 %v978
    %v5142 = vunpack.c.l.b16 %v979
    %v5143 = vunpack.c.l.b16 %v980
    %v5144 = vunpack.c.l.b16 %v981
    %v5145 = vunpack.c.l.b16 %v982
    %v5146 = vunpack.c.l.b16 %v983
    %v5147 = vunpack.c.l.b16 %v984
    %v5148 = vunpack.c.l.b16 %v985
    %v5149 = vunpack.c.l.b16 %v986
    %v5150 = vunpack.c.l.b16 %v987
    %v5151 = vunpack.c.l.b16 %v988
    %v5152 = vunpack.c.l.b16 %v989
    %v5153 = vunpack.c.l.b16 %v990
    %v5154 = vunpack.c.l.b16 %v991
    %v5155 = vunpack.c.l.b16 %v992
    %v5156 = vunpack.c.l.b16 %v993
    %v5157 = vunpack.c.l.b16 %v994
    %v5158 = vunpack.c.l.b16 %v995
    %v5159 = vunpack.c.l.b16 %v996
    %v5160 = vunpack.c.l.b16 %v997
    %v5161 = vunpack.c.l.b16 %v998
    %v5162 = vunpack.c.l.b16 %v999
    %v5163 = vunpack.c.l.b16 %v1000
    %v5164 = vunpack.c.l.b16 %v1001
    %v5165 = vunpack.c.l.b16 %v1002
    %v5166 = vunpack.c.l.b16 %v1003
    %v5167 = vunpack.c.l.b16 %v1004
    %v5168 = vunpack.c.l.b16 %v1005
    %v5169 = vunpack.c.l.b16 %v1006
    %v5170 = vunpack.c.l.b16 %v1007
    %v5171 = vunpack.c.l.b16 %v1008
    %v5172 = vunpack.c.l.b16 %v1009
    %v5173 = vunpack.c.l.b16 %v1010
    %v5174 = vunpack.c.l.b16 %v1011
    %v5175 = vunpack.c.l.b16 %v1012
    %v5176 = vunpack.c.l.b16 %v1013
    %v5177 = vunpack.c.l.b16 %v1014
    %v5178 = vunpack.c.l.b16 %v1015
    %v5179 = vunpack.c.l.b16 %v1016
    %v5180 = vunpack.c.l.b16 %v1017
    %v5181 = vunpack.c.l.b16 %v1018
    %v5182 = vunpack.c.l.b16 %v1019
    %v5183 = vunpack.c.l.b16 %v1020
    %v5184 = vunpack.c.l.b16 %v1021
    %v5185 = vunpack.c.l.b16 %v1022
    %v5186 = vunpack.c.l.b16 %v1023
    %v5187 = vunpack.c.l.b16 %v1024
    %v5188 = vunpack.c.l.b16 %v1025
    %v5189 = vunpack.c.l.b16 %v1026
    %v5190 = vunpack.c.l.b16 %v1027
    %v5191 = vunpack.c.l.b16 %v1028
    %v5192 = vunpack.c.l.b16 %v1029
    %v5193 = vunpack.c.l.b16 %v1030
    %v5194 = vunpack.c.l.b16 %v1031
    %v5195 = vunpack.c.l.b16 %v1032
    %v5196 = vunpack.c.l.b16 %v1033
    %v5197 = vunpack.c.l.b16 %v1034
    %v5198 = vunpack.c.l.b16 %v1035
    %v5199 = vunpack.c.l.b16 %v1036
    %v5200 = vunpack.c.l.b16 %v1037
    %v5201 = vunpack.c.l.b16 %v1038
    %v5202 = vunpack.c.l.b16 %v1039
    %v5203 = vunpack.c.l.b16 %v1040
    %v5204 = vunpack.c.l.b16 %v1041
    %v5205 = vunpack.c.l.b16 %v1042
    %v5206 = vunpack.c.l.b16 %v1043
    %v5207 = vunpack.c.l.b16 %v1044
    %v5208 = vunpack.c.l.b16 %v1045
    %v5209 = vunpack.c.l.b16 %v1046
    %v5210 = vunpack.c.l.b16 %v1047
    %v5211 = vunpack.c.l.b16 %v1048
    %v5212 = vunpack.c.l.b16 %v1049
    %v5213 = vunpack.c.l.b16 %v1050
    %v5214 = vunpack.c.l.b16 %v1051
    %v5215 = vunpack.c.l.b16 %v1052
    %v5216 = vunpack.c.l.b16 %v1053
    %v5217 = vunpack.c.l.b16 %v1054
    %v5218 = vunpack.c.l.b16 %v1055
    %v5219 = vunpack.c.l.b16 %v1056
    %v5220 = vunpack.c.l.b16 %v1057
    %v5221 = vunpack.c.l.b16 %v1058
    %v5222 = vunpack.c.l.b16 %v1059
    %v5223 = vunpack.c.l.b16 %v1060
    %v5224 = vunpack.c.l.b16 %v1061
    %v5225 = vunpack.c.l.b16 %v1062
    %v5226 = vunpack.c.l.b16 %v1063
    %v5227 = vunpack.c.l.b16 %v1064
    %v5228 = vunpack.c.l.b16 %v1065
    %v5229 = vunpack.c.l.b16 %v1066
    %v5230 = vunpack.c.l.b16 %v1067
    %v5231 = vunpack.c.l.b16 %v1068
    %v5232 = vunpack.c.l.b16 %v1069
    %v5233 = vunpack.c.l.b16 %v1070
    %v5234 = vunpack.c.l.b16 %v1071
    %v5235 = vunpack.c.l.b16 %v1072
    %v5236 = vunpack.c.l.b16 %v1073
    %v5237 = vunpack.c.l.b16 %v1074
    %v5238 = vunpack.c.l.b16 %v1075
    %v5239 = vunpack.c.l.b16 %v1076
    %v5240 = vunpack.c.l.b16 %v1077
    %v5241 = vunpack.c.l.b16 %v1078
    %v5242 = vunpack.c.l.b16 %v1079
    %v5243 = vunpack.c.l.b16 %v1080
    %v5244 = vunpack.c.l.b16 %v1081
    %v5245 = vunpack.c.l.b16 %v1082
    %v5246 = vunpack.c.l.b16 %v1083
    %v5247 = vunpack.c.l.b16 %v1084
    %v5248 = vunpack.c.l.b16 %v1085
    %v5249 = vunpack.c.l.b16 %v1086
    %v5250 = vunpack.c.l.b16 %v1087
    %v5251 = vunpack.c.l.b16 %v1088
    %v5252 = vunpack.c.l.b16 %v1089
    %v5253 = vunpack.c.l.b16 %v1090
    %v5254 = vunpack.c.l.b16 %v1091
    %v5255 = vunpack.c.l.b16 %v1092
    %v5256 = vunpack.c.l.b16 %v1093
    %v5257 = vunpack.c.l.b16 %v1094
    %v5258 = vunpack.c.l.b16 %v1095
    %v5259 = vunpack.c.l.b16 %v1096
    %v5260 = vunpack.c.l.b16 %v1097
    %v5261 = vunpack.c.l.b16 %v1098
    %v5262 = vunpack.c.l.b16 %v1099
    %v5263 = vunpack.c.l.b16 %v1100
    %v5264 = vunpack.c.l.b16 %v1101
    %v5265 = vunpack.c.l.b16 %v1102
    %v5266 = vunpack.c.l.b16 %v1103
    %v5267 = vunpack.c.l.b16 %v1104
    %v5268 = vunpack.c.l.b16 %v1105
    %v5269 = vunpack.c.l.b16 %v1106
    %v5270 = vunpack.c.l.b16 %v1107
    %v5271 = vunpack.c.l.b16 %v1108
    %v5272 = vunpack.c.l.b16 %v1109
    %v5273 = vunpack.c.l.b16 %v1110
    %v5274 = vunpack.c.l.b16 %v1111
    %v5275 = vunpack.c.l.b16 %v1112
    %v5276 = vunpack.c.l.b16 %v1113
    %v5277 = vunpack.c.l.b16 %v1114
    %v5278 = vunpack.c.l.b16 %v1115
    %v5279 = vunpack.c.l.b16 %v1116
    %v5280 = vunpack.c.l.b16 %v1117
    %v5281 = vunpack.c.l.b16 %v1118
    %v5282 = vunpack.c.l.b16 %v1119
    %v5283 = vunpack.c.l.b16 %v1120
    %v5284 = vunpack.c.l.b16 %v1121
    %v5285 = vunpack.c.l.b16 %v1122
    %v5286 = vunpack.c.l.b16 %v1123
    %v5287 = vunpack.c.l.b16 %v1124
    %v5288 = vunpack.c.l.b16 %v1125
    %v5289 = vunpack.c.l.b16 %v1126
    %v5290 = vunpack.c.l.b16 %v1127
    %v5291 = vunpack.c.l.b16 %v1128
    %v5292 = vunpack.c.l.b16 %v1129
    %v5293 = vunpack.c.l.b16 %v1130
    %v5294 = vunpack.c.l.b16 %v1131
    %v5295 = vunpack.c.l.b16 %v1132
    %v5296 = vunpack.c.l.b16 %v1133
    %v5297 = vunpack.c.l.b16 %v1134
    %v5298 = vunpack.c.l.b16 %v1135
    %v5299 = vunpack.c.l.b16 %v1136
    %v5300 = vunpack.c.l.b16 %v1137
    %v5301 = vunpack.c.l.b16 %v1138
    %v5302 = vunpack.c.l.b16 %v1139
    %v5303 = vunpack.c.l.b16 %v1140
    %v5304 = vunpack.c.l.b16 %v1141
    %v5305 = vunpack.c.l.b16 %v1142
    %v5306 = vunpack.c.l.b16 %v1143
    %v5307 = vunpack.c.l.b16 %v1144
    %v5308 = vunpack.c.l.b16 %v1145
    %v5309 = vunpack.c.l.b16 %v1146
    %v5310 = vunpack.c.l.b16 %v1147
    %v5311 = vunpack.c.l.b16 %v1148
    %v5312 = vunpack.c.l.b16 %v1149
    %v5313 = vunpack.c.l.b16 %v1150
    %v5314 = vunpack.c.l.b16 %v1151
    %v5315 = vunpack.c.l.b16 %v1152
    %v5316 = vunpack.c.l.b16 %v1153
    %v5317 = vunpack.c.l.b16 %v1154
    %v5318 = vunpack.c.l.b16 %v1155
    %v5319 = vunpack.c.l.b16 %v1156
    %v5320 = vunpack.c.l.b16 %v1157
    %v5321 = vunpack.c.l.b16 %v1158
    %v5322 = vunpack.c.l.b16 %v1159
    %v5323 = vunpack.c.l.b16 %v1160
    %v5324 = vunpack.c.l.b16 %v1161
    %v5325 = vunpack.c.l.b16 %v1162
    %v5326 = vunpack.c.l.b16 %v1163
    %v5327 = vunpack.c.l.b16 %v1164
    %v5328 = vunpack.c.l.b16 %v1165
    %v5329 = vunpack.c.l.b16 %v1166
    %v5330 = vunpack.c.l.b16 %v1167
    %v5331 = vunpack.c.l.b16 %v1168
    %v5332 = vunpack.c.l.b16 %v1169
    %v5333 = vunpack.c.l.b16 %v1170
    %v5334 = vunpack.c.l.b16 %v1171
    %v5335 = vunpack.c.l.b16 %v1172
    %v5336 = vunpack.c.l.b16 %v1173
    %v5337 = vunpack.c.l.b16 %v1174
    %v5338 = vunpack.c.l.b16 %v1175
    %v5339 = vunpack.c.l.b16 %v1176
    %v5340 = vunpack.c.l.b16 %v1177
    %v5341 = vunpack.c.l.b16 %v1178
    %v5342 = vunpack.c.l.b16 %v1179
    %v5343 = vunpack.c.l.b16 %v1180
    %v5344 = vunpack.c.l.b16 %v1181
    %v5345 = vunpack.c.l.b16 %v1182
    %v5346 = vunpack.c.l.b16 %v1183
    %v5347 = vunpack.c.l.b16 %v1184
    %v5348 = vunpack.c.l.b16 %v1185
    %v5349 = vunpack.c.l.b16 %v1186
    %v5350 = vunpack.c.l.b16 %v1187
    %v5351 = vunpack.c.l.b16 %v1188
    %v5352 = vunpack.c.l.b16 %v1189
    %v5353 = vunpack.c.l.b16 %v1190
    %v5354 = vunpack.c.l.b16 %v1191
    %v5355 = vunpack.c.l.b16 %v1192
    %v5356 = vunpack.c.l.b16 %v1193
    %v5357 = vunpack.c.l.b16 %v1194
    %v5358 = vunpack.c.l.b16 %v1195
    %v5359 = vunpack.c.l.b16 %v1196
    %v5360 = vunpack.c.l.b16 %v1197
    %v5361 = vunpack.c.l.b16 %v1198
    %v5362 = vunpack.c.l.b16 %v1199
    %v5363 = vunpack.c.l.b16 %v1200
    %v5364 = vunpack.c.l.b16 %v1201
    %v5365 = vunpack.c.l.b16 %v1202
    %v5366 = vunpack.c.l.b16 %v1203
    %v5367 = vunpack.c.l.b16 %v1204
    %v5368 = vunpack.c.l.b16 %v1205
    %v5369 = vunpack.c.l.b16 %v1206
    %v5370 = vunpack.c.l.b16 %v1207
    %v5371 = vunpack.c.l.b16 %v1208
    %v5372 = vunpack.c.l.b16 %v1209
    %v5373 = vunpack.c.l.b16 %v1210
    %v5374 = vunpack.c.l.b16 %v1211
    %v5375 = vunpack.c.l.b16 %v1212
    %v5376 = vunpack.c.l.b16 %v1213
    %v5377 = vunpack.c.l.b16 %v1214
    %v5378 = vunpack.c.l.b16 %v1215
    %v5379 = vunpack.c.l.b16 %v1216
    %v5380 = vunpack.c.l.b16 %v1217
    %v5381 = vunpack.c.l.b16 %v1218
    %v5382 = vunpack.c.l.b16 %v1219
    %v5383 = vunpack.c.l.b16 %v1220
    %v5384 = vunpack.c.l.b16 %v1221
    %v5385 = vunpack.c.l.b16 %v1222
    %v5386 = vunpack.c.l.b16 %v1223
    %v5387 = vunpack.c.l.b16 %v1224
    %v5388 = vunpack.c.l.b16 %v1225
    %v5389 = vunpack.c.l.b16 %v1226
    %v5390 = vunpack.c.l.b16 %v1227
    %v5391 = vunpack.c.l.b16 %v1228
    %v5392 = vunpack.c.l.b16 %v1229
    %v5393 = vunpack.c.l.b16 %v1230
    %v5394 = vunpack.c.l.b16 %v1231
    %v5395 = vunpack.c.l.b16 %v1232
    %v5396 = vunpack.c.l.b16 %v1233
    %v5397 = vunpack.c.l.b16 %v1234
    %v5398 = vunpack.c.l.b16 %v1235
    %v5399 = vunpack.c.l.b16 %v1236
    %v5400 = vunpack.c.l.b16 %v1237
    %v5401 = vunpack.c.l.b16 %v1238
    %v5402 = vunpack.c.l.b16 %v1239
    %v5403 = vunpack.c.l.b16 %v1240
    %v5404 = vunpack.c.l.b16 %v1241
    %v5405 = vunpack.c.l.b16 %v1242
    %v5406 = vunpack.c.l.b16 %v1243
    %v5407 = vunpack.c.l.b16 %v1244
    %v5408 = vunpack.c.l.b16 %v1245
    %v5409 = vunpack.c.l.b16 %v1246
    %v5410 = vunpack.c.l.b16 %v1247
    %v5411 = vunpack.c.l.b16 %v1248
    %v5412 = vunpack.c.l.b16 %v1249
    %v5413 = vunpack.c.l.b16 %v1250
    %v5414 = vunpack.c.l.b16 %v1251
    %v5415 = vunpack.c.l.b16 %v1252
    %v5416 = vunpack.c.l.b16 %v1253
    %v5417 = vunpack.c.l.b16 %v1254
    %v5418 = vunpack.c.l.b16 %v1255
    %v5419 = vunpack.c.l.b16 %v1256
    %v5420 = vunpack.c.l.b16 %v1257
    %v5421 = vunpack.c.l.b16 %v1258
    %v5422 = vunpack.c.l.b16 %v1259
    %v5423 = vunpack.c.l.b16 %v1260
    %v5424 = vunpack.c.l.b16 %v1261
    %v5425 = vunpack.c.l.b16 %v1262
    %v5426 = vunpack.c.l.b16 %v1263
    %v5427 = vunpack.c.l.b16 %v1264
    %v5428 = vunpack.c.l.b16 %v1265
    %v5429 = vunpack.c.l.b16 %v1266
    %v5430 = vunpack.c.l.b16 %v1267
    %v5431 = vunpack.c.l.b16 %v1268
    %v5432 = vunpack.c.l.b16 %v1269
    %v5433 = vunpack.c.l.b16 %v1270
    %v5434 = vunpack.c.l.b16 %v1271
    %v5435 = vunpack.c.l.b16 %v1272
    %v5436 = vunpack.c.l.b16 %v1273
    %v5437 = vunpack.c.l.b16 %v1274
    %v5438 = vunpack.c.l.b16 %v1275
    %v5439 = vunpack.c.l.b16 %v1276
    %v5440 = vunpack.c.l.b16 %v1277
    %v5441 = vunpack.c.l.b16 %v1278
    %v5442 = vunpack.c.l.b16 %v1279
    %v5443 = vunpack.c.l.b16 %v1280
    %v5444 = vunpack.c.l.b16 %v1281
    %v5445 = vunpack.c.l.b16 %v1282
    %v5446 = vunpack.c.l.b16 %v1283
    %v5447 = vunpack.c.l.b16 %v1284
    %v5448 = vunpack.c.l.b16 %v1285
    %v5449 = vunpack.c.l.b16 %v1286
    %v5450 = vunpack.c.l.b16 %v1287
    %v5451 = vunpack.c.l.b16 %v1288
    %v5452 = vunpack.c.l.b16 %v1289
    %v5453 = vunpack.c.l.b16 %v1290
    %v5454 = vunpack.c.l.b16 %v1291
    %v5455 = vunpack.c.l.b16 %v1292
    %v5456 = vunpack.c.l.b16 %v1293
    %v5457 = vunpack.c.l.b16 %v1294
    %v5458 = vunpack.c.l.b16 %v1295
    %v5459 = vunpack.c.l.b16 %v1296
    %v5460 = vunpack.c.l.b16 %v1297
    %v5461 = vunpack.c.l.b16 %v1298
    %v5462 = vunpack.c.l.b16 %v1299
    %v5463 = vunpack.c.l.b16 %v1300
    %v5464 = vunpack.c.l.b16 %v1301
    %v5465 = vunpack.c.l.b16 %v1302
    %v5466 = vunpack.c.l.b16 %v1303
    %v5467 = vunpack.c.l.b16 %v1304
    %v5468 = vunpack.c.l.b16 %v1305
    %v5469 = vunpack.c.l.b16 %v1306
    %v5470 = vunpack.c.l.b16 %v1307
    %v5471 = vunpack.c.l.b16 %v1308
    %v5472 = vunpack.c.l.b16 %v1309
    %v5473 = vunpack.c.l.b16 %v1310
    %v5474 = vunpack.c.l.b16 %v1311
    %v5475 = vunpack.c.l.b16 %v1312
    %v5476 = vunpack.c.l.b16 %v1313
    %v5477 = vunpack.c.l.b16 %v1314
    %v5478 = vunpack.c.l.b16 %v1315
    %v5479 = vunpack.c.l.b16 %v1316
    %v5480 = vunpack.c.l.b16 %v1317
    %v5481 = vunpack.c.l.b16 %v1318
    %v5482 = vunpack.c.l.b16 %v1319
    %v5483 = vunpack.c.l.b16 %v1320
    %v5484 = vunpack.c.l.b16 %v1321
    %v5485 = vunpack.c.l.b16 %v1322
    %v5486 = vunpack.c.l.b16 %v1323
    %v5487 = vunpack.c.l.b16 %v1324
    %v5488 = vunpack.c.l.b16 %v1325
    %v5489 = vunpack.c.l.b16 %v1326
    %v5490 = vunpack.c.l.b16 %v1327
    %v5491 = vunpack.c.l.b16 %v1328
    %v5492 = vunpack.c.l.b16 %v1329
    %v5493 = vunpack.c.l.b16 %v1330
    %v5494 = vunpack.c.l.b16 %v1331
    %v5495 = vunpack.c.l.b16 %v1332
    %v5496 = vunpack.c.l.b16 %v1333
    %v5497 = vunpack.c.l.b16 %v1334
    %v5498 = vunpack.c.l.b16 %v1335
    %v5499 = vunpack.c.l.b16 %v1336
    %v5500 = vunpack.c.l.b16 %v1337
    %v5501 = vunpack.c.l.b16 %v1338
    %v5502 = vunpack.c.l.b16 %v1339
    %v5503 = vunpack.c.l.b16 %v1340
    %v5504 = vunpack.c.l.b16 %v1341
    %v5505 = vunpack.c.l.b16 %v1342
    %v5506 = vunpack.c.l.b16 %v1343
    %v5507 = vunpack.c.l.b16 %v1344
    %v5508 = vunpack.c.l.b16 %v1345
    %v5509 = vunpack.c.l.b16 %v1346
    %v5510 = vunpack.c.l.b16 %v1347
    %v5511 = vunpack.c.l.b16 %v1348
    %v5512 = vunpack.c.l.b16 %v1349
    %v5513 = vunpack.c.l.b16 %v1350
    %v5514 = vunpack.c.l.b16 %v1351
    %v5515 = vunpack.c.l.b16 %v1352
    %v5516 = vunpack.c.l.b16 %v1353
    %v5517 = vunpack.c.l.b16 %v1354
    %v5518 = vunpack.c.l.b16 %v1355
    %v5519 = vunpack.c.l.b16 %v1356
    %v5520 = vunpack.c.l.b16 %v1357
    %v5521 = vunpack.c.l.b16 %v1358
    %v5522 = vunpack.c.l.b16 %v1359
    %v5523 = vunpack.c.l.b16 %v1360
    %v5524 = vunpack.c.l.b16 %v1361
    %v5525 = vunpack.c.l.b16 %v1362
    %v5526 = vunpack.c.l.b16 %v1363
    %v5527 = vunpack.c.l.b16 %v1364
    %v5528 = vunpack.c.l.b16 %v1365
    %v5529 = vunpack.c.l.b16 %v1366
    %v5530 = vunpack.c.l.b16 %v1367
    %v5531 = vunpack.c.l.b16 %v1368
    %v5532 = vunpack.c.l.b16 %v1369
    %v5533 = vunpack.c.l.b16 %v1370
    %v5534 = vunpack.c.l.b16 %v1371
    %v5535 = vunpack.c.l.b16 %v1372
    %v5536 = vunpack.c.l.b16 %v1373
    %v5537 = vunpack.c.l.b16 %v1374
    %v5538 = vunpack.c.l.b16 %v1375
    %v5539 = vunpack.c.l.b16 %v1376
    %v5540 = vunpack.c.l.b16 %v1377
    %v5541 = vunpack.c.l.b16 %v1378
    %v5542 = vunpack.c.l.b16 %v1379
    %v5543 = vunpack.c.l.b16 %v1380
    %v5544 = vunpack.c.l.b16 %v1381
    %v5545 = vunpack.c.l.b16 %v1382
    %v5546 = vunpack.c.l.b16 %v1383
    %v5547 = vunpack.c.l.b16 %v1384
    %v5548 = vunpack.c.l.b16 %v1385
    %v5549 = vunpack.c.l.b16 %v1386
    %v5550 = vunpack.c.l.b16 %v1387
    %v5551 = vunpack.c.l.b16 %v1388
    %v5552 = vunpack.c.l.b16 %v1389
    %v5553 = vunpack.c.l.b16 %v1390
    %v5554 = vunpack.c.l.b16 %v1391
    %v5555 = vunpack.c.l.b16 %v1392
    %v5556 = vunpack.c.l.b16 %v1393
    %v5557 = vunpack.c.l.b16 %v1394
    %v5558 = vunpack.c.l.b16 %v1395
    %v5559 = vunpack.c.l.b16 %v1396
    %v5560 = vunpack.c.l.b16 %v1397
    %v5561 = vunpack.c.l.b16 %v1398
    %v5562 = vunpack.c.l.b16 %v1399
    %v5563 = vunpack.c.l.b16 %v1400
    %v5564 = vunpack.c.l.b16 %v1401
    %v5565 = vunpack.c.l.b16 %v1402
    %v5566 = vunpack.c.l.b16 %v1403
    %v5567 = vunpack.c.l.b16 %v1404
    %v5568 = vunpack.c.l.b16 %v1405
    %v5569 = vunpack.c.l.b16 %v1406
    %v5570 = vunpack.c.l.b16 %v1407
    %v5571 = vunpack.c.l.b16 %v1408
    %v5572 = vunpack.c.l.b16 %v1409
    %v5573 = vunpack.c.l.b16 %v1410
    %v5574 = vunpack.c.l.b16 %v1411
    %v5575 = vunpack.c.l.b16 %v1412
    %v5576 = vunpack.c.l.b16 %v1413
    %v5577 = vunpack.c.l.b16 %v1414
    %v5578 = vunpack.c.l.b16 %v1415
    %v5579 = vunpack.c.l.b16 %v1416
    %v5580 = vunpack.c.l.b16 %v1417
    %v5581 = vunpack.c.l.b16 %v1418
    %v5582 = vunpack.c.l.b16 %v1419
    %v5583 = vunpack.c.l.b16 %v1420
    %v5584 = vunpack.c.l.b16 %v1421
    %v5585 = vunpack.c.l.b16 %v1422
    %v5586 = vunpack.c.l.b16 %v1423
    %v5587 = vunpack.c.l.b16 %v1424
    %v5588 = vunpack.c.l.b16 %v1425
    %v5589 = vunpack.c.l.b16 %v1426
    %v5590 = vunpack.c.l.b16 %v1427
    %v5591 = vunpack.c.l.b16 %v1428
    %v5592 = vunpack.c.l.b16 %v1429
    %v5593 = vunpack.c.l.b16 %v1430
    %v5594 = vunpack.c.l.b16 %v1431
    %v5595 = vunpack.c.l.b16 %v1432
    %v5596 = vunpack.c.l.b16 %v1433
    %v5597 = vunpack.c.l.b16 %v1434
    %v5598 = vunpack.c.l.b16 %v1435
    %v5599 = vunpack.c.l.b16 %v1436
    %v5600 = vunpack.c.l.b16 %v1437
    %v5601 = vunpack.c.l.b16 %v1438
    %v5602 = vunpack.c.l.b16 %v1439
    %v5603 = vunpack.c.l.b16 %v1440
    %v5604 = vunpack.c.l.b16 %v1441
    %v5605 = vunpack.c.l.b16 %v1442
    %v5606 = vunpack.c.l.b16 %v1443
    %v5607 = vunpack.c.l.b16 %v1444
    %v5608 = vunpack.c.l.b16 %v1445
    %v5609 = vunpack.c.l.b16 %v1446
    %v5610 = vunpack.c.l.b16 %v1447
    %v5611 = vunpack.c.l.b16 %v1448
    %v5612 = vunpack.c.l.b16 %v1449
    %v5613 = vunpack.c.l.b16 %v1450
    %v5614 = vunpack.c.l.b16 %v1451
    %v5615 = vunpack.c.l.b16 %v1452
    %v5616 = vunpack.c.l.b16 %v1453
    %v5617 = vunpack.c.l.b16 %v1454
    %v5618 = vunpack.c.l.b16 %v1455
    %v5619 = vunpack.c.l.b16 %v1456
    %v5620 = vunpack.c.l.b16 %v1457
    %v5621 = vunpack.c.l.b16 %v1458
    %v5622 = vunpack.c.l.b16 %v1459
    %v5623 = vunpack.c.l.b16 %v1460
    %v5624 = vunpack.c.l.b16 %v1461
    %v5625 = vunpack.c.l.b16 %v1462
    %v5626 = vunpack.c.l.b16 %v1463
    %v5627 = vunpack.c.l.b16 %v1464
    %v5628 = vunpack.c.l.b16 %v1465
    %v5629 = vunpack.c.l.b16 %v1466
    %v5630 = vunpack.c.l.b16 %v1467
    %v5631 = vunpack.c.l.b16 %v1468
    %v5632 = vunpack.c.l.b16 %v1469
    %v5633 = vunpack.c.l.b16 %v1470
    %v5634 = vunpack.c.l.b16 %v1471
    %v5635 = vunpack.c.l.b16 %v1472
    %v5636 = vunpack.c.l.b16 %v1473
    %v5637 = vunpack.c.l.b16 %v1474
    %v5638 = vunpack.c.l.b16 %v1475
    %v5639 = vunpack.c.l.b16 %v1476
    %v5640 = vunpack.c.l.b16 %v1477
    %v5641 = vunpack.c.l.b16 %v1478
    %v5642 = vunpack.c.l.b16 %v1479
    %v5643 = vunpack.c.l.b16 %v1480
    %v5644 = vunpack.c.l.b16 %v1481
    %v5645 = vunpack.c.l.b16 %v1482
    %v5646 = vunpack.c.l.b16 %v1483
    %v5647 = vunpack.c.l.b16 %v1484
    %v5648 = vunpack.c.l.b16 %v1485
    %v5649 = vunpack.c.l.b16 %v1486
    %v5650 = vunpack.c.l.b16 %v1487
    %v5651 = vunpack.c.l.b16 %v1488
    %v5652 = vunpack.c.l.b16 %v1489
    %v5653 = vunpack.c.l.b16 %v1490
    %v5654 = vunpack.c.l.b16 %v1491
    %v5655 = vunpack.c.l.b16 %v1492
    %v5656 = vunpack.c.l.b16 %v1493
    %v5657 = vunpack.c.l.b16 %v1494
    %v5658 = vunpack.c.l.b16 %v1495
    %v5659 = vunpack.c.l.b16 %v1496
    %v5660 = vunpack.c.l.b16 %v1497
    %v5661 = vunpack.c.l.b16 %v1498
    %v5662 = vunpack.c.l.b16 %v1499
    %v5663 = vunpack.c.l.b16 %v1500
    %v5664 = vunpack.c.l.b16 %v1501
    %v5665 = vunpack.c.l.b16 %v1502
    %v5666 = vunpack.c.l.b16 %v1503
    %v5667 = vunpack.c.l.b16 %v1504
    %v5668 = vunpack.c.l.b16 %v1505
    %v5669 = vunpack.c.l.b16 %v1506
    %v5670 = vunpack.c.l.b16 %v1507
    %v5671 = vunpack.c.l.b16 %v1508
    %v5672 = vunpack.c.l.b16 %v1509
    %v5673 = vunpack.c.l.b16 %v1510
    %v5674 = vunpack.c.l.b16 %v1511
    %v5675 = vunpack.c.l.b16 %v1512
    %v5676 = vunpack.c.l.b16 %v1513
    %v5677 = vunpack.c.l.b16 %v1514
    %v5678 = vunpack.c.l.b16 %v1515
    %v5679 = vunpack.c.l.b16 %v1516
    %v5680 = vunpack.c.l.b16 %v1517
    %v5681 = vunpack.c.l.b16 %v1518
    %v5682 = vunpack.c.l.b16 %v1519
    %v5683 = vunpack.c.l.b16 %v1520
    %v5684 = vunpack.c.l.b16 %v1521
    %v5685 = vunpack.c.l.b16 %v1522
    %v5686 = vunpack.c.l.b16 %v1523
    %v5687 = vunpack.c.l.b16 %v1524
    %v5688 = vunpack.c.l.b16 %v1525
    %v5689 = vunpack.c.l.b16 %v1526
    %v5690 = vunpack.c.l.b16 %v1527
    %v5691 = vunpack.c.l.b16 %v1528
    %v5692 = vunpack.c.l.b16 %v1529
    %v5693 = vunpack.c.l.b16 %v1530
    %v5694 = vunpack.c.l.b16 %v1531
    %v5695 = vunpack.c.l.b16 %v1532
    %v5696 = vunpack.c.l.b16 %v1533
    %v5697 = vunpack.c.l.b16 %v1534
    %v5698 = vunpack.c.l.b16 %v1535
    %v5699 = vunpack.c.l.b16 %v1536
    %v5700 = vunpack.c.l.b16 %v1537
    %v5701 = vunpack.c.l.b16 %v1538
    %v5702 = vunpack.c.l.b16 %v1539
    %v5703 = vunpack.c.l.b16 %v1540
    %v5704 = vunpack.c.l.b16 %v1541
    %v5705 = vunpack.c.l.b16 %v1542
    %v5706 = vunpack.c.l.b16 %v1543
    %v5707 = vunpack.c.l.b16 %v1544
    %v5708 = vunpack.c.l.b16 %v1545
    %v5709 = vunpack.c.l.b16 %v1546
    %v5710 = vunpack.c.l.b16 %v1547
    %v5711 = vunpack.c.l.b16 %v1548
    %v5712 = vunpack.c.l.b16 %v1549
    %v5713 = vunpack.c.l.b16 %v1550
    %v5714 = vunpack.c.l.b16 %v1551
    %v5715 = vunpack.c.l.b16 %v1552
    %v5716 = vunpack.c.l.b16 %v1553
    %v5717 = vunpack.c.l.b16 %v1554
    %v5718 = vunpack.c.l.b16 %v1555
    %v5719 = vunpack.c.l.b16 %v1556
    %v5720 = vunpack.c.l.b16 %v1557
    %v5721 = vunpack.c.l.b16 %v1558
    %v5722 = vunpack.c.l.b16 %v1559
    %v5723 = vunpack.c.l.b16 %v1560
    %v5724 = vunpack.c.l.b16 %v1561
    %v5725 = vunpack.c.l.b16 %v1562
    %v5726 = vunpack.c.l.b16 %v1563
    %v5727 = vunpack.c.l.b16 %v1564
    %v5728 = vunpack.c.l.b16 %v1565
    %v5729 = vunpack.c.l.b16 %v1566
    %v5730 = vunpack.c.l.b16 %v1567
    %v5731 = vunpack.c.l.b16 %v1568
    %v5732 = vunpack.c.l.b16 %v1569
    %v5733 = vunpack.c.l.b16 %v1570
    %v5734 = vunpack.c.l.b16 %v1571
    %v5735 = vunpack.c.l.b16 %v1572
    %v5736 = vunpack.c.l.b16 %v1573
    %v5737 = vunpack.c.l.b16 %v1574
    %v5738 = vunpack.c.l.b16 %v1575
    %v5739 = vunpack.c.l.b16 %v1576
    %v5740 = vunpack.c.l.b16 %v1577
    %v5741 = vunpack.c.l.b16 %v1578
    %v5742 = vunpack.c.l.b16 %v1579
    %v5743 = vunpack.c.l.b16 %v1580
    %v5744 = vunpack.c.l.b16 %v1581
    %v5745 = vunpack.c.l.b16 %v1582
    %v5746 = vunpack.c.l.b16 %v1583
    %v5747 = vunpack.c.l.b16 %v1584
    %v5748 = vunpack.c.l.b16 %v1585
    %v5749 = vunpack.c.l.b16 %v1586
    %v5750 = vunpack.c.l.b16 %v1587
    %v5751 = vunpack.c.l.b16 %v1588
    %v5752 = vunpack.c.l.b16 %v1589
    %v5753 = vunpack.c.l.b16 %v1590
    %v5754 = vunpack.c.l.b16 %v1591
    %v5755 = vunpack.c.l.b16 %v1592
    %v5756 = vunpack.c.l.b16 %v1593
    %v5757 = vunpack.c.l.b16 %v1594
    %v5758 = vunpack.c.l.b16 %v1595
    %v5759 = vunpack.c.l.b16 %v1596
    %v5760 = vunpack.c.l.b16 %v1597
    %v5761 = vunpack.c.l.b16 %v1598
    %v5762 = vunpack.c.l.b16 %v1599
    %v5763 = vunpack.c.l.b16 %v1600
    %v5764 = vunpack.c.l.b16 %v1601
    %v5765 = vunpack.c.l.b16 %v1602
    %v5766 = vunpack.c.l.b16 %v1603
    %v5767 = vunpack.c.l.b16 %v1604
    %v5768 = vunpack.c.l.b16 %v1605
    %v5769 = vunpack.c.l.b16 %v1606
    %v5770 = vunpack.c.l.b16 %v1607
    %v5771 = vunpack.c.l.b16 %v1608
    %v5772 = vunpack.c.l.b16 %v1609
    %v5773 = vunpack.c.l.b16 %v1610
    %v5774 = vunpack.c.l.b16 %v1611
    %v5775 = vunpack.c.l.b16 %v1612
    %v5776 = vunpack.c.l.b16 %v1613
    %v5777 = vunpack.c.l.b16 %v1614
    %v5778 = vunpack.c.l.b16 %v1615
    %v5779 = vunpack.c.l.b16 %v1616
    %v5780 = vunpack.c.l.b16 %v1617
    %v5781 = vunpack.c.l.b16 %v1618
    %v5782 = vunpack.c.l.b16 %v1619
    %v5783 = vunpack.c.l.b16 %v1620
    %v5784 = vunpack.c.l.b16 %v1621
    %v5785 = vunpack.c.l.b16 %v1622
    %v5786 = vunpack.c.l.b16 %v1623
    %v5787 = vunpack.c.l.b16 %v1624
    %v5788 = vunpack.c.l.b16 %v1625
    %v5789 = vunpack.c.l.b16 %v1626
    %v5790 = vunpack.c.l.b16 %v1627
    %v5791 = vunpack.c.l.b16 %v1628
    %v5792 = vunpack.c.l.b16 %v1629
    %v5793 = vunpack.c.l.b16 %v1630
    %v5794 = vunpack.c.l.b16 %v1631
    %v5795 = vunpack.c.l.b16 %v1632
    %v5796 = vunpack.c.l.b16 %v1633
    %v5797 = vunpack.c.l.b16 %v1634
    %v5798 = vunpack.c.l.b16 %v1635
    %v5799 = vunpack.c.l.b16 %v1636
    %v5800 = vunpack.c.l.b16 %v1637
    %v5801 = vunpack.c.l.b16 %v1638
    %v5802 = vunpack.c.l.b16 %v1639
    %v5803 = vunpack.c.l.b16 %v1640
    %v5804 = vunpack.c.l.b16 %v1641
    %v5805 = vunpack.c.l.b16 %v1642
    %v5806 = vunpack.c.l.b16 %v1643
    %v5807 = vunpack.c.l.b16 %v1644
    %v5808 = vunpack.c.l.b16 %v1645
    %v5809 = vunpack.c.l.b16 %v1646
    %v5810 = vunpack.c.l.b16 %v1647
    %v5811 = vunpack.c.l.b16 %v1648
    %v5812 = vunpack.c.l.b16 %v1649
    %v5813 = vunpack.c.l.b16 %v1650
    %v5814 = vunpack.c.l.b16 %v1651
    %v5815 = vunpack.c.l.b16 %v1652
    %v5816 = vunpack.c.l.b16 %v1653
    %v5817 = vunpack.c.l.b16 %v1654
    %v5818 = vunpack.c.l.b16 %v1655
    %v5819 = vunpack.c.l.b16 %v1656
    %v5820 = vunpack.c.l.b16 %v1657
    %v5821 = vunpack.c.l.b16 %v1658
    %v5822 = vunpack.c.l.b16 %v1659
    %v5823 = vunpack.c.l.b16 %v1660
    %v5824 = vunpack.c.l.b16 %v1661
    %v5825 = vunpack.c.l.b16 %v1662
    %v5826 = vunpack.c.l.b16 %v1663
    %v5827 = vunpack.c.l.b16 %v1664
    %v5828 = vunpack.c.l.b16 %v1665
    %v5829 = vunpack.c.l.b16 %v1666
    %v5830 = vunpack.c.l.b16 %v1667
    %v5831 = vunpack.c.l.b16 %v1668
    %v5832 = vunpack.c.l.b16 %v1669
    %v5833 = vunpack.c.l.b16 %v1670
    %v5834 = vunpack.c.l.b16 %v1671
    %v5835 = vunpack.c.l.b16 %v1672
    %v5836 = vunpack.c.l.b16 %v1673
    %v5837 = vunpack.c.l.b16 %v1674
    %v5838 = vunpack.c.l.b16 %v1675
    %v5839 = vunpack.c.l.b16 %v1676
    %v5840 = vunpack.c.l.b16 %v1677
    %v5841 = vunpack.c.l.b16 %v1678
    %v5842 = vunpack.c.l.b16 %v1679
    %v5843 = vunpack.c.l.b16 %v1680
    %v5844 = vunpack.c.l.b16 %v1681
    %v5845 = vunpack.c.l.b16 %v1682
    %v5846 = vunpack.c.l.b16 %v1683
    %v5847 = vunpack.c.l.b16 %v1684
    %v5848 = vunpack.c.l.b16 %v1685
    %v5849 = vunpack.c.l.b16 %v1686
    %v5850 = vunpack.c.l.b16 %v1687
    %v5851 = vunpack.c.l.b16 %v1688
    %v5852 = vunpack.c.l.b16 %v1689
    %v5853 = vunpack.c.l.b16 %v1690
    %v5854 = vunpack.c.l.b16 %v1691
    %v5855 = vunpack.c.l.b16 %v1692
    %v5856 = vunpack.c.l.b16 %v1693
    %v5857 = vunpack.c.l.b16 %v1694
    %v5858 = vunpack.c.l.b16 %v1695
    %v5859 = vunpack.c.l.b16 %v1696
    %v5860 = vunpack.c.l.b16 %v1697
    %v5861 = vunpack.c.l.b16 %v1698
    %v5862 = vunpack.c.l.b16 %v1699
    %v5863 = vunpack.c.l.b16 %v1700
    %v5864 = vunpack.c.l.b16 %v1701
    %v5865 = vunpack.c.l.b16 %v1702
    %v5866 = vunpack.c.l.b16 %v1703
    %v5867 = vunpack.c.l.b16 %v1704
    %v5868 = vunpack.c.l.b16 %v1705
    %v5869 = vunpack.c.l.b16 %v1706
    %v5870 = vunpack.c.l.b16 %v1707
    %v5871 = vunpack.c.l.b16 %v1708
    %v5872 = vunpack.c.l.b16 %v1709
    %v5873 = vunpack.c.l.b16 %v1710
    %v5874 = vunpack.c.l.b16 %v1711
    %v5875 = vunpack.c.l.b16 %v1712
    %v5876 = vunpack.c.l.b16 %v1713
    %v5877 = vunpack.c.l.b16 %v1714
    %v5878 = vunpack.c.l.b16 %v1715
    %v5879 = vunpack.c.l.b16 %v1716
    %v5880 = vunpack.c.l.b16 %v1717
    %v5881 = vunpack.c.l.b16 %v1718
    %v5882 = vunpack.c.l.b16 %v1719
    %v5883 = vunpack.c.l.b16 %v1720
    %v5884 = vunpack.c.l.b16 %v1721
    %v5885 = vunpack.c.l.b16 %v1722
    %v5886 = vunpack.c.l.b16 %v1723
    %v5887 = vunpack.c.l.b16 %v1724
    %v5888 = vunpack.c.l.b16 %v1725
    %v5889 = vunpack.c.l.b16 %v1726
    %v5890 = vunpack.c.l.b16 %v1727
    %v5891 = vunpack.c.l.b16 %v1728
    %v5892 = vunpack.c.l.b16 %v1729
    %v5893 = vunpack.c.l.b16 %v1730
    %v5894 = vunpack.c.l.b16 %v1731
    %v5895 = vunpack.c.l.b16 %v1732
    %v5896 = vunpack.c.l.b16 %v1733
    %v5897 = vunpack.c.l.b16 %v1734
    %v5898 = vunpack.c.l.b16 %v1735
    %v5899 = vunpack.c.l.b16 %v1736
    %v5900 = vunpack.c.l.b16 %v1737
    %v5901 = vunpack.c.l.b16 %v1738
    %v5902 = vunpack.c.l.b16 %v1739
    %v5903 = vunpack.c.l.b16 %v1740
    %v5904 = vunpack.c.l.b16 %v1741
    %v5905 = vunpack.c.l.b16 %v1742
    %v5906 = vunpack.c.l.b16 %v1743
    %v5907 = vunpack.c.l.b16 %v1744
    %v5908 = vunpack.c.l.b16 %v1745
    %v5909 = vunpack.c.l.b16 %v1746
    %v5910 = vunpack.c.l.b16 %v1747
    %v5911 = vunpack.c.l.b16 %v1748
    %v5912 = vunpack.c.l.b16 %v1749
    %v5913 = vunpack.c.l.b16 %v1750
    %v5914 = vunpack.c.l.b16 %v1751
    %v5915 = vunpack.c.l.b16 %v1752
    %v5916 = vunpack.c.l.b16 %v1753
    %v5917 = vunpack.c.l.b16 %v1754
    %v5918 = vunpack.c.l.b16 %v1755
    %v5919 = vunpack.c.l.b16 %v1756
    %v5920 = vunpack.c.l.b16 %v1757
    %v5921 = vunpack.c.l.b16 %v1758
    %v5922 = vunpack.c.l.b16 %v1759
    %v5923 = vunpack.c.l.b16 %v1760
    %v5924 = vunpack.c.l.b16 %v1761
    %v5925 = vunpack.c.l.b16 %v1762
    %v5926 = vunpack.c.l.b16 %v1763
    %v5927 = vunpack.c.l.b16 %v1764
    %v5928 = vunpack.c.l.b16 %v1765
    %v5929 = vunpack.c.l.b16 %v1766
    %v5930 = vunpack.c.l.b16 %v1767
    %v5931 = vunpack.c.l.b16 %v1768
    %v5932 = vunpack.c.l.b16 %v1769
    %v5933 = vunpack.c.l.b16 %v1770
    %v5934 = vunpack.c.l.b16 %v1771
    %v5935 = vunpack.c.l.b16 %v1772
    %v5936 = vunpack.c.l.b16 %v1773
    %v5937 = vunpack.c.l.b16 %v1774
    %v5938 = vunpack.c.l.b16 %v1775
    %v5939 = vunpack.c.l.b16 %v1776
    %v5940 = vunpack.c.l.b16 %v1777
    %v5941 = vunpack.c.l.b16 %v1778
    %v5942 = vunpack.c.l.b16 %v1779
    %v5943 = vunpack.c.l.b16 %v1780
    %v5944 = vunpack.c.l.b16 %v1781
    %v5945 = vunpack.c.l.b16 %v1782
    %v5946 = vunpack.c.l.b16 %v1783
    %v5947 = vunpack.c.l.b16 %v1784
    %v5948 = vunpack.c.l.b16 %v1785
    %v5949 = vunpack.c.l.b16 %v1786
    %v5950 = vunpack.c.l.b16 %v1787
    %v5951 = vunpack.c.l.b16 %v1788
    %v5952 = vunpack.c.l.b16 %v1789
    %v5953 = vunpack.c.l.b16 %v1790
    %v5954 = vunpack.c.l.b16 %v1791
    %v5955 = vunpack.c.l.b16 %v1792
    %v5956 = vunpack.c.l.b16 %v1793
    %v5957 = vunpack.c.l.b16 %v1794
    %v5958 = vunpack.c.l.b16 %v1795
    %v5959 = vunpack.c.l.b16 %v1796
    %v5960 = vunpack.c.l.b16 %v1797
    %v5961 = vunpack.c.l.b16 %v1798
    %v5962 = vunpack.c.l.b16 %v1799
    %v5963 = vunpack.c.l.b16 %v1800
    %v5964 = vunpack.c.l.b16 %v1801
    %v5965 = vunpack.c.l.b16 %v1802
    %v5966 = vunpack.c.l.b16 %v1803
    %v5967 = vunpack.c.l.b16 %v1804
    %v5968 = vunpack.c.l.b16 %v1805
    %v5969 = vunpack.c.l.b16 %v1806
    %v5970 = vunpack.c.l.b16 %v1807
    %v5971 = vunpack.c.l.b16 %v1808
    %v5972 = vunpack.c.l.b16 %v1809
    %v5973 = vunpack.c.l.b16 %v1810
    %v5974 = vunpack.c.l.b16 %v1811
    %v5975 = vunpack.c.l.b16 %v1812
    %v5976 = vunpack.c.l.b16 %v1813
    %v5977 = vunpack.c.l.b16 %v1814
    %v5978 = vunpack.c.l.b16 %v1815
    %v5979 = vunpack.c.l.b16 %v1816
    %v5980 = vunpack.c.l.b16 %v1817
    %v5981 = vunpack.c.l.b16 %v1818
    %v5982 = vunpack.c.l.b16 %v1819
    %v5983 = vunpack.c.l.b16 %v1820
    %v5984 = vunpack.c.l.b16 %v1821
    %v5985 = vunpack.c.l.b16 %v1822
    %v5986 = vunpack.c.l.b16 %v1823
    %v5987 = vunpack.c.l.b16 %v1824
    %v5988 = vunpack.c.l.b16 %v1825
    %v5989 = vunpack.c.l.b16 %v1826
    %v5990 = vunpack.c.l.b16 %v1827
    %v5991 = vunpack.c.l.b16 %v1828
    %v5992 = vunpack.c.l.b16 %v1829
    %v5993 = vunpack.c.l.b16 %v1830
    %v5994 = vunpack.c.l.b16 %v1831
    %v5995 = vunpack.c.l.b16 %v1832
    %v5996 = vunpack.c.l.b16 %v1833
    %v5997 = vunpack.c.l.b16 %v1834
    %v5998 = vunpack.c.l.b16 %v1835
    %v5999 = vunpack.c.l.b16 %v1836
    %v6000 = vunpack.c.l.b16 %v1837
    %v6001 = vunpack.c.l.b16 %v1838
    %v6002 = vunpack.c.l.b16 %v1839
    %v6003 = vunpack.c.l.b16 %v1840
    %v6004 = vunpack.c.l.b16 %v1841
    %v6005 = vunpack.c.l.b16 %v1842
    %v6006 = vunpack.c.l.b16 %v1843
    %v6007 = vunpack.c.l.b16 %v1844
    %v6008 = vunpack.c.l.b16 %v1845
    %v6009 = vunpack.c.l.b16 %v1846
    %v6010 = vunpack.c.l.b16 %v1847
    %v6011 = vunpack.c.l.b16 %v1848
    %v6012 = vunpack.c.l.b16 %v1849
    %v6013 = vunpack.c.l.b16 %v1850
    %v6014 = vunpack.c.l.b16 %v1851
    %v6015 = vunpack.c.l.b16 %v1852
    %v6016 = vunpack.c.l.b16 %v1853
    %v6017 = vunpack.c.l.b16 %v1854
    %v6018 = vunpack.c.l.b16 %v1855
    %v6019 = vunpack.c.l.b16 %v1856
    %v6020 = vunpack.c.l.b16 %v1857
    %v6021 = vunpack.c.l.b16 %v1858
    %v6022 = vunpack.c.l.b16 %v1859
    %v6023 = vunpack.c.l.b16 %v1860
    %v6024 = vunpack.c.l.b16 %v1861
    %v6025 = vunpack.c.l.b16 %v1862
    %v6026 = vunpack.c.l.b16 %v1863
    %v6027 = vunpack.c.l.b16 %v1864
    %v6028 = vunpack.c.l.b16 %v1865
    %v6029 = vunpack.c.l.b16 %v1866
    %v6030 = vunpack.c.l.b16 %v1867
    %v6031 = vunpack.c.l.b16 %v1868
    %v6032 = vunpack.c.l.b16 %v1869
    %v6033 = vunpack.c.l.b16 %v1870
    %v6034 = vunpack.c.l.b16 %v1871
    %v6035 = vunpack.c.l.b16 %v1872
    %v6036 = vunpack.c.l.b16 %v1873
    %v6037 = vunpack.c.l.b16 %v1874
    %v6038 = vunpack.c.l.b16 %v1875
    %v6039 = vunpack.c.l.b16 %v1876
    %v6040 = vunpack.c.l.b16 %v1877
    %v6041 = vunpack.c.l.b16 %v1878
    %v6042 = vunpack.c.l.b16 %v1879
    %v6043 = vunpack.c.l.b16 %v1880
    %v6044 = vunpack.c.l.b16 %v1881
    %v6045 = vunpack.c.l.b16 %v1882
    %v6046 = vunpack.c.l.b16 %v1883
    %v6047 = vunpack.c.l.b16 %v1884
    %v6048 = vunpack.c.l.b16 %v1885
    %v6049 = vunpack.c.l.b16 %v1886
    %v6050 = vunpack.c.l.b16 %v1887
    %v6051 = vunpack.c.l.b16 %v1888
    %v6052 = vunpack.c.l.b16 %v1889
    %v6053 = vunpack.c.l.b16 %v1890
    %v6054 = vunpack.c.l.b16 %v1891
    %v6055 = vunpack.c.l.b16 %v1892
    %v6056 = vunpack.c.l.b16 %v1893
    %v6057 = vunpack.c.l.b16 %v1894
    %v6058 = vunpack.c.l.b16 %v1895
    %v6059 = vunpack.c.l.b16 %v1896
    %v6060 = vunpack.c.l.b16 %v1897
    %v6061 = vunpack.c.l.b16 %v1898
    %v6062 = vunpack.c.l.b16 %v1899
    %v6063 = vunpack.c.l.b16 %v1900
    %v6064 = vunpack.c.l.b16 %v1901
    %v6065 = vunpack.c.l.b16 %v1902
    %v6066 = vunpack.c.l.b16 %v1903
    %v6067 = vunpack.c.l.b16 %v1904
    %v6068 = vunpack.c.l.b16 %v1905
    %v6069 = vunpack.c.l.b16 %v1906
    %v6070 = vunpack.c.l.b16 %v1907
    %v6071 = vunpack.c.l.b16 %v1908
    %v6072 = vunpack.c.l.b16 %v1909
    %v6073 = vunpack.c.l.b16 %v1910
    %v6074 = vunpack.c.l.b16 %v1911
    %v6075 = vunpack.c.l.b16 %v1912
    %v6076 = vunpack.c.l.b16 %v1913
    %v6077 = vunpack.c.l.b16 %v1914
    %v6078 = vunpack.c.l.b16 %v1915
    %v6079 = vunpack.c.l.b16 %v1916
    %v6080 = vunpack.c.l.b16 %v1917
    %v6081 = vunpack.c.l.b16 %v1918
    %v6082 = vunpack.c.l.b16 %v1919
    %v6083 = vunpack.c.l.b16 %v1920
    %v6084 = vunpack.c.l.b16 %v1921
    %v6085 = vunpack.c.l.b16 %v1922
    %v6086 = vunpack.c.l.b16 %v1923
    %v6087 = vunpack.c.l.b16 %v1924
    %v6088 = vunpack.c.l.b16 %v1925
    %v6089 = vunpack.c.l.b16 %v1926
    %v6090 = vunpack.c.l.b16 %v1927
    %v6091 = vunpack.c.l.b16 %v1928
    %v6092 = vunpack.c.l.b16 %v1929
    %v6093 = vunpack.c.l.b16 %v1930
    %v6094 = vunpack.c.l.b16 %v1931
    %v6095 = vunpack.c.l.b16 %v1932
    %v6096 = vunpack.c.l.b16 %v1933
    %v6097 = vunpack.c.l.b16 %v1934
    %v6098 = vunpack.c.l.b16 %v1935
    %v6099 = vunpack.c.l.b16 %v1936
    %v6100 = vunpack.c.l.b16 %v1937
    %v6101 = vunpack.c.l.b16 %v1938
    %v6102 = vunpack.c.l.b16 %v1939
    %v6103 = vunpack.c.l.b16 %v1940
    %v6104 = vunpack.c.l.b16 %v1941
    %v6105 = vunpack.c.l.b16 %v1942
    %v6106 = vunpack.c.l.b16 %v1943
    %v6107 = vunpack.c.l.b16 %v1944
    %v6108 = vunpack.c.l.b16 %v1945
    %v6109 = vunpack.c.l.b16 %v1946
    %v6110 = vunpack.c.l.b16 %v1947
    %v6111 = vunpack.c.l.b16 %v1948
    %v6112 = vunpack.c.l.b16 %v1949
    %v6113 = vunpack.c.l.b16 %v1950
    %v6114 = vunpack.c.l.b16 %v1951
    %v6115 = vunpack.c.l.b16 %v1952
    %v6116 = vunpack.c.l.b16 %v1953
    %v6117 = vunpack.c.l.b16 %v1954
    %v6118 = vunpack.c.l.b16 %v1955
    %v6119 = vunpack.c.l.b16 %v1956
    %v6120 = vunpack.c.l.b16 %v1957
    %v6121 = vunpack.c.l.b16 %v1958
    %v6122 = vunpack.c.l.b16 %v1959
    %v6123 = vunpack.c.l.b16 %v1960
    %v6124 = vunpack.c.l.b16 %v1961
    %v6125 = vunpack.c.l.b16 %v1962
    %v6126 = vunpack.c.l.b16 %v1963
    %v6127 = vunpack.c.l.b16 %v1964
    %v6128 = vunpack.c.l.b16 %v1965
    %v6129 = vunpack.c.l.b16 %v1966
    %v6130 = vunpack.c.l.b16 %v1967
    %v6131 = vunpack.c.l.b16 %v1968
    %v6132 = vunpack.c.l.b16 %v1969
    %v6133 = vunpack.c.l.b16 %v1970
    %v6134 = vunpack.c.l.b16 %v1971
    %v6135 = vunpack.c.l.b16 %v1972
    %v6136 = vunpack.c.l.b16 %v1973
    %v6137 = vunpack.c.l.b16 %v1974
    %v6138 = vunpack.c.l.b16 %v1975
    %v6139 = vunpack.c.l.b16 %v1976
    %v6140 = vunpack.c.l.b16 %v1977
    %v6141 = vunpack.c.l.b16 %v1978
    %v6142 = vunpack.c.l.b16 %v1979
    %v6143 = vunpack.c.l.b16 %v1980
    %v6144 = vunpack.c.l.b16 %v1981
    %v6145 = vunpack.c.l.b16 %v1982
    %v6146 = vunpack.c.l.b16 %v1983
    %v6147 = vunpack.c.l.b16 %v1984
    %v6148 = vunpack.c.l.b16 %v1985
    %v6149 = vunpack.c.l.b16 %v1986
    %v6150 = vunpack.c.l.b16 %v1987
    %v6151 = vunpack.c.l.b16 %v1988
    %v6152 = vunpack.c.l.b16 %v1989
    %v6153 = vunpack.c.l.b16 %v1990
    %v6154 = vunpack.c.l.b16 %v1991
    %v6155 = vunpack.c.l.b16 %v1992
    %v6156 = vunpack.c.l.b16 %v1993
    %v6157 = vunpack.c.l.b16 %v1994
    %v6158 = vunpack.c.l.b16 %v1995
    %v6159 = vunpack.c.l.b16 %v1996
    %v6160 = vunpack.c.l.b16 %v1997
    %v6161 = vunpack.c.l.b16 %v1998
    %v6162 = vunpack.c.l.b16 %v1999
    %v6163 = vunpack.c.l.b16 %v2000
    %v6164 = vunpack.c.l.b16 %v2001
    %v6165 = vunpack.c.l.b16 %v2002
    %v6166 = vunpack.c.l.b16 %v2003
    %v6167 = vpack.c.b16 %v4293, %v4292
    %v6168 = vpack.c.b16 %v4295, %v4294
    %v6169 = vpack.c.b16 %v4297, %v4296
    %v6170 = vpack.c.b16 %v4299, %v4298
    %v6171 = vpack.c.b16 %v4301, %v4300
    %v6172 = vpack.c.b16 %v4303, %v4302
    %v6173 = vpack.c.b16 %v4305, %v4304
    %v6174 = vpack.c.b16 %v4307, %v4306
    %v6175 = vpack.c.b16 %v4309, %v4308
    %v6176 = vpack.c.b16 %v4311, %v4310
    %v6177 = vpack.c.b16 %v4313, %v4312
    %v6178 = vpack.c.b16 %v4315, %v4314
    %v6179 = vpack.c.b16 %v4317, %v4316
    %v6180 = vpack.c.b16 %v4319, %v4318
    %v6181 = vpack.c.b16 %v4321, %v4320
    %v6182 = vpack.c.b16 %v4323, %v4322
    %v6183 = vpack.c.b16 %v4325, %v4324
    %v6184 = vpack.c.b16 %v4327, %v4326
    %v6185 = vpack.c.b16 %v4329, %v4328
    %v6186 = vpack.c.b16 %v4331, %v4330
    %v6187 = vpack.c.b16 %v4333, %v4332
    %v6188 = vpack.c.b16 %v4335, %v4334
    %v6189 = vpack.c.b16 %v4337, %v4336
    %v6190 = vpack.c.b16 %v4339, %v4338
    %v6191 = vpack.c.b16 %v4341, %v4340
    %v6192 = vpack.c.b16 %v4343, %v4342
    %v6193 = vpack.c.b16 %v4345, %v4344
    %v6194 = vpack.c.b16 %v4347, %v4346
    %v6195 = vpack.c.b16 %v4349, %v4348
    %v6196 = vpack.c.b16 %v4351, %v4350
    %v6197 = vpack.c.b16 %v4353, %v4352
    %v6198 = vpack.c.b16 %v4355, %v4354
    %v6199 = vpack.c.b16 %v4357, %v4356
    %v6200 = vpack.c.b16 %v4359, %v4358
    %v6201 = vpack.c.b16 %v4361, %v4360
    %v6202 = vpack.c.b16 %v4363, %v4362
    %v6203 = vpack.c.b16 %v4365, %v4364
    %v6204 = vpack.c.b16 %v4367, %v4366
    %v6205 = vpack.c.b16 %v4369, %v4368
    %v6206 = vpack.c.b16 %v4371, %v4370
    %v6207 = vpack.c.b16 %v4373, %v4372
    %v6208 = vpack.c.b16 %v4375, %v4374
    %v6209 = vpack.c.b16 %v4377, %v4376
    %v6210 = vpack.c.b16 %v4379, %v4378
    %v6211 = vpack.c.b16 %v4381, %v4380
    %v6212 = vpack.c.b16 %v4383, %v4382
    %v6213 = vpack.c.b16 %v4385, %v4384
    %v6214 = vpack.c.b16 %v4387, %v4386
    %v6215 = vpack.c.b16 %v4389, %v4388
    %v6216 = vpack.c.b16 %v4391, %v4390
    %v6217 = vpack.c.b16 %v4393, %v4392
    %v6218 = vpack.c.b16 %v4395, %v4394
    %v6219 = vpack.c.b16 %v4397, %v4396
    %v6220 = vpack.c.b16 %v4399, %v4398
    %v6221 = vpack.c.b16 %v4401, %v4400
    %v6222 = vpack.c.b16 %v4403, %v4402
    %v6223 = vpack.c.b16 %v4405, %v4404
    %v6224 = vpack.c.b16 %v4407, %v4406
    %v6225 = vpack.c.b16 %v4409, %v4408
    %v6226 = vpack.c.b16 %v4411, %v4410
    %v6227 = vpack.c.b16 %v4413, %v4412
    %v6228 = vpack.c.b16 %v4415, %v4414
    %v6229 = vpack.c.b16 %v4417, %v4416
    %v6230 = vpack.c.b16 %v4419, %v4418
    %v6231 = vpack.c.b16 %v4421, %v4420
    %v6232 = vpack.c.b16 %v4423, %v4422
    %v6233 = vpack.c.b16 %v4425, %v4424
    %v6234 = vpack.c.b16 %v4427, %v4426
    %v6235 = vpack.c.b16 %v4429, %v4428
    %v6236 = vpack.c.b16 %v4431, %v4430
    %v6237 = vpack.c.b16 %v4433, %v4432
    %v6238 = vpack.c.b16 %v4435, %v4434
    %v6239 = vpack.c.b16 %v4437, %v4436
    %v6240 = vpack.c.b16 %v4439, %v4438
    %v6241 = vpack.c.b16 %v4441, %v4440
    %v6242 = vpack.c.b16 %v4443, %v4442
    %v6243 = vpack.c.b16 %v4445, %v4444
    %v6244 = vpack.c.b16 %v4447, %v4446
    %v6245 = vpack.c.b16 %v4449, %v4448
    %v6246 = vpack.c.b16 %v4451, %v4450
    %v6247 = vpack.c.b16 %v4453, %v4452
    %v6248 = vpack.c.b16 %v4455, %v4454
    %v6249 = vpack.c.b16 %v4457, %v4456
    %v6250 = vpack.c.b16 %v4459, %v4458
    %v6251 = vpack.c.b16 %v4461, %v4460
    %v6252 = vpack.c.b16 %v4463, %v4462
    %v6253 = vpack.c.b16 %v4465, %v4464
    %v6254 = vpack.c.b16 %v4467, %v4466
    %v6255 = vpack.c.b16 %v4469, %v4468
    %v6256 = vpack.c.b16 %v4471, %v4470
    %v6257 = vpack.c.b16 %v4473, %v4472
    %v6258 = vpack.c.b16 %v4475, %v4474
    %v6259 = vpack.c.b16 %v4477, %v4476
    %v6260 = vpack.c.b16 %v4479, %v4478
    %v6261 = vpack.c.b16 %v4481, %v4480
    %v6262 = vpack.c.b16 %v4483, %v4482
    %v6263 = vpack.c.b16 %v4485, %v4484
    %v6264 = vpack.c.b16 %v4487, %v4486
    %v6265 = vpack.c.b16 %v4489, %v4488
    %v6266 = vpack.c.b16 %v4491, %v4490
    %v6267 = vpack.c.b16 %v4493, %v4492
    %v6268 = vpack.c.b16 %v4495, %v4494
    %v6269 = vpack.c.b16 %v4497, %v4496
    %v6270 = vpack.c.b16 %v4499, %v4498
    %v6271 = vpack.c.b16 %v4501, %v4500
    %v6272 = vpack.c.b16 %v4503, %v4502
    %v6273 = vpack.c.b16 %v4505, %v4504
    %v6274 = vpack.c.b16 %v4507, %v4506
    %v6275 = vpack.c.b16 %v4509, %v4508
    %v6276 = vpack.c.b16 %v4511, %v4510
    %v6277 = vpack.c.b16 %v4513, %v4512
    %v6278 = vpack.c.b16 %v4515, %v4514
    %v6279 = vpack.c.b16 %v4517, %v4516
    %v6280 = vpack.c.b16 %v4519, %v4518
    %v6281 = vpack.c.b16 %v4521, %v4520
    %v6282 = vpack.c.b16 %v4523, %v4522
    %v6283 = vpack.c.b16 %v4525, %v4524
    %v6284 = vpack.c.b16 %v4527, %v4526
    %v6285 = vpack.c.b16 %v4529, %v4528
    %v6286 = vpack.c.b16 %v4531, %v4530
    %v6287 = vpack.c.b16 %v4533, %v4532
    %v6288 = vpack.c.b16 %v4535, %v4534
    %v6289 = vpack.c.b16 %v4537, %v4536
    %v6290 = vpack.c.b16 %v4539, %v4538
    %v6291 = vpack.c.b16 %v4541, %v4540
    %v6292 = vpack.c.b16 %v4543, %v4542
    %v6293 = vpack.c.b16 %v4545, %v4544
    %v6294 = vpack.c.b16 %v4547, %v4546
    %v6295 = vpack.c.b16 %v4549, %v4548
    %v6296 = vpack.c.b16 %v4551, %v4550
    %v6297 = vpack.c.b16 %v4553, %v4552
    %v6298 = vpack.c.b16 %v4555, %v4554
    %v6299 = vpack.c.b16 %v4557, %v4556
    %v6300 = vpack.c.b16 %v4559, %v4558
    %v6301 = vpack.c.b16 %v4561, %v4560
    %v6302 = vpack.c.b16 %v4563, %v4562
    %v6303 = vpack.c.b16 %v4565, %v4564
    %v6304 = vpack.c.b16 %v4567, %v4566
    %v6305 = vpack.c.b16 %v4569, %v4568
    %v6306 = vpack.c.b16 %v4571, %v4570
    %v6307 = vpack.c.b16 %v4573, %v4572
    %v6308 = vpack.c.b16 %v4575, %v4574
    %v6309 = vpack.c.b16 %v4577, %v4576
    %v6310 = vpack.c.b16 %v4579, %v4578
    %v6311 = vpack.c.b16 %v4581, %v4580
    %v6312 = vpack.c.b16 %v4583, %v4582
    %v6313 = vpack.c.b16 %v4585, %v4584
    %v6314 = vpack.c.b16 %v4587, %v4586
    %v6315 = vpack.c.b16 %v4589, %v4588
    %v6316 = vpack.c.b16 %v4591, %v4590
    %v6317 = vpack.c.b16 %v4593, %v4592
    %v6318 = vpack.c.b16 %v4595, %v4594
    %v6319 = vpack.c.b16 %v4597, %v4596
    %v6320 = vpack.c.b16 %v4599, %v4598
    %v6321 = vpack.c.b16 %v4601, %v4600
    %v6322 = vpack.c.b16 %v4603, %v4602
    %v6323 = vpack.c.b16 %v4605, %v4604
    %v6324 = vpack.c.b16 %v4607, %v4606
    %v6325 = vpack.c.b16 %v4609, %v4608
    %v6326 = vpack.c.b16 %v4611, %v4610
    %v6327 = vpack.c.b16 %v4613, %v4612
    %v6328 = vpack.c.b16 %v4615, %v4614
    %v6329 = vpack.c.b16 %v4617, %v4616
    %v6330 = vpack.c.b16 %v4619, %v4618
    %v6331 = vpack.c.b16 %v4621, %v4620
    %v6332 = vpack.c.b16 %v4623, %v4622
    %v6333 = vpack.c.b16 %v4625, %v4624
    %v6334 = vpack.c.b16 %v4627, %v4626
    %v6335 = vpack.c.b16 %v4629, %v4628
    %v6336 = vpack.c.b16 %v4631, %v4630
    %v6337 = vpack.c.b16 %v4633, %v4632
    %v6338 = vpack.c.b16 %v4635, %v4634
    %v6339 = vpack.c.b16 %v4637, %v4636
    %v6340 = vpack.c.b16 %v4639, %v4638
    %v6341 = vpack.c.b16 %v4641, %v4640
    %v6342 = vpack.c.b16 %v4643, %v4642
    %v6343 = vpack.c.b16 %v4645, %v4644
    %v6344 = vpack.c.b16 %v4647, %v4646
    %v6345 = vpack.c.b16 %v4649, %v4648
    %v6346 = vpack.c.b16 %v4651, %v4650
    %v6347 = vpack.c.b16 %v4653, %v4652
    %v6348 = vpack.c.b16 %v4655, %v4654
    %v6349 = vpack.c.b16 %v4657, %v4656
    %v6350 = vpack.c.b16 %v4659, %v4658
    %v6351 = vpack.c.b16 %v4661, %v4660
    %v6352 = vpack.c.b16 %v4663, %v4662
    %v6353 = vpack.c.b16 %v4665, %v4664
    %v6354 = vpack.c.b16 %v4667, %v4666
    %v6355 = vpack.c.b16 %v4669, %v4668
    %v6356 = vpack.c.b16 %v4671, %v4670
    %v6357 = vpack.c.b16 %v4673, %v4672
    %v6358 = vpack.c.b16 %v4675, %v4674
    %v6359 = vpack.c.b16 %v4677, %v4676
    %v6360 = vpack.c.b16 %v4679, %v4678
    %v6361 = vpack.c.b16 %v4681, %v4680
    %v6362 = vpack.c.b16 %v4683, %v4682
    %v6363 = vpack.c.b16 %v4685, %v4684
    %v6364 = vpack.c.b16 %v4687, %v4686
    %v6365 = vpack.c.b16 %v4689, %v4688
    %v6366 = vpack.c.b16 %v4691, %v4690
    %v6367 = vpack.c.b16 %v4693, %v4692
    %v6368 = vpack.c.b16 %v4695, %v4694
    %v6369 = vpack.c.b16 %v4697, %v4696
    %v6370 = vpack.c.b16 %v4699, %v4698
    %v6371 = vpack.c.b16 %v4701, %v4700
    %v6372 = vpack.c.b16 %v4703, %v4702
    %v6373 = vpack.c.b16 %v4705, %v4704
    %v6374 = vpack.c.b16 %v4707, %v4706
    %v6375 = vpack.c.b16 %v4709, %v4708
    %v6376 = vpack.c.b16 %v4711, %v4710
    %v6377 = vpack.c.b16 %v4713, %v4712
    %v6378 = vpack.c.b16 %v4715, %v4714
    %v6379 = vpack.c.b16 %v4717, %v4716
    %v6380 = vpack.c.b16 %v4719, %v4718
    %v6381 = vpack.c.b16 %v4721, %v4720
    %v6382 = vpack.c.b16 %v4723, %v4722
    %v6383 = vpack.c.b16 %v4725, %v4724
    %v6384 = vpack.c.b16 %v4727, %v4726
    %v6385 = vpack.c.b16 %v4729, %v4728
    %v6386 = vpack.c.b16 %v4731, %v4730
    %v6387 = vpack.c.b16 %v4733, %v4732
    %v6388 = vpack.c.b16 %v4735, %v4734
    %v6389 = vpack.c.b16 %v4737, %v4736
    %v6390 = vpack.c.b16 %v4739, %v4738
    %v6391 = vpack.c.b16 %v4741, %v4740
    %v6392 = vpack.c.b16 %v4743, %v4742
    %v6393 = vpack.c.b16 %v4745, %v4744
    %v6394 = vpack.c.b16 %v4747, %v4746
    %v6395 = vpack.c.b16 %v4749, %v4748
    %v6396 = vpack.c.b16 %v4751, %v4750
    %v6397 = vpack.c.b16 %v4753, %v4752
    %v6398 = vpack.c.b16 %v4755, %v4754
    %v6399 = vpack.c.b16 %v4757, %v4756
    %v6400 = vpack.c.b16 %v4759, %v4758
    %v6401 = vpack.c.b16 %v4761, %v4760
    %v6402 = vpack.c.b16 %v4763, %v4762
    %v6403 = vpack.c.b16 %v4765, %v4764
    %v6404 = vpack.c.b16 %v4767, %v4766
    %v6405 = vpack.c.b16 %v4769, %v4768
    %v6406 = vpack.c.b16 %v4771, %v4770
    %v6407 = vpack.c.b16 %v4773, %v4772
    %v6408 = vpack.c.b16 %v4775, %v4774
    %v6409 = vpack.c.b16 %v4777, %v4776
    %v6410 = vpack.c.b16 %v4779, %v4778
    %v6411 = vpack.c.b16 %v4781, %v4780
    %v6412 = vpack.c.b16 %v4783, %v4782
    %v6413 = vpack.c.b16 %v4785, %v4784
    %v6414 = vpack.c.b16 %v4787, %v4786
    %v6415 = vpack.c.b16 %v4789, %v4788
    %v6416 = vpack.c.b16 %v4791, %v4790
    %v6417 = vpack.c.b16 %v4793, %v4792
    %v6418 = vpack.c.b16 %v4795, %v4794
    %v6419 = vpack.c.b16 %v4797, %v4796
    %v6420 = vpack.c.b16 %v4799, %v4798
    %v6421 = vpack.c.b16 %v4801, %v4800
    %v6422 = vpack.c.b16 %v4803, %v4802
    %v6423 = vpack.c.b16 %v4805, %v4804
    %v6424 = vpack.c.b16 %v4807, %v4806
    %v6425 = vpack.c.b16 %v4809, %v4808
    %v6426 = vpack.c.b16 %v4811, %v4810
    %v6427 = vpack.c.b16 %v4813, %v4812
    %v6428 = vpack.c.b16 %v4815, %v4814
    %v6429 = vpack.c.b16 %v4817, %v4816
    %v6430 = vpack.c.b16 %v4819, %v4818
    %v6431 = vpack.c.b16 %v4821, %v4820
    %v6432 = vpack.c.b16 %v4823, %v4822
    %v6433 = vpack.c.b16 %v4825, %v4824
    %v6434 = vpack.c.b16 %v4827, %v4826
    %v6435 = vpack.c.b16 %v4829, %v4828
    %v6436 = vpack.c.b16 %v4831, %v4830
    %v6437 = vpack.c.b16 %v4833, %v4832
    %v6438 = vpack.c.b16 %v4835, %v4834
    %v6439 = vpack.c.b16 %v4837, %v4836
    %v6440 = vpack.c.b16 %v4839, %v4838
    %v6441 = vpack.c.b16 %v4841, %v4840
    %v6442 = vpack.c.b16 %v4843, %v4842
    %v6443 = vpack.c.b16 %v4845, %v4844
    %v6444 = vpack.c.b16 %v4847, %v4846
    %v6445 = vpack.c.b16 %v4849, %v4848
    %v6446 = vpack.c.b16 %v4851, %v4850
    %v6447 = vpack.c.b16 %v4853, %v4852
    %v6448 = vpack.c.b16 %v4855, %v4854
    %v6449 = vpack.c.b16 %v4857, %v4856
    %v6450 = vpack.c.b16 %v4859, %v4858
    %v6451 = vpack.c.b16 %v4861, %v4860
    %v6452 = vpack.c.b16 %v4863, %v4862
    %v6453 = vpack.c.b16 %v4865, %v4864
    %v6454 = vpack.c.b16 %v4867, %v4866
    %v6455 = vpack.c.b16 %v4869, %v4868
    %v6456 = vpack.c.b16 %v4871, %v4870
    %v6457 = vpack.c.b16 %v4873, %v4872
    %v6458 = vpack.c.b16 %v4875, %v4874
    %v6459 = vpack.c.b16 %v4877, %v4876
    %v6460 = vpack.c.b16 %v4879, %v4878
    %v6461 = vpack.c.b16 %v4881, %v4880
    %v6462 = vpack.c.b16 %v4883, %v4882
    %v6463 = vpack.c.b16 %v4885, %v4884
    %v6464 = vpack.c.b16 %v4887, %v4886
    %v6465 = vpack.c.b16 %v4889, %v4888
    %v6466 = vpack.c.b16 %v4891, %v4890
    %v6467 = vpack.c.b16 %v4893, %v4892
    %v6468 = vpack.c.b16 %v4895, %v4894
    %v6469 = vpack.c.b16 %v4897, %v4896
    %v6470 = vpack.c.b16 %v4899, %v4898
    %v6471 = vpack.c.b16 %v4901, %v4900
    %v6472 = vpack.c.b16 %v4903, %v4902
    %v6473 = vpack.c.b16 %v4905, %v4904
    %v6474 = vpack.c.b16 %v4907, %v4906
    %v6475 = vpack.c.b16 %v4909, %v4908
    %v6476 = vpack.c.b16 %v4911, %v4910
    %v6477 = vpack.c.b16 %v4913, %v4912
    %v6478 = vpack.c.b16 %v4915, %v4914
    %v6479 = vpack.c.b16 %v4917, %v4916
    %v6480 = vpack.c.b16 %v4919, %v4918
    %v6481 = vpack.c.b16 %v4921, %v4920
    %v6482 = vpack.c.b16 %v4923, %v4922
    %v6483 = vpack.c.b16 %v4925, %v4924
    %v6484 = vpack.c.b16 %v4927, %v4926
    %v6485 = vpack.c.b16 %v4929, %v4928
    %v6486 = vpack.c.b16 %v4931, %v4930
    %v6487 = vpack.c.b16 %v4933, %v4932
    %v6488 = vpack.c.b16 %v4935, %v4934
    %v6489 = vpack.c.b16 %v4937, %v4936
    %v6490 = vpack.c.b16 %v4939, %v4938
    %v6491 = vpack.c.b16 %v4941, %v4940
    %v6492 = vpack.c.b16 %v4943, %v4942
    %v6493 = vpack.c.b16 %v4945, %v4944
    %v6494 = vpack.c.b16 %v4947, %v4946
    %v6495 = vpack.c.b16 %v4949, %v4948
    %v6496 = vpack.c.b16 %v4951, %v4950
    %v6497 = vpack.c.b16 %v4953, %v4952
    %v6498 = vpack.c.b16 %v4955, %v4954
    %v6499 = vpack.c.b16 %v4957, %v4956
    %v6500 = vpack.c.b16 %v4959, %v4958
    %v6501 = vpack.c.b16 %v4961, %v4960
    %v6502 = vpack.c.b16 %v4963, %v4962
    %v6503 = vpack.c.b16 %v4965, %v4964
    %v6504 = vpack.c.b16 %v4967, %v4966
    %v6505 = vpack.c.b16 %v4969, %v4968
    %v6506 = vpack.c.b16 %v4971, %v4970
    %v6507 = vpack.c.b16 %v4973, %v4972
    %v6508 = vpack.c.b16 %v4975, %v4974
    %v6509 = vpack.c.b16 %v4977, %v4976
    %v6510 = vpack.c.b16 %v4979, %v4978
    %v6511 = vpack.c.b16 %v4981, %v4980
    %v6512 = vpack.c.b16 %v4983, %v4982
    %v6513 = vpack.c.b16 %v4985, %v4984
    %v6514 = vpack.c.b16 %v4987, %v4986
    %v6515 = vpack.c.b16 %v4989, %v4988
    %v6516 = vpack.c.b16 %v4991, %v4990
    %v6517 = vpack.c.b16 %v4993, %v4992
    %v6518 = vpack.c.b16 %v4995, %v4994
    %v6519 = vpack.c.b16 %v4997, %v4996
    %v6520 = vpack.c.b16 %v4999, %v4998
    %v6521 = vpack.c.b16 %v5001, %v5000
    %v6522 = vpack.c.b16 %v5003, %v5002
    %v6523 = vpack.c.b16 %v5005, %v5004
    %v6524 = vpack.c.b16 %v5007, %v5006
    %v6525 = vpack.c.b16 %v5009, %v5008
    %v6526 = vpack.c.b16 %v5011, %v5010
    %v6527 = vpack.c.b16 %v5013, %v5012
    %v6528 = vpack.c.b16 %v5015, %v5014
    %v6529 = vpack.c.b16 %v5017, %v5016
    %v6530 = vpack.c.b16 %v5019, %v5018
    %v6531 = vpack.c.b16 %v5021, %v5020
    %v6532 = vpack.c.b16 %v5023, %v5022
    %v6533 = vpack.c.b16 %v5025, %v5024
    %v6534 = vpack.c.b16 %v5027, %v5026
    %v6535 = vpack.c.b16 %v5029, %v5028
    %v6536 = vpack.c.b16 %v5031, %v5030
    %v6537 = vpack.c.b16 %v5033, %v5032
    %v6538 = vpack.c.b16 %v5035, %v5034
    %v6539 = vpack.c.b16 %v5037, %v5036
    %v6540 = vpack.c.b16 %v5039, %v5038
    %v6541 = vpack.c.b16 %v5041, %v5040
    %v6542 = vpack.c.b16 %v5043, %v5042
    %v6543 = vpack.c.b16 %v5045, %v5044
    %v6544 = vpack.c.b16 %v5047, %v5046
    %v6545 = vpack.c.b16 %v5049, %v5048
    %v6546 = vpack.c.b16 %v5051, %v5050
    %v6547 = vpack.c.b16 %v5053, %v5052
    %v6548 = vpack.c.b16 %v5055, %v5054
    %v6549 = vpack.c.b16 %v5057, %v5056
    %v6550 = vpack.c.b16 %v5059, %v5058
    %v6551 = vpack.c.b16 %v5061, %v5060
    %v6552 = vpack.c.b16 %v5063, %v5062
    %v6553 = vpack.c.b16 %v5065, %v5064
    %v6554 = vpack.c.b16 %v5067, %v5066
    %v6555 = vpack.c.b16 %v5069, %v5068
    %v6556 = vpack.c.b16 %v5071, %v5070
    %v6557 = vpack.c.b16 %v5073, %v5072
    %v6558 = vpack.c.b16 %v5075, %v5074
    %v6559 = vpack.c.b16 %v5077, %v5076
    %v6560 = vpack.c.b16 %v5079, %v5078
    %v6561 = vpack.c.b16 %v5081, %v5080
    %v6562 = vpack.c.b16 %v5083, %v5082
    %v6563 = vpack.c.b16 %v5085, %v5084
    %v6564 = vpack.c.b16 %v5087, %v5086
    %v6565 = vpack.c.b16 %v5089, %v5088
    %v6566 = vpack.c.b16 %v5091, %v5090
    %v6567 = vpack.c.b16 %v5093, %v5092
    %v6568 = vpack.c.b16 %v5095, %v5094
    %v6569 = vpack.c.b16 %v5097, %v5096
    %v6570 = vpack.c.b16 %v5099, %v5098
    %v6571 = vpack.c.b16 %v5101, %v5100
    %v6572 = vpack.c.b16 %v5103, %v5102
    %v6573 = vpack.c.b16 %v5105, %v5104
    %v6574 = vpack.c.b16 %v5107, %v5106
    %v6575 = vpack.c.b16 %v5109, %v5108
    %v6576 = vpack.c.b16 %v5111, %v5110
    %v6577 = vpack.c.b16 %v5113, %v5112
    %v6578 = vpack.c.b16 %v5115, %v5114
    %v6579 = vpack.c.b16 %v5117, %v5116
    %v6580 = vpack.c.b16 %v5119, %v5118
    %v6581 = vpack.c.b16 %v5121, %v5120
    %v6582 = vpack.c.b16 %v5123, %v5122
    %v6583 = vpack.c.b16 %v5125, %v5124
    %v6584 = vpack.c.b16 %v5127, %v5126
    %v6585 = vpack.c.b16 %v5129, %v5128
    %v6586 = vpack.c.b16 %v5131, %v5130
    %v6587 = vpack.c.b16 %v5133, %v5132
    %v6588 = vpack.c.b16 %v5135, %v5134
    %v6589 = vpack.c.b16 %v5137, %v5136
    %v6590 = vpack.c.b16 %v5139, %v5138
    %v6591 = vpack.c.b16 %v5141, %v5140
    %v6592 = vpack.c.b16 %v5143, %v5142
    %v6593 = vpack.c.b16 %v5145, %v5144
    %v6594 = vpack.c.b16 %v5147, %v5146
    %v6595 = vpack.c.b16 %v5149, %v5148
    %v6596 = vpack.c.b16 %v5151, %v5150
    %v6597 = vpack.c.b16 %v5153, %v5152
    %v6598 = vpack.c.b16 %v5155, %v5154
    %v6599 = vpack.c.b16 %v5157, %v5156
    %v6600 = vpack.c.b16 %v5159, %v5158
    %v6601 = vpack.c.b16 %v5161, %v5160
    %v6602 = vpack.c.b16 %v5163, %v5162
    %v6603 = vpack.c.b16 %v5165, %v5164
    %v6604 = vpack.c.b16 %v5167, %v5166
    %v6605 = vpack.c.b16 %v5169, %v5168
    %v6606 = vpack.c.b16 %v5171, %v5170
    %v6607 = vpack.c.b16 %v5173, %v5172
    %v6608 = vpack.c.b16 %v5175, %v5174
    %v6609 = vpack.c.b16 %v5177, %v5176
    %v6610 = vpack.c.b16 %v5179, %v5178
    %v6611 = vpack.c.b16 %v5181, %v5180
    %v6612 = vpack.c.b16 %v5183, %v5182
    %v6613 = vpack.c.b16 %v5185, %v5184
    %v6614 = vpack.c.b16 %v5187, %v5186
    %v6615 = vpack.c.b16 %v5189, %v5188
    %v6616 = vpack.c.b16 %v5191, %v5190
    %v6617 = vpack.c.b16 %v5193, %v5192
    %v6618 = vpack.c.b16 %v5195, %v5194
    %v6619 = vpack.c.b16 %v5197, %v5196
    %v6620 = vpack.c.b16 %v5199, %v5198
    %v6621 = vpack.c.b16 %v5201, %v5200
    %v6622 = vpack.c.b16 %v5203, %v5202
    %v6623 = vpack.c.b16 %v5205, %v5204
    %v6624 = vpack.c.b16 %v5207, %v5206
    %v6625 = vpack.c.b16 %v5209, %v5208
    %v6626 = vpack.c.b16 %v5211, %v5210
    %v6627 = vpack.c.b16 %v5213, %v5212
    %v6628 = vpack.c.b16 %v5215, %v5214
    %v6629 = vpack.c.b16 %v5217, %v5216
    %v6630 = vpack.c.b16 %v5219, %v5218
    %v6631 = vpack.c.b16 %v5221, %v5220
    %v6632 = vpack.c.b16 %v5223, %v5222
    %v6633 = vpack.c.b16 %v5225, %v5224
    %v6634 = vpack.c.b16 %v5227, %v5226
    %v6635 = vpack.c.b16 %v5229, %v5228
    %v6636 = vpack.c.b16 %v5231, %v5230
    %v6637 = vpack.c.b16 %v5233, %v5232
    %v6638 = vpack.c.b16 %v5235, %v5234
    %v6639 = vpack.c.b16 %v5237, %v5236
    %v6640 = vpack.c.b16 %v5239, %v5238
    %v6641 = vpack.c.b16 %v5241, %v5240
    %v6642 = vpack.c.b16 %v5243, %v5242
    %v6643 = vpack.c.b16 %v5245, %v5244
    %v6644 = vpack.c.b16 %v5247, %v5246
    %v6645 = vpack.c.b16 %v5249, %v5248
    %v6646 = vpack.c.b16 %v5251, %v5250
    %v6647 = vpack.c.b16 %v5253, %v5252
    %v6648 = vpack.c.b16 %v5255, %v5254
    %v6649 = vpack.c.b16 %v5257, %v5256
    %v6650 = vpack.c.b16 %v5259, %v5258
    %v6651 = vpack.c.b16 %v5261, %v5260
    %v6652 = vpack.c.b16 %v5263, %v5262
    %v6653 = vpack.c.b16 %v5265, %v5264
    %v6654 = vpack.c.b16 %v5267, %v5266
    %v6655 = vpack.c.b16 %v5269, %v5268
    %v6656 = vpack.c.b16 %v5271, %v5270
    %v6657 = vpack.c.b16 %v5273, %v5272
    %v6658 = vpack.c.b16 %v5275, %v5274
    %v6659 = vpack.c.b16 %v5277, %v5276
    %v6660 = vpack.c.b16 %v5279, %v5278
    %v6661 = vpack.c.b16 %v5281, %v5280
    %v6662 = vpack.c.b16 %v5283, %v5282
    %v6663 = vpack.c.b16 %v5285, %v5284
    %v6664 = vpack.c.b16 %v5287, %v5286
    %v6665 = vpack.c.b16 %v5289, %v5288
    %v6666 = vpack.c.b16 %v5291, %v5290
    %v6667 = vpack.c.b16 %v5293, %v5292
    %v6668 = vpack.c.b16 %v5295, %v5294
    %v6669 = vpack.c.b16 %v5297, %v5296
    %v6670 = vpack.c.b16 %v5299, %v5298
    %v6671 = vpack.c.b16 %v5301, %v5300
    %v6672 = vpack.c.b16 %v5303, %v5302
    %v6673 = vpack.c.b16 %v5305, %v5304
    %v6674 = vpack.c.b16 %v5307, %v5306
    %v6675 = vpack.c.b16 %v5309, %v5308
    %v6676 = vpack.c.b16 %v5311, %v5310
    %v6677 = vpack.c.b16 %v5313, %v5312
    %v6678 = vpack.c.b16 %v5315, %v5314
    %v6679 = vpack.c.b16 %v5317, %v5316
    %v6680 = vpack.c.b16 %v5319, %v5318
    %v6681 = vpack.c.b16 %v5321, %v5320
    %v6682 = vpack.c.b16 %v5323, %v5322
    %v6683 = vpack.c.b16 %v5325, %v5324
    %v6684 = vpack.c.b16 %v5327, %v5326
    %v6685 = vpack.c.b16 %v5329, %v5328
    %v6686 = vpack.c.b16 %v5331, %v5330
    %v6687 = vpack.c.b16 %v5333, %v5332
    %v6688 = vpack.c.b16 %v5335, %v5334
    %v6689 = vpack.c.b16 %v5337, %v5336
    %v6690 = vpack.c.b16 %v5339, %v5338
    %v6691 = vpack.c.b16 %v5341, %v5340
    %v6692 = vpack.c.b16 %v5343, %v5342
    %v6693 = vpack.c.b16 %v5345, %v5344
    %v6694 = vpack.c.b16 %v5347, %v5346
    %v6695 = vpack.c.b16 %v5349, %v5348
    %v6696 = vpack.c.b16 %v5351, %v5350
    %v6697 = vpack.c.b16 %v5353, %v5352
    %v6698 = vpack.c.b16 %v5355, %v5354
    %v6699 = vpack.c.b16 %v5357, %v5356
    %v6700 = vpack.c.b16 %v5359, %v5358
    %v6701 = vpack.c.b16 %v5361, %v5360
    %v6702 = vpack.c.b16 %v5363, %v5362
    %v6703 = vpack.c.b16 %v5365, %v5364
    %v6704 = vpack.c.b16 %v5367, %v5366
    %v6705 = vpack.c.b16 %v5369, %v5368
    %v6706 = vpack.c.b16 %v5371, %v5370
    %v6707 = vpack.c.b16 %v5373, %v5372
    %v6708 = vpack.c.b16 %v5375, %v5374
    %v6709 = vpack.c.b16 %v5377, %v5376
    %v6710 = vpack.c.b16 %v5379, %v5378
    %v6711 = vpack.c.b16 %v5381, %v5380
    %v6712 = vpack.c.b16 %v5383, %v5382
    %v6713 = vpack.c.b16 %v5385, %v5384
    %v6714 = vpack.c.b16 %v5387, %v5386
    %v6715 = vpack.c.b16 %v5389, %v5388
    %v6716 = vpack.c.b16 %v5391, %v5390
    %v6717 = vpack.c.b16 %v5393, %v5392
    %v6718 = vpack.c.b16 %v5395, %v5394
    %v6719 = vpack.c.b16 %v5397, %v5396
    %v6720 = vpack.c.b16 %v5399, %v5398
    %v6721 = vpack.c.b16 %v5401, %v5400
    %v6722 = vpack.c.b16 %v5403, %v5402
    %v6723 = vpack.c.b16 %v5405, %v5404
    %v6724 = vpack.c.b16 %v5407, %v5406
    %v6725 = vpack.c.b16 %v5409, %v5408
    %v6726 = vpack.c.b16 %v5411, %v5410
    %v6727 = vpack.c.b16 %v5413, %v5412
    %v6728 = vpack.c.b16 %v5415, %v5414
    %v6729 = vpack.c.b16 %v5417, %v5416
    %v6730 = vpack.c.b16 %v5419, %v5418
    %v6731 = vpack.c.b16 %v5421, %v5420
    %v6732 = vpack.c.b16 %v5423, %v5422
    %v6733 = vpack.c.b16 %v5425, %v5424
    %v6734 = vpack.c.b16 %v5427, %v5426
    %v6735 = vpack.c.b16 %v5429, %v5428
    %v6736 = vpack.c.b16 %v5431, %v5430
    %v6737 = vpack.c.b16 %v5433, %v5432
    %v6738 = vpack.c.b16 %v5435, %v5434
    %v6739 = vpack.c.b16 %v5437, %v5436
    %v6740 = vpack.c.b16 %v5439, %v5438
    %v6741 = vpack.c.b16 %v5441, %v5440
    %v6742 = vpack.c.b16 %v5443, %v5442
    %v6743 = vpack.c.b16 %v5445, %v5444
    %v6744 = vpack.c.b16 %v5447, %v5446
    %v6745 = vpack.c.b16 %v5449, %v5448
    %v6746 = vpack.c.b16 %v5451, %v5450
    %v6747 = vpack.c.b16 %v5453, %v5452
    %v6748 = vpack.c.b16 %v5455, %v5454
    %v6749 = vpack.c.b16 %v5457, %v5456
    %v6750 = vpack.c.b16 %v5459, %v5458
    %v6751 = vpack.c.b16 %v5461, %v5460
    %v6752 = vpack.c.b16 %v5463, %v5462
    %v6753 = vpack.c.b16 %v5465, %v5464
    %v6754 = vpack.c.b16 %v5467, %v5466
    %v6755 = vpack.c.b16 %v5469, %v5468
    %v6756 = vpack.c.b16 %v5471, %v5470
    %v6757 = vpack.c.b16 %v5473, %v5472
    %v6758 = vpack.c.b16 %v5475, %v5474
    %v6759 = vpack.c.b16 %v5477, %v5476
    %v6760 = vpack.c.b16 %v5479, %v5478
    %v6761 = vpack.c.b16 %v5481, %v5480
    %v6762 = vpack.c.b16 %v5483, %v5482
    %v6763 = vpack.c.b16 %v5485, %v5484
    %v6764 = vpack.c.b16 %v5487, %v5486
    %v6765 = vpack.c.b16 %v5489, %v5488
    %v6766 = vpack.c.b16 %v5491, %v5490
    %v6767 = vpack.c.b16 %v5493, %v5492
    %v6768 = vpack.c.b16 %v5495, %v5494
    %v6769 = vpack.c.b16 %v5497, %v5496
    %v6770 = vpack.c.b16 %v5499, %v5498
    %v6771 = vpack.c.b16 %v5501, %v5500
    %v6772 = vpack.c.b16 %v5503, %v5502
    %v6773 = vpack.c.b16 %v5505, %v5504
    %v6774 = vpack.c.b16 %v5507, %v5506
    %v6775 = vpack.c.b16 %v5509, %v5508
    %v6776 = vpack.c.b16 %v5511, %v5510
    %v6777 = vpack.c.b16 %v5513, %v5512
    %v6778 = vpack.c.b16 %v5515, %v5514
    %v6779 = vpack.c.b16 %v5517, %v5516
    %v6780 = vpack.c.b16 %v5519, %v5518
    %v6781 = vpack.c.b16 %v5521, %v5520
    %v6782 = vpack.c.b16 %v5523, %v5522
    %v6783 = vpack.c.b16 %v5525, %v5524
    %v6784 = vpack.c.b16 %v5527, %v5526
    %v6785 = vpack.c.b16 %v5529, %v5528
    %v6786 = vpack.c.b16 %v5531, %v5530
    %v6787 = vpack.c.b16 %v5533, %v5532
    %v6788 = vpack.c.b16 %v5535, %v5534
    %v6789 = vpack.c.b16 %v5537, %v5536
    %v6790 = vpack.c.b16 %v5539, %v5538
    %v6791 = vpack.c.b16 %v5541, %v5540
    %v6792 = vpack.c.b16 %v5543, %v5542
    %v6793 = vpack.c.b16 %v5545, %v5544
    %v6794 = vpack.c.b16 %v5547, %v5546
    %v6795 = vpack.c.b16 %v5549, %v5548
    %v6796 = vpack.c.b16 %v5551, %v5550
    %v6797 = vpack.c.b16 %v5553, %v5552
    %v6798 = vpack.c.b16 %v5555, %v5554
    %v6799 = vpack.c.b16 %v5557, %v5556
    %v6800 = vpack.c.b16 %v5559, %v5558
    %v6801 = vpack.c.b16 %v5561, %v5560
    %v6802 = vpack.c.b16 %v5563, %v5562
    %v6803 = vpack.c.b16 %v5565, %v5564
    %v6804 = vpack.c.b16 %v5567, %v5566
    %v6805 = vpack.c.b16 %v5569, %v5568
    %v6806 = vpack.c.b16 %v5571, %v5570
    %v6807 = vpack.c.b16 %v5573, %v5572
    %v6808 = vpack.c.b16 %v5575, %v5574
    %v6809 = vpack.c.b16 %v5577, %v5576
    %v6810 = vpack.c.b16 %v5579, %v5578
    %v6811 = vpack.c.b16 %v5581, %v5580
    %v6812 = vpack.c.b16 %v5583, %v5582
    %v6813 = vpack.c.b16 %v5585, %v5584
    %v6814 = vpack.c.b16 %v5587, %v5586
    %v6815 = vpack.c.b16 %v5589, %v5588
    %v6816 = vpack.c.b16 %v5591, %v5590
    %v6817 = vpack.c.b16 %v5593, %v5592
    %v6818 = vpack.c.b16 %v5595, %v5594
    %v6819 = vpack.c.b16 %v5597, %v5596
    %v6820 = vpack.c.b16 %v5599, %v5598
    %v6821 = vpack.c.b16 %v5601, %v5600
    %v6822 = vpack.c.b16 %v5603, %v5602
    %v6823 = vpack.c.b16 %v5605, %v5604
    %v6824 = vpack.c.b16 %v5607, %v5606
    %v6825 = vpack.c.b16 %v5609, %v5608
    %v6826 = vpack.c.b16 %v5611, %v5610
    %v6827 = vpack.c.b16 %v5613, %v5612
    %v6828 = vpack.c.b16 %v5615, %v5614
    %v6829 = vpack.c.b16 %v5617, %v5616
    %v6830 = vpack.c.b16 %v5619, %v5618
    %v6831 = vpack.c.b16 %v5621, %v5620
    %v6832 = vpack.c.b16 %v5623, %v5622
    %v6833 = vpack.c.b16 %v5625, %v5624
    %v6834 = vpack.c.b16 %v5627, %v5626
    %v6835 = vpack.c.b16 %v5629, %v5628
    %v6836 = vpack.c.b16 %v5631, %v5630
    %v6837 = vpack.c.b16 %v5633, %v5632
    %v6838 = vpack.c.b16 %v5635, %v5634
    %v6839 = vpack.c.b16 %v5637, %v5636
    %v6840 = vpack.c.b16 %v5639, %v5638
    %v6841 = vpack.c.b16 %v5641, %v5640
    %v6842 = vpack.c.b16 %v5643, %v5642
    %v6843 = vpack.c.b16 %v5645, %v5644
    %v6844 = vpack.c.b16 %v5647, %v5646
    %v6845 = vpack.c.b16 %v5649, %v5648
    %v6846 = vpack.c.b16 %v5651, %v5650
    %v6847 = vpack.c.b16 %v5653, %v5652
    %v6848 = vpack.c.b16 %v5655, %v5654
    %v6849 = vpack.c.b16 %v5657, %v5656
    %v6850 = vpack.c.b16 %v5659, %v5658
    %v6851 = vpack.c.b16 %v5661, %v5660
    %v6852 = vpack.c.b16 %v5663, %v5662
    %v6853 = vpack.c.b16 %v5665, %v5664
    %v6854 = vpack.c.b16 %v5667, %v5666
    %v6855 = vpack.c.b16 %v5669, %v5668
    %v6856 = vpack.c.b16 %v5671, %v5670
    %v6857 = vpack.c.b16 %v5673, %v5672
    %v6858 = vpack.c.b16 %v5675, %v5674
    %v6859 = vpack.c.b16 %v5677, %v5676
    %v6860 = vpack.c.b16 %v5679, %v5678
    %v6861 = vpack.c.b16 %v5681, %v5680
    %v6862 = vpack.c.b16 %v5683, %v5682
    %v6863 = vpack.c.b16 %v5685, %v5684
    %v6864 = vpack.c.b16 %v5687, %v5686
    %v6865 = vpack.c.b16 %v5689, %v5688
    %v6866 = vpack.c.b16 %v5691, %v5690
    %v6867 = vpack.c.b16 %v5693, %v5692
    %v6868 = vpack.c.b16 %v5695, %v5694
    %v6869 = vpack.c.b16 %v5697, %v5696
    %v6870 = vpack.c.b16 %v5699, %v5698
    %v6871 = vpack.c.b16 %v5701, %v5700
    %v6872 = vpack.c.b16 %v5703, %v5702
    %v6873 = vpack.c.b16 %v5705, %v5704
    %v6874 = vpack.c.b16 %v5707, %v5706
    %v6875 = vpack.c.b16 %v5709, %v5708
    %v6876 = vpack.c.b16 %v5711, %v5710
    %v6877 = vpack.c.b16 %v5713, %v5712
    %v6878 = vpack.c.b16 %v5715, %v5714
    %v6879 = vpack.c.b16 %v5717, %v5716
    %v6880 = vpack.c.b16 %v5719, %v5718
    %v6881 = vpack.c.b16 %v5721, %v5720
    %v6882 = vpack.c.b16 %v5723, %v5722
    %v6883 = vpack.c.b16 %v5725, %v5724
    %v6884 = vpack.c.b16 %v5727, %v5726
    %v6885 = vpack.c.b16 %v5729, %v5728
    %v6886 = vpack.c.b16 %v5731, %v5730
    %v6887 = vpack.c.b16 %v5733, %v5732
    %v6888 = vpack.c.b16 %v5735, %v5734
    %v6889 = vpack.c.b16 %v5737, %v5736
    %v6890 = vpack.c.b16 %v5739, %v5738
    %v6891 = vpack.c.b16 %v5741, %v5740
    %v6892 = vpack.c.b16 %v5743, %v5742
    %v6893 = vpack.c.b16 %v5745, %v5744
    %v6894 = vpack.c.b16 %v5747, %v5746
    %v6895 = vpack.c.b16 %v5749, %v5748
    %v6896 = vpack.c.b16 %v5751, %v5750
    %v6897 = vpack.c.b16 %v5753, %v5752
    %v6898 = vpack.c.b16 %v5755, %v5754
    %v6899 = vpack.c.b16 %v5757, %v5756
    %v6900 = vpack.c.b16 %v5759, %v5758
    %v6901 = vpack.c.b16 %v5761, %v5760
    %v6902 = vpack.c.b16 %v5763, %v5762
    %v6903 = vpack.c.b16 %v5765, %v5764
    %v6904 = vpack.c.b16 %v5767, %v5766
    %v6905 = vpack.c.b16 %v5769, %v5768
    %v6906 = vpack.c.b16 %v5771, %v5770
    %v6907 = vpack.c.b16 %v5773, %v5772
    %v6908 = vpack.c.b16 %v5775, %v5774
    %v6909 = vpack.c.b16 %v5777, %v5776
    %v6910 = vpack.c.b16 %v5779, %v5778
    %v6911 = vpack.c.b16 %v5781, %v5780
    %v6912 = vpack.c.b16 %v5783, %v5782
    %v6913 = vpack.c.b16 %v5785, %v5784
    %v6914 = vpack.c.b16 %v5787, %v5786
    %v6915 = vpack.c.b16 %v5789, %v5788
    %v6916 = vpack.c.b16 %v5791, %v5790
    %v6917 = vpack.c.b16 %v5793, %v5792
    %v6918 = vpack.c.b16 %v5795, %v5794
    %v6919 = vpack.c.b16 %v5797, %v5796
    %v6920 = vpack.c.b16 %v5799, %v5798
    %v6921 = vpack.c.b16 %v5801, %v5800
    %v6922 = vpack.c.b16 %v5803, %v5802
    %v6923 = vpack.c.b16 %v5805, %v5804
    %v6924 = vpack.c.b16 %v5807, %v5806
    %v6925 = vpack.c.b16 %v5809, %v5808
    %v6926 = vpack.c.b16 %v5811, %v5810
    %v6927 = vpack.c.b16 %v5813, %v5812
    %v6928 = vpack.c.b16 %v5815, %v5814
    %v6929 = vpack.c.b16 %v5817, %v5816
    %v6930 = vpack.c.b16 %v5819, %v5818
    %v6931 = vpack.c.b16 %v5821, %v5820
    %v6932 = vpack.c.b16 %v5823, %v5822
    %v6933 = vpack.c.b16 %v5825, %v5824
    %v6934 = vpack.c.b16 %v5827, %v5826
    %v6935 = vpack.c.b16 %v5829, %v5828
    %v6936 = vpack.c.b16 %v5831, %v5830
    %v6937 = vpack.c.b16 %v5833, %v5832
    %v6938 = vpack.c.b16 %v5835, %v5834
    %v6939 = vpack.c.b16 %v5837, %v5836
    %v6940 = vpack.c.b16 %v5839, %v5838
    %v6941 = vpack.c.b16 %v5841, %v5840
    %v6942 = vpack.c.b16 %v5843, %v5842
    %v6943 = vpack.c.b16 %v5845, %v5844
    %v6944 = vpack.c.b16 %v5847, %v5846
    %v6945 = vpack.c.b16 %v5849, %v5848
    %v6946 = vpack.c.b16 %v5851, %v5850
    %v6947 = vpack.c.b16 %v5853, %v5852
    %v6948 = vpack.c.b16 %v5855, %v5854
    %v6949 = vpack.c.b16 %v5857, %v5856
    %v6950 = vpack.c.b16 %v5859, %v5858
    %v6951 = vpack.c.b16 %v5861, %v5860
    %v6952 = vpack.c.b16 %v5863, %v5862
    %v6953 = vpack.c.b16 %v5865, %v5864
    %v6954 = vpack.c.b16 %v5867, %v5866
    %v6955 = vpack.c.b16 %v5869, %v5868
    %v6956 = vpack.c.b16 %v5871, %v5870
    %v6957 = vpack.c.b16 %v5873, %v5872
    %v6958 = vpack.c.b16 %v5875, %v5874
    %v6959 = vpack.c.b16 %v5877, %v5876
    %v6960 = vpack.c.b16 %v5879, %v5878
    %v6961 = vpack.c.b16 %v5881, %v5880
    %v6962 = vpack.c.b16 %v5883, %v5882
    %v6963 = vpack.c.b16 %v5885, %v5884
    %v6964 = vpack.c.b16 %v5887, %v5886
    %v6965 = vpack.c.b16 %v5889, %v5888
    %v6966 = vpack.c.b16 %v5891, %v5890
    %v6967 = vpack.c.b16 %v5893, %v5892
    %v6968 = vpack.c.b16 %v5895, %v5894
    %v6969 = vpack.c.b16 %v5897, %v5896
    %v6970 = vpack.c.b16 %v5899, %v5898
    %v6971 = vpack.c.b16 %v5901, %v5900
    %v6972 = vpack.c.b16 %v5903, %v5902
    %v6973 = vpack.c.b16 %v5905, %v5904
    %v6974 = vpack.c.b16 %v5907, %v5906
    %v6975 = vpack.c.b16 %v5909, %v5908
    %v6976 = vpack.c.b16 %v5911, %v5910
    %v6977 = vpack.c.b16 %v5913, %v5912
    %v6978 = vpack.c.b16 %v5915, %v5914
    %v6979 = vpack.c.b16 %v5917, %v5916
    %v6980 = vpack.c.b16 %v5919, %v5918
    %v6981 = vpack.c.b16 %v5921, %v5920
    %v6982 = vpack.c.b16 %v5923, %v5922
    %v6983 = vpack.c.b16 %v5925, %v5924
    %v6984 = vpack.c.b16 %v5927, %v5926
    %v6985 = vpack.c.b16 %v5929, %v5928
    %v6986 = vpack.c.b16 %v5931, %v5930
    %v6987 = vpack.c.b16 %v5933, %v5932
    %v6988 = vpack.c.b16 %v5935, %v5934
    %v6989 = vpack.c.b16 %v5937, %v5936
    %v6990 = vpack.c.b16 %v5939, %v5938
    %v6991 = vpack.c.b16 %v5941, %v5940
    %v6992 = vpack.c.b16 %v5943, %v5942
    %v6993 = vpack.c.b16 %v5945, %v5944
    %v6994 = vpack.c.b16 %v5947, %v5946
    %v6995 = vpack.c.b16 %v5949, %v5948
    %v6996 = vpack.c.b16 %v5951, %v5950
    %v6997 = vpack.c.b16 %v5953, %v5952
    %v6998 = vpack.c.b16 %v5955, %v5954
    %v6999 = vpack.c.b16 %v5957, %v5956
    %v7000 = vpack.c.b16 %v5959, %v5958
    %v7001 = vpack.c.b16 %v5961, %v5960
    %v7002 = vpack.c.b16 %v5963, %v5962
    %v7003 = vpack.c.b16 %v5965, %v5964
    %v7004 = vpack.c.b16 %v5967, %v5966
    %v7005 = vpack.c.b16 %v5969, %v5968
    %v7006 = vpack.c.b16 %v5971, %v5970
    %v7007 = vpack.c.b16 %v5973, %v5972
    %v7008 = vpack.c.b16 %v5975, %v5974
    %v7009 = vpack.c.b16 %v5977, %v5976
    %v7010 = vpack.c.b16 %v5979, %v5978
    %v7011 = vpack.c.b16 %v5981, %v5980
    %v7012 = vpack.c.b16 %v5983, %v5982
    %v7013 = vpack.c.b16 %v5985, %v5984
    %v7014 = vpack.c.b16 %v5987, %v5986
    %v7015 = vpack.c.b16 %v5989, %v5988
    %v7016 = vpack.c.b16 %v5991, %v5990
    %v7017 = vpack.c.b16 %v5993, %v5992
    %v7018 = vpack.c.b16 %v5995, %v5994
    %v7019 = vpack.c.b16 %v5997, %v5996
    %v7020 = vpack.c.b16 %v5999, %v5998
    %v7021 = vpack.c.b16 %v6001, %v6000
    %v7022 = vpack.c.b16 %v6003, %v6002
    %v7023 = vpack.c.b16 %v6005, %v6004
    %v7024 = vpack.c.b16 %v6007, %v6006
    %v7025 = vpack.c.b16 %v6009, %v6008
    %v7026 = vpack.c.b16 %v6011, %v6010
    %v7027 = vpack.c.b16 %v6013, %v6012
    %v7028 = vpack.c.b16 %v6015, %v6014
    %v7029 = vpack.c.b16 %v6017, %v6016
    %v7030 = vpack.c.b16 %v6019, %v6018
    %v7031 = vpack.c.b16 %v6021, %v6020
    %v7032 = vpack.c.b16 %v6023, %v6022
    %v7033 = vpack.c.b16 %v6025, %v6024
    %v7034 = vpack.c.b16 %v6027, %v6026
    %v7035 = vpack.c.b16 %v6029, %v6028
    %v7036 = vpack.c.b16 %v6031, %v6030
    %v7037 = vpack.c.b16 %v6033, %v6032
    %v7038 = vpack.c.b16 %v6035, %v6034
    %v7039 = vpack.c.b16 %v6037, %v6036
    %v7040 = vpack.c.b16 %v6039, %v6038
    %v7041 = vpack.c.b16 %v6041, %v6040
    %v7042 = vpack.c.b16 %v6043, %v6042
    %v7043 = vpack.c.b16 %v6045, %v6044
    %v7044 = vpack.c.b16 %v6047, %v6046
    %v7045 = vpack.c.b16 %v6049, %v6048
    %v7046 = vpack.c.b16 %v6051, %v6050
    %v7047 = vpack.c.b16 %v6053, %v6052
    %v7048 = vpack.c.b16 %v6055, %v6054
    %v7049 = vpack.c.b16 %v6057, %v6056
    %v7050 = vpack.c.b16 %v6059, %v6058
    %v7051 = vpack.c.b16 %v6061, %v6060
    %v7052 = vpack.c.b16 %v6063, %v6062
    %v7053 = vpack.c.b16 %v6065, %v6064
    %v7054 = vpack.c.b16 %v6067, %v6066
    %v7055 = vpack.c.b16 %v6069, %v6068
    %v7056 = vpack.c.b16 %v6071, %v6070
    %v7057 = vpack.c.b16 %v6073, %v6072
    %v7058 = vpack.c.b16 %v6075, %v6074
    %v7059 = vpack.c.b16 %v6077, %v6076
    %v7060 = vpack.c.b16 %v6079, %v6078
    %v7061 = vpack.c.b16 %v6081, %v6080
    %v7062 = vpack.c.b16 %v6083, %v6082
    %v7063 = vpack.c.b16 %v6085, %v6084
    %v7064 = vpack.c.b16 %v6087, %v6086
    %v7065 = vpack.c.b16 %v6089, %v6088
    %v7066 = vpack.c.b16 %v6091, %v6090
    %v7067 = vpack.c.b16 %v6093, %v6092
    %v7068 = vpack.c.b16 %v6095, %v6094
    %v7069 = vpack.c.b16 %v6097, %v6096
    %v7070 = vpack.c.b16 %v6099, %v6098
    %v7071 = vpack.c.b16 %v6101, %v6100
    %v7072 = vpack.c.b16 %v6103, %v6102
    %v7073 = vpack.c.b16 %v6105, %v6104
    %v7074 = vpack.c.b16 %v6107, %v6106
    %v7075 = vpack.c.b16 %v6109, %v6108
    %v7076 = vpack.c.b16 %v6111, %v6110
    %v7077 = vpack.c.b16 %v6113, %v6112
    %v7078 = vpack.c.b16 %v6115, %v6114
    %v7079 = vpack.c.b16 %v6117, %v6116
    %v7080 = vpack.c.b16 %v6119, %v6118
    %v7081 = vpack.c.b16 %v6121, %v6120
    %v7082 = vpack.c.b16 %v6123, %v6122
    %v7083 = vpack.c.b16 %v6125, %v6124
    %v7084 = vpack.c.b16 %v6127, %v6126
    %v7085 = vpack.c.b16 %v6129, %v6128
    %v7086 = vpack.c.b16 %v6131, %v6130
    %v7087 = vpack.c.b16 %v6133, %v6132
    %v7088 = vpack.c.b16 %v6135, %v6134
    %v7089 = vpack.c.b16 %v6137, %v6136
    %v7090 = vpack.c.b16 %v6139, %v6138
    %v7091 = vpack.c.b16 %v6141, %v6140
    %v7092 = vpack.c.b16 %v6143, %v6142
    %v7093 = vpack.c.b16 %v6145, %v6144
    %v7094 = vpack.c.b16 %v6147, %v6146
    %v7095 = vpack.c.b16 %v6149, %v6148
    %v7096 = vpack.c.b16 %v6151, %v6150
    %v7097 = vpack.c.b16 %v6153, %v6152
    %v7098 = vpack.c.b16 %v6155, %v6154
    %v7099 = vpack.c.b16 %v6157, %v6156
    %v7100 = vpack.c.b16 %v6159, %v6158
    %v7101 = vpack.c.b16 %v6161, %v6160
    %v7102 = vpack.c.b16 %v6163, %v6162
    %v7103 = vpack.c.b16 %v6165, %v6164
    %v7104 = vpack.c.b16 %v6166, %v6166
    %vm8042 = vcmask 195584
    %v8044 = vsel %vm8042, %v2299, 0
    %vm8046 = vcmask 1043456
    %v8048 = vsel %vm8046, %v7104, 0
    %8050 = vmatprep.subr.bf16.mxu0 0
    %8051 = vmatpush1.bf16.msra.mxu0 %v6174
    %8052 = vmatprep.subr.bf16.mxu0 0
    %8053 = vmatpush1.bf16.msra.mxu0 %v6173
    %8054 = vmatprep.subr.bf16.mxu0 0
    %8055 = vmatpush1.bf16.msra.mxu0 %v6172
    %8056 = vmatprep.subr.bf16.mxu0 0
    %8057 = vmatpush1.bf16.msra.mxu0 %v6171
    %8058 = vmatprep.subr.bf16.mxu0 0
    %8059 = vmatpush1.bf16.msra.mxu0 %v6170
    %8060 = vmatprep.subr.bf16.mxu0 0
    %8061 = vmatpush1.bf16.msra.mxu0 %v6169
    %8062 = vmatprep.subr.bf16.mxu0 0
    %8063 = vmatpush1.bf16.msra.mxu0 %v6168
    %8064 = vmatprep.subr.bf16.mxu0 0
    %8065 = vmatpush1.bf16.msra.mxu0 %v6167
    %8066 = vmatprep.subr.bf16.mxu0 0
    %8067 = vmatpush2.bf16.msra.mxu0 %v6182
    %8068 = vmatprep.subr.bf16.mxu0 0
    %8069 = vmatpush2.bf16.msra.mxu0 %v6181
    %8070 = vmatprep.subr.bf16.mxu0 0
    %8071 = vmatpush2.bf16.msra.mxu0 %v6180
    %8072 = vmatprep.subr.bf16.mxu0 0
    %8073 = vmatpush2.bf16.msra.mxu0 %v6179
    %8074 = vmatprep.subr.bf16.mxu0 0
    %8075 = vmatpush2.bf16.msra.mxu0 %v6178
    %8076 = vmatprep.subr.bf16.mxu0 0
    %8077 = vmatpush2.bf16.msra.mxu0 %v6177
    %8078 = vmatprep.subr.bf16.mxu0 0
    %8079 = vmatpush2.bf16.msra.mxu0 %v6176
    %8080 = vmatprep.subr.bf16.mxu0 0
    %8081 = vmatpush2.bf16.msra.mxu0 %v6175
    %8082 = vmatprep.mubr.bf16.mxu0 %v2183
    %8083 = vmatmul.mubr.bf16.gmra.mxu0 %v2182
    %v8084 = vpop.f32.mrf.mxu0
    %v8085 = vadd.f32 %v2004, %v8084
    %v8086 = vpop.f32.mrf.mxu0
    %v8087 = vpop.f32.mrf.mxu0
    %v8088 = vpop.f32.mrf.mxu0
    %8089 = vdwg.mxu0
    %8090 = vmatprep.subr.bf16.mxu0 0
    %8091 = vmatpush1.bf16.msra.mxu0 %v6190
    %8092 = vmatprep.subr.bf16.mxu0 0
    %8093 = vmatpush1.bf16.msra.mxu0 %v6189
    %8094 = vmatprep.subr.bf16.mxu0 0
    %8095 = vmatpush1.bf16.msra.mxu0 %v6188
    %8096 = vmatprep.subr.bf16.mxu0 0
    %8097 = vmatpush1.bf16.msra.mxu0 %v6187
    %8098 = vmatprep.subr.bf16.mxu0 0
    %8099 = vmatpush1.bf16.msra.mxu0 %v6186
    %8100 = vmatprep.subr.bf16.mxu0 0
    %8101 = vmatpush1.bf16.msra.mxu0 %v6185
    %8102 = vmatprep.subr.bf16.mxu0 0
    %8103 = vmatpush1.bf16.msra.mxu0 %v6184
    %8104 = vmatprep.subr.bf16.mxu0 0
    %8105 = vmatpush1.bf16.msra.mxu0 %v6183
    %8106 = vmatprep.subr.bf16.mxu0 0
    %8107 = vmatpush2.bf16.msra.mxu0 %v6198
    %8108 = vmatprep.subr.bf16.mxu0 0
    %8109 = vmatpush2.bf16.msra.mxu0 %v6197
    %8110 = vmatprep.subr.bf16.mxu0 0
    %8111 = vmatpush2.bf16.msra.mxu0 %v6196
    %8112 = vmatprep.subr.bf16.mxu0 0
    %8113 = vmatpush2.bf16.msra.mxu0 %v6195
    %8114 = vmatprep.subr.bf16.mxu0 0
    %8115 = vmatpush2.bf16.msra.mxu0 %v6194
    %8116 = vmatprep.subr.bf16.mxu0 0
    %8117 = vmatpush2.bf16.msra.mxu0 %v6193
    %8118 = vmatprep.subr.bf16.mxu0 0
    %8119 = vmatpush2.bf16.msra.mxu0 %v6192
    %8120 = vmatprep.subr.bf16.mxu0 0
    %8121 = vmatpush2.bf16.msra.mxu0 %v6191
    %8122 = vmatprep.mubr.bf16.mxu0 %v2185
    %8123 = vmatmul.mubr.bf16.gmra.mxu0 %v2184
    %v8124 = vpop.f32.mrf.mxu0
    %v8125 = vadd.f32 %v8085, %v8124
    %v8126 = vpop.f32.mrf.mxu0
    %v8127 = vpop.f32.mrf.mxu0
    %v8128 = vpop.f32.mrf.mxu0
    %8129 = vdwg.mxu0
    %8130 = vmatprep.subr.bf16.mxu0 0
    %8131 = vmatpush1.bf16.msra.mxu0 %v6206
    %8132 = vmatprep.subr.bf16.mxu0 0
    %8133 = vmatpush1.bf16.msra.mxu0 %v6205
    %8134 = vmatprep.subr.bf16.mxu0 0
    %8135 = vmatpush1.bf16.msra.mxu0 %v6204
    %8136 = vmatprep.subr.bf16.mxu0 0
    %8137 = vmatpush1.bf16.msra.mxu0 %v6203
    %8138 = vmatprep.subr.bf16.mxu0 0
    %8139 = vmatpush1.bf16.msra.mxu0 %v6202
    %8140 = vmatprep.subr.bf16.mxu0 0
    %8141 = vmatpush1.bf16.msra.mxu0 %v6201
    %8142 = vmatprep.subr.bf16.mxu0 0
    %8143 = vmatpush1.bf16.msra.mxu0 %v6200
    %8144 = vmatprep.subr.bf16.mxu0 0
    %8145 = vmatpush1.bf16.msra.mxu0 %v6199
    %8146 = vmatprep.subr.bf16.mxu0 0
    %8147 = vmatpush2.bf16.msra.mxu0 %v6214
    %8148 = vmatprep.subr.bf16.mxu0 0
    %8149 = vmatpush2.bf16.msra.mxu0 %v6213
    %8150 = vmatprep.subr.bf16.mxu0 0
    %8151 = vmatpush2.bf16.msra.mxu0 %v6212
    %8152 = vmatprep.subr.bf16.mxu0 0
    %8153 = vmatpush2.bf16.msra.mxu0 %v6211
    %8154 = vmatprep.subr.bf16.mxu0 0
    %8155 = vmatpush2.bf16.msra.mxu0 %v6210
    %8156 = vmatprep.subr.bf16.mxu0 0
    %8157 = vmatpush2.bf16.msra.mxu0 %v6209
    %8158 = vmatprep.subr.bf16.mxu0 0
    %8159 = vmatpush2.bf16.msra.mxu0 %v6208
    %8160 = vmatprep.subr.bf16.mxu0 0
    %8161 = vmatpush2.bf16.msra.mxu0 %v6207
    %8162 = vmatprep.mubr.bf16.mxu0 %v2187
    %8163 = vmatmul.mubr.bf16.gmra.mxu0 %v2186
    %v8164 = vpop.f32.mrf.mxu0
    %v8165 = vadd.f32 %v8125, %v8164
    %v8166 = vpop.f32.mrf.mxu0
    %v8167 = vpop.f32.mrf.mxu0
    %v8168 = vpop.f32.mrf.mxu0
    %8169 = vdwg.mxu0
    %8170 = vmatprep.subr.bf16.mxu0 0
    %8171 = vmatpush1.bf16.msra.mxu0 %v6222
    %8172 = vmatprep.subr.bf16.mxu0 0
    %8173 = vmatpush1.bf16.msra.mxu0 %v6221
    %8174 = vmatprep.subr.bf16.mxu0 0
    %8175 = vmatpush1.bf16.msra.mxu0 %v6220
    %8176 = vmatprep.subr.bf16.mxu0 0
    %8177 = vmatpush1.bf16.msra.mxu0 %v6219
    %8178 = vmatprep.subr.bf16.mxu0 0
    %8179 = vmatpush1.bf16.msra.mxu0 %v6218
    %8180 = vmatprep.subr.bf16.mxu0 0
    %8181 = vmatpush1.bf16.msra.mxu0 %v6217
    %8182 = vmatprep.subr.bf16.mxu0 0
    %8183 = vmatpush1.bf16.msra.mxu0 %v6216
    %8184 = vmatprep.subr.bf16.mxu0 0
    %8185 = vmatpush1.bf16.msra.mxu0 %v6215
    %8186 = vmatprep.subr.bf16.mxu0 0
    %8187 = vmatpush2.bf16.msra.mxu0 %v6230
    %8188 = vmatprep.subr.bf16.mxu0 0
    %8189 = vmatpush2.bf16.msra.mxu0 %v6229
    %8190 = vmatprep.subr.bf16.mxu0 0
    %8191 = vmatpush2.bf16.msra.mxu0 %v6228
    %8192 = vmatprep.subr.bf16.mxu0 0
    %8193 = vmatpush2.bf16.msra.mxu0 %v6227
    %8194 = vmatprep.subr.bf16.mxu0 0
    %8195 = vmatpush2.bf16.msra.mxu0 %v6226
    %8196 = vmatprep.subr.bf16.mxu0 0
    %8197 = vmatpush2.bf16.msra.mxu0 %v6225
    %8198 = vmatprep.subr.bf16.mxu0 0
    %8199 = vmatpush2.bf16.msra.mxu0 %v6224
    %8200 = vmatprep.subr.bf16.mxu0 0
    %8201 = vmatpush2.bf16.msra.mxu0 %v6223
    %8202 = vmatprep.mubr.bf16.mxu0 %v2189
    %8203 = vmatmul.mubr.bf16.gmra.mxu0 %v2188
    %v8204 = vpop.f32.mrf.mxu0
    %v8205 = vadd.f32 %v8165, %v8204
    %v8206 = vpop.f32.mrf.mxu0
    %v8207 = vpop.f32.mrf.mxu0
    %v8208 = vpop.f32.mrf.mxu0
    %8209 = vdwg.mxu0
    %8210 = vmatprep.subr.bf16.mxu0 0
    %8211 = vmatpush1.bf16.msra.mxu0 %v6238
    %8212 = vmatprep.subr.bf16.mxu0 0
    %8213 = vmatpush1.bf16.msra.mxu0 %v6237
    %8214 = vmatprep.subr.bf16.mxu0 0
    %8215 = vmatpush1.bf16.msra.mxu0 %v6236
    %8216 = vmatprep.subr.bf16.mxu0 0
    %8217 = vmatpush1.bf16.msra.mxu0 %v6235
    %8218 = vmatprep.subr.bf16.mxu0 0
    %8219 = vmatpush1.bf16.msra.mxu0 %v6234
    %8220 = vmatprep.subr.bf16.mxu0 0
    %8221 = vmatpush1.bf16.msra.mxu0 %v6233
    %8222 = vmatprep.subr.bf16.mxu0 0
    %8223 = vmatpush1.bf16.msra.mxu0 %v6232
    %8224 = vmatprep.subr.bf16.mxu0 0
    %8225 = vmatpush1.bf16.msra.mxu0 %v6231
    %8226 = vmatprep.subr.bf16.mxu0 0
    %8227 = vmatpush2.bf16.msra.mxu0 %v6246
    %8228 = vmatprep.subr.bf16.mxu0 0
    %8229 = vmatpush2.bf16.msra.mxu0 %v6245
    %8230 = vmatprep.subr.bf16.mxu0 0
    %8231 = vmatpush2.bf16.msra.mxu0 %v6244
    %8232 = vmatprep.subr.bf16.mxu0 0
    %8233 = vmatpush2.bf16.msra.mxu0 %v6243
    %8234 = vmatprep.subr.bf16.mxu0 0
    %8235 = vmatpush2.bf16.msra.mxu0 %v6242
    %8236 = vmatprep.subr.bf16.mxu0 0
    %8237 = vmatpush2.bf16.msra.mxu0 %v6241
    %8238 = vmatprep.subr.bf16.mxu0 0
    %8239 = vmatpush2.bf16.msra.mxu0 %v6240
    %8240 = vmatprep.subr.bf16.mxu0 0
    %8241 = vmatpush2.bf16.msra.mxu0 %v6239
    %8242 = vmatprep.mubr.bf16.mxu0 %v2191
    %8243 = vmatmul.mubr.bf16.gmra.mxu0 %v2190
    %v8244 = vpop.f32.mrf.mxu0
    %v8245 = vadd.f32 %v8205, %v8244
    %v8246 = vpop.f32.mrf.mxu0
    %v8247 = vpop.f32.mrf.mxu0
    %v8248 = vpop.f32.mrf.mxu0
    %8249 = vdwg.mxu0
    %8250 = vmatprep.subr.bf16.mxu0 0
    %8251 = vmatpush1.bf16.msra.mxu0 %v6254
    %8252 = vmatprep.subr.bf16.mxu0 0
    %8253 = vmatpush1.bf16.msra.mxu0 %v6253
    %8254 = vmatprep.subr.bf16.mxu0 0
    %8255 = vmatpush1.bf16.msra.mxu0 %v6252
    %8256 = vmatprep.subr.bf16.mxu0 0
    %8257 = vmatpush1.bf16.msra.mxu0 %v6251
    %8258 = vmatprep.subr.bf16.mxu0 0
    %8259 = vmatpush1.bf16.msra.mxu0 %v6250
    %8260 = vmatprep.subr.bf16.mxu0 0
    %8261 = vmatpush1.bf16.msra.mxu0 %v6249
    %8262 = vmatprep.subr.bf16.mxu0 0
    %8263 = vmatpush1.bf16.msra.mxu0 %v6248
    %8264 = vmatprep.subr.bf16.mxu0 0
    %8265 = vmatpush1.bf16.msra.mxu0 %v6247
    %8266 = vmatprep.subr.bf16.mxu0 0
    %8267 = vmatpush2.bf16.msra.mxu0 %v6262
    %8268 = vmatprep.subr.bf16.mxu0 0
    %8269 = vmatpush2.bf16.msra.mxu0 %v6261
    %8270 = vmatprep.subr.bf16.mxu0 0
    %8271 = vmatpush2.bf16.msra.mxu0 %v6260
    %8272 = vmatprep.subr.bf16.mxu0 0
    %8273 = vmatpush2.bf16.msra.mxu0 %v6259
    %8274 = vmatprep.subr.bf16.mxu0 0
    %8275 = vmatpush2.bf16.msra.mxu0 %v6258
    %8276 = vmatprep.subr.bf16.mxu0 0
    %8277 = vmatpush2.bf16.msra.mxu0 %v6257
    %8278 = vmatprep.subr.bf16.mxu0 0
    %8279 = vmatpush2.bf16.msra.mxu0 %v6256
    %8280 = vmatprep.subr.bf16.mxu0 0
    %8281 = vmatpush2.bf16.msra.mxu0 %v6255
    %8282 = vmatprep.mubr.bf16.mxu0 %v2193
    %8283 = vmatmul.mubr.bf16.gmra.mxu0 %v2192
    %v8284 = vpop.f32.mrf.mxu0
    %v8285 = vadd.f32 %v8245, %v8284
    %v8286 = vpop.f32.mrf.mxu0
    %v8287 = vpop.f32.mrf.mxu0
    %v8288 = vpop.f32.mrf.mxu0
    %8289 = vdwg.mxu0
    %8290 = vmatprep.subr.bf16.mxu0 0
    %8291 = vmatpush1.bf16.msra.mxu0 %v6270
    %8292 = vmatprep.subr.bf16.mxu0 0
    %8293 = vmatpush1.bf16.msra.mxu0 %v6269
    %8294 = vmatprep.subr.bf16.mxu0 0
    %8295 = vmatpush1.bf16.msra.mxu0 %v6268
    %8296 = vmatprep.subr.bf16.mxu0 0
    %8297 = vmatpush1.bf16.msra.mxu0 %v6267
    %8298 = vmatprep.subr.bf16.mxu0 0
    %8299 = vmatpush1.bf16.msra.mxu0 %v6266
    %8300 = vmatprep.subr.bf16.mxu0 0
    %8301 = vmatpush1.bf16.msra.mxu0 %v6265
    %8302 = vmatprep.subr.bf16.mxu0 0
    %8303 = vmatpush1.bf16.msra.mxu0 %v6264
    %8304 = vmatprep.subr.bf16.mxu0 0
    %8305 = vmatpush1.bf16.msra.mxu0 %v6263
    %8306 = vmatprep.subr.bf16.mxu0 0
    %8307 = vmatpush2.bf16.msra.mxu0 %v6278
    %8308 = vmatprep.subr.bf16.mxu0 0
    %8309 = vmatpush2.bf16.msra.mxu0 %v6277
    %8310 = vmatprep.subr.bf16.mxu0 0
    %8311 = vmatpush2.bf16.msra.mxu0 %v6276
    %8312 = vmatprep.subr.bf16.mxu0 0
    %8313 = vmatpush2.bf16.msra.mxu0 %v6275
    %8314 = vmatprep.subr.bf16.mxu0 0
    %8315 = vmatpush2.bf16.msra.mxu0 %v6274
    %8316 = vmatprep.subr.bf16.mxu0 0
    %8317 = vmatpush2.bf16.msra.mxu0 %v6273
    %8318 = vmatprep.subr.bf16.mxu0 0
    %8319 = vmatpush2.bf16.msra.mxu0 %v6272
    %8320 = vmatprep.subr.bf16.mxu0 0
    %8321 = vmatpush2.bf16.msra.mxu0 %v6271
    %8322 = vmatprep.mubr.bf16.mxu0 %v2195
    %8323 = vmatmul.mubr.bf16.gmra.mxu0 %v2194
    %v8324 = vpop.f32.mrf.mxu0
    %v8325 = vadd.f32 %v8285, %v8324
    %v8326 = vpop.f32.mrf.mxu0
    %v8327 = vpop.f32.mrf.mxu0
    %v8328 = vpop.f32.mrf.mxu0
    %8329 = vdwg.mxu0
    %8330 = vmatprep.subr.bf16.mxu0 0
    %8331 = vmatpush1.bf16.msra.mxu0 %v6286
    %8332 = vmatprep.subr.bf16.mxu0 0
    %8333 = vmatpush1.bf16.msra.mxu0 %v6285
    %8334 = vmatprep.subr.bf16.mxu0 0
    %8335 = vmatpush1.bf16.msra.mxu0 %v6284
    %8336 = vmatprep.subr.bf16.mxu0 0
    %8337 = vmatpush1.bf16.msra.mxu0 %v6283
    %8338 = vmatprep.subr.bf16.mxu0 0
    %8339 = vmatpush1.bf16.msra.mxu0 %v6282
    %8340 = vmatprep.subr.bf16.mxu0 0
    %8341 = vmatpush1.bf16.msra.mxu0 %v6281
    %8342 = vmatprep.subr.bf16.mxu0 0
    %8343 = vmatpush1.bf16.msra.mxu0 %v6280
    %8344 = vmatprep.subr.bf16.mxu0 0
    %8345 = vmatpush1.bf16.msra.mxu0 %v6279
    %8346 = vmatprep.subr.bf16.mxu0 0
    %8347 = vmatpush2.bf16.msra.mxu0 %v6294
    %8348 = vmatprep.subr.bf16.mxu0 0
    %8349 = vmatpush2.bf16.msra.mxu0 %v6293
    %8350 = vmatprep.subr.bf16.mxu0 0
    %8351 = vmatpush2.bf16.msra.mxu0 %v6292
    %8352 = vmatprep.subr.bf16.mxu0 0
    %8353 = vmatpush2.bf16.msra.mxu0 %v6291
    %8354 = vmatprep.subr.bf16.mxu0 0
    %8355 = vmatpush2.bf16.msra.mxu0 %v6290
    %8356 = vmatprep.subr.bf16.mxu0 0
    %8357 = vmatpush2.bf16.msra.mxu0 %v6289
    %8358 = vmatprep.subr.bf16.mxu0 0
    %8359 = vmatpush2.bf16.msra.mxu0 %v6288
    %8360 = vmatprep.subr.bf16.mxu0 0
    %8361 = vmatpush2.bf16.msra.mxu0 %v6287
    %8362 = vmatprep.mubr.bf16.mxu0 %v2197
    %8363 = vmatmul.mubr.bf16.gmra.mxu0 %v2196
    %v8364 = vpop.f32.mrf.mxu0
    %v8365 = vadd.f32 %v8325, %v8364
    %v8366 = vpop.f32.mrf.mxu0
    %v8367 = vpop.f32.mrf.mxu0
    %v8368 = vpop.f32.mrf.mxu0
    %8369 = vdwg.mxu0
    %8370 = vmatprep.subr.bf16.mxu0 0
    %8371 = vmatpush1.bf16.msra.mxu0 %v6302
    %8372 = vmatprep.subr.bf16.mxu0 0
    %8373 = vmatpush1.bf16.msra.mxu0 %v6301
    %8374 = vmatprep.subr.bf16.mxu0 0
    %8375 = vmatpush1.bf16.msra.mxu0 %v6300
    %8376 = vmatprep.subr.bf16.mxu0 0
    %8377 = vmatpush1.bf16.msra.mxu0 %v6299
    %8378 = vmatprep.subr.bf16.mxu0 0
    %8379 = vmatpush1.bf16.msra.mxu0 %v6298
    %8380 = vmatprep.subr.bf16.mxu0 0
    %8381 = vmatpush1.bf16.msra.mxu0 %v6297
    %8382 = vmatprep.subr.bf16.mxu0 0
    %8383 = vmatpush1.bf16.msra.mxu0 %v6296
    %8384 = vmatprep.subr.bf16.mxu0 0
    %8385 = vmatpush1.bf16.msra.mxu0 %v6295
    %8386 = vmatprep.subr.bf16.mxu0 0
    %8387 = vmatpush2.bf16.msra.mxu0 %v6310
    %8388 = vmatprep.subr.bf16.mxu0 0
    %8389 = vmatpush2.bf16.msra.mxu0 %v6309
    %8390 = vmatprep.subr.bf16.mxu0 0
    %8391 = vmatpush2.bf16.msra.mxu0 %v6308
    %8392 = vmatprep.subr.bf16.mxu0 0
    %8393 = vmatpush2.bf16.msra.mxu0 %v6307
    %8394 = vmatprep.subr.bf16.mxu0 0
    %8395 = vmatpush2.bf16.msra.mxu0 %v6306
    %8396 = vmatprep.subr.bf16.mxu0 0
    %8397 = vmatpush2.bf16.msra.mxu0 %v6305
    %8398 = vmatprep.subr.bf16.mxu0 0
    %8399 = vmatpush2.bf16.msra.mxu0 %v6304
    %8400 = vmatprep.subr.bf16.mxu0 0
    %8401 = vmatpush2.bf16.msra.mxu0 %v6303
    %8402 = vmatprep.mubr.bf16.mxu0 %v2199
    %8403 = vmatmul.mubr.bf16.gmra.mxu0 %v2198
    %v8404 = vpop.f32.mrf.mxu0
    %v8405 = vadd.f32 %v8365, %v8404
    %v8406 = vpop.f32.mrf.mxu0
    %v8407 = vpop.f32.mrf.mxu0
    %v8408 = vpop.f32.mrf.mxu0
    %8409 = vdwg.mxu0
    %8410 = vmatprep.subr.bf16.mxu0 0
    %8411 = vmatpush1.bf16.msra.mxu0 %v6318
    %8412 = vmatprep.subr.bf16.mxu0 0
    %8413 = vmatpush1.bf16.msra.mxu0 %v6317
    %8414 = vmatprep.subr.bf16.mxu0 0
    %8415 = vmatpush1.bf16.msra.mxu0 %v6316
    %8416 = vmatprep.subr.bf16.mxu0 0
    %8417 = vmatpush1.bf16.msra.mxu0 %v6315
    %8418 = vmatprep.subr.bf16.mxu0 0
    %8419 = vmatpush1.bf16.msra.mxu0 %v6314
    %8420 = vmatprep.subr.bf16.mxu0 0
    %8421 = vmatpush1.bf16.msra.mxu0 %v6313
    %8422 = vmatprep.subr.bf16.mxu0 0
    %8423 = vmatpush1.bf16.msra.mxu0 %v6312
    %8424 = vmatprep.subr.bf16.mxu0 0
    %8425 = vmatpush1.bf16.msra.mxu0 %v6311
    %8426 = vmatprep.subr.bf16.mxu0 0
    %8427 = vmatpush2.bf16.msra.mxu0 %v6326
    %8428 = vmatprep.subr.bf16.mxu0 0
    %8429 = vmatpush2.bf16.msra.mxu0 %v6325
    %8430 = vmatprep.subr.bf16.mxu0 0
    %8431 = vmatpush2.bf16.msra.mxu0 %v6324
    %8432 = vmatprep.subr.bf16.mxu0 0
    %8433 = vmatpush2.bf16.msra.mxu0 %v6323
    %8434 = vmatprep.subr.bf16.mxu0 0
    %8435 = vmatpush2.bf16.msra.mxu0 %v6322
    %8436 = vmatprep.subr.bf16.mxu0 0
    %8437 = vmatpush2.bf16.msra.mxu0 %v6321
    %8438 = vmatprep.subr.bf16.mxu0 0
    %8439 = vmatpush2.bf16.msra.mxu0 %v6320
    %8440 = vmatprep.subr.bf16.mxu0 0
    %8441 = vmatpush2.bf16.msra.mxu0 %v6319
    %8442 = vmatprep.mubr.bf16.mxu0 %v2201
    %8443 = vmatmul.mubr.bf16.gmra.mxu0 %v2200
    %v8444 = vpop.f32.mrf.mxu0
    %v8445 = vadd.f32 %v8405, %v8444
    %v8446 = vpop.f32.mrf.mxu0
    %v8447 = vpop.f32.mrf.mxu0
    %v8448 = vpop.f32.mrf.mxu0
    %8449 = vdwg.mxu0
    %8450 = vmatprep.subr.bf16.mxu0 0
    %8451 = vmatpush1.bf16.msra.mxu0 %v6334
    %8452 = vmatprep.subr.bf16.mxu0 0
    %8453 = vmatpush1.bf16.msra.mxu0 %v6333
    %8454 = vmatprep.subr.bf16.mxu0 0
    %8455 = vmatpush1.bf16.msra.mxu0 %v6332
    %8456 = vmatprep.subr.bf16.mxu0 0
    %8457 = vmatpush1.bf16.msra.mxu0 %v6331
    %8458 = vmatprep.subr.bf16.mxu0 0
    %8459 = vmatpush1.bf16.msra.mxu0 %v6330
    %8460 = vmatprep.subr.bf16.mxu0 0
    %8461 = vmatpush1.bf16.msra.mxu0 %v6329
    %8462 = vmatprep.subr.bf16.mxu0 0
    %8463 = vmatpush1.bf16.msra.mxu0 %v6328
    %8464 = vmatprep.subr.bf16.mxu0 0
    %8465 = vmatpush1.bf16.msra.mxu0 %v6327
    %8466 = vmatprep.subr.bf16.mxu0 0
    %8467 = vmatpush2.bf16.msra.mxu0 %v6342
    %8468 = vmatprep.subr.bf16.mxu0 0
    %8469 = vmatpush2.bf16.msra.mxu0 %v6341
    %8470 = vmatprep.subr.bf16.mxu0 0
    %8471 = vmatpush2.bf16.msra.mxu0 %v6340
    %8472 = vmatprep.subr.bf16.mxu0 0
    %8473 = vmatpush2.bf16.msra.mxu0 %v6339
    %8474 = vmatprep.subr.bf16.mxu0 0
    %8475 = vmatpush2.bf16.msra.mxu0 %v6338
    %8476 = vmatprep.subr.bf16.mxu0 0
    %8477 = vmatpush2.bf16.msra.mxu0 %v6337
    %8478 = vmatprep.subr.bf16.mxu0 0
    %8479 = vmatpush2.bf16.msra.mxu0 %v6336
    %8480 = vmatprep.subr.bf16.mxu0 0
    %8481 = vmatpush2.bf16.msra.mxu0 %v6335
    %8482 = vmatprep.mubr.bf16.mxu0 %v2203
    %8483 = vmatmul.mubr.bf16.gmra.mxu0 %v2202
    %v8484 = vpop.f32.mrf.mxu0
    %v8485 = vadd.f32 %v8445, %v8484
    %v8486 = vpop.f32.mrf.mxu0
    %v8487 = vpop.f32.mrf.mxu0
    %v8488 = vpop.f32.mrf.mxu0
    %8489 = vdwg.mxu0
    %8490 = vmatprep.subr.bf16.mxu0 0
    %8491 = vmatpush1.bf16.msra.mxu0 %v6350
    %8492 = vmatprep.subr.bf16.mxu0 0
    %8493 = vmatpush1.bf16.msra.mxu0 %v6349
    %8494 = vmatprep.subr.bf16.mxu0 0
    %8495 = vmatpush1.bf16.msra.mxu0 %v6348
    %8496 = vmatprep.subr.bf16.mxu0 0
    %8497 = vmatpush1.bf16.msra.mxu0 %v6347
    %8498 = vmatprep.subr.bf16.mxu0 0
    %8499 = vmatpush1.bf16.msra.mxu0 %v6346
    %8500 = vmatprep.subr.bf16.mxu0 0
    %8501 = vmatpush1.bf16.msra.mxu0 %v6345
    %8502 = vmatprep.subr.bf16.mxu0 0
    %8503 = vmatpush1.bf16.msra.mxu0 %v6344
    %8504 = vmatprep.subr.bf16.mxu0 0
    %8505 = vmatpush1.bf16.msra.mxu0 %v6343
    %8506 = vmatprep.subr.bf16.mxu0 0
    %8507 = vmatpush2.bf16.msra.mxu0 %v6358
    %8508 = vmatprep.subr.bf16.mxu0 0
    %8509 = vmatpush2.bf16.msra.mxu0 %v6357
    %8510 = vmatprep.subr.bf16.mxu0 0
    %8511 = vmatpush2.bf16.msra.mxu0 %v6356
    %8512 = vmatprep.subr.bf16.mxu0 0
    %8513 = vmatpush2.bf16.msra.mxu0 %v6355
    %8514 = vmatprep.subr.bf16.mxu0 0
    %8515 = vmatpush2.bf16.msra.mxu0 %v6354
    %8516 = vmatprep.subr.bf16.mxu0 0
    %8517 = vmatpush2.bf16.msra.mxu0 %v6353
    %8518 = vmatprep.subr.bf16.mxu0 0
    %8519 = vmatpush2.bf16.msra.mxu0 %v6352
    %8520 = vmatprep.subr.bf16.mxu0 0
    %8521 = vmatpush2.bf16.msra.mxu0 %v6351
    %8522 = vmatprep.mubr.bf16.mxu0 %v2205
    %8523 = vmatmul.mubr.bf16.gmra.mxu0 %v2204
    %v8524 = vpop.f32.mrf.mxu0
    %v8525 = vadd.f32 %v8485, %v8524
    %v8526 = vpop.f32.mrf.mxu0
    %v8527 = vpop.f32.mrf.mxu0
    %v8528 = vpop.f32.mrf.mxu0
    %8529 = vdwg.mxu0
    %8530 = vmatprep.subr.bf16.mxu0 0
    %8531 = vmatpush1.bf16.msra.mxu0 %v6366
    %8532 = vmatprep.subr.bf16.mxu0 0
    %8533 = vmatpush1.bf16.msra.mxu0 %v6365
    %8534 = vmatprep.subr.bf16.mxu0 0
    %8535 = vmatpush1.bf16.msra.mxu0 %v6364
    %8536 = vmatprep.subr.bf16.mxu0 0
    %8537 = vmatpush1.bf16.msra.mxu0 %v6363
    %8538 = vmatprep.subr.bf16.mxu0 0
    %8539 = vmatpush1.bf16.msra.mxu0 %v6362
    %8540 = vmatprep.subr.bf16.mxu0 0
    %8541 = vmatpush1.bf16.msra.mxu0 %v6361
    %8542 = vmatprep.subr.bf16.mxu0 0
    %8543 = vmatpush1.bf16.msra.mxu0 %v6360
    %8544 = vmatprep.subr.bf16.mxu0 0
    %8545 = vmatpush1.bf16.msra.mxu0 %v6359
    %8546 = vmatprep.subr.bf16.mxu0 0
    %8547 = vmatpush2.bf16.msra.mxu0 %v6374
    %8548 = vmatprep.subr.bf16.mxu0 0
    %8549 = vmatpush2.bf16.msra.mxu0 %v6373
    %8550 = vmatprep.subr.bf16.mxu0 0
    %8551 = vmatpush2.bf16.msra.mxu0 %v6372
    %8552 = vmatprep.subr.bf16.mxu0 0
    %8553 = vmatpush2.bf16.msra.mxu0 %v6371
    %8554 = vmatprep.subr.bf16.mxu0 0
    %8555 = vmatpush2.bf16.msra.mxu0 %v6370
    %8556 = vmatprep.subr.bf16.mxu0 0
    %8557 = vmatpush2.bf16.msra.mxu0 %v6369
    %8558 = vmatprep.subr.bf16.mxu0 0
    %8559 = vmatpush2.bf16.msra.mxu0 %v6368
    %8560 = vmatprep.subr.bf16.mxu0 0
    %8561 = vmatpush2.bf16.msra.mxu0 %v6367
    %8562 = vmatprep.mubr.bf16.mxu0 %v2207
    %8563 = vmatmul.mubr.bf16.gmra.mxu0 %v2206
    %v8564 = vpop.f32.mrf.mxu0
    %v8565 = vadd.f32 %v8525, %v8564
    %v8566 = vpop.f32.mrf.mxu0
    %v8567 = vpop.f32.mrf.mxu0
    %v8568 = vpop.f32.mrf.mxu0
    %8569 = vdwg.mxu0
    %8570 = vmatprep.subr.bf16.mxu0 0
    %8571 = vmatpush1.bf16.msra.mxu0 %v6382
    %8572 = vmatprep.subr.bf16.mxu0 0
    %8573 = vmatpush1.bf16.msra.mxu0 %v6381
    %8574 = vmatprep.subr.bf16.mxu0 0
    %8575 = vmatpush1.bf16.msra.mxu0 %v6380
    %8576 = vmatprep.subr.bf16.mxu0 0
    %8577 = vmatpush1.bf16.msra.mxu0 %v6379
    %8578 = vmatprep.subr.bf16.mxu0 0
    %8579 = vmatpush1.bf16.msra.mxu0 %v6378
    %8580 = vmatprep.subr.bf16.mxu0 0
    %8581 = vmatpush1.bf16.msra.mxu0 %v6377
    %8582 = vmatprep.subr.bf16.mxu0 0
    %8583 = vmatpush1.bf16.msra.mxu0 %v6376
    %8584 = vmatprep.subr.bf16.mxu0 0
    %8585 = vmatpush1.bf16.msra.mxu0 %v6375
    %8586 = vmatprep.subr.bf16.mxu0 0
    %8587 = vmatpush2.bf16.msra.mxu0 %v6390
    %8588 = vmatprep.subr.bf16.mxu0 0
    %8589 = vmatpush2.bf16.msra.mxu0 %v6389
    %8590 = vmatprep.subr.bf16.mxu0 0
    %8591 = vmatpush2.bf16.msra.mxu0 %v6388
    %8592 = vmatprep.subr.bf16.mxu0 0
    %8593 = vmatpush2.bf16.msra.mxu0 %v6387
    %8594 = vmatprep.subr.bf16.mxu0 0
    %8595 = vmatpush2.bf16.msra.mxu0 %v6386
    %8596 = vmatprep.subr.bf16.mxu0 0
    %8597 = vmatpush2.bf16.msra.mxu0 %v6385
    %8598 = vmatprep.subr.bf16.mxu0 0
    %8599 = vmatpush2.bf16.msra.mxu0 %v6384
    %8600 = vmatprep.subr.bf16.mxu0 0
    %8601 = vmatpush2.bf16.msra.mxu0 %v6383
    %8602 = vmatprep.mubr.bf16.mxu0 %v2209
    %8603 = vmatmul.mubr.bf16.gmra.mxu0 %v2208
    %v8604 = vpop.f32.mrf.mxu0
    %v8605 = vadd.f32 %v8565, %v8604
    %v8606 = vpop.f32.mrf.mxu0
    %v8607 = vpop.f32.mrf.mxu0
    %v8608 = vpop.f32.mrf.mxu0
    %8609 = vdwg.mxu0
    %8610 = vmatprep.subr.bf16.mxu0 0
    %8611 = vmatpush1.bf16.msra.mxu0 %v6398
    %8612 = vmatprep.subr.bf16.mxu0 0
    %8613 = vmatpush1.bf16.msra.mxu0 %v6397
    %8614 = vmatprep.subr.bf16.mxu0 0
    %8615 = vmatpush1.bf16.msra.mxu0 %v6396
    %8616 = vmatprep.subr.bf16.mxu0 0
    %8617 = vmatpush1.bf16.msra.mxu0 %v6395
    %8618 = vmatprep.subr.bf16.mxu0 0
    %8619 = vmatpush1.bf16.msra.mxu0 %v6394
    %8620 = vmatprep.subr.bf16.mxu0 0
    %8621 = vmatpush1.bf16.msra.mxu0 %v6393
    %8622 = vmatprep.subr.bf16.mxu0 0
    %8623 = vmatpush1.bf16.msra.mxu0 %v6392
    %8624 = vmatprep.subr.bf16.mxu0 0
    %8625 = vmatpush1.bf16.msra.mxu0 %v6391
    %8626 = vmatprep.subr.bf16.mxu0 0
    %8627 = vmatpush2.bf16.msra.mxu0 %v6406
    %8628 = vmatprep.subr.bf16.mxu0 0
    %8629 = vmatpush2.bf16.msra.mxu0 %v6405
    %8630 = vmatprep.subr.bf16.mxu0 0
    %8631 = vmatpush2.bf16.msra.mxu0 %v6404
    %8632 = vmatprep.subr.bf16.mxu0 0
    %8633 = vmatpush2.bf16.msra.mxu0 %v6403
    %8634 = vmatprep.subr.bf16.mxu0 0
    %8635 = vmatpush2.bf16.msra.mxu0 %v6402
    %8636 = vmatprep.subr.bf16.mxu0 0
    %8637 = vmatpush2.bf16.msra.mxu0 %v6401
    %8638 = vmatprep.subr.bf16.mxu0 0
    %8639 = vmatpush2.bf16.msra.mxu0 %v6400
    %8640 = vmatprep.subr.bf16.mxu0 0
    %8641 = vmatpush2.bf16.msra.mxu0 %v6399
    %8642 = vmatprep.mubr.bf16.mxu0 %v2211
    %8643 = vmatmul.mubr.bf16.gmra.mxu0 %v2210
    %v8644 = vpop.f32.mrf.mxu0
    %v8645 = vadd.f32 %v8605, %v8644
    %v8646 = vpop.f32.mrf.mxu0
    %v8647 = vpop.f32.mrf.mxu0
    %v8648 = vpop.f32.mrf.mxu0
    %8649 = vdwg.mxu0
    %8650 = vmatprep.subr.bf16.mxu0 0
    %8651 = vmatpush1.bf16.msra.mxu0 %v6414
    %8652 = vmatprep.subr.bf16.mxu0 0
    %8653 = vmatpush1.bf16.msra.mxu0 %v6413
    %8654 = vmatprep.subr.bf16.mxu0 0
    %8655 = vmatpush1.bf16.msra.mxu0 %v6412
    %8656 = vmatprep.subr.bf16.mxu0 0
    %8657 = vmatpush1.bf16.msra.mxu0 %v6411
    %8658 = vmatprep.subr.bf16.mxu0 0
    %8659 = vmatpush1.bf16.msra.mxu0 %v6410
    %8660 = vmatprep.subr.bf16.mxu0 0
    %8661 = vmatpush1.bf16.msra.mxu0 %v6409
    %8662 = vmatprep.subr.bf16.mxu0 0
    %8663 = vmatpush1.bf16.msra.mxu0 %v6408
    %8664 = vmatprep.subr.bf16.mxu0 0
    %8665 = vmatpush1.bf16.msra.mxu0 %v6407
    %8666 = vmatprep.subr.bf16.mxu0 0
    %8667 = vmatpush2.bf16.msra.mxu0 %v6422
    %8668 = vmatprep.subr.bf16.mxu0 0
    %8669 = vmatpush2.bf16.msra.mxu0 %v6421
    %8670 = vmatprep.subr.bf16.mxu0 0
    %8671 = vmatpush2.bf16.msra.mxu0 %v6420
    %8672 = vmatprep.subr.bf16.mxu0 0
    %8673 = vmatpush2.bf16.msra.mxu0 %v6419
    %8674 = vmatprep.subr.bf16.mxu0 0
    %8675 = vmatpush2.bf16.msra.mxu0 %v6418
    %8676 = vmatprep.subr.bf16.mxu0 0
    %8677 = vmatpush2.bf16.msra.mxu0 %v6417
    %8678 = vmatprep.subr.bf16.mxu0 0
    %8679 = vmatpush2.bf16.msra.mxu0 %v6416
    %8680 = vmatprep.subr.bf16.mxu0 0
    %8681 = vmatpush2.bf16.msra.mxu0 %v6415
    %8682 = vmatprep.mubr.bf16.mxu0 %v2213
    %8683 = vmatmul.mubr.bf16.gmra.mxu0 %v2212
    %v8684 = vpop.f32.mrf.mxu0
    %v8685 = vadd.f32 %v8645, %v8684
    %v8686 = vpop.f32.mrf.mxu0
    %v8687 = vpop.f32.mrf.mxu0
    %v8688 = vpop.f32.mrf.mxu0
    %8689 = vdwg.mxu0
    %8690 = vmatprep.subr.bf16.mxu0 0
    %8691 = vmatpush1.bf16.msra.mxu0 %v6430
    %8692 = vmatprep.subr.bf16.mxu0 0
    %8693 = vmatpush1.bf16.msra.mxu0 %v6429
    %8694 = vmatprep.subr.bf16.mxu0 0
    %8695 = vmatpush1.bf16.msra.mxu0 %v6428
    %8696 = vmatprep.subr.bf16.mxu0 0
    %8697 = vmatpush1.bf16.msra.mxu0 %v6427
    %8698 = vmatprep.subr.bf16.mxu0 0
    %8699 = vmatpush1.bf16.msra.mxu0 %v6426
    %8700 = vmatprep.subr.bf16.mxu0 0
    %8701 = vmatpush1.bf16.msra.mxu0 %v6425
    %8702 = vmatprep.subr.bf16.mxu0 0
    %8703 = vmatpush1.bf16.msra.mxu0 %v6424
    %8704 = vmatprep.subr.bf16.mxu0 0
    %8705 = vmatpush1.bf16.msra.mxu0 %v6423
    %8706 = vmatprep.subr.bf16.mxu0 0
    %8707 = vmatpush2.bf16.msra.mxu0 %v6438
    %8708 = vmatprep.subr.bf16.mxu0 0
    %8709 = vmatpush2.bf16.msra.mxu0 %v6437
    %8710 = vmatprep.subr.bf16.mxu0 0
    %8711 = vmatpush2.bf16.msra.mxu0 %v6436
    %8712 = vmatprep.subr.bf16.mxu0 0
    %8713 = vmatpush2.bf16.msra.mxu0 %v6435
    %8714 = vmatprep.subr.bf16.mxu0 0
    %8715 = vmatpush2.bf16.msra.mxu0 %v6434
    %8716 = vmatprep.subr.bf16.mxu0 0
    %8717 = vmatpush2.bf16.msra.mxu0 %v6433
    %8718 = vmatprep.subr.bf16.mxu0 0
    %8719 = vmatpush2.bf16.msra.mxu0 %v6432
    %8720 = vmatprep.subr.bf16.mxu0 0
    %8721 = vmatpush2.bf16.msra.mxu0 %v6431
    %8722 = vmatprep.mubr.bf16.mxu0 %v2215
    %8723 = vmatmul.mubr.bf16.gmra.mxu0 %v2214
    %v8724 = vpop.f32.mrf.mxu0
    %v8725 = vadd.f32 %v8685, %v8724
    %v8726 = vpop.f32.mrf.mxu0
    %v8727 = vpop.f32.mrf.mxu0
    %v8728 = vpop.f32.mrf.mxu0
    %8729 = vdwg.mxu0
    %8730 = vmatprep.subr.bf16.mxu0 0
    %8731 = vmatpush1.bf16.msra.mxu0 %v6446
    %8732 = vmatprep.subr.bf16.mxu0 0
    %8733 = vmatpush1.bf16.msra.mxu0 %v6445
    %8734 = vmatprep.subr.bf16.mxu0 0
    %8735 = vmatpush1.bf16.msra.mxu0 %v6444
    %8736 = vmatprep.subr.bf16.mxu0 0
    %8737 = vmatpush1.bf16.msra.mxu0 %v6443
    %8738 = vmatprep.subr.bf16.mxu0 0
    %8739 = vmatpush1.bf16.msra.mxu0 %v6442
    %8740 = vmatprep.subr.bf16.mxu0 0
    %8741 = vmatpush1.bf16.msra.mxu0 %v6441
    %8742 = vmatprep.subr.bf16.mxu0 0
    %8743 = vmatpush1.bf16.msra.mxu0 %v6440
    %8744 = vmatprep.subr.bf16.mxu0 0
    %8745 = vmatpush1.bf16.msra.mxu0 %v6439
    %8746 = vmatprep.subr.bf16.mxu0 0
    %8747 = vmatpush2.bf16.msra.mxu0 %v6454
    %8748 = vmatprep.subr.bf16.mxu0 0
    %8749 = vmatpush2.bf16.msra.mxu0 %v6453
    %8750 = vmatprep.subr.bf16.mxu0 0
    %8751 = vmatpush2.bf16.msra.mxu0 %v6452
    %8752 = vmatprep.subr.bf16.mxu0 0
    %8753 = vmatpush2.bf16.msra.mxu0 %v6451
    %8754 = vmatprep.subr.bf16.mxu0 0
    %8755 = vmatpush2.bf16.msra.mxu0 %v6450
    %8756 = vmatprep.subr.bf16.mxu0 0
    %8757 = vmatpush2.bf16.msra.mxu0 %v6449
    %8758 = vmatprep.subr.bf16.mxu0 0
    %8759 = vmatpush2.bf16.msra.mxu0 %v6448
    %8760 = vmatprep.subr.bf16.mxu0 0
    %8761 = vmatpush2.bf16.msra.mxu0 %v6447
    %8762 = vmatprep.mubr.bf16.mxu0 %v2217
    %8763 = vmatmul.mubr.bf16.gmra.mxu0 %v2216
    %v8764 = vpop.f32.mrf.mxu0
    %v8765 = vadd.f32 %v8725, %v8764
    %v8766 = vpop.f32.mrf.mxu0
    %v8767 = vpop.f32.mrf.mxu0
    %v8768 = vpop.f32.mrf.mxu0
    %8769 = vdwg.mxu0
    %8770 = vmatprep.subr.bf16.mxu0 0
    %8771 = vmatpush1.bf16.msra.mxu0 %v6462
    %8772 = vmatprep.subr.bf16.mxu0 0
    %8773 = vmatpush1.bf16.msra.mxu0 %v6461
    %8774 = vmatprep.subr.bf16.mxu0 0
    %8775 = vmatpush1.bf16.msra.mxu0 %v6460
    %8776 = vmatprep.subr.bf16.mxu0 0
    %8777 = vmatpush1.bf16.msra.mxu0 %v6459
    %8778 = vmatprep.subr.bf16.mxu0 0
    %8779 = vmatpush1.bf16.msra.mxu0 %v6458
    %8780 = vmatprep.subr.bf16.mxu0 0
    %8781 = vmatpush1.bf16.msra.mxu0 %v6457
    %8782 = vmatprep.subr.bf16.mxu0 0
    %8783 = vmatpush1.bf16.msra.mxu0 %v6456
    %8784 = vmatprep.subr.bf16.mxu0 0
    %8785 = vmatpush1.bf16.msra.mxu0 %v6455
    %8786 = vmatprep.subr.bf16.mxu0 0
    %8787 = vmatpush2.bf16.msra.mxu0 %v6470
    %8788 = vmatprep.subr.bf16.mxu0 0
    %8789 = vmatpush2.bf16.msra.mxu0 %v6469
    %8790 = vmatprep.subr.bf16.mxu0 0
    %8791 = vmatpush2.bf16.msra.mxu0 %v6468
    %8792 = vmatprep.subr.bf16.mxu0 0
    %8793 = vmatpush2.bf16.msra.mxu0 %v6467
    %8794 = vmatprep.subr.bf16.mxu0 0
    %8795 = vmatpush2.bf16.msra.mxu0 %v6466
    %8796 = vmatprep.subr.bf16.mxu0 0
    %8797 = vmatpush2.bf16.msra.mxu0 %v6465
    %8798 = vmatprep.subr.bf16.mxu0 0
    %8799 = vmatpush2.bf16.msra.mxu0 %v6464
    %8800 = vmatprep.subr.bf16.mxu0 0
    %8801 = vmatpush2.bf16.msra.mxu0 %v6463
    %8802 = vmatprep.mubr.bf16.mxu0 %v2219
    %8803 = vmatmul.mubr.bf16.gmra.mxu0 %v2218
    %v8804 = vpop.f32.mrf.mxu0
    %v8805 = vadd.f32 %v8765, %v8804
    %v8806 = vpop.f32.mrf.mxu0
    %v8807 = vpop.f32.mrf.mxu0
    %v8808 = vpop.f32.mrf.mxu0
    %8809 = vdwg.mxu0
    %8810 = vmatprep.subr.bf16.mxu0 0
    %8811 = vmatpush1.bf16.msra.mxu0 %v6478
    %8812 = vmatprep.subr.bf16.mxu0 0
    %8813 = vmatpush1.bf16.msra.mxu0 %v6477
    %8814 = vmatprep.subr.bf16.mxu0 0
    %8815 = vmatpush1.bf16.msra.mxu0 %v6476
    %8816 = vmatprep.subr.bf16.mxu0 0
    %8817 = vmatpush1.bf16.msra.mxu0 %v6475
    %8818 = vmatprep.subr.bf16.mxu0 0
    %8819 = vmatpush1.bf16.msra.mxu0 %v6474
    %8820 = vmatprep.subr.bf16.mxu0 0
    %8821 = vmatpush1.bf16.msra.mxu0 %v6473
    %8822 = vmatprep.subr.bf16.mxu0 0
    %8823 = vmatpush1.bf16.msra.mxu0 %v6472
    %8824 = vmatprep.subr.bf16.mxu0 0
    %8825 = vmatpush1.bf16.msra.mxu0 %v6471
    %8826 = vmatprep.subr.bf16.mxu0 0
    %8827 = vmatpush2.bf16.msra.mxu0 %v6486
    %8828 = vmatprep.subr.bf16.mxu0 0
    %8829 = vmatpush2.bf16.msra.mxu0 %v6485
    %8830 = vmatprep.subr.bf16.mxu0 0
    %8831 = vmatpush2.bf16.msra.mxu0 %v6484
    %8832 = vmatprep.subr.bf16.mxu0 0
    %8833 = vmatpush2.bf16.msra.mxu0 %v6483
    %8834 = vmatprep.subr.bf16.mxu0 0
    %8835 = vmatpush2.bf16.msra.mxu0 %v6482
    %8836 = vmatprep.subr.bf16.mxu0 0
    %8837 = vmatpush2.bf16.msra.mxu0 %v6481
    %8838 = vmatprep.subr.bf16.mxu0 0
    %8839 = vmatpush2.bf16.msra.mxu0 %v6480
    %8840 = vmatprep.subr.bf16.mxu0 0
    %8841 = vmatpush2.bf16.msra.mxu0 %v6479
    %8842 = vmatprep.mubr.bf16.mxu0 %v2221
    %8843 = vmatmul.mubr.bf16.gmra.mxu0 %v2220
    %v8844 = vpop.f32.mrf.mxu0
    %v8845 = vadd.f32 %v8805, %v8844
    %v8846 = vpop.f32.mrf.mxu0
    %v8847 = vpop.f32.mrf.mxu0
    %v8848 = vpop.f32.mrf.mxu0
    %8849 = vdwg.mxu0
    %8850 = vmatprep.subr.bf16.mxu0 0
    %8851 = vmatpush1.bf16.msra.mxu0 %v6494
    %8852 = vmatprep.subr.bf16.mxu0 0
    %8853 = vmatpush1.bf16.msra.mxu0 %v6493
    %8854 = vmatprep.subr.bf16.mxu0 0
    %8855 = vmatpush1.bf16.msra.mxu0 %v6492
    %8856 = vmatprep.subr.bf16.mxu0 0
    %8857 = vmatpush1.bf16.msra.mxu0 %v6491
    %8858 = vmatprep.subr.bf16.mxu0 0
    %8859 = vmatpush1.bf16.msra.mxu0 %v6490
    %8860 = vmatprep.subr.bf16.mxu0 0
    %8861 = vmatpush1.bf16.msra.mxu0 %v6489
    %8862 = vmatprep.subr.bf16.mxu0 0
    %8863 = vmatpush1.bf16.msra.mxu0 %v6488
    %8864 = vmatprep.subr.bf16.mxu0 0
    %8865 = vmatpush1.bf16.msra.mxu0 %v6487
    %8866 = vmatprep.subr.bf16.mxu0 0
    %8867 = vmatpush2.bf16.msra.mxu0 %v6502
    %8868 = vmatprep.subr.bf16.mxu0 0
    %8869 = vmatpush2.bf16.msra.mxu0 %v6501
    %8870 = vmatprep.subr.bf16.mxu0 0
    %8871 = vmatpush2.bf16.msra.mxu0 %v6500
    %8872 = vmatprep.subr.bf16.mxu0 0
    %8873 = vmatpush2.bf16.msra.mxu0 %v6499
    %8874 = vmatprep.subr.bf16.mxu0 0
    %8875 = vmatpush2.bf16.msra.mxu0 %v6498
    %8876 = vmatprep.subr.bf16.mxu0 0
    %8877 = vmatpush2.bf16.msra.mxu0 %v6497
    %8878 = vmatprep.subr.bf16.mxu0 0
    %8879 = vmatpush2.bf16.msra.mxu0 %v6496
    %8880 = vmatprep.subr.bf16.mxu0 0
    %8881 = vmatpush2.bf16.msra.mxu0 %v6495
    %8882 = vmatprep.mubr.bf16.mxu0 %v2223
    %8883 = vmatmul.mubr.bf16.gmra.mxu0 %v2222
    %v8884 = vpop.f32.mrf.mxu0
    %v8885 = vadd.f32 %v8845, %v8884
    %v8886 = vpop.f32.mrf.mxu0
    %v8887 = vpop.f32.mrf.mxu0
    %v8888 = vpop.f32.mrf.mxu0
    %8889 = vdwg.mxu0
    %8890 = vmatprep.subr.bf16.mxu0 0
    %8891 = vmatpush1.bf16.msra.mxu0 %v6510
    %8892 = vmatprep.subr.bf16.mxu0 0
    %8893 = vmatpush1.bf16.msra.mxu0 %v6509
    %8894 = vmatprep.subr.bf16.mxu0 0
    %8895 = vmatpush1.bf16.msra.mxu0 %v6508
    %8896 = vmatprep.subr.bf16.mxu0 0
    %8897 = vmatpush1.bf16.msra.mxu0 %v6507
    %8898 = vmatprep.subr.bf16.mxu0 0
    %8899 = vmatpush1.bf16.msra.mxu0 %v6506
    %8900 = vmatprep.subr.bf16.mxu0 0
    %8901 = vmatpush1.bf16.msra.mxu0 %v6505
    %8902 = vmatprep.subr.bf16.mxu0 0
    %8903 = vmatpush1.bf16.msra.mxu0 %v6504
    %8904 = vmatprep.subr.bf16.mxu0 0
    %8905 = vmatpush1.bf16.msra.mxu0 %v6503
    %8906 = vmatprep.subr.bf16.mxu0 0
    %8907 = vmatpush2.bf16.msra.mxu0 %v6518
    %8908 = vmatprep.subr.bf16.mxu0 0
    %8909 = vmatpush2.bf16.msra.mxu0 %v6517
    %8910 = vmatprep.subr.bf16.mxu0 0
    %8911 = vmatpush2.bf16.msra.mxu0 %v6516
    %8912 = vmatprep.subr.bf16.mxu0 0
    %8913 = vmatpush2.bf16.msra.mxu0 %v6515
    %8914 = vmatprep.subr.bf16.mxu0 0
    %8915 = vmatpush2.bf16.msra.mxu0 %v6514
    %8916 = vmatprep.subr.bf16.mxu0 0
    %8917 = vmatpush2.bf16.msra.mxu0 %v6513
    %8918 = vmatprep.subr.bf16.mxu0 0
    %8919 = vmatpush2.bf16.msra.mxu0 %v6512
    %8920 = vmatprep.subr.bf16.mxu0 0
    %8921 = vmatpush2.bf16.msra.mxu0 %v6511
    %8922 = vmatprep.mubr.bf16.mxu0 %v2225
    %8923 = vmatmul.mubr.bf16.gmra.mxu0 %v2224
    %v8924 = vpop.f32.mrf.mxu0
    %v8925 = vadd.f32 %v8885, %v8924
    %v8926 = vpop.f32.mrf.mxu0
    %v8927 = vpop.f32.mrf.mxu0
    %v8928 = vpop.f32.mrf.mxu0
    %8929 = vdwg.mxu0
    %8930 = vmatprep.subr.bf16.mxu0 0
    %8931 = vmatpush1.bf16.msra.mxu0 %v6526
    %8932 = vmatprep.subr.bf16.mxu0 0
    %8933 = vmatpush1.bf16.msra.mxu0 %v6525
    %8934 = vmatprep.subr.bf16.mxu0 0
    %8935 = vmatpush1.bf16.msra.mxu0 %v6524
    %8936 = vmatprep.subr.bf16.mxu0 0
    %8937 = vmatpush1.bf16.msra.mxu0 %v6523
    %8938 = vmatprep.subr.bf16.mxu0 0
    %8939 = vmatpush1.bf16.msra.mxu0 %v6522
    %8940 = vmatprep.subr.bf16.mxu0 0
    %8941 = vmatpush1.bf16.msra.mxu0 %v6521
    %8942 = vmatprep.subr.bf16.mxu0 0
    %8943 = vmatpush1.bf16.msra.mxu0 %v6520
    %8944 = vmatprep.subr.bf16.mxu0 0
    %8945 = vmatpush1.bf16.msra.mxu0 %v6519
    %8946 = vmatprep.subr.bf16.mxu0 0
    %8947 = vmatpush2.bf16.msra.mxu0 %v6534
    %8948 = vmatprep.subr.bf16.mxu0 0
    %8949 = vmatpush2.bf16.msra.mxu0 %v6533
    %8950 = vmatprep.subr.bf16.mxu0 0
    %8951 = vmatpush2.bf16.msra.mxu0 %v6532
    %8952 = vmatprep.subr.bf16.mxu0 0
    %8953 = vmatpush2.bf16.msra.mxu0 %v6531
    %8954 = vmatprep.subr.bf16.mxu0 0
    %8955 = vmatpush2.bf16.msra.mxu0 %v6530
    %8956 = vmatprep.subr.bf16.mxu0 0
    %8957 = vmatpush2.bf16.msra.mxu0 %v6529
    %8958 = vmatprep.subr.bf16.mxu0 0
    %8959 = vmatpush2.bf16.msra.mxu0 %v6528
    %8960 = vmatprep.subr.bf16.mxu0 0
    %8961 = vmatpush2.bf16.msra.mxu0 %v6527
    %8962 = vmatprep.mubr.bf16.mxu0 %v2227
    %8963 = vmatmul.mubr.bf16.gmra.mxu0 %v2226
    %v8964 = vpop.f32.mrf.mxu0
    %v8965 = vadd.f32 %v8925, %v8964
    %v8966 = vpop.f32.mrf.mxu0
    %v8967 = vpop.f32.mrf.mxu0
    %v8968 = vpop.f32.mrf.mxu0
    %8969 = vdwg.mxu0
    %8970 = vmatprep.subr.bf16.mxu0 0
    %8971 = vmatpush1.bf16.msra.mxu0 %v6542
    %8972 = vmatprep.subr.bf16.mxu0 0
    %8973 = vmatpush1.bf16.msra.mxu0 %v6541
    %8974 = vmatprep.subr.bf16.mxu0 0
    %8975 = vmatpush1.bf16.msra.mxu0 %v6540
    %8976 = vmatprep.subr.bf16.mxu0 0
    %8977 = vmatpush1.bf16.msra.mxu0 %v6539
    %8978 = vmatprep.subr.bf16.mxu0 0
    %8979 = vmatpush1.bf16.msra.mxu0 %v6538
    %8980 = vmatprep.subr.bf16.mxu0 0
    %8981 = vmatpush1.bf16.msra.mxu0 %v6537
    %8982 = vmatprep.subr.bf16.mxu0 0
    %8983 = vmatpush1.bf16.msra.mxu0 %v6536
    %8984 = vmatprep.subr.bf16.mxu0 0
    %8985 = vmatpush1.bf16.msra.mxu0 %v6535
    %8986 = vmatprep.subr.bf16.mxu0 0
    %8987 = vmatpush2.bf16.msra.mxu0 %v6550
    %8988 = vmatprep.subr.bf16.mxu0 0
    %8989 = vmatpush2.bf16.msra.mxu0 %v6549
    %8990 = vmatprep.subr.bf16.mxu0 0
    %8991 = vmatpush2.bf16.msra.mxu0 %v6548
    %8992 = vmatprep.subr.bf16.mxu0 0
    %8993 = vmatpush2.bf16.msra.mxu0 %v6547
    %8994 = vmatprep.subr.bf16.mxu0 0
    %8995 = vmatpush2.bf16.msra.mxu0 %v6546
    %8996 = vmatprep.subr.bf16.mxu0 0
    %8997 = vmatpush2.bf16.msra.mxu0 %v6545
    %8998 = vmatprep.subr.bf16.mxu0 0
    %8999 = vmatpush2.bf16.msra.mxu0 %v6544
    %9000 = vmatprep.subr.bf16.mxu0 0
    %9001 = vmatpush2.bf16.msra.mxu0 %v6543
    %9002 = vmatprep.mubr.bf16.mxu0 %v2229
    %9003 = vmatmul.mubr.bf16.gmra.mxu0 %v2228
    %v9004 = vpop.f32.mrf.mxu0
    %v9005 = vadd.f32 %v8965, %v9004
    %v9006 = vpop.f32.mrf.mxu0
    %v9007 = vpop.f32.mrf.mxu0
    %v9008 = vpop.f32.mrf.mxu0
    %9009 = vdwg.mxu0
    %9010 = vmatprep.subr.bf16.mxu0 0
    %9011 = vmatpush1.bf16.msra.mxu0 %v6558
    %9012 = vmatprep.subr.bf16.mxu0 0
    %9013 = vmatpush1.bf16.msra.mxu0 %v6557
    %9014 = vmatprep.subr.bf16.mxu0 0
    %9015 = vmatpush1.bf16.msra.mxu0 %v6556
    %9016 = vmatprep.subr.bf16.mxu0 0
    %9017 = vmatpush1.bf16.msra.mxu0 %v6555
    %9018 = vmatprep.subr.bf16.mxu0 0
    %9019 = vmatpush1.bf16.msra.mxu0 %v6554
    %9020 = vmatprep.subr.bf16.mxu0 0
    %9021 = vmatpush1.bf16.msra.mxu0 %v6553
    %9022 = vmatprep.subr.bf16.mxu0 0
    %9023 = vmatpush1.bf16.msra.mxu0 %v6552
    %9024 = vmatprep.subr.bf16.mxu0 0
    %9025 = vmatpush1.bf16.msra.mxu0 %v6551
    %9026 = vmatprep.subr.bf16.mxu0 0
    %9027 = vmatpush2.bf16.msra.mxu0 %v6566
    %9028 = vmatprep.subr.bf16.mxu0 0
    %9029 = vmatpush2.bf16.msra.mxu0 %v6565
    %9030 = vmatprep.subr.bf16.mxu0 0
    %9031 = vmatpush2.bf16.msra.mxu0 %v6564
    %9032 = vmatprep.subr.bf16.mxu0 0
    %9033 = vmatpush2.bf16.msra.mxu0 %v6563
    %9034 = vmatprep.subr.bf16.mxu0 0
    %9035 = vmatpush2.bf16.msra.mxu0 %v6562
    %9036 = vmatprep.subr.bf16.mxu0 0
    %9037 = vmatpush2.bf16.msra.mxu0 %v6561
    %9038 = vmatprep.subr.bf16.mxu0 0
    %9039 = vmatpush2.bf16.msra.mxu0 %v6560
    %9040 = vmatprep.subr.bf16.mxu0 0
    %9041 = vmatpush2.bf16.msra.mxu0 %v6559
    %9042 = vmatprep.mubr.bf16.mxu0 %v2231
    %9043 = vmatmul.mubr.bf16.gmra.mxu0 %v2230
    %v9044 = vpop.f32.mrf.mxu0
    %v9045 = vadd.f32 %v9005, %v9044
    %v9046 = vpop.f32.mrf.mxu0
    %v9047 = vpop.f32.mrf.mxu0
    %v9048 = vpop.f32.mrf.mxu0
    %9049 = vdwg.mxu0
    %9050 = vmatprep.subr.bf16.mxu0 0
    %9051 = vmatpush1.bf16.msra.mxu0 %v6574
    %9052 = vmatprep.subr.bf16.mxu0 0
    %9053 = vmatpush1.bf16.msra.mxu0 %v6573
    %9054 = vmatprep.subr.bf16.mxu0 0
    %9055 = vmatpush1.bf16.msra.mxu0 %v6572
    %9056 = vmatprep.subr.bf16.mxu0 0
    %9057 = vmatpush1.bf16.msra.mxu0 %v6571
    %9058 = vmatprep.subr.bf16.mxu0 0
    %9059 = vmatpush1.bf16.msra.mxu0 %v6570
    %9060 = vmatprep.subr.bf16.mxu0 0
    %9061 = vmatpush1.bf16.msra.mxu0 %v6569
    %9062 = vmatprep.subr.bf16.mxu0 0
    %9063 = vmatpush1.bf16.msra.mxu0 %v6568
    %9064 = vmatprep.subr.bf16.mxu0 0
    %9065 = vmatpush1.bf16.msra.mxu0 %v6567
    %9066 = vmatprep.subr.bf16.mxu0 0
    %9067 = vmatpush2.bf16.msra.mxu0 %v6582
    %9068 = vmatprep.subr.bf16.mxu0 0
    %9069 = vmatpush2.bf16.msra.mxu0 %v6581
    %9070 = vmatprep.subr.bf16.mxu0 0
    %9071 = vmatpush2.bf16.msra.mxu0 %v6580
    %9072 = vmatprep.subr.bf16.mxu0 0
    %9073 = vmatpush2.bf16.msra.mxu0 %v6579
    %9074 = vmatprep.subr.bf16.mxu0 0
    %9075 = vmatpush2.bf16.msra.mxu0 %v6578
    %9076 = vmatprep.subr.bf16.mxu0 0
    %9077 = vmatpush2.bf16.msra.mxu0 %v6577
    %9078 = vmatprep.subr.bf16.mxu0 0
    %9079 = vmatpush2.bf16.msra.mxu0 %v6576
    %9080 = vmatprep.subr.bf16.mxu0 0
    %9081 = vmatpush2.bf16.msra.mxu0 %v6575
    %9082 = vmatprep.mubr.bf16.mxu0 %v2233
    %9083 = vmatmul.mubr.bf16.gmra.mxu0 %v2232
    %v9084 = vpop.f32.mrf.mxu0
    %v9085 = vadd.f32 %v9045, %v9084
    %v9086 = vpop.f32.mrf.mxu0
    %v9087 = vpop.f32.mrf.mxu0
    %v9088 = vpop.f32.mrf.mxu0
    %9089 = vdwg.mxu0
    %9090 = vmatprep.subr.bf16.mxu0 0
    %9091 = vmatpush1.bf16.msra.mxu0 %v6590
    %9092 = vmatprep.subr.bf16.mxu0 0
    %9093 = vmatpush1.bf16.msra.mxu0 %v6589
    %9094 = vmatprep.subr.bf16.mxu0 0
    %9095 = vmatpush1.bf16.msra.mxu0 %v6588
    %9096 = vmatprep.subr.bf16.mxu0 0
    %9097 = vmatpush1.bf16.msra.mxu0 %v6587
    %9098 = vmatprep.subr.bf16.mxu0 0
    %9099 = vmatpush1.bf16.msra.mxu0 %v6586
    %9100 = vmatprep.subr.bf16.mxu0 0
    %9101 = vmatpush1.bf16.msra.mxu0 %v6585
    %9102 = vmatprep.subr.bf16.mxu0 0
    %9103 = vmatpush1.bf16.msra.mxu0 %v6584
    %9104 = vmatprep.subr.bf16.mxu0 0
    %9105 = vmatpush1.bf16.msra.mxu0 %v6583
    %9106 = vmatprep.subr.bf16.mxu0 0
    %9107 = vmatpush2.bf16.msra.mxu0 %v6598
    %9108 = vmatprep.subr.bf16.mxu0 0
    %9109 = vmatpush2.bf16.msra.mxu0 %v6597
    %9110 = vmatprep.subr.bf16.mxu0 0
    %9111 = vmatpush2.bf16.msra.mxu0 %v6596
    %9112 = vmatprep.subr.bf16.mxu0 0
    %9113 = vmatpush2.bf16.msra.mxu0 %v6595
    %9114 = vmatprep.subr.bf16.mxu0 0
    %9115 = vmatpush2.bf16.msra.mxu0 %v6594
    %9116 = vmatprep.subr.bf16.mxu0 0
    %9117 = vmatpush2.bf16.msra.mxu0 %v6593
    %9118 = vmatprep.subr.bf16.mxu0 0
    %9119 = vmatpush2.bf16.msra.mxu0 %v6592
    %9120 = vmatprep.subr.bf16.mxu0 0
    %9121 = vmatpush2.bf16.msra.mxu0 %v6591
    %9122 = vmatprep.mubr.bf16.mxu0 %v2235
    %9123 = vmatmul.mubr.bf16.gmra.mxu0 %v2234
    %v9124 = vpop.f32.mrf.mxu0
    %v9125 = vadd.f32 %v9085, %v9124
    %v9126 = vpop.f32.mrf.mxu0
    %v9127 = vpop.f32.mrf.mxu0
    %v9128 = vpop.f32.mrf.mxu0
    %9129 = vdwg.mxu0
    %9130 = vmatprep.subr.bf16.mxu0 0
    %9131 = vmatpush1.bf16.msra.mxu0 %v6606
    %9132 = vmatprep.subr.bf16.mxu0 0
    %9133 = vmatpush1.bf16.msra.mxu0 %v6605
    %9134 = vmatprep.subr.bf16.mxu0 0
    %9135 = vmatpush1.bf16.msra.mxu0 %v6604
    %9136 = vmatprep.subr.bf16.mxu0 0
    %9137 = vmatpush1.bf16.msra.mxu0 %v6603
    %9138 = vmatprep.subr.bf16.mxu0 0
    %9139 = vmatpush1.bf16.msra.mxu0 %v6602
    %9140 = vmatprep.subr.bf16.mxu0 0
    %9141 = vmatpush1.bf16.msra.mxu0 %v6601
    %9142 = vmatprep.subr.bf16.mxu0 0
    %9143 = vmatpush1.bf16.msra.mxu0 %v6600
    %9144 = vmatprep.subr.bf16.mxu0 0
    %9145 = vmatpush1.bf16.msra.mxu0 %v6599
    %9146 = vmatprep.subr.bf16.mxu0 0
    %9147 = vmatpush2.bf16.msra.mxu0 %v6614
    %9148 = vmatprep.subr.bf16.mxu0 0
    %9149 = vmatpush2.bf16.msra.mxu0 %v6613
    %9150 = vmatprep.subr.bf16.mxu0 0
    %9151 = vmatpush2.bf16.msra.mxu0 %v6612
    %9152 = vmatprep.subr.bf16.mxu0 0
    %9153 = vmatpush2.bf16.msra.mxu0 %v6611
    %9154 = vmatprep.subr.bf16.mxu0 0
    %9155 = vmatpush2.bf16.msra.mxu0 %v6610
    %9156 = vmatprep.subr.bf16.mxu0 0
    %9157 = vmatpush2.bf16.msra.mxu0 %v6609
    %9158 = vmatprep.subr.bf16.mxu0 0
    %9159 = vmatpush2.bf16.msra.mxu0 %v6608
    %9160 = vmatprep.subr.bf16.mxu0 0
    %9161 = vmatpush2.bf16.msra.mxu0 %v6607
    %9162 = vmatprep.mubr.bf16.mxu0 %v2237
    %9163 = vmatmul.mubr.bf16.gmra.mxu0 %v2236
    %v9164 = vpop.f32.mrf.mxu0
    %v9165 = vadd.f32 %v9125, %v9164
    %v9166 = vpop.f32.mrf.mxu0
    %v9167 = vpop.f32.mrf.mxu0
    %v9168 = vpop.f32.mrf.mxu0
    %9169 = vdwg.mxu0
    %9170 = vmatprep.subr.bf16.mxu0 0
    %9171 = vmatpush1.bf16.msra.mxu0 %v6622
    %9172 = vmatprep.subr.bf16.mxu0 0
    %9173 = vmatpush1.bf16.msra.mxu0 %v6621
    %9174 = vmatprep.subr.bf16.mxu0 0
    %9175 = vmatpush1.bf16.msra.mxu0 %v6620
    %9176 = vmatprep.subr.bf16.mxu0 0
    %9177 = vmatpush1.bf16.msra.mxu0 %v6619
    %9178 = vmatprep.subr.bf16.mxu0 0
    %9179 = vmatpush1.bf16.msra.mxu0 %v6618
    %9180 = vmatprep.subr.bf16.mxu0 0
    %9181 = vmatpush1.bf16.msra.mxu0 %v6617
    %9182 = vmatprep.subr.bf16.mxu0 0
    %9183 = vmatpush1.bf16.msra.mxu0 %v6616
    %9184 = vmatprep.subr.bf16.mxu0 0
    %9185 = vmatpush1.bf16.msra.mxu0 %v6615
    %9186 = vmatprep.subr.bf16.mxu0 0
    %9187 = vmatpush2.bf16.msra.mxu0 %v6630
    %9188 = vmatprep.subr.bf16.mxu0 0
    %9189 = vmatpush2.bf16.msra.mxu0 %v6629
    %9190 = vmatprep.subr.bf16.mxu0 0
    %9191 = vmatpush2.bf16.msra.mxu0 %v6628
    %9192 = vmatprep.subr.bf16.mxu0 0
    %9193 = vmatpush2.bf16.msra.mxu0 %v6627
    %9194 = vmatprep.subr.bf16.mxu0 0
    %9195 = vmatpush2.bf16.msra.mxu0 %v6626
    %9196 = vmatprep.subr.bf16.mxu0 0
    %9197 = vmatpush2.bf16.msra.mxu0 %v6625
    %9198 = vmatprep.subr.bf16.mxu0 0
    %9199 = vmatpush2.bf16.msra.mxu0 %v6624
    %9200 = vmatprep.subr.bf16.mxu0 0
    %9201 = vmatpush2.bf16.msra.mxu0 %v6623
    %9202 = vmatprep.mubr.bf16.mxu0 %v2239
    %9203 = vmatmul.mubr.bf16.gmra.mxu0 %v2238
    %v9204 = vpop.f32.mrf.mxu0
    %v9205 = vadd.f32 %v9165, %v9204
    %v9206 = vpop.f32.mrf.mxu0
    %v9207 = vpop.f32.mrf.mxu0
    %v9208 = vpop.f32.mrf.mxu0
    %9209 = vdwg.mxu0
    %9210 = vmatprep.subr.bf16.mxu0 0
    %9211 = vmatpush1.bf16.msra.mxu0 %v6638
    %9212 = vmatprep.subr.bf16.mxu0 0
    %9213 = vmatpush1.bf16.msra.mxu0 %v6637
    %9214 = vmatprep.subr.bf16.mxu0 0
    %9215 = vmatpush1.bf16.msra.mxu0 %v6636
    %9216 = vmatprep.subr.bf16.mxu0 0
    %9217 = vmatpush1.bf16.msra.mxu0 %v6635
    %9218 = vmatprep.subr.bf16.mxu0 0
    %9219 = vmatpush1.bf16.msra.mxu0 %v6634
    %9220 = vmatprep.subr.bf16.mxu0 0
    %9221 = vmatpush1.bf16.msra.mxu0 %v6633
    %9222 = vmatprep.subr.bf16.mxu0 0
    %9223 = vmatpush1.bf16.msra.mxu0 %v6632
    %9224 = vmatprep.subr.bf16.mxu0 0
    %9225 = vmatpush1.bf16.msra.mxu0 %v6631
    %9226 = vmatprep.subr.bf16.mxu0 0
    %9227 = vmatpush2.bf16.msra.mxu0 %v6646
    %9228 = vmatprep.subr.bf16.mxu0 0
    %9229 = vmatpush2.bf16.msra.mxu0 %v6645
    %9230 = vmatprep.subr.bf16.mxu0 0
    %9231 = vmatpush2.bf16.msra.mxu0 %v6644
    %9232 = vmatprep.subr.bf16.mxu0 0
    %9233 = vmatpush2.bf16.msra.mxu0 %v6643
    %9234 = vmatprep.subr.bf16.mxu0 0
    %9235 = vmatpush2.bf16.msra.mxu0 %v6642
    %9236 = vmatprep.subr.bf16.mxu0 0
    %9237 = vmatpush2.bf16.msra.mxu0 %v6641
    %9238 = vmatprep.subr.bf16.mxu0 0
    %9239 = vmatpush2.bf16.msra.mxu0 %v6640
    %9240 = vmatprep.subr.bf16.mxu0 0
    %9241 = vmatpush2.bf16.msra.mxu0 %v6639
    %9242 = vmatprep.mubr.bf16.mxu0 %v2241
    %9243 = vmatmul.mubr.bf16.gmra.mxu0 %v2240
    %v9244 = vpop.f32.mrf.mxu0
    %v9245 = vadd.f32 %v9205, %v9244
    %v9246 = vpop.f32.mrf.mxu0
    %v9247 = vpop.f32.mrf.mxu0
    %v9248 = vpop.f32.mrf.mxu0
    %9249 = vdwg.mxu0
    %9250 = vmatprep.subr.bf16.mxu0 0
    %9251 = vmatpush1.bf16.msra.mxu0 %v6654
    %9252 = vmatprep.subr.bf16.mxu0 0
    %9253 = vmatpush1.bf16.msra.mxu0 %v6653
    %9254 = vmatprep.subr.bf16.mxu0 0
    %9255 = vmatpush1.bf16.msra.mxu0 %v6652
    %9256 = vmatprep.subr.bf16.mxu0 0
    %9257 = vmatpush1.bf16.msra.mxu0 %v6651
    %9258 = vmatprep.subr.bf16.mxu0 0
    %9259 = vmatpush1.bf16.msra.mxu0 %v6650
    %9260 = vmatprep.subr.bf16.mxu0 0
    %9261 = vmatpush1.bf16.msra.mxu0 %v6649
    %9262 = vmatprep.subr.bf16.mxu0 0
    %9263 = vmatpush1.bf16.msra.mxu0 %v6648
    %9264 = vmatprep.subr.bf16.mxu0 0
    %9265 = vmatpush1.bf16.msra.mxu0 %v6647
    %9266 = vmatprep.subr.bf16.mxu0 0
    %9267 = vmatpush2.bf16.msra.mxu0 %v6662
    %9268 = vmatprep.subr.bf16.mxu0 0
    %9269 = vmatpush2.bf16.msra.mxu0 %v6661
    %9270 = vmatprep.subr.bf16.mxu0 0
    %9271 = vmatpush2.bf16.msra.mxu0 %v6660
    %9272 = vmatprep.subr.bf16.mxu0 0
    %9273 = vmatpush2.bf16.msra.mxu0 %v6659
    %9274 = vmatprep.subr.bf16.mxu0 0
    %9275 = vmatpush2.bf16.msra.mxu0 %v6658
    %9276 = vmatprep.subr.bf16.mxu0 0
    %9277 = vmatpush2.bf16.msra.mxu0 %v6657
    %9278 = vmatprep.subr.bf16.mxu0 0
    %9279 = vmatpush2.bf16.msra.mxu0 %v6656
    %9280 = vmatprep.subr.bf16.mxu0 0
    %9281 = vmatpush2.bf16.msra.mxu0 %v6655
    %9282 = vmatprep.mubr.bf16.mxu0 %v2243
    %9283 = vmatmul.mubr.bf16.gmra.mxu0 %v2242
    %v9284 = vpop.f32.mrf.mxu0
    %v9285 = vadd.f32 %v9245, %v9284
    %v9286 = vpop.f32.mrf.mxu0
    %v9287 = vpop.f32.mrf.mxu0
    %v9288 = vpop.f32.mrf.mxu0
    %9289 = vdwg.mxu0
    %9290 = vmatprep.subr.bf16.mxu0 0
    %9291 = vmatpush1.bf16.msra.mxu0 %v6670
    %9292 = vmatprep.subr.bf16.mxu0 0
    %9293 = vmatpush1.bf16.msra.mxu0 %v6669
    %9294 = vmatprep.subr.bf16.mxu0 0
    %9295 = vmatpush1.bf16.msra.mxu0 %v6668
    %9296 = vmatprep.subr.bf16.mxu0 0
    %9297 = vmatpush1.bf16.msra.mxu0 %v6667
    %9298 = vmatprep.subr.bf16.mxu0 0
    %9299 = vmatpush1.bf16.msra.mxu0 %v6666
    %9300 = vmatprep.subr.bf16.mxu0 0
    %9301 = vmatpush1.bf16.msra.mxu0 %v6665
    %9302 = vmatprep.subr.bf16.mxu0 0
    %9303 = vmatpush1.bf16.msra.mxu0 %v6664
    %9304 = vmatprep.subr.bf16.mxu0 0
    %9305 = vmatpush1.bf16.msra.mxu0 %v6663
    %9306 = vmatprep.subr.bf16.mxu0 0
    %9307 = vmatpush2.bf16.msra.mxu0 %v6678
    %9308 = vmatprep.subr.bf16.mxu0 0
    %9309 = vmatpush2.bf16.msra.mxu0 %v6677
    %9310 = vmatprep.subr.bf16.mxu0 0
    %9311 = vmatpush2.bf16.msra.mxu0 %v6676
    %9312 = vmatprep.subr.bf16.mxu0 0
    %9313 = vmatpush2.bf16.msra.mxu0 %v6675
    %9314 = vmatprep.subr.bf16.mxu0 0
    %9315 = vmatpush2.bf16.msra.mxu0 %v6674
    %9316 = vmatprep.subr.bf16.mxu0 0
    %9317 = vmatpush2.bf16.msra.mxu0 %v6673
    %9318 = vmatprep.subr.bf16.mxu0 0
    %9319 = vmatpush2.bf16.msra.mxu0 %v6672
    %9320 = vmatprep.subr.bf16.mxu0 0
    %9321 = vmatpush2.bf16.msra.mxu0 %v6671
    %9322 = vmatprep.mubr.bf16.mxu0 %v2245
    %9323 = vmatmul.mubr.bf16.gmra.mxu0 %v2244
    %v9324 = vpop.f32.mrf.mxu0
    %v9325 = vadd.f32 %v9285, %v9324
    %v9326 = vpop.f32.mrf.mxu0
    %v9327 = vpop.f32.mrf.mxu0
    %v9328 = vpop.f32.mrf.mxu0
    %9329 = vdwg.mxu0
    %9330 = vmatprep.subr.bf16.mxu0 0
    %9331 = vmatpush1.bf16.msra.mxu0 %v6686
    %9332 = vmatprep.subr.bf16.mxu0 0
    %9333 = vmatpush1.bf16.msra.mxu0 %v6685
    %9334 = vmatprep.subr.bf16.mxu0 0
    %9335 = vmatpush1.bf16.msra.mxu0 %v6684
    %9336 = vmatprep.subr.bf16.mxu0 0
    %9337 = vmatpush1.bf16.msra.mxu0 %v6683
    %9338 = vmatprep.subr.bf16.mxu0 0
    %9339 = vmatpush1.bf16.msra.mxu0 %v6682
    %9340 = vmatprep.subr.bf16.mxu0 0
    %9341 = vmatpush1.bf16.msra.mxu0 %v6681
    %9342 = vmatprep.subr.bf16.mxu0 0
    %9343 = vmatpush1.bf16.msra.mxu0 %v6680
    %9344 = vmatprep.subr.bf16.mxu0 0
    %9345 = vmatpush1.bf16.msra.mxu0 %v6679
    %9346 = vmatprep.subr.bf16.mxu0 0
    %9347 = vmatpush2.bf16.msra.mxu0 %v6694
    %9348 = vmatprep.subr.bf16.mxu0 0
    %9349 = vmatpush2.bf16.msra.mxu0 %v6693
    %9350 = vmatprep.subr.bf16.mxu0 0
    %9351 = vmatpush2.bf16.msra.mxu0 %v6692
    %9352 = vmatprep.subr.bf16.mxu0 0
    %9353 = vmatpush2.bf16.msra.mxu0 %v6691
    %9354 = vmatprep.subr.bf16.mxu0 0
    %9355 = vmatpush2.bf16.msra.mxu0 %v6690
    %9356 = vmatprep.subr.bf16.mxu0 0
    %9357 = vmatpush2.bf16.msra.mxu0 %v6689
    %9358 = vmatprep.subr.bf16.mxu0 0
    %9359 = vmatpush2.bf16.msra.mxu0 %v6688
    %9360 = vmatprep.subr.bf16.mxu0 0
    %9361 = vmatpush2.bf16.msra.mxu0 %v6687
    %9362 = vmatprep.mubr.bf16.mxu0 %v2247
    %9363 = vmatmul.mubr.bf16.gmra.mxu0 %v2246
    %v9364 = vpop.f32.mrf.mxu0
    %v9365 = vadd.f32 %v9325, %v9364
    %v9366 = vpop.f32.mrf.mxu0
    %v9367 = vpop.f32.mrf.mxu0
    %v9368 = vpop.f32.mrf.mxu0
    %9369 = vdwg.mxu0
    %9370 = vmatprep.subr.bf16.mxu0 0
    %9371 = vmatpush1.bf16.msra.mxu0 %v6702
    %9372 = vmatprep.subr.bf16.mxu0 0
    %9373 = vmatpush1.bf16.msra.mxu0 %v6701
    %9374 = vmatprep.subr.bf16.mxu0 0
    %9375 = vmatpush1.bf16.msra.mxu0 %v6700
    %9376 = vmatprep.subr.bf16.mxu0 0
    %9377 = vmatpush1.bf16.msra.mxu0 %v6699
    %9378 = vmatprep.subr.bf16.mxu0 0
    %9379 = vmatpush1.bf16.msra.mxu0 %v6698
    %9380 = vmatprep.subr.bf16.mxu0 0
    %9381 = vmatpush1.bf16.msra.mxu0 %v6697
    %9382 = vmatprep.subr.bf16.mxu0 0
    %9383 = vmatpush1.bf16.msra.mxu0 %v6696
    %9384 = vmatprep.subr.bf16.mxu0 0
    %9385 = vmatpush1.bf16.msra.mxu0 %v6695
    %9386 = vmatprep.subr.bf16.mxu0 0
    %9387 = vmatpush2.bf16.msra.mxu0 %v6710
    %9388 = vmatprep.subr.bf16.mxu0 0
    %9389 = vmatpush2.bf16.msra.mxu0 %v6709
    %9390 = vmatprep.subr.bf16.mxu0 0
    %9391 = vmatpush2.bf16.msra.mxu0 %v6708
    %9392 = vmatprep.subr.bf16.mxu0 0
    %9393 = vmatpush2.bf16.msra.mxu0 %v6707
    %9394 = vmatprep.subr.bf16.mxu0 0
    %9395 = vmatpush2.bf16.msra.mxu0 %v6706
    %9396 = vmatprep.subr.bf16.mxu0 0
    %9397 = vmatpush2.bf16.msra.mxu0 %v6705
    %9398 = vmatprep.subr.bf16.mxu0 0
    %9399 = vmatpush2.bf16.msra.mxu0 %v6704
    %9400 = vmatprep.subr.bf16.mxu0 0
    %9401 = vmatpush2.bf16.msra.mxu0 %v6703
    %9402 = vmatprep.mubr.bf16.mxu0 %v2249
    %9403 = vmatmul.mubr.bf16.gmra.mxu0 %v2248
    %v9404 = vpop.f32.mrf.mxu0
    %v9405 = vadd.f32 %v9365, %v9404
    %v9406 = vpop.f32.mrf.mxu0
    %v9407 = vpop.f32.mrf.mxu0
    %v9408 = vpop.f32.mrf.mxu0
    %9409 = vdwg.mxu0
    %9410 = vmatprep.subr.bf16.mxu0 0
    %9411 = vmatpush1.bf16.msra.mxu0 %v6718
    %9412 = vmatprep.subr.bf16.mxu0 0
    %9413 = vmatpush1.bf16.msra.mxu0 %v6717
    %9414 = vmatprep.subr.bf16.mxu0 0
    %9415 = vmatpush1.bf16.msra.mxu0 %v6716
    %9416 = vmatprep.subr.bf16.mxu0 0
    %9417 = vmatpush1.bf16.msra.mxu0 %v6715
    %9418 = vmatprep.subr.bf16.mxu0 0
    %9419 = vmatpush1.bf16.msra.mxu0 %v6714
    %9420 = vmatprep.subr.bf16.mxu0 0
    %9421 = vmatpush1.bf16.msra.mxu0 %v6713
    %9422 = vmatprep.subr.bf16.mxu0 0
    %9423 = vmatpush1.bf16.msra.mxu0 %v6712
    %9424 = vmatprep.subr.bf16.mxu0 0
    %9425 = vmatpush1.bf16.msra.mxu0 %v6711
    %9426 = vmatprep.subr.bf16.mxu0 0
    %9427 = vmatpush2.bf16.msra.mxu0 %v6726
    %9428 = vmatprep.subr.bf16.mxu0 0
    %9429 = vmatpush2.bf16.msra.mxu0 %v6725
    %9430 = vmatprep.subr.bf16.mxu0 0
    %9431 = vmatpush2.bf16.msra.mxu0 %v6724
    %9432 = vmatprep.subr.bf16.mxu0 0
    %9433 = vmatpush2.bf16.msra.mxu0 %v6723
    %9434 = vmatprep.subr.bf16.mxu0 0
    %9435 = vmatpush2.bf16.msra.mxu0 %v6722
    %9436 = vmatprep.subr.bf16.mxu0 0
    %9437 = vmatpush2.bf16.msra.mxu0 %v6721
    %9438 = vmatprep.subr.bf16.mxu0 0
    %9439 = vmatpush2.bf16.msra.mxu0 %v6720
    %9440 = vmatprep.subr.bf16.mxu0 0
    %9441 = vmatpush2.bf16.msra.mxu0 %v6719
    %9442 = vmatprep.mubr.bf16.mxu0 %v2251
    %9443 = vmatmul.mubr.bf16.gmra.mxu0 %v2250
    %v9444 = vpop.f32.mrf.mxu0
    %v9445 = vadd.f32 %v9405, %v9444
    %v9446 = vpop.f32.mrf.mxu0
    %v9447 = vpop.f32.mrf.mxu0
    %v9448 = vpop.f32.mrf.mxu0
    %9449 = vdwg.mxu0
    %9450 = vmatprep.subr.bf16.mxu0 0
    %9451 = vmatpush1.bf16.msra.mxu0 %v6734
    %9452 = vmatprep.subr.bf16.mxu0 0
    %9453 = vmatpush1.bf16.msra.mxu0 %v6733
    %9454 = vmatprep.subr.bf16.mxu0 0
    %9455 = vmatpush1.bf16.msra.mxu0 %v6732
    %9456 = vmatprep.subr.bf16.mxu0 0
    %9457 = vmatpush1.bf16.msra.mxu0 %v6731
    %9458 = vmatprep.subr.bf16.mxu0 0
    %9459 = vmatpush1.bf16.msra.mxu0 %v6730
    %9460 = vmatprep.subr.bf16.mxu0 0
    %9461 = vmatpush1.bf16.msra.mxu0 %v6729
    %9462 = vmatprep.subr.bf16.mxu0 0
    %9463 = vmatpush1.bf16.msra.mxu0 %v6728
    %9464 = vmatprep.subr.bf16.mxu0 0
    %9465 = vmatpush1.bf16.msra.mxu0 %v6727
    %9466 = vmatprep.subr.bf16.mxu0 0
    %9467 = vmatpush2.bf16.msra.mxu0 %v6742
    %9468 = vmatprep.subr.bf16.mxu0 0
    %9469 = vmatpush2.bf16.msra.mxu0 %v6741
    %9470 = vmatprep.subr.bf16.mxu0 0
    %9471 = vmatpush2.bf16.msra.mxu0 %v6740
    %9472 = vmatprep.subr.bf16.mxu0 0
    %9473 = vmatpush2.bf16.msra.mxu0 %v6739
    %9474 = vmatprep.subr.bf16.mxu0 0
    %9475 = vmatpush2.bf16.msra.mxu0 %v6738
    %9476 = vmatprep.subr.bf16.mxu0 0
    %9477 = vmatpush2.bf16.msra.mxu0 %v6737
    %9478 = vmatprep.subr.bf16.mxu0 0
    %9479 = vmatpush2.bf16.msra.mxu0 %v6736
    %9480 = vmatprep.subr.bf16.mxu0 0
    %9481 = vmatpush2.bf16.msra.mxu0 %v6735
    %9482 = vmatprep.mubr.bf16.mxu0 %v2253
    %9483 = vmatmul.mubr.bf16.gmra.mxu0 %v2252
    %v9484 = vpop.f32.mrf.mxu0
    %v9485 = vadd.f32 %v9445, %v9484
    %v9486 = vpop.f32.mrf.mxu0
    %v9487 = vpop.f32.mrf.mxu0
    %v9488 = vpop.f32.mrf.mxu0
    %9489 = vdwg.mxu0
    %9490 = vmatprep.subr.bf16.mxu0 0
    %9491 = vmatpush1.bf16.msra.mxu0 %v6750
    %9492 = vmatprep.subr.bf16.mxu0 0
    %9493 = vmatpush1.bf16.msra.mxu0 %v6749
    %9494 = vmatprep.subr.bf16.mxu0 0
    %9495 = vmatpush1.bf16.msra.mxu0 %v6748
    %9496 = vmatprep.subr.bf16.mxu0 0
    %9497 = vmatpush1.bf16.msra.mxu0 %v6747
    %9498 = vmatprep.subr.bf16.mxu0 0
    %9499 = vmatpush1.bf16.msra.mxu0 %v6746
    %9500 = vmatprep.subr.bf16.mxu0 0
    %9501 = vmatpush1.bf16.msra.mxu0 %v6745
    %9502 = vmatprep.subr.bf16.mxu0 0
    %9503 = vmatpush1.bf16.msra.mxu0 %v6744
    %9504 = vmatprep.subr.bf16.mxu0 0
    %9505 = vmatpush1.bf16.msra.mxu0 %v6743
    %9506 = vmatprep.subr.bf16.mxu0 0
    %9507 = vmatpush2.bf16.msra.mxu0 %v6758
    %9508 = vmatprep.subr.bf16.mxu0 0
    %9509 = vmatpush2.bf16.msra.mxu0 %v6757
    %9510 = vmatprep.subr.bf16.mxu0 0
    %9511 = vmatpush2.bf16.msra.mxu0 %v6756
    %9512 = vmatprep.subr.bf16.mxu0 0
    %9513 = vmatpush2.bf16.msra.mxu0 %v6755
    %9514 = vmatprep.subr.bf16.mxu0 0
    %9515 = vmatpush2.bf16.msra.mxu0 %v6754
    %9516 = vmatprep.subr.bf16.mxu0 0
    %9517 = vmatpush2.bf16.msra.mxu0 %v6753
    %9518 = vmatprep.subr.bf16.mxu0 0
    %9519 = vmatpush2.bf16.msra.mxu0 %v6752
    %9520 = vmatprep.subr.bf16.mxu0 0
    %9521 = vmatpush2.bf16.msra.mxu0 %v6751
    %9522 = vmatprep.mubr.bf16.mxu0 %v2255
    %9523 = vmatmul.mubr.bf16.gmra.mxu0 %v2254
    %v9524 = vpop.f32.mrf.mxu0
    %v9525 = vadd.f32 %v9485, %v9524
    %v9526 = vpop.f32.mrf.mxu0
    %v9527 = vpop.f32.mrf.mxu0
    %v9528 = vpop.f32.mrf.mxu0
    %9529 = vdwg.mxu0
    %9530 = vmatprep.subr.bf16.mxu0 0
    %9531 = vmatpush1.bf16.msra.mxu0 %v6766
    %9532 = vmatprep.subr.bf16.mxu0 0
    %9533 = vmatpush1.bf16.msra.mxu0 %v6765
    %9534 = vmatprep.subr.bf16.mxu0 0
    %9535 = vmatpush1.bf16.msra.mxu0 %v6764
    %9536 = vmatprep.subr.bf16.mxu0 0
    %9537 = vmatpush1.bf16.msra.mxu0 %v6763
    %9538 = vmatprep.subr.bf16.mxu0 0
    %9539 = vmatpush1.bf16.msra.mxu0 %v6762
    %9540 = vmatprep.subr.bf16.mxu0 0
    %9541 = vmatpush1.bf16.msra.mxu0 %v6761
    %9542 = vmatprep.subr.bf16.mxu0 0
    %9543 = vmatpush1.bf16.msra.mxu0 %v6760
    %9544 = vmatprep.subr.bf16.mxu0 0
    %9545 = vmatpush1.bf16.msra.mxu0 %v6759
    %9546 = vmatprep.subr.bf16.mxu0 0
    %9547 = vmatpush2.bf16.msra.mxu0 %v6774
    %9548 = vmatprep.subr.bf16.mxu0 0
    %9549 = vmatpush2.bf16.msra.mxu0 %v6773
    %9550 = vmatprep.subr.bf16.mxu0 0
    %9551 = vmatpush2.bf16.msra.mxu0 %v6772
    %9552 = vmatprep.subr.bf16.mxu0 0
    %9553 = vmatpush2.bf16.msra.mxu0 %v6771
    %9554 = vmatprep.subr.bf16.mxu0 0
    %9555 = vmatpush2.bf16.msra.mxu0 %v6770
    %9556 = vmatprep.subr.bf16.mxu0 0
    %9557 = vmatpush2.bf16.msra.mxu0 %v6769
    %9558 = vmatprep.subr.bf16.mxu0 0
    %9559 = vmatpush2.bf16.msra.mxu0 %v6768
    %9560 = vmatprep.subr.bf16.mxu0 0
    %9561 = vmatpush2.bf16.msra.mxu0 %v6767
    %9562 = vmatprep.mubr.bf16.mxu0 %v2257
    %9563 = vmatmul.mubr.bf16.gmra.mxu0 %v2256
    %v9564 = vpop.f32.mrf.mxu0
    %v9565 = vadd.f32 %v9525, %v9564
    %v9566 = vpop.f32.mrf.mxu0
    %v9567 = vpop.f32.mrf.mxu0
    %v9568 = vpop.f32.mrf.mxu0
    %9569 = vdwg.mxu0
    %9570 = vmatprep.subr.bf16.mxu0 0
    %9571 = vmatpush1.bf16.msra.mxu0 %v6782
    %9572 = vmatprep.subr.bf16.mxu0 0
    %9573 = vmatpush1.bf16.msra.mxu0 %v6781
    %9574 = vmatprep.subr.bf16.mxu0 0
    %9575 = vmatpush1.bf16.msra.mxu0 %v6780
    %9576 = vmatprep.subr.bf16.mxu0 0
    %9577 = vmatpush1.bf16.msra.mxu0 %v6779
    %9578 = vmatprep.subr.bf16.mxu0 0
    %9579 = vmatpush1.bf16.msra.mxu0 %v6778
    %9580 = vmatprep.subr.bf16.mxu0 0
    %9581 = vmatpush1.bf16.msra.mxu0 %v6777
    %9582 = vmatprep.subr.bf16.mxu0 0
    %9583 = vmatpush1.bf16.msra.mxu0 %v6776
    %9584 = vmatprep.subr.bf16.mxu0 0
    %9585 = vmatpush1.bf16.msra.mxu0 %v6775
    %9586 = vmatprep.subr.bf16.mxu0 0
    %9587 = vmatpush2.bf16.msra.mxu0 %v6790
    %9588 = vmatprep.subr.bf16.mxu0 0
    %9589 = vmatpush2.bf16.msra.mxu0 %v6789
    %9590 = vmatprep.subr.bf16.mxu0 0
    %9591 = vmatpush2.bf16.msra.mxu0 %v6788
    %9592 = vmatprep.subr.bf16.mxu0 0
    %9593 = vmatpush2.bf16.msra.mxu0 %v6787
    %9594 = vmatprep.subr.bf16.mxu0 0
    %9595 = vmatpush2.bf16.msra.mxu0 %v6786
    %9596 = vmatprep.subr.bf16.mxu0 0
    %9597 = vmatpush2.bf16.msra.mxu0 %v6785
    %9598 = vmatprep.subr.bf16.mxu0 0
    %9599 = vmatpush2.bf16.msra.mxu0 %v6784
    %9600 = vmatprep.subr.bf16.mxu0 0
    %9601 = vmatpush2.bf16.msra.mxu0 %v6783
    %9602 = vmatprep.mubr.bf16.mxu0 %v2259
    %9603 = vmatmul.mubr.bf16.gmra.mxu0 %v2258
    %v9604 = vpop.f32.mrf.mxu0
    %v9605 = vadd.f32 %v9565, %v9604
    %v9606 = vpop.f32.mrf.mxu0
    %v9607 = vpop.f32.mrf.mxu0
    %v9608 = vpop.f32.mrf.mxu0
    %9609 = vdwg.mxu0
    %9610 = vmatprep.subr.bf16.mxu0 0
    %9611 = vmatpush1.bf16.msra.mxu0 %v6798
    %9612 = vmatprep.subr.bf16.mxu0 0
    %9613 = vmatpush1.bf16.msra.mxu0 %v6797
    %9614 = vmatprep.subr.bf16.mxu0 0
    %9615 = vmatpush1.bf16.msra.mxu0 %v6796
    %9616 = vmatprep.subr.bf16.mxu0 0
    %9617 = vmatpush1.bf16.msra.mxu0 %v6795
    %9618 = vmatprep.subr.bf16.mxu0 0
    %9619 = vmatpush1.bf16.msra.mxu0 %v6794
    %9620 = vmatprep.subr.bf16.mxu0 0
    %9621 = vmatpush1.bf16.msra.mxu0 %v6793
    %9622 = vmatprep.subr.bf16.mxu0 0
    %9623 = vmatpush1.bf16.msra.mxu0 %v6792
    %9624 = vmatprep.subr.bf16.mxu0 0
    %9625 = vmatpush1.bf16.msra.mxu0 %v6791
    %9626 = vmatprep.subr.bf16.mxu0 0
    %9627 = vmatpush2.bf16.msra.mxu0 %v6806
    %9628 = vmatprep.subr.bf16.mxu0 0
    %9629 = vmatpush2.bf16.msra.mxu0 %v6805
    %9630 = vmatprep.subr.bf16.mxu0 0
    %9631 = vmatpush2.bf16.msra.mxu0 %v6804
    %9632 = vmatprep.subr.bf16.mxu0 0
    %9633 = vmatpush2.bf16.msra.mxu0 %v6803
    %9634 = vmatprep.subr.bf16.mxu0 0
    %9635 = vmatpush2.bf16.msra.mxu0 %v6802
    %9636 = vmatprep.subr.bf16.mxu0 0
    %9637 = vmatpush2.bf16.msra.mxu0 %v6801
    %9638 = vmatprep.subr.bf16.mxu0 0
    %9639 = vmatpush2.bf16.msra.mxu0 %v6800
    %9640 = vmatprep.subr.bf16.mxu0 0
    %9641 = vmatpush2.bf16.msra.mxu0 %v6799
    %9642 = vmatprep.mubr.bf16.mxu0 %v2261
    %9643 = vmatmul.mubr.bf16.gmra.mxu0 %v2260
    %v9644 = vpop.f32.mrf.mxu0
    %v9645 = vadd.f32 %v9605, %v9644
    %v9646 = vpop.f32.mrf.mxu0
    %v9647 = vpop.f32.mrf.mxu0
    %v9648 = vpop.f32.mrf.mxu0
    %9649 = vdwg.mxu0
    %9650 = vmatprep.subr.bf16.mxu0 0
    %9651 = vmatpush1.bf16.msra.mxu0 %v6814
    %9652 = vmatprep.subr.bf16.mxu0 0
    %9653 = vmatpush1.bf16.msra.mxu0 %v6813
    %9654 = vmatprep.subr.bf16.mxu0 0
    %9655 = vmatpush1.bf16.msra.mxu0 %v6812
    %9656 = vmatprep.subr.bf16.mxu0 0
    %9657 = vmatpush1.bf16.msra.mxu0 %v6811
    %9658 = vmatprep.subr.bf16.mxu0 0
    %9659 = vmatpush1.bf16.msra.mxu0 %v6810
    %9660 = vmatprep.subr.bf16.mxu0 0
    %9661 = vmatpush1.bf16.msra.mxu0 %v6809
    %9662 = vmatprep.subr.bf16.mxu0 0
    %9663 = vmatpush1.bf16.msra.mxu0 %v6808
    %9664 = vmatprep.subr.bf16.mxu0 0
    %9665 = vmatpush1.bf16.msra.mxu0 %v6807
    %9666 = vmatprep.subr.bf16.mxu0 0
    %9667 = vmatpush2.bf16.msra.mxu0 %v6822
    %9668 = vmatprep.subr.bf16.mxu0 0
    %9669 = vmatpush2.bf16.msra.mxu0 %v6821
    %9670 = vmatprep.subr.bf16.mxu0 0
    %9671 = vmatpush2.bf16.msra.mxu0 %v6820
    %9672 = vmatprep.subr.bf16.mxu0 0
    %9673 = vmatpush2.bf16.msra.mxu0 %v6819
    %9674 = vmatprep.subr.bf16.mxu0 0
    %9675 = vmatpush2.bf16.msra.mxu0 %v6818
    %9676 = vmatprep.subr.bf16.mxu0 0
    %9677 = vmatpush2.bf16.msra.mxu0 %v6817
    %9678 = vmatprep.subr.bf16.mxu0 0
    %9679 = vmatpush2.bf16.msra.mxu0 %v6816
    %9680 = vmatprep.subr.bf16.mxu0 0
    %9681 = vmatpush2.bf16.msra.mxu0 %v6815
    %9682 = vmatprep.mubr.bf16.mxu0 %v2263
    %9683 = vmatmul.mubr.bf16.gmra.mxu0 %v2262
    %v9684 = vpop.f32.mrf.mxu0
    %v9685 = vadd.f32 %v9645, %v9684
    %v9686 = vpop.f32.mrf.mxu0
    %v9687 = vpop.f32.mrf.mxu0
    %v9688 = vpop.f32.mrf.mxu0
    %9689 = vdwg.mxu0
    %9690 = vmatprep.subr.bf16.mxu0 0
    %9691 = vmatpush1.bf16.msra.mxu0 %v6830
    %9692 = vmatprep.subr.bf16.mxu0 0
    %9693 = vmatpush1.bf16.msra.mxu0 %v6829
    %9694 = vmatprep.subr.bf16.mxu0 0
    %9695 = vmatpush1.bf16.msra.mxu0 %v6828
    %9696 = vmatprep.subr.bf16.mxu0 0
    %9697 = vmatpush1.bf16.msra.mxu0 %v6827
    %9698 = vmatprep.subr.bf16.mxu0 0
    %9699 = vmatpush1.bf16.msra.mxu0 %v6826
    %9700 = vmatprep.subr.bf16.mxu0 0
    %9701 = vmatpush1.bf16.msra.mxu0 %v6825
    %9702 = vmatprep.subr.bf16.mxu0 0
    %9703 = vmatpush1.bf16.msra.mxu0 %v6824
    %9704 = vmatprep.subr.bf16.mxu0 0
    %9705 = vmatpush1.bf16.msra.mxu0 %v6823
    %9706 = vmatprep.subr.bf16.mxu0 0
    %9707 = vmatpush2.bf16.msra.mxu0 %v6838
    %9708 = vmatprep.subr.bf16.mxu0 0
    %9709 = vmatpush2.bf16.msra.mxu0 %v6837
    %9710 = vmatprep.subr.bf16.mxu0 0
    %9711 = vmatpush2.bf16.msra.mxu0 %v6836
    %9712 = vmatprep.subr.bf16.mxu0 0
    %9713 = vmatpush2.bf16.msra.mxu0 %v6835
    %9714 = vmatprep.subr.bf16.mxu0 0
    %9715 = vmatpush2.bf16.msra.mxu0 %v6834
    %9716 = vmatprep.subr.bf16.mxu0 0
    %9717 = vmatpush2.bf16.msra.mxu0 %v6833
    %9718 = vmatprep.subr.bf16.mxu0 0
    %9719 = vmatpush2.bf16.msra.mxu0 %v6832
    %9720 = vmatprep.subr.bf16.mxu0 0
    %9721 = vmatpush2.bf16.msra.mxu0 %v6831
    %9722 = vmatprep.mubr.bf16.mxu0 %v2265
    %9723 = vmatmul.mubr.bf16.gmra.mxu0 %v2264
    %v9724 = vpop.f32.mrf.mxu0
    %v9725 = vadd.f32 %v9685, %v9724
    %v9726 = vpop.f32.mrf.mxu0
    %v9727 = vpop.f32.mrf.mxu0
    %v9728 = vpop.f32.mrf.mxu0
    %9729 = vdwg.mxu0
    %9730 = vmatprep.subr.bf16.mxu0 0
    %9731 = vmatpush1.bf16.msra.mxu0 %v6846
    %9732 = vmatprep.subr.bf16.mxu0 0
    %9733 = vmatpush1.bf16.msra.mxu0 %v6845
    %9734 = vmatprep.subr.bf16.mxu0 0
    %9735 = vmatpush1.bf16.msra.mxu0 %v6844
    %9736 = vmatprep.subr.bf16.mxu0 0
    %9737 = vmatpush1.bf16.msra.mxu0 %v6843
    %9738 = vmatprep.subr.bf16.mxu0 0
    %9739 = vmatpush1.bf16.msra.mxu0 %v6842
    %9740 = vmatprep.subr.bf16.mxu0 0
    %9741 = vmatpush1.bf16.msra.mxu0 %v6841
    %9742 = vmatprep.subr.bf16.mxu0 0
    %9743 = vmatpush1.bf16.msra.mxu0 %v6840
    %9744 = vmatprep.subr.bf16.mxu0 0
    %9745 = vmatpush1.bf16.msra.mxu0 %v6839
    %9746 = vmatprep.subr.bf16.mxu0 0
    %9747 = vmatpush2.bf16.msra.mxu0 %v6854
    %9748 = vmatprep.subr.bf16.mxu0 0
    %9749 = vmatpush2.bf16.msra.mxu0 %v6853
    %9750 = vmatprep.subr.bf16.mxu0 0
    %9751 = vmatpush2.bf16.msra.mxu0 %v6852
    %9752 = vmatprep.subr.bf16.mxu0 0
    %9753 = vmatpush2.bf16.msra.mxu0 %v6851
    %9754 = vmatprep.subr.bf16.mxu0 0
    %9755 = vmatpush2.bf16.msra.mxu0 %v6850
    %9756 = vmatprep.subr.bf16.mxu0 0
    %9757 = vmatpush2.bf16.msra.mxu0 %v6849
    %9758 = vmatprep.subr.bf16.mxu0 0
    %9759 = vmatpush2.bf16.msra.mxu0 %v6848
    %9760 = vmatprep.subr.bf16.mxu0 0
    %9761 = vmatpush2.bf16.msra.mxu0 %v6847
    %9762 = vmatprep.mubr.bf16.mxu0 %v2267
    %9763 = vmatmul.mubr.bf16.gmra.mxu0 %v2266
    %v9764 = vpop.f32.mrf.mxu0
    %v9765 = vadd.f32 %v9725, %v9764
    %v9766 = vpop.f32.mrf.mxu0
    %v9767 = vpop.f32.mrf.mxu0
    %v9768 = vpop.f32.mrf.mxu0
    %9769 = vdwg.mxu0
    %9770 = vmatprep.subr.bf16.mxu0 0
    %9771 = vmatpush1.bf16.msra.mxu0 %v6862
    %9772 = vmatprep.subr.bf16.mxu0 0
    %9773 = vmatpush1.bf16.msra.mxu0 %v6861
    %9774 = vmatprep.subr.bf16.mxu0 0
    %9775 = vmatpush1.bf16.msra.mxu0 %v6860
    %9776 = vmatprep.subr.bf16.mxu0 0
    %9777 = vmatpush1.bf16.msra.mxu0 %v6859
    %9778 = vmatprep.subr.bf16.mxu0 0
    %9779 = vmatpush1.bf16.msra.mxu0 %v6858
    %9780 = vmatprep.subr.bf16.mxu0 0
    %9781 = vmatpush1.bf16.msra.mxu0 %v6857
    %9782 = vmatprep.subr.bf16.mxu0 0
    %9783 = vmatpush1.bf16.msra.mxu0 %v6856
    %9784 = vmatprep.subr.bf16.mxu0 0
    %9785 = vmatpush1.bf16.msra.mxu0 %v6855
    %9786 = vmatprep.subr.bf16.mxu0 0
    %9787 = vmatpush2.bf16.msra.mxu0 %v6870
    %9788 = vmatprep.subr.bf16.mxu0 0
    %9789 = vmatpush2.bf16.msra.mxu0 %v6869
    %9790 = vmatprep.subr.bf16.mxu0 0
    %9791 = vmatpush2.bf16.msra.mxu0 %v6868
    %9792 = vmatprep.subr.bf16.mxu0 0
    %9793 = vmatpush2.bf16.msra.mxu0 %v6867
    %9794 = vmatprep.subr.bf16.mxu0 0
    %9795 = vmatpush2.bf16.msra.mxu0 %v6866
    %9796 = vmatprep.subr.bf16.mxu0 0
    %9797 = vmatpush2.bf16.msra.mxu0 %v6865
    %9798 = vmatprep.subr.bf16.mxu0 0
    %9799 = vmatpush2.bf16.msra.mxu0 %v6864
    %9800 = vmatprep.subr.bf16.mxu0 0
    %9801 = vmatpush2.bf16.msra.mxu0 %v6863
    %9802 = vmatprep.mubr.bf16.mxu0 %v2269
    %9803 = vmatmul.mubr.bf16.gmra.mxu0 %v2268
    %v9804 = vpop.f32.mrf.mxu0
    %v9805 = vadd.f32 %v9765, %v9804
    %v9806 = vpop.f32.mrf.mxu0
    %v9807 = vpop.f32.mrf.mxu0
    %v9808 = vpop.f32.mrf.mxu0
    %9809 = vdwg.mxu0
    %9810 = vmatprep.subr.bf16.mxu0 0
    %9811 = vmatpush1.bf16.msra.mxu0 %v6878
    %9812 = vmatprep.subr.bf16.mxu0 0
    %9813 = vmatpush1.bf16.msra.mxu0 %v6877
    %9814 = vmatprep.subr.bf16.mxu0 0
    %9815 = vmatpush1.bf16.msra.mxu0 %v6876
    %9816 = vmatprep.subr.bf16.mxu0 0
    %9817 = vmatpush1.bf16.msra.mxu0 %v6875
    %9818 = vmatprep.subr.bf16.mxu0 0
    %9819 = vmatpush1.bf16.msra.mxu0 %v6874
    %9820 = vmatprep.subr.bf16.mxu0 0
    %9821 = vmatpush1.bf16.msra.mxu0 %v6873
    %9822 = vmatprep.subr.bf16.mxu0 0
    %9823 = vmatpush1.bf16.msra.mxu0 %v6872
    %9824 = vmatprep.subr.bf16.mxu0 0
    %9825 = vmatpush1.bf16.msra.mxu0 %v6871
    %9826 = vmatprep.subr.bf16.mxu0 0
    %9827 = vmatpush2.bf16.msra.mxu0 %v6886
    %9828 = vmatprep.subr.bf16.mxu0 0
    %9829 = vmatpush2.bf16.msra.mxu0 %v6885
    %9830 = vmatprep.subr.bf16.mxu0 0
    %9831 = vmatpush2.bf16.msra.mxu0 %v6884
    %9832 = vmatprep.subr.bf16.mxu0 0
    %9833 = vmatpush2.bf16.msra.mxu0 %v6883
    %9834 = vmatprep.subr.bf16.mxu0 0
    %9835 = vmatpush2.bf16.msra.mxu0 %v6882
    %9836 = vmatprep.subr.bf16.mxu0 0
    %9837 = vmatpush2.bf16.msra.mxu0 %v6881
    %9838 = vmatprep.subr.bf16.mxu0 0
    %9839 = vmatpush2.bf16.msra.mxu0 %v6880
    %9840 = vmatprep.subr.bf16.mxu0 0
    %9841 = vmatpush2.bf16.msra.mxu0 %v6879
    %9842 = vmatprep.mubr.bf16.mxu0 %v2271
    %9843 = vmatmul.mubr.bf16.gmra.mxu0 %v2270
    %v9844 = vpop.f32.mrf.mxu0
    %v9845 = vadd.f32 %v9805, %v9844
    %v9846 = vpop.f32.mrf.mxu0
    %v9847 = vpop.f32.mrf.mxu0
    %v9848 = vpop.f32.mrf.mxu0
    %9849 = vdwg.mxu0
    %9850 = vmatprep.subr.bf16.mxu0 0
    %9851 = vmatpush1.bf16.msra.mxu0 %v6894
    %9852 = vmatprep.subr.bf16.mxu0 0
    %9853 = vmatpush1.bf16.msra.mxu0 %v6893
    %9854 = vmatprep.subr.bf16.mxu0 0
    %9855 = vmatpush1.bf16.msra.mxu0 %v6892
    %9856 = vmatprep.subr.bf16.mxu0 0
    %9857 = vmatpush1.bf16.msra.mxu0 %v6891
    %9858 = vmatprep.subr.bf16.mxu0 0
    %9859 = vmatpush1.bf16.msra.mxu0 %v6890
    %9860 = vmatprep.subr.bf16.mxu0 0
    %9861 = vmatpush1.bf16.msra.mxu0 %v6889
    %9862 = vmatprep.subr.bf16.mxu0 0
    %9863 = vmatpush1.bf16.msra.mxu0 %v6888
    %9864 = vmatprep.subr.bf16.mxu0 0
    %9865 = vmatpush1.bf16.msra.mxu0 %v6887
    %9866 = vmatprep.subr.bf16.mxu0 0
    %9867 = vmatpush2.bf16.msra.mxu0 %v6902
    %9868 = vmatprep.subr.bf16.mxu0 0
    %9869 = vmatpush2.bf16.msra.mxu0 %v6901
    %9870 = vmatprep.subr.bf16.mxu0 0
    %9871 = vmatpush2.bf16.msra.mxu0 %v6900
    %9872 = vmatprep.subr.bf16.mxu0 0
    %9873 = vmatpush2.bf16.msra.mxu0 %v6899
    %9874 = vmatprep.subr.bf16.mxu0 0
    %9875 = vmatpush2.bf16.msra.mxu0 %v6898
    %9876 = vmatprep.subr.bf16.mxu0 0
    %9877 = vmatpush2.bf16.msra.mxu0 %v6897
    %9878 = vmatprep.subr.bf16.mxu0 0
    %9879 = vmatpush2.bf16.msra.mxu0 %v6896
    %9880 = vmatprep.subr.bf16.mxu0 0
    %9881 = vmatpush2.bf16.msra.mxu0 %v6895
    %9882 = vmatprep.mubr.bf16.mxu0 %v2273
    %9883 = vmatmul.mubr.bf16.gmra.mxu0 %v2272
    %v9884 = vpop.f32.mrf.mxu0
    %v9885 = vadd.f32 %v9845, %v9884
    %v9886 = vpop.f32.mrf.mxu0
    %v9887 = vpop.f32.mrf.mxu0
    %v9888 = vpop.f32.mrf.mxu0
    %9889 = vdwg.mxu0
    %9890 = vmatprep.subr.bf16.mxu0 0
    %9891 = vmatpush1.bf16.msra.mxu0 %v6910
    %9892 = vmatprep.subr.bf16.mxu0 0
    %9893 = vmatpush1.bf16.msra.mxu0 %v6909
    %9894 = vmatprep.subr.bf16.mxu0 0
    %9895 = vmatpush1.bf16.msra.mxu0 %v6908
    %9896 = vmatprep.subr.bf16.mxu0 0
    %9897 = vmatpush1.bf16.msra.mxu0 %v6907
    %9898 = vmatprep.subr.bf16.mxu0 0
    %9899 = vmatpush1.bf16.msra.mxu0 %v6906
    %9900 = vmatprep.subr.bf16.mxu0 0
    %9901 = vmatpush1.bf16.msra.mxu0 %v6905
    %9902 = vmatprep.subr.bf16.mxu0 0
    %9903 = vmatpush1.bf16.msra.mxu0 %v6904
    %9904 = vmatprep.subr.bf16.mxu0 0
    %9905 = vmatpush1.bf16.msra.mxu0 %v6903
    %9906 = vmatprep.subr.bf16.mxu0 0
    %9907 = vmatpush2.bf16.msra.mxu0 %v6918
    %9908 = vmatprep.subr.bf16.mxu0 0
    %9909 = vmatpush2.bf16.msra.mxu0 %v6917
    %9910 = vmatprep.subr.bf16.mxu0 0
    %9911 = vmatpush2.bf16.msra.mxu0 %v6916
    %9912 = vmatprep.subr.bf16.mxu0 0
    %9913 = vmatpush2.bf16.msra.mxu0 %v6915
    %9914 = vmatprep.subr.bf16.mxu0 0
    %9915 = vmatpush2.bf16.msra.mxu0 %v6914
    %9916 = vmatprep.subr.bf16.mxu0 0
    %9917 = vmatpush2.bf16.msra.mxu0 %v6913
    %9918 = vmatprep.subr.bf16.mxu0 0
    %9919 = vmatpush2.bf16.msra.mxu0 %v6912
    %9920 = vmatprep.subr.bf16.mxu0 0
    %9921 = vmatpush2.bf16.msra.mxu0 %v6911
    %9922 = vmatprep.mubr.bf16.mxu0 %v2275
    %9923 = vmatmul.mubr.bf16.gmra.mxu0 %v2274
    %v9924 = vpop.f32.mrf.mxu0
    %v9925 = vadd.f32 %v9885, %v9924
    %v9926 = vpop.f32.mrf.mxu0
    %v9927 = vpop.f32.mrf.mxu0
    %v9928 = vpop.f32.mrf.mxu0
    %9929 = vdwg.mxu0
    %9930 = vmatprep.subr.bf16.mxu0 0
    %9931 = vmatpush1.bf16.msra.mxu0 %v6926
    %9932 = vmatprep.subr.bf16.mxu0 0
    %9933 = vmatpush1.bf16.msra.mxu0 %v6925
    %9934 = vmatprep.subr.bf16.mxu0 0
    %9935 = vmatpush1.bf16.msra.mxu0 %v6924
    %9936 = vmatprep.subr.bf16.mxu0 0
    %9937 = vmatpush1.bf16.msra.mxu0 %v6923
    %9938 = vmatprep.subr.bf16.mxu0 0
    %9939 = vmatpush1.bf16.msra.mxu0 %v6922
    %9940 = vmatprep.subr.bf16.mxu0 0
    %9941 = vmatpush1.bf16.msra.mxu0 %v6921
    %9942 = vmatprep.subr.bf16.mxu0 0
    %9943 = vmatpush1.bf16.msra.mxu0 %v6920
    %9944 = vmatprep.subr.bf16.mxu0 0
    %9945 = vmatpush1.bf16.msra.mxu0 %v6919
    %9946 = vmatprep.subr.bf16.mxu0 0
    %9947 = vmatpush2.bf16.msra.mxu0 %v6934
    %9948 = vmatprep.subr.bf16.mxu0 0
    %9949 = vmatpush2.bf16.msra.mxu0 %v6933
    %9950 = vmatprep.subr.bf16.mxu0 0
    %9951 = vmatpush2.bf16.msra.mxu0 %v6932
    %9952 = vmatprep.subr.bf16.mxu0 0
    %9953 = vmatpush2.bf16.msra.mxu0 %v6931
    %9954 = vmatprep.subr.bf16.mxu0 0
    %9955 = vmatpush2.bf16.msra.mxu0 %v6930
    %9956 = vmatprep.subr.bf16.mxu0 0
    %9957 = vmatpush2.bf16.msra.mxu0 %v6929
    %9958 = vmatprep.subr.bf16.mxu0 0
    %9959 = vmatpush2.bf16.msra.mxu0 %v6928
    %9960 = vmatprep.subr.bf16.mxu0 0
    %9961 = vmatpush2.bf16.msra.mxu0 %v6927
    %9962 = vmatprep.mubr.bf16.mxu0 %v2277
    %9963 = vmatmul.mubr.bf16.gmra.mxu0 %v2276
    %v9964 = vpop.f32.mrf.mxu0
    %v9965 = vadd.f32 %v9925, %v9964
    %v9966 = vpop.f32.mrf.mxu0
    %v9967 = vpop.f32.mrf.mxu0
    %v9968 = vpop.f32.mrf.mxu0
    %9969 = vdwg.mxu0
    %9970 = vmatprep.subr.bf16.mxu0 0
    %9971 = vmatpush1.bf16.msra.mxu0 %v6942
    %9972 = vmatprep.subr.bf16.mxu0 0
    %9973 = vmatpush1.bf16.msra.mxu0 %v6941
    %9974 = vmatprep.subr.bf16.mxu0 0
    %9975 = vmatpush1.bf16.msra.mxu0 %v6940
    %9976 = vmatprep.subr.bf16.mxu0 0
    %9977 = vmatpush1.bf16.msra.mxu0 %v6939
    %9978 = vmatprep.subr.bf16.mxu0 0
    %9979 = vmatpush1.bf16.msra.mxu0 %v6938
    %9980 = vmatprep.subr.bf16.mxu0 0
    %9981 = vmatpush1.bf16.msra.mxu0 %v6937
    %9982 = vmatprep.subr.bf16.mxu0 0
    %9983 = vmatpush1.bf16.msra.mxu0 %v6936
    %9984 = vmatprep.subr.bf16.mxu0 0
    %9985 = vmatpush1.bf16.msra.mxu0 %v6935
    %9986 = vmatprep.subr.bf16.mxu0 0
    %9987 = vmatpush2.bf16.msra.mxu0 %v6950
    %9988 = vmatprep.subr.bf16.mxu0 0
    %9989 = vmatpush2.bf16.msra.mxu0 %v6949
    %9990 = vmatprep.subr.bf16.mxu0 0
    %9991 = vmatpush2.bf16.msra.mxu0 %v6948
    %9992 = vmatprep.subr.bf16.mxu0 0
    %9993 = vmatpush2.bf16.msra.mxu0 %v6947
    %9994 = vmatprep.subr.bf16.mxu0 0
    %9995 = vmatpush2.bf16.msra.mxu0 %v6946
    %9996 = vmatprep.subr.bf16.mxu0 0
    %9997 = vmatpush2.bf16.msra.mxu0 %v6945
    %9998 = vmatprep.subr.bf16.mxu0 0
    %9999 = vmatpush2.bf16.msra.mxu0 %v6944
    %10000 = vmatprep.subr.bf16.mxu0 0
    %10001 = vmatpush2.bf16.msra.mxu0 %v6943
    %10002 = vmatprep.mubr.bf16.mxu0 %v2279
    %10003 = vmatmul.mubr.bf16.gmra.mxu0 %v2278
    %v10004 = vpop.f32.mrf.mxu0
    %v10005 = vadd.f32 %v9965, %v10004
    %v10006 = vpop.f32.mrf.mxu0
    %v10007 = vpop.f32.mrf.mxu0
    %v10008 = vpop.f32.mrf.mxu0
    %10009 = vdwg.mxu0
    %10010 = vmatprep.subr.bf16.mxu0 0
    %10011 = vmatpush1.bf16.msra.mxu0 %v6958
    %10012 = vmatprep.subr.bf16.mxu0 0
    %10013 = vmatpush1.bf16.msra.mxu0 %v6957
    %10014 = vmatprep.subr.bf16.mxu0 0
    %10015 = vmatpush1.bf16.msra.mxu0 %v6956
    %10016 = vmatprep.subr.bf16.mxu0 0
    %10017 = vmatpush1.bf16.msra.mxu0 %v6955
    %10018 = vmatprep.subr.bf16.mxu0 0
    %10019 = vmatpush1.bf16.msra.mxu0 %v6954
    %10020 = vmatprep.subr.bf16.mxu0 0
    %10021 = vmatpush1.bf16.msra.mxu0 %v6953
    %10022 = vmatprep.subr.bf16.mxu0 0
    %10023 = vmatpush1.bf16.msra.mxu0 %v6952
    %10024 = vmatprep.subr.bf16.mxu0 0
    %10025 = vmatpush1.bf16.msra.mxu0 %v6951
    %10026 = vmatprep.subr.bf16.mxu0 0
    %10027 = vmatpush2.bf16.msra.mxu0 %v6966
    %10028 = vmatprep.subr.bf16.mxu0 0
    %10029 = vmatpush2.bf16.msra.mxu0 %v6965
    %10030 = vmatprep.subr.bf16.mxu0 0
    %10031 = vmatpush2.bf16.msra.mxu0 %v6964
    %10032 = vmatprep.subr.bf16.mxu0 0
    %10033 = vmatpush2.bf16.msra.mxu0 %v6963
    %10034 = vmatprep.subr.bf16.mxu0 0
    %10035 = vmatpush2.bf16.msra.mxu0 %v6962
    %10036 = vmatprep.subr.bf16.mxu0 0
    %10037 = vmatpush2.bf16.msra.mxu0 %v6961
    %10038 = vmatprep.subr.bf16.mxu0 0
    %10039 = vmatpush2.bf16.msra.mxu0 %v6960
    %10040 = vmatprep.subr.bf16.mxu0 0
    %10041 = vmatpush2.bf16.msra.mxu0 %v6959
    %10042 = vmatprep.mubr.bf16.mxu0 %v2281
    %10043 = vmatmul.mubr.bf16.gmra.mxu0 %v2280
    %v10044 = vpop.f32.mrf.mxu0
    %v10045 = vadd.f32 %v10005, %v10044
    %v10046 = vpop.f32.mrf.mxu0
    %v10047 = vpop.f32.mrf.mxu0
    %v10048 = vpop.f32.mrf.mxu0
    %10049 = vdwg.mxu0
    %10050 = vmatprep.subr.bf16.mxu0 0
    %10051 = vmatpush1.bf16.msra.mxu0 %v6974
    %10052 = vmatprep.subr.bf16.mxu0 0
    %10053 = vmatpush1.bf16.msra.mxu0 %v6973
    %10054 = vmatprep.subr.bf16.mxu0 0
    %10055 = vmatpush1.bf16.msra.mxu0 %v6972
    %10056 = vmatprep.subr.bf16.mxu0 0
    %10057 = vmatpush1.bf16.msra.mxu0 %v6971
    %10058 = vmatprep.subr.bf16.mxu0 0
    %10059 = vmatpush1.bf16.msra.mxu0 %v6970
    %10060 = vmatprep.subr.bf16.mxu0 0
    %10061 = vmatpush1.bf16.msra.mxu0 %v6969
    %10062 = vmatprep.subr.bf16.mxu0 0
    %10063 = vmatpush1.bf16.msra.mxu0 %v6968
    %10064 = vmatprep.subr.bf16.mxu0 0
    %10065 = vmatpush1.bf16.msra.mxu0 %v6967
    %10066 = vmatprep.subr.bf16.mxu0 0
    %10067 = vmatpush2.bf16.msra.mxu0 %v6982
    %10068 = vmatprep.subr.bf16.mxu0 0
    %10069 = vmatpush2.bf16.msra.mxu0 %v6981
    %10070 = vmatprep.subr.bf16.mxu0 0
    %10071 = vmatpush2.bf16.msra.mxu0 %v6980
    %10072 = vmatprep.subr.bf16.mxu0 0
    %10073 = vmatpush2.bf16.msra.mxu0 %v6979
    %10074 = vmatprep.subr.bf16.mxu0 0
    %10075 = vmatpush2.bf16.msra.mxu0 %v6978
    %10076 = vmatprep.subr.bf16.mxu0 0
    %10077 = vmatpush2.bf16.msra.mxu0 %v6977
    %10078 = vmatprep.subr.bf16.mxu0 0
    %10079 = vmatpush2.bf16.msra.mxu0 %v6976
    %10080 = vmatprep.subr.bf16.mxu0 0
    %10081 = vmatpush2.bf16.msra.mxu0 %v6975
    %10082 = vmatprep.mubr.bf16.mxu0 %v2283
    %10083 = vmatmul.mubr.bf16.gmra.mxu0 %v2282
    %v10084 = vpop.f32.mrf.mxu0
    %v10085 = vadd.f32 %v10045, %v10084
    %v10086 = vpop.f32.mrf.mxu0
    %v10087 = vpop.f32.mrf.mxu0
    %v10088 = vpop.f32.mrf.mxu0
    %10089 = vdwg.mxu0
    %10090 = vmatprep.subr.bf16.mxu0 0
    %10091 = vmatpush1.bf16.msra.mxu0 %v6990
    %10092 = vmatprep.subr.bf16.mxu0 0
    %10093 = vmatpush1.bf16.msra.mxu0 %v6989
    %10094 = vmatprep.subr.bf16.mxu0 0
    %10095 = vmatpush1.bf16.msra.mxu0 %v6988
    %10096 = vmatprep.subr.bf16.mxu0 0
    %10097 = vmatpush1.bf16.msra.mxu0 %v6987
    %10098 = vmatprep.subr.bf16.mxu0 0
    %10099 = vmatpush1.bf16.msra.mxu0 %v6986
    %10100 = vmatprep.subr.bf16.mxu0 0
    %10101 = vmatpush1.bf16.msra.mxu0 %v6985
    %10102 = vmatprep.subr.bf16.mxu0 0
    %10103 = vmatpush1.bf16.msra.mxu0 %v6984
    %10104 = vmatprep.subr.bf16.mxu0 0
    %10105 = vmatpush1.bf16.msra.mxu0 %v6983
    %10106 = vmatprep.subr.bf16.mxu0 0
    %10107 = vmatpush2.bf16.msra.mxu0 %v6998
    %10108 = vmatprep.subr.bf16.mxu0 0
    %10109 = vmatpush2.bf16.msra.mxu0 %v6997
    %10110 = vmatprep.subr.bf16.mxu0 0
    %10111 = vmatpush2.bf16.msra.mxu0 %v6996
    %10112 = vmatprep.subr.bf16.mxu0 0
    %10113 = vmatpush2.bf16.msra.mxu0 %v6995
    %10114 = vmatprep.subr.bf16.mxu0 0
    %10115 = vmatpush2.bf16.msra.mxu0 %v6994
    %10116 = vmatprep.subr.bf16.mxu0 0
    %10117 = vmatpush2.bf16.msra.mxu0 %v6993
    %10118 = vmatprep.subr.bf16.mxu0 0
    %10119 = vmatpush2.bf16.msra.mxu0 %v6992
    %10120 = vmatprep.subr.bf16.mxu0 0
    %10121 = vmatpush2.bf16.msra.mxu0 %v6991
    %10122 = vmatprep.mubr.bf16.mxu0 %v2285
    %10123 = vmatmul.mubr.bf16.gmra.mxu0 %v2284
    %v10124 = vpop.f32.mrf.mxu0
    %v10125 = vadd.f32 %v10085, %v10124
    %v10126 = vpop.f32.mrf.mxu0
    %v10127 = vpop.f32.mrf.mxu0
    %v10128 = vpop.f32.mrf.mxu0
    %10129 = vdwg.mxu0
    %10130 = vmatprep.subr.bf16.mxu0 0
    %10131 = vmatpush1.bf16.msra.mxu0 %v7006
    %10132 = vmatprep.subr.bf16.mxu0 0
    %10133 = vmatpush1.bf16.msra.mxu0 %v7005
    %10134 = vmatprep.subr.bf16.mxu0 0
    %10135 = vmatpush1.bf16.msra.mxu0 %v7004
    %10136 = vmatprep.subr.bf16.mxu0 0
    %10137 = vmatpush1.bf16.msra.mxu0 %v7003
    %10138 = vmatprep.subr.bf16.mxu0 0
    %10139 = vmatpush1.bf16.msra.mxu0 %v7002
    %10140 = vmatprep.subr.bf16.mxu0 0
    %10141 = vmatpush1.bf16.msra.mxu0 %v7001
    %10142 = vmatprep.subr.bf16.mxu0 0
    %10143 = vmatpush1.bf16.msra.mxu0 %v7000
    %10144 = vmatprep.subr.bf16.mxu0 0
    %10145 = vmatpush1.bf16.msra.mxu0 %v6999
    %10146 = vmatprep.subr.bf16.mxu0 0
    %10147 = vmatpush2.bf16.msra.mxu0 %v7014
    %10148 = vmatprep.subr.bf16.mxu0 0
    %10149 = vmatpush2.bf16.msra.mxu0 %v7013
    %10150 = vmatprep.subr.bf16.mxu0 0
    %10151 = vmatpush2.bf16.msra.mxu0 %v7012
    %10152 = vmatprep.subr.bf16.mxu0 0
    %10153 = vmatpush2.bf16.msra.mxu0 %v7011
    %10154 = vmatprep.subr.bf16.mxu0 0
    %10155 = vmatpush2.bf16.msra.mxu0 %v7010
    %10156 = vmatprep.subr.bf16.mxu0 0
    %10157 = vmatpush2.bf16.msra.mxu0 %v7009
    %10158 = vmatprep.subr.bf16.mxu0 0
    %10159 = vmatpush2.bf16.msra.mxu0 %v7008
    %10160 = vmatprep.subr.bf16.mxu0 0
    %10161 = vmatpush2.bf16.msra.mxu0 %v7007
    %10162 = vmatprep.mubr.bf16.mxu0 %v2287
    %10163 = vmatmul.mubr.bf16.gmra.mxu0 %v2286
    %v10164 = vpop.f32.mrf.mxu0
    %v10165 = vadd.f32 %v10125, %v10164
    %v10166 = vpop.f32.mrf.mxu0
    %v10167 = vpop.f32.mrf.mxu0
    %v10168 = vpop.f32.mrf.mxu0
    %10169 = vdwg.mxu0
    %10170 = vmatprep.subr.bf16.mxu0 0
    %10171 = vmatpush1.bf16.msra.mxu0 %v7022
    %10172 = vmatprep.subr.bf16.mxu0 0
    %10173 = vmatpush1.bf16.msra.mxu0 %v7021
    %10174 = vmatprep.subr.bf16.mxu0 0
    %10175 = vmatpush1.bf16.msra.mxu0 %v7020
    %10176 = vmatprep.subr.bf16.mxu0 0
    %10177 = vmatpush1.bf16.msra.mxu0 %v7019
    %10178 = vmatprep.subr.bf16.mxu0 0
    %10179 = vmatpush1.bf16.msra.mxu0 %v7018
    %10180 = vmatprep.subr.bf16.mxu0 0
    %10181 = vmatpush1.bf16.msra.mxu0 %v7017
    %10182 = vmatprep.subr.bf16.mxu0 0
    %10183 = vmatpush1.bf16.msra.mxu0 %v7016
    %10184 = vmatprep.subr.bf16.mxu0 0
    %10185 = vmatpush1.bf16.msra.mxu0 %v7015
    %10186 = vmatprep.subr.bf16.mxu0 0
    %10187 = vmatpush2.bf16.msra.mxu0 %v7030
    %10188 = vmatprep.subr.bf16.mxu0 0
    %10189 = vmatpush2.bf16.msra.mxu0 %v7029
    %10190 = vmatprep.subr.bf16.mxu0 0
    %10191 = vmatpush2.bf16.msra.mxu0 %v7028
    %10192 = vmatprep.subr.bf16.mxu0 0
    %10193 = vmatpush2.bf16.msra.mxu0 %v7027
    %10194 = vmatprep.subr.bf16.mxu0 0
    %10195 = vmatpush2.bf16.msra.mxu0 %v7026
    %10196 = vmatprep.subr.bf16.mxu0 0
    %10197 = vmatpush2.bf16.msra.mxu0 %v7025
    %10198 = vmatprep.subr.bf16.mxu0 0
    %10199 = vmatpush2.bf16.msra.mxu0 %v7024
    %10200 = vmatprep.subr.bf16.mxu0 0
    %10201 = vmatpush2.bf16.msra.mxu0 %v7023
    %10202 = vmatprep.mubr.bf16.mxu0 %v2289
    %10203 = vmatmul.mubr.bf16.gmra.mxu0 %v2288
    %v10204 = vpop.f32.mrf.mxu0
    %v10205 = vadd.f32 %v10165, %v10204
    %v10206 = vpop.f32.mrf.mxu0
    %v10207 = vpop.f32.mrf.mxu0
    %v10208 = vpop.f32.mrf.mxu0
    %10209 = vdwg.mxu0
    %10210 = vmatprep.subr.bf16.mxu0 0
    %10211 = vmatpush1.bf16.msra.mxu0 %v7038
    %10212 = vmatprep.subr.bf16.mxu0 0
    %10213 = vmatpush1.bf16.msra.mxu0 %v7037
    %10214 = vmatprep.subr.bf16.mxu0 0
    %10215 = vmatpush1.bf16.msra.mxu0 %v7036
    %10216 = vmatprep.subr.bf16.mxu0 0
    %10217 = vmatpush1.bf16.msra.mxu0 %v7035
    %10218 = vmatprep.subr.bf16.mxu0 0
    %10219 = vmatpush1.bf16.msra.mxu0 %v7034
    %10220 = vmatprep.subr.bf16.mxu0 0
    %10221 = vmatpush1.bf16.msra.mxu0 %v7033
    %10222 = vmatprep.subr.bf16.mxu0 0
    %10223 = vmatpush1.bf16.msra.mxu0 %v7032
    %10224 = vmatprep.subr.bf16.mxu0 0
    %10225 = vmatpush1.bf16.msra.mxu0 %v7031
    %10226 = vmatprep.subr.bf16.mxu0 0
    %10227 = vmatpush2.bf16.msra.mxu0 %v7046
    %10228 = vmatprep.subr.bf16.mxu0 0
    %10229 = vmatpush2.bf16.msra.mxu0 %v7045
    %10230 = vmatprep.subr.bf16.mxu0 0
    %10231 = vmatpush2.bf16.msra.mxu0 %v7044
    %10232 = vmatprep.subr.bf16.mxu0 0
    %10233 = vmatpush2.bf16.msra.mxu0 %v7043
    %10234 = vmatprep.subr.bf16.mxu0 0
    %10235 = vmatpush2.bf16.msra.mxu0 %v7042
    %10236 = vmatprep.subr.bf16.mxu0 0
    %10237 = vmatpush2.bf16.msra.mxu0 %v7041
    %10238 = vmatprep.subr.bf16.mxu0 0
    %10239 = vmatpush2.bf16.msra.mxu0 %v7040
    %10240 = vmatprep.subr.bf16.mxu0 0
    %10241 = vmatpush2.bf16.msra.mxu0 %v7039
    %10242 = vmatprep.mubr.bf16.mxu0 %v2291
    %10243 = vmatmul.mubr.bf16.gmra.mxu0 %v2290
    %v10244 = vpop.f32.mrf.mxu0
    %v10245 = vadd.f32 %v10205, %v10244
    %v10246 = vpop.f32.mrf.mxu0
    %v10247 = vpop.f32.mrf.mxu0
    %v10248 = vpop.f32.mrf.mxu0
    %10249 = vdwg.mxu0
    %10250 = vmatprep.subr.bf16.mxu0 0
    %10251 = vmatpush1.bf16.msra.mxu0 %v7054
    %10252 = vmatprep.subr.bf16.mxu0 0
    %10253 = vmatpush1.bf16.msra.mxu0 %v7053
    %10254 = vmatprep.subr.bf16.mxu0 0
    %10255 = vmatpush1.bf16.msra.mxu0 %v7052
    %10256 = vmatprep.subr.bf16.mxu0 0
    %10257 = vmatpush1.bf16.msra.mxu0 %v7051
    %10258 = vmatprep.subr.bf16.mxu0 0
    %10259 = vmatpush1.bf16.msra.mxu0 %v7050
    %10260 = vmatprep.subr.bf16.mxu0 0
    %10261 = vmatpush1.bf16.msra.mxu0 %v7049
    %10262 = vmatprep.subr.bf16.mxu0 0
    %10263 = vmatpush1.bf16.msra.mxu0 %v7048
    %10264 = vmatprep.subr.bf16.mxu0 0
    %10265 = vmatpush1.bf16.msra.mxu0 %v7047
    %10266 = vmatprep.subr.bf16.mxu0 0
    %10267 = vmatpush2.bf16.msra.mxu0 %v7062
    %10268 = vmatprep.subr.bf16.mxu0 0
    %10269 = vmatpush2.bf16.msra.mxu0 %v7061
    %10270 = vmatprep.subr.bf16.mxu0 0
    %10271 = vmatpush2.bf16.msra.mxu0 %v7060
    %10272 = vmatprep.subr.bf16.mxu0 0
    %10273 = vmatpush2.bf16.msra.mxu0 %v7059
    %10274 = vmatprep.subr.bf16.mxu0 0
    %10275 = vmatpush2.bf16.msra.mxu0 %v7058
    %10276 = vmatprep.subr.bf16.mxu0 0
    %10277 = vmatpush2.bf16.msra.mxu0 %v7057
    %10278 = vmatprep.subr.bf16.mxu0 0
    %10279 = vmatpush2.bf16.msra.mxu0 %v7056
    %10280 = vmatprep.subr.bf16.mxu0 0
    %10281 = vmatpush2.bf16.msra.mxu0 %v7055
    %10282 = vmatprep.mubr.bf16.mxu0 %v2293
    %10283 = vmatmul.mubr.bf16.gmra.mxu0 %v2292
    %v10284 = vpop.f32.mrf.mxu0
    %v10285 = vadd.f32 %v10245, %v10284
    %v10286 = vpop.f32.mrf.mxu0
    %v10287 = vpop.f32.mrf.mxu0
    %v10288 = vpop.f32.mrf.mxu0
    %10289 = vdwg.mxu0
    %10290 = vmatprep.subr.bf16.mxu0 0
    %10291 = vmatpush1.bf16.msra.mxu0 %v7070
    %10292 = vmatprep.subr.bf16.mxu0 0
    %10293 = vmatpush1.bf16.msra.mxu0 %v7069
    %10294 = vmatprep.subr.bf16.mxu0 0
    %10295 = vmatpush1.bf16.msra.mxu0 %v7068
    %10296 = vmatprep.subr.bf16.mxu0 0
    %10297 = vmatpush1.bf16.msra.mxu0 %v7067
    %10298 = vmatprep.subr.bf16.mxu0 0
    %10299 = vmatpush1.bf16.msra.mxu0 %v7066
    %10300 = vmatprep.subr.bf16.mxu0 0
    %10301 = vmatpush1.bf16.msra.mxu0 %v7065
    %10302 = vmatprep.subr.bf16.mxu0 0
    %10303 = vmatpush1.bf16.msra.mxu0 %v7064
    %10304 = vmatprep.subr.bf16.mxu0 0
    %10305 = vmatpush1.bf16.msra.mxu0 %v7063
    %10306 = vmatprep.subr.bf16.mxu0 0
    %10307 = vmatpush2.bf16.msra.mxu0 %v7078
    %10308 = vmatprep.subr.bf16.mxu0 0
    %10309 = vmatpush2.bf16.msra.mxu0 %v7077
    %10310 = vmatprep.subr.bf16.mxu0 0
    %10311 = vmatpush2.bf16.msra.mxu0 %v7076
    %10312 = vmatprep.subr.bf16.mxu0 0
    %10313 = vmatpush2.bf16.msra.mxu0 %v7075
    %10314 = vmatprep.subr.bf16.mxu0 0
    %10315 = vmatpush2.bf16.msra.mxu0 %v7074
    %10316 = vmatprep.subr.bf16.mxu0 0
    %10317 = vmatpush2.bf16.msra.mxu0 %v7073
    %10318 = vmatprep.subr.bf16.mxu0 0
    %10319 = vmatpush2.bf16.msra.mxu0 %v7072
    %10320 = vmatprep.subr.bf16.mxu0 0
    %10321 = vmatpush2.bf16.msra.mxu0 %v7071
    %10322 = vmatprep.mubr.bf16.mxu0 %v2295
    %10323 = vmatmul.mubr.bf16.gmra.mxu0 %v2294
    %v10324 = vpop.f32.mrf.mxu0
    %v10325 = vadd.f32 %v10285, %v10324
    %v10326 = vpop.f32.mrf.mxu0
    %v10327 = vpop.f32.mrf.mxu0
    %v10328 = vpop.f32.mrf.mxu0
    %10329 = vdwg.mxu0
    %10330 = vmatprep.subr.bf16.mxu0 0
    %10331 = vmatpush1.bf16.msra.mxu0 %v7086
    %10332 = vmatprep.subr.bf16.mxu0 0
    %10333 = vmatpush1.bf16.msra.mxu0 %v7085
    %10334 = vmatprep.subr.bf16.mxu0 0
    %10335 = vmatpush1.bf16.msra.mxu0 %v7084
    %10336 = vmatprep.subr.bf16.mxu0 0
    %10337 = vmatpush1.bf16.msra.mxu0 %v7083
    %10338 = vmatprep.subr.bf16.mxu0 0
    %10339 = vmatpush1.bf16.msra.mxu0 %v7082
    %10340 = vmatprep.subr.bf16.mxu0 0
    %10341 = vmatpush1.bf16.msra.mxu0 %v7081
    %10342 = vmatprep.subr.bf16.mxu0 0
    %10343 = vmatpush1.bf16.msra.mxu0 %v7080
    %10344 = vmatprep.subr.bf16.mxu0 0
    %10345 = vmatpush1.bf16.msra.mxu0 %v7079
    %10346 = vmatprep.subr.bf16.mxu0 0
    %10347 = vmatpush2.bf16.msra.mxu0 %v7094
    %10348 = vmatprep.subr.bf16.mxu0 0
    %10349 = vmatpush2.bf16.msra.mxu0 %v7093
    %10350 = vmatprep.subr.bf16.mxu0 0
    %10351 = vmatpush2.bf16.msra.mxu0 %v7092
    %10352 = vmatprep.subr.bf16.mxu0 0
    %10353 = vmatpush2.bf16.msra.mxu0 %v7091
    %10354 = vmatprep.subr.bf16.mxu0 0
    %10355 = vmatpush2.bf16.msra.mxu0 %v7090
    %10356 = vmatprep.subr.bf16.mxu0 0
    %10357 = vmatpush2.bf16.msra.mxu0 %v7089
    %10358 = vmatprep.subr.bf16.mxu0 0
    %10359 = vmatpush2.bf16.msra.mxu0 %v7088
    %10360 = vmatprep.subr.bf16.mxu0 0
    %10361 = vmatpush2.bf16.msra.mxu0 %v7087
    %10362 = vmatprep.mubr.bf16.mxu0 %v2297
    %10363 = vmatmul.mubr.bf16.gmra.mxu0 %v2296
    %v10364 = vpop.f32.mrf.mxu0
    %v10365 = vadd.f32 %v10325, %v10364
    %v10366 = vpop.f32.mrf.mxu0
    %v10367 = vpop.f32.mrf.mxu0
    %v10368 = vpop.f32.mrf.mxu0
    %10369 = vdwg.mxu0
    %10370 = vmatprep.subr.bf16.mxu0 0
    %10371 = vmatpush1.bf16.msra.mxu0 %v7102
    %10372 = vmatprep.subr.bf16.mxu0 0
    %10373 = vmatpush1.bf16.msra.mxu0 %v7101
    %10374 = vmatprep.subr.bf16.mxu0 0
    %10375 = vmatpush1.bf16.msra.mxu0 %v7100
    %10376 = vmatprep.subr.bf16.mxu0 0
    %10377 = vmatpush1.bf16.msra.mxu0 %v7099
    %10378 = vmatprep.subr.bf16.mxu0 0
    %10379 = vmatpush1.bf16.msra.mxu0 %v7098
    %10380 = vmatprep.subr.bf16.mxu0 0
    %10381 = vmatpush1.bf16.msra.mxu0 %v7097
    %10382 = vmatprep.subr.bf16.mxu0 0
    %10383 = vmatpush1.bf16.msra.mxu0 %v7096
    %10384 = vmatprep.subr.bf16.mxu0 0
    %10385 = vmatpush1.bf16.msra.mxu0 %v7095
    %10386 = vmatprep.subr.bf16.mxu0 0
    %10387 = vmatpush2.bf16.msra.mxu0 0
    %10388 = vmatprep.subr.bf16.mxu0 0
    %10389 = vmatpush2.bf16.msra.mxu0 0
    %10390 = vmatprep.subr.bf16.mxu0 0
    %10391 = vmatpush2.bf16.msra.mxu0 0
    %10392 = vmatprep.subr.bf16.mxu0 0
    %10393 = vmatpush2.bf16.msra.mxu0 0
    %10394 = vmatprep.subr.bf16.mxu0 0
    %10395 = vmatpush2.bf16.msra.mxu0 0
    %10396 = vmatprep.subr.bf16.mxu0 0
    %10397 = vmatpush2.bf16.msra.mxu0 0
    %10398 = vmatprep.subr.bf16.mxu0 0
    %10399 = vmatpush2.bf16.msra.mxu0 %v8048
    %10400 = vmatprep.subr.bf16.mxu0 0
    %10401 = vmatpush2.bf16.msra.mxu0 %v7103
    %10402 = vmatprep.mubr.bf16.mxu0 %v8044
    %10403 = vmatmul.mubr.bf16.gmra.mxu0 %v2298
    %v10404 = vpop.f32.mrf.mxu0
    %v10405 = vadd.f32 %v10365, %v10404
    %v10406 = vpop.f32.mrf.mxu0
    %v10407 = vpop.f32.mrf.mxu0
    %v10408 = vpop.f32.mrf.mxu0
    %10409 = vdwg.mxu0
    %v10410 = vmax.f32 %v10405, 0.0
    %v10411 = vld [vmem:[%s3] sm:$0xff]
    %v10412 = vld [vmem:[%s3 + $0x8] sm:$0xff]
    %v10413 = vld [vmem:[%s3 + $0x10] sm:$0xff]
    %v10414 = vld [vmem:[%s3 + $0x18] sm:$0xff]
    %v10415 = vld [vmem:[%s3 + $0x20] sm:$0xff]
    %v10416 = vld [vmem:[%s3 + $0x28] sm:$0xff]
    %v10417 = vld [vmem:[%s3 + $0x30] sm:$0xff]
    %v10418 = vld [vmem:[%s3 + $0x38] sm:$0xff]
    %v10419 = vld [vmem:[%s3 + $0x40] sm:$0xff]
    %v10420 = vld [vmem:[%s3 + $0x48] sm:$0xff]
    %v10421 = vld [vmem:[%s3 + $0x50] sm:$0xff]
    %v10422 = vld [vmem:[%s3 + $0x58] sm:$0xff]
    %v10423 = vld [vmem:[%s3 + $0x60] sm:$0xff]
    %v10424 = vld [vmem:[%s3 + $0x68] sm:$0xff]
    %v10425 = vld [vmem:[%s3 + $0x70] sm:$0xff]
    %v10426 = vld [vmem:[%s3 + $0x78] sm:$0xff]
    %v10427 = vld [vmem:[#allocation7] sm:$0x1]
    %v10429 = vlaneseq
    %v10430 = vshrl.u32 %v10429, 7
    %v10431 = vsub.s32 0, %v10430
    %v10432 = vrot.slane %v10427, %v10431
    %10434 = vmatprep.subr.mxu0 0.0
    %10435 = vmatpush1.msra.mxu0 %v10426
    %10436 = vmatprep.subr.mxu0 0.0
    %10437 = vmatpush1.msra.mxu0 %v10425
    %10438 = vmatprep.subr.mxu0 0.0
    %10439 = vmatpush1.msra.mxu0 %v10424
    %10440 = vmatprep.subr.mxu0 0.0
    %10441 = vmatpush1.msra.mxu0 %v10423
    %10442 = vmatprep.subr.mxu0 0.0
    %10443 = vmatpush1.msra.mxu0 %v10422
    %10444 = vmatprep.subr.mxu0 0.0
    %10445 = vmatpush1.msra.mxu0 %v10421
    %10446 = vmatprep.subr.mxu0 0.0
    %10447 = vmatpush1.msra.mxu0 %v10420
    %10448 = vmatprep.subr.mxu0 0.0
    %10449 = vmatpush1.msra.mxu0 %v10419
    %10450 = vmatprep.subr.mxu0 0.0
    %10451 = vmatpush1.msra.mxu0 %v10418
    %10452 = vmatprep.subr.mxu0 0.0
    %10453 = vmatpush1.msra.mxu0 %v10417
    %10454 = vmatprep.subr.mxu0 0.0
    %10455 = vmatpush1.msra.mxu0 %v10416
    %10456 = vmatprep.subr.mxu0 0.0
    %10457 = vmatpush1.msra.mxu0 %v10415
    %10458 = vmatprep.subr.mxu0 0.0
    %10459 = vmatpush1.msra.mxu0 %v10414
    %10460 = vmatprep.subr.mxu0 0.0
    %10461 = vmatpush1.msra.mxu0 %v10413
    %10462 = vmatprep.subr.mxu0 0.0
    %10463 = vmatpush1.msra.mxu0 %v10412
    %10464 = vmatprep.subr.mxu0 0.0
    %10465 = vmatpush1.msra.mxu0 %v10411
    %10466 = vmatprep.subr.mxu0 0.0
    %10467 = vmatpush2.msra.mxu0 0.0
    %10468 = vmatprep.subr.mxu0 0.0
    %10469 = vmatpush2.msra.mxu0 0.0
    %10470 = vmatprep.subr.mxu0 0.0
    %10471 = vmatpush2.msra.mxu0 0.0
    %10472 = vmatprep.subr.mxu0 0.0
    %10473 = vmatpush2.msra.mxu0 0.0
    %10474 = vmatprep.subr.mxu0 0.0
    %10475 = vmatpush2.msra.mxu0 0.0
    %10476 = vmatprep.subr.mxu0 0.0
    %10477 = vmatpush2.msra.mxu0 0.0
    %10478 = vmatprep.subr.mxu0 0.0
    %10479 = vmatpush2.msra.mxu0 0.0
    %10480 = vmatprep.subr.mxu0 0.0
    %10481 = vmatpush2.msra.mxu0 0.0
    %10482 = vmatprep.subr.mxu0 0.0
    %10483 = vmatpush2.msra.mxu0 0.0
    %10484 = vmatprep.subr.mxu0 0.0
    %10485 = vmatpush2.msra.mxu0 0.0
    %10486 = vmatprep.subr.mxu0 0.0
    %10487 = vmatpush2.msra.mxu0 0.0
    %10488 = vmatprep.subr.mxu0 0.0
    %10489 = vmatpush2.msra.mxu0 0.0
    %10490 = vmatprep.subr.mxu0 0.0
    %10491 = vmatpush2.msra.mxu0 0.0
    %10492 = vmatprep.subr.mxu0 0.0
    %10493 = vmatpush2.msra.mxu0 0.0
    %10494 = vmatprep.subr.mxu0 0.0
    %10495 = vmatpush2.msra.mxu0 0.0
    %10496 = vmatprep.subr.mxu0 0.0
    %10497 = vmatpush2.msra.mxu0 0.0
    %10498 = vmatprep.mubr.f32.mxu0 0.0
    %10499 = vmatmul.mubr.f32.gmra.mxu0 %v10410
    %v10500 = vpop.f32.mrf.mxu0
    %v10501 = vadd.f32 %v10432, %v10500
    %v10502 = vpop.f32.mrf.mxu0
    %10503 = vdwg.mxu0
    %vm10504 = vcmask 15360
    %10505 = vst.msk [vmem:[%s5] sm:$0xff] %vm10504, %v10501
    // Predicated region
    $region38: #{tpu_custom_call.1} parent=1 // pred_check
      _
    $region39: #{tpu_custom_call.1} parent=1 // pred_check_branch
      %10507 = sbr.rel (0) target = $region41
    $region40: #{tpu_custom_call.1} parent=1 // pred_region
      _
    $region41: #{tpu_custom_call.1} parent=1 // pred_fallthru
      _
    // Predicated region
    $region42: #{tpu_custom_call.1} parent=1 // pred_check
      _
    $region43: #{tpu_custom_call.1} parent=1 // pred_check_branch
      %10509 = sbr.rel (0) target = $region45
    $region44: #{tpu_custom_call.1} parent=1 // pred_region
      _
    $region45: #{tpu_custom_call.1} parent=1 // pred_fallthru
      _
    %10510 = vsyncpa [#allocation3], 1
    %10511 = vsyncpa [#allocation5], 1
    %10512 = vsyncpa [#allocation8], 1

</llo_original>
